<compile_context>
chip_gen: v6e
topology: v6e:2x2x1
jax: 0.10.0
libtpu: 0.0.40
codegen_flags: <defaults>
</compile_context>

<pallas_src>
import functools
import math

import numpy as np
import jax
import jax.numpy as jnp
from jax import lax
from jax.experimental import pallas as pl
from jax.experimental.pallas import tpu as pltpu


def _dft_matrices(N, f_pad):
    """Lane-concatenated DFT / inverse-DFT matrices for row-wise (c, n) signals.

    fdft (N, 2*f_pad):  x_cn @ fdft -> [Re | Im] of rfft (norm='backward')
    idft (2*f_pad, N):  [Re | Im] @ idft -> irfft(n=N, norm='ortho')
    Columns / rows >= fbins inside each half are zero padding and contribute
    nothing downstream.
    """
    fbins = N // 2 + 1
    ang = 2.0 * np.pi * np.outer(np.arange(N), np.arange(fbins)) / N    # (N, fbins)
    cos, sin = np.cos(ang), np.sin(ang)

    fdft = np.zeros((N, 2 * f_pad), np.float32)
    fdft[:, :fbins] = cos
    fdft[:, f_pad:f_pad + fbins] = -sin

    w = np.full(fbins, 2.0)
    w[0] = 1.0
    if N % 2 == 0:
        w[-1] = 1.0                       # DC / Nyquist imag parts are ignored, like irfft
    idft = np.zeros((2 * f_pad, N), np.float32)
    idft[:fbins, :] = (cos * w / np.sqrt(N)).T
    idft[f_pad:f_pad + fbins, :] = (-sin * w / np.sqrt(N)).T
    return fdft, idft


def _pick_batch_tile(B, C, max_rows=512):
    """Returns (bt, B_padded): rows = bt*C fills the MXU M-dim while keeping at
    least two grid steps (megacore) when B allows; awkward/prime B is padded up
    instead of silently collapsing to bt=1."""
    bt_cap = max(1, min(max_rows // max(C, 1), B))
    if B >= 2:
        bt_cap = min(bt_cap, max(1, B // 2))          # keep >= 2 grid steps
    best_div = max(bt for bt in range(1, bt_cap + 1) if B % bt == 0)
    if 2 * best_div >= bt_cap:                         # divisor is good enough
        return best_div, B
    bt = bt_cap
    return bt, ((B + bt - 1) // bt) * bt               # pad B up to a multiple of bt


def _vmem_limit_bytes(resident_bytes):
    """Footprint-derived VMEM request, clamped to a generation-safe cap."""
    cap = 48 * 1024 * 1024                             # safe everywhere (v7x: 64 MiB/TC)
    try:
        cap = min(int(pltpu.get_tpu_info().vmem_capacity_bytes * 3 // 4),
                  100 * 1024 * 1024)                   # roomier on v5e/v6e (128 MiB)
    except Exception:                                  # no TPU visible / interpret mode
        pass
    return int(min(max(2 * resident_bytes, 32 * 1024 * 1024), cap))


def _spectral_kernel(x_ref, wkv_ref, bdc_ref, fdft_ref, idft_ref, o_ref, ctx_sc,
                     *, bt, C, f_pad, q_scale, compute_dtype, precision,
                     approx_softmax):
    f32 = jnp.float32

    # Forward rfft (norm='backward') of every (b, c) row: ONE fused matmul
    # producing [Re | Im] lane-concatenated halves.
    x = x_ref[...].astype(compute_dtype)                                   # (rows, N)
    xri = jnp.dot(x, fdft_ref[...], precision=precision,
                  preferred_element_type=f32)                              # (rows, 2*f_pad)

    wkv = wkv_ref[...].astype(compute_dtype)                               # (2C, C) = [W_K; W_V]
    bdc = bdc_ref[...]                                                     # (2C, f_pad), DC col only

    dn_t = (((1,), (1,)), ((), ()))                                        # A @ B^T (contract freq)

    for b in range(bt):                                                    # small static loop
        r0 = b * C
        xr_b = xri[r0:r0 + C, :f_pad].astype(compute_dtype)                # (C, f_pad)  Re
        xi_b = xri[r0:r0 + C, f_pad:].astype(compute_dtype)                # (C, f_pad)  Im

        # fc_K / fc_V applied in the frequency domain with the fused [W_K; W_V]
        # weight; the constant bias only touches the DC bin (pre-scaled by N).
        kv_re = jnp.dot(wkv, xr_b, precision=precision,
                        preferred_element_type=f32) + bdc                  # (2C, f_pad)
        kv_im = jnp.dot(wkv, xi_b, precision=precision,
                        preferred_element_type=f32)                        # (2C, f_pad)
        k_re, v_re = kv_re[:C], kv_re[C:]
        k_im, v_im = kv_im[:C], kv_im[C:]

        # Complex Q K^T (no conjugation), two row-stacked matmuls.
        # TODO(synk): if a bundle dump shows per-batch vxpose from the transposed
        # RHS, produce K/V directly as (f_pad, C) instead.
        q_ri = jnp.concatenate([xr_b, xi_b], axis=0)                       # (2C, f_pad) = [Qr; Qi]
        blk_r = lax.dot_general(q_ri, k_re.astype(compute_dtype), dn_t,
                                precision=precision,
                                preferred_element_type=f32)                # [Qr Kr^T; Qi Kr^T]
        blk_i = lax.dot_general(q_ri, k_im.astype(compute_dtype), dn_t,
                                precision=precision,
                                preferred_element_type=f32)                # [Qr Ki^T; Qi Ki^T]
        att_re = blk_r[:C] - blk_i[C:]
        att_im = blk_i[:C] + blk_r[C:]

        # softmax(|attention| * scale, axis=-1).  q_scale folds the ortho
        # 1/sqrt(N) of Q and the K.size(-1)**-0.5 scale into one (C,C) multiply.
        amag = jnp.sqrt(att_re * att_re + att_im * att_im) * q_scale
        amag = amag - jnp.max(amag, axis=-1, keepdims=True)
        p = jnp.exp(amag)
        denom = jnp.sum(p, axis=-1, keepdims=True)
        if approx_softmax:
            attn = p * pl.reciprocal(denom, approx=True)                   # fast EUP path
        else:
            attn = p / denom                                               # exact (default)

        # context = attention (real) @ V (complex), accumulated into VMEM scratch
        # (bounds the live set of the unrolled loop; no concatenate afterwards).
        attn_c = attn.astype(compute_dtype)
        ctx_sc[r0:r0 + C, :f_pad] = jnp.dot(attn_c, v_re.astype(compute_dtype),
                                            precision=precision,
                                            preferred_element_type=f32)
        ctx_sc[r0:r0 + C, f_pad:] = jnp.dot(attn_c, v_im.astype(compute_dtype),
                                            precision=precision,
                                            preferred_element_type=f32)

    # irfft(n=N, norm='ortho') of every row: ONE fused matmul, lane-dense store.
    out = jnp.dot(ctx_sc[...].astype(compute_dtype), idft_ref[...],
                  precision=precision, preferred_element_type=f32)
    o_ref[...] = out.astype(o_ref.dtype)                                   # (rows, N)


def adaptive_spectral_block_c(x, params, *, compute_dtype=jnp.float32,
                              approx_softmax=False):
    """x: (B, C, N) exactly as handed to the PyTorch module.  Returns (B, C, N).

    compute_dtype=jnp.bfloat16 casts every matmul operand (DFT matrices, channel
    mix, QK^T, attn@V) to bf16 with f32 accumulation: 2-3x MXU throughput and
    half the resident DFT footprint (recommended for large N / v7x).  The f32
    default keeps strict numerical parity with torch.fft / torch.softmax.
    """
    B, C, N = x.shape
    fbins = N // 2 + 1
    f_pad = max(128, ((fbins + 127) // 128) * 128)     # lane-dense frequency axis
    fdft, idft = _dft_matrices(N, f_pad)
    q_scale = (1.0 / math.sqrt(N)) * float(fbins) ** (-0.5)

    bt, B_pad = _pick_batch_tile(B, C)
    rows = bt * C

    strict = jnp.dtype(compute_dtype) == jnp.dtype(jnp.float32)
    precision = lax.Precision.HIGHEST if strict else lax.Precision.DEFAULT

    x_flat = x.reshape(B * C, N)                        # native dtype, no extra HBM pass
    if B_pad != B:
        pad = jnp.zeros(((B_pad - B) * C, N), x_flat.dtype)
        x_flat = jnp.concatenate([x_flat, pad], axis=0)

    w_kv = jnp.concatenate([params["W_K"], params["W_V"]], axis=0).astype(jnp.float32)
    bias = (float(N) * jnp.concatenate([params["b_K"], params["b_V"]])).astype(jnp.float32)
    b_dc = jnp.zeros((2 * C, f_pad), jnp.float32).at[:, 0].set(bias)   # rfft(const) = N*b at DC

    kernel = functools.partial(
        _spectral_kernel, bt=bt, C=C, f_pad=f_pad, q_scale=q_scale,
        compute_dtype=compute_dtype, precision=precision,
        approx_softmax=approx_softmax)

    dt_bytes = jnp.dtype(compute_dtype).itemsize
    x_bytes = jnp.dtype(x.dtype).itemsize
    resident = (2 * rows * N * x_bytes                       # x tile (double-buffered)
                + 2 * rows * N * x_bytes                     # out tile
                + 2 * 2 * N * 2 * f_pad * dt_bytes           # fdft + idft
                + 2 * (2 * C * C + 2 * C * f_pad) * 4        # wkv + bias
                + rows * 2 * f_pad * 4)                      # ctx scratch
    # TODO(synk): for very large N (4*N*f_pad*dt_bytes > ~1/3 VMEM) stream the DFT
    # matrices along the time axis with an inner pltpu.emit_pipeline instead of
    # keeping them fully resident (mandatory on v7x's 64 MiB well before v5e/v6e).

    flops_per_b = (2 * C * N * 2 * f_pad              # forward DFT
                   + 2 * 2 * (2 * C) * C * f_pad      # fused K/V channel mix (re+im)
                   + 2 * 2 * (2 * C) * C * f_pad      # complex Q K^T
                   + 2 * 2 * C * C * f_pad            # attention @ V (re+im)
                   + 2 * C * 2 * f_pad * N)           # inverse DFT
    cost = pl.CostEstimate(
        flops=int(B_pad * flops_per_b),
        transcendentals=int(B_pad * 2 * C * C),
        bytes_accessed=int(x_bytes * 2 * B_pad * C * N
                           + dt_bytes * 4 * N * f_pad
                           + 4 * (2 * C * C + 2 * C * f_pad)),
    )

    out_flat = pl.pallas_call(
        kernel,
        out_shape=jax.ShapeDtypeStruct((B_pad * C, N), x.dtype),
        grid_spec=pltpu.PrefetchScalarGridSpec(
            num_scalar_prefetch=0,
            grid=(B_pad // bt,),
            in_specs=[
                pl.BlockSpec((rows, N), lambda i: (i, 0)),            # x rows for this tile
                pl.BlockSpec((2 * C, C), lambda i: (0, 0)),           # [W_K; W_V]
                pl.BlockSpec((2 * C, f_pad), lambda i: (0, 0)),       # N*[b_K; b_V] at DC bin
                pl.BlockSpec((N, 2 * f_pad), lambda i: (0, 0)),       # [Re | Im] forward DFT
                pl.BlockSpec((2 * f_pad, N), lambda i: (0, 0)),       # [Re ; Im] inverse DFT
            ],
            out_specs=pl.BlockSpec((rows, N), lambda i: (i, 0)),
            scratch_shapes=[pltpu.VMEM((rows, 2 * f_pad), jnp.float32)],
        ),
        compiler_params=pltpu.CompilerParams(
            dimension_semantics=("parallel",),
            vmem_limit_bytes=_vmem_limit_bytes(resident),
        ),
        cost_estimate=cost,
    )(x_flat, w_kv, b_dc,
      jnp.asarray(fdft, dtype=compute_dtype), jnp.asarray(idft, dtype=compute_dtype))

    return out_flat[:B * C].reshape(B, C, N)


def _reference(x, params):
    """Pure-JAX reference mirroring the PyTorch forward (uses jnp.fft)."""
    dtype = x.dtype
    x_nc = jnp.transpose(x, (0, 2, 1)).astype(jnp.float32)   # (B, N, C)
    _, N, _ = x_nc.shape
    q = jnp.fft.rfft(x_nc, axis=1, norm="ortho")
    k = jnp.fft.rfft(x_nc @ params["W_K"].T + params["b_K"], axis=1)
    v = jnp.fft.rfft(x_nc @ params["W_V"].T + params["b_V"], axis=1)
    Q = jnp.transpose(q, (0, 2, 1))
    K = jnp.transpose(k, (0, 2, 1))
    V = jnp.transpose(v, (0, 2, 1))
    scale = K.shape[-1] ** (-0.5)
    att = jnp.einsum("bcf,bdf->bcd", Q, K) * scale
    att = jax.nn.softmax(jnp.abs(att), axis=-1).astype(jnp.complex64)
    ctx = jnp.transpose(jnp.einsum("bcd,bdf->bcf", att, V), (0, 2, 1))   # (B, F, C)
    out = jnp.fft.irfft(ctx, n=N, axis=1, norm="ortho")
    return jnp.transpose(out, (0, 2, 1)).astype(dtype)


if __name__ == "__main__":
    B, C, N = 2, 32, 16   # (batch, dim, seq) — the forward transposes to (B, N, C)
    key = jax.random.PRNGKey(0)
    kx, kwk, kbk, kwv, kbv, kcw, kcwh = jax.random.split(key, 7)
    bound = 1.0 / math.sqrt(C)
    params = {
        # fc_K / fc_V (the only parameters the forward pass actually uses)
        "W_K": jax.random.uniform(kwk, (C, C), jnp.float32, -bound, bound),
        "b_K": jax.random.uniform(kbk, (C,), jnp.float32, -bound, bound),
        "W_V": jax.random.uniform(kwv, (C, C), jnp.float32, -bound, bound),
        "b_V": jax.random.uniform(kbv, (C,), jnp.float32, -bound, bound),
        # Present in __init__ but never used by forward (kept for parameter fidelity):
        # complex_weight, complex_weight_high, fc_Q, fc
        "complex_weight": 0.02 * jax.random.normal(kcw, (C, 2), jnp.float32),
        "complex_weight_high": 0.02 * jax.random.normal(kcwh, (C, 2), jnp.float32),
    }
    x = jax.random.normal(kx, (B, C, N), jnp.float32)

    ref = jax.block_until_ready(_reference(x, params))

    # Strict-parity path (f32 operands, exact softmax division).
    out = jax.block_until_ready(adaptive_spectral_block_c(x, params))
    np.testing.assert_allclose(np.asarray(out), np.asarray(ref), rtol=2e-3, atol=2e-3)

    # bf16 fast path (all MXU operands bf16, f32 accumulation) — loose sanity check.
    out_bf16 = jax.block_until_ready(
        adaptive_spectral_block_c(x, params, compute_dtype=jnp.bfloat16))
    np.testing.assert_allclose(np.asarray(out_bf16), np.asarray(ref), rtol=1e-1, atol=1e-1)

    print("KERNEL_OK")
</pallas_src>

<mosaic_0001>
module attributes {stable_mosaic.version = 11 : i64} {
  func.func @_spectral_kernel(%arg0: i32, %arg1: memref<32x16xf32, #tpu.memory_space<vmem>>, %arg2: memref<64x32xf32, #tpu.memory_space<vmem>>, %arg3: memref<64x128xf32, #tpu.memory_space<vmem>>, %arg4: memref<16x256xf32, #tpu.memory_space<vmem>>, %arg5: memref<256x16xf32, #tpu.memory_space<vmem>>, %arg6: memref<32x16xf32, #tpu.memory_space<vmem>>, %arg7: memref<32x256xf32, #tpu.memory_space<vmem>>) attributes {dimension_semantics = [#tpu.dimension_semantics<parallel>], iteration_bounds = array<i64: 2>, scalar_prefetch = 0 : i64, scratch_operands = 1 : i64, tpu.core_type = #tpu.core_type<tc>, window_params = [{transform_indices = @transform_0, window_bounds = array<i64: 32, 16>}, {pipeline_mode = #tpu.pipeline_mode<synchronous>, transform_indices = @transform_1, window_bounds = array<i64: 64, 32>}, {pipeline_mode = #tpu.pipeline_mode<synchronous>, transform_indices = @transform_2, window_bounds = array<i64: 64, 128>}, {pipeline_mode = #tpu.pipeline_mode<synchronous>, transform_indices = @transform_3, window_bounds = array<i64: 16, 256>}, {pipeline_mode = #tpu.pipeline_mode<synchronous>, transform_indices = @transform_4, window_bounds = array<i64: 256, 16>}, {transform_indices = @transform_5, window_bounds = array<i64: 32, 16>}]} {
    %c0 = arith.constant 0 : index
    %c0_0 = arith.constant 0 : index
    %0 = vector.load %arg1[%c0, %c0_0] : memref<32x16xf32, #tpu.memory_space<vmem>>, vector<32x16xf32>
    %c0_1 = arith.constant 0 : index
    %c0_2 = arith.constant 0 : index
    %1 = vector.load %arg4[%c0_1, %c0_2] : memref<16x256xf32, #tpu.memory_space<vmem>>, vector<16x256xf32>
    %cst = arith.constant dense<0.000000e+00> : vector<32x256xf32>
    %2 = tpu.matmul %0, %1, %cst {dimension_numbers = #tpu.dot_dimension_numbers<[1], [0], [0], [1], [0, 0, 1, 1], [], []>, precision = #tpu.contract_precision<fp32>} : vector<32x16xf32>, vector<16x256xf32>, vector<32x256xf32> -> vector<32x256xf32>
    %c0_3 = arith.constant 0 : index
    %c0_4 = arith.constant 0 : index
    %3 = vector.load %arg2[%c0_3, %c0_4] : memref<64x32xf32, #tpu.memory_space<vmem>>, vector<64x32xf32>
    %c0_5 = arith.constant 0 : index
    %c0_6 = arith.constant 0 : index
    %4 = vector.load %arg3[%c0_5, %c0_6] : memref<64x128xf32, #tpu.memory_space<vmem>>, vector<64x128xf32>
    %5 = vector.extract_strided_slice %2 {offsets = [0, 0], sizes = [32, 128], strides = [1, 1]} : vector<32x256xf32> to vector<32x128xf32>
    %6 = vector.extract_strided_slice %2 {offsets = [0, 128], sizes = [32, 128], strides = [1, 1]} : vector<32x256xf32> to vector<32x128xf32>
    %cst_7 = arith.constant dense<0.000000e+00> : vector<64x128xf32>
    %7 = tpu.matmul %3, %5, %cst_7 {dimension_numbers = #tpu.dot_dimension_numbers<[1], [0], [0], [1], [0, 0, 1, 1], [], []>, precision = #tpu.contract_precision<fp32>} : vector<64x32xf32>, vector<32x128xf32>, vector<64x128xf32> -> vector<64x128xf32>
    %8 = arith.addf %7, %4 : vector<64x128xf32>
    %cst_8 = arith.constant dense<0.000000e+00> : vector<64x128xf32>
    %9 = tpu.matmul %3, %6, %cst_8 {dimension_numbers = #tpu.dot_dimension_numbers<[1], [0], [0], [1], [0, 0, 1, 1], [], []>, precision = #tpu.contract_precision<fp32>} : vector<64x32xf32>, vector<32x128xf32>, vector<64x128xf32> -> vector<64x128xf32>
    %10 = vector.extract_strided_slice %8 {offsets = [0, 0], sizes = [32, 128], strides = [1, 1]} : vector<64x128xf32> to vector<32x128xf32>
    %11 = vector.extract_strided_slice %8 {offsets = [32, 0], sizes = [32, 128], strides = [1, 1]} : vector<64x128xf32> to vector<32x128xf32>
    %12 = vector.extract_strided_slice %9 {offsets = [0, 0], sizes = [32, 128], strides = [1, 1]} : vector<64x128xf32> to vector<32x128xf32>
    %13 = vector.extract_strided_slice %9 {offsets = [32, 0], sizes = [32, 128], strides = [1, 1]} : vector<64x128xf32> to vector<32x128xf32>
    %14 = tpu.concatenate %5, %6 in 0 : vector<32x128xf32>, vector<32x128xf32> -> vector<64x128xf32>
    %cst_9 = arith.constant dense<0.000000e+00> : vector<64x32xf32>
    %15 = tpu.matmul %14, %10, %cst_9 {dimension_numbers = #tpu.dot_dimension_numbers<[1], [1], [0], [0], [0, 0, 1, 0], [], []>, precision = #tpu.contract_precision<fp32>} : vector<64x128xf32>, vector<32x128xf32>, vector<64x32xf32> -> vector<64x32xf32>
    %cst_10 = arith.constant dense<0.000000e+00> : vector<64x32xf32>
    %16 = tpu.matmul %14, %12, %cst_10 {dimension_numbers = #tpu.dot_dimension_numbers<[1], [1], [0], [0], [0, 0, 1, 0], [], []>, precision = #tpu.contract_precision<fp32>} : vector<64x128xf32>, vector<32x128xf32>, vector<64x32xf32> -> vector<64x32xf32>
    %17 = vector.extract_strided_slice %15 {offsets = [0, 0], sizes = [32, 32], strides = [1, 1]} : vector<64x32xf32> to vector<32x32xf32>
    %18 = vector.extract_strided_slice %16 {offsets = [32, 0], sizes = [32, 32], strides = [1, 1]} : vector<64x32xf32> to vector<32x32xf32>
    %19 = arith.subf %17, %18 : vector<32x32xf32>
    %20 = vector.extract_strided_slice %16 {offsets = [0, 0], sizes = [32, 32], strides = [1, 1]} : vector<64x32xf32> to vector<32x32xf32>
    %21 = vector.extract_strided_slice %15 {offsets = [32, 0], sizes = [32, 32], strides = [1, 1]} : vector<64x32xf32> to vector<32x32xf32>
    %22 = arith.addf %20, %21 : vector<32x32xf32>
    %23 = arith.mulf %19, %19 : vector<32x32xf32>
    %24 = arith.mulf %22, %22 : vector<32x32xf32>
    %25 = arith.addf %23, %24 : vector<32x32xf32>
    %26 = math.sqrt %25 : vector<32x32xf32>
    %cst_11 = arith.constant 0.0833333358 : f32
    %27 = vector.broadcast %cst_11 : f32 to vector<32x32xf32>
    %28 = arith.mulf %26, %27 : vector<32x32xf32>
    %cst_12 = arith.constant dense<0xFF800000> : vector<32xf32>
    %29 = vector.multi_reduction <maximumf>, %28, %cst_12 [1] : vector<32x32xf32> to vector<32xf32>
    %30 = vector.shape_cast %29 : vector<32xf32> to vector<32x1xf32>
    %31 = vector.broadcast %30 : vector<32x1xf32> to vector<32x32xf32>
    %32 = arith.subf %28, %31 : vector<32x32xf32>
    %33 = math.exp %32 : vector<32x32xf32>
    %cst_13 = arith.constant dense<0.000000e+00> : vector<32xf32>
    %34 = vector.multi_reduction <add>, %33, %cst_13 [1] : vector<32x32xf32> to vector<32xf32>
    %35 = vector.shape_cast %34 : vector<32xf32> to vector<32x1xf32>
    %36 = vector.broadcast %35 : vector<32x1xf32> to vector<32x32xf32>
    %37 = arith.divf %33, %36 : vector<32x32xf32>
    %cst_14 = arith.constant dense<0.000000e+00> : vector<32x128xf32>
    %38 = tpu.matmul %37, %11, %cst_14 {dimension_numbers = #tpu.dot_dimension_numbers<[1], [0], [0], [1], [0, 0, 1, 1], [], []>, precision = #tpu.contract_precision<fp32>} : vector<32x32xf32>, vector<32x128xf32>, vector<32x128xf32> -> vector<32x128xf32>
    %c0_15 = arith.constant 0 : index
    %c0_16 = arith.constant 0 : index
    %39 = vector.load %arg7[%c0_15, %c0_16] : memref<32x256xf32, #tpu.memory_space<vmem>>, vector<32x128xf32>
    tpu.vector_store %arg7[%c0_15, %c0_16], %38 {strides = array<i32>} : memref<32x256xf32, #tpu.memory_space<vmem>>, vector<32x128xf32>,
    %cst_17 = arith.constant dense<0.000000e+00> : vector<32x128xf32>
    %40 = tpu.matmul %37, %13, %cst_17 {dimension_numbers = #tpu.dot_dimension_numbers<[1], [0], [0], [1], [0, 0, 1, 1], [], []>, precision = #tpu.contract_precision<fp32>} : vector<32x32xf32>, vector<32x128xf32>, vector<32x128xf32> -> vector<32x128xf32>
    %c0_18 = arith.constant 0 : index
    %c128 = arith.constant 128 : index
    %41 = vector.load %arg7[%c0_18, %c128] : memref<32x256xf32, #tpu.memory_space<vmem>>, vector<32x128xf32>
    tpu.vector_store %arg7[%c0_18, %c128], %40 {strides = array<i32>} : memref<32x256xf32, #tpu.memory_space<vmem>>, vector<32x128xf32>,
    %c0_19 = arith.constant 0 : index
    %c0_20 = arith.constant 0 : index
    %42 = vector.load %arg7[%c0_19, %c0_20] : memref<32x256xf32, #tpu.memory_space<vmem>>, vector<32x256xf32>
    %c0_21 = arith.constant 0 : index
    %c0_22 = arith.constant 0 : index
    %43 = vector.load %arg5[%c0_21, %c0_22] : memref<256x16xf32, #tpu.memory_space<vmem>>, vector<256x16xf32>
    %cst_23 = arith.constant dense<0.000000e+00> : vector<32x16xf32>
    %44 = tpu.matmul %42, %43, %cst_23 {dimension_numbers = #tpu.dot_dimension_numbers<[1], [0], [0], [1], [0, 0, 1, 1], [], []>, precision = #tpu.contract_precision<fp32>} : vector<32x256xf32>, vector<256x16xf32>, vector<32x16xf32> -> vector<32x16xf32>
    %c0_24 = arith.constant 0 : index
    %c0_25 = arith.constant 0 : index
    %45 = vector.load %arg6[%c0_24, %c0_25] : memref<32x16xf32, #tpu.memory_space<vmem>>, vector<32x16xf32>
    tpu.vector_store %arg6[%c0_24, %c0_25], %44 {strides = array<i32>} : memref<32x16xf32, #tpu.memory_space<vmem>>, vector<32x16xf32>,
    return
  }
  func.func @transform_0(%arg0: i32) -> (i32, i32) {
    %c0_i32 = arith.constant 0 : i32
    %c0_i32_0 = arith.constant 0 : i32
    return %arg0, %c0_i32 : i32, i32
  }
  func.func @transform_1(%arg0: i32) -> (i32, i32) {
    %c0_i32 = arith.constant 0 : i32
    %c0_i32_0 = arith.constant 0 : i32
    %c0_i32_1 = arith.constant 0 : i32
    return %c0_i32, %c0_i32_0 : i32, i32
  }
  func.func @transform_2(%arg0: i32) -> (i32, i32) {
    %c0_i32 = arith.constant 0 : i32
    %c0_i32_0 = arith.constant 0 : i32
    %c0_i32_1 = arith.constant 0 : i32
    return %c0_i32, %c0_i32_0 : i32, i32
  }
  func.func @transform_3(%arg0: i32) -> (i32, i32) {
    %c0_i32 = arith.constant 0 : i32
    %c0_i32_0 = arith.constant 0 : i32
    %c0_i32_1 = arith.constant 0 : i32
    return %c0_i32, %c0_i32_0 : i32, i32
  }
  func.func @transform_4(%arg0: i32) -> (i32, i32) {
    %c0_i32 = arith.constant 0 : i32
    %c0_i32_0 = arith.constant 0 : i32
    %c0_i32_1 = arith.constant 0 : i32
    return %c0_i32, %c0_i32_0 : i32, i32
  }
  func.func @transform_5(%arg0: i32) -> (i32, i32) {
    %c0_i32 = arith.constant 0 : i32
    %c0_i32_0 = arith.constant 0 : i32
    return %arg0, %c0_i32 : i32, i32
  }
}

</mosaic_0001>

<llo_original>
// kernel: tpu_custom_call.1
$region0: #{tpu_custom_call.1}
  #allocation0 [shape = 'u32[]', space=smem, size = 0x4, offset = 0x4, fixed_abs, tag = 'smem constant byte address 0x4 - core index']
  #allocation1 [shape = 'u32[144,128]{1,0:T(1,128)}', space=vmem, size = 0x12000, scoped, tag = 'internal scratch']
  #allocation2 [shape = 'f32[32,256]{1,0:T(8,128)}', space=vmem, size = 0x8000, scoped, tag = 'scratch operand']
  %s0 = inlined_call_operand.vmem [shape: f32[64,16], index: 0, kind: input, shape index: {}]
  %s1 = inlined_call_operand.vmem [shape: f32[64,32], index: 1, kind: input, shape index: {}]
  %s2 = inlined_call_operand.vmem [shape: f32[64,128], index: 2, kind: input, shape index: {}]
  %s3 = inlined_call_operand.vmem [shape: f32[16,256], index: 3, kind: input, shape index: {}]
  %s4 = inlined_call_operand.vmem [shape: f32[256,16], index: 4, kind: input, shape index: {}]
  %s5 = inlined_call_operand.vmem [shape: f32[64,16], index: 5, kind: output, shape index: {}]
  %s6 = sld [smem:[#allocation0]]
  $region53: #{tpu_custom_call.1} parent=0
    _
  %s8 = ssub.s32 1, %s6
  %s9 = scalar_select 0, %s8, %s6
  loop: start=0, step=1, limit=4
  $region2: #{tpu_custom_call.1} parent=0 // loop_pre_header
    _
  $region3: #{tpu_custom_call.1} parent=0 // loop_header
    %s11 = sphi 0, %s15
    %p12 = scmp.ge.s32.totalorder %s11, 4
    %s21 = sphi 0, %s23
    %s24 = sphi 0, %s21
    %s25 = sphi 0, %s24
    %s41 = sphi 0, %s25
    %s45 = sphi 0, %s45
    %s47 = sphi 0, %s45
    %s48 = sphi 0, %s47
    %s62 = sphi 0, %s48
    %s66 = sphi 0, %s66
    %s68 = sphi 0, %s66
    %s69 = sphi 0, %s68
    %s83 = sphi 0, %s69
    %s87 = sphi 0, %s87
    %s89 = sphi 0, %s87
    %s90 = sphi 0, %s89
    %s104 = sphi 0, %s90
    %s108 = sphi 0, %s108
    %s110 = sphi 0, %s108
    %s111 = sphi 0, %s110
    %s125 = sphi 0, %s111
    %s131 = sphi 0, %s133
    %s134 = sphi 0, %s131
    %s135 = sphi 0, %s134
    %s151 = sphi 0, %s135
  $region4: #{tpu_custom_call.1} parent=0 // loop_header_branch
    %14 = sbr.rel (%p12) target = $region8
  $region5: #{tpu_custom_call.1} parent=0 // loop_body
    %s16 = ssub.s32 %s11, 1
    %s17 = ssub.s32 %s11, 2
    %s18 = sadd.s32 %s11, 1
    %s19 = ssub.s32 %s11, %s18
    %p20 = scmp.eq.s32.totalorder %s19, 0
    %s22 = sadd.s32 %s21, 1
    %s23 = scalar_select %p20, %s21, %s22
    %p26 = pneg %p20
    %p27 = scmp.eq.s32.totalorder %s11, 1
    %p28 = por %p26, %p27
    %p29 = scmp.ne.s32.totalorder %s21, %s24
    %p30 = scmp.eq.s32.totalorder %s11, 0
    %p31 = por %p29, %p30
    %p32 = scmp.ne.s32.totalorder %s21, %s24
    %p33 = scmp.eq.s32.totalorder %s16, 1
    %p34 = por %p32, %p33
    %p35 = scmp.ne.s32.totalorder %s24, %s25
    %p36 = scmp.eq.s32.totalorder %s16, 0
    %p37 = por %p35, %p36
    %p38 = scmp.ne.s32.totalorder %s24, %s25
    %p39 = scmp.eq.s32.totalorder %s17, 1
    %p40 = por %p38, %p39
    %p42 = scmp.ne.s32.totalorder %s25, %s41
    %p43 = scmp.eq.s32.totalorder %s17, 0
    %p44 = por %p42, %p43
    %s46 = sadd.s32 %s45, 1
    %p49 = scmp.eq.s32.totalorder %s11, 1
    %p50 = scmp.ne.s32.totalorder %s45, %s47
    %p51 = scmp.eq.s32.totalorder %s11, 0
    %p52 = por %p50, %p51
    %p53 = scmp.ne.s32.totalorder %s45, %s47
    %p54 = scmp.eq.s32.totalorder %s16, 1
    %p55 = por %p53, %p54
    %p56 = scmp.ne.s32.totalorder %s47, %s48
    %p57 = scmp.eq.s32.totalorder %s16, 0
    %p58 = por %p56, %p57
    %p59 = scmp.ne.s32.totalorder %s47, %s48
    %p60 = scmp.eq.s32.totalorder %s17, 1
    %p61 = por %p59, %p60
    %p63 = scmp.ne.s32.totalorder %s48, %s62
    %p64 = scmp.eq.s32.totalorder %s17, 0
    %p65 = por %p63, %p64
    %s67 = sadd.s32 %s66, 1
    %p70 = scmp.eq.s32.totalorder %s11, 1
    %p71 = scmp.ne.s32.totalorder %s66, %s68
    %p72 = scmp.eq.s32.totalorder %s11, 0
    %p73 = por %p71, %p72
    %p74 = scmp.ne.s32.totalorder %s66, %s68
    %p75 = scmp.eq.s32.totalorder %s16, 1
    %p76 = por %p74, %p75
    %p77 = scmp.ne.s32.totalorder %s68, %s69
    %p78 = scmp.eq.s32.totalorder %s16, 0
    %p79 = por %p77, %p78
    %p80 = scmp.ne.s32.totalorder %s68, %s69
    %p81 = scmp.eq.s32.totalorder %s17, 1
    %p82 = por %p80, %p81
    %p84 = scmp.ne.s32.totalorder %s69, %s83
    %p85 = scmp.eq.s32.totalorder %s17, 0
    %p86 = por %p84, %p85
    %s88 = sadd.s32 %s87, 1
    %p91 = scmp.eq.s32.totalorder %s11, 1
    %p92 = scmp.ne.s32.totalorder %s87, %s89
    %p93 = scmp.eq.s32.totalorder %s11, 0
    %p94 = por %p92, %p93
    %p95 = scmp.ne.s32.totalorder %s87, %s89
    %p96 = scmp.eq.s32.totalorder %s16, 1
    %p97 = por %p95, %p96
    %p98 = scmp.ne.s32.totalorder %s89, %s90
    %p99 = scmp.eq.s32.totalorder %s16, 0
    %p100 = por %p98, %p99
    %p101 = scmp.ne.s32.totalorder %s89, %s90
    %p102 = scmp.eq.s32.totalorder %s17, 1
    %p103 = por %p101, %p102
    %p105 = scmp.ne.s32.totalorder %s90, %s104
    %p106 = scmp.eq.s32.totalorder %s17, 0
    %p107 = por %p105, %p106
    %s109 = sadd.s32 %s108, 1
    %p112 = scmp.eq.s32.totalorder %s11, 1
    %p113 = scmp.ne.s32.totalorder %s108, %s110
    %p114 = scmp.eq.s32.totalorder %s11, 0
    %p115 = por %p113, %p114
    %p116 = scmp.ne.s32.totalorder %s108, %s110
    %p117 = scmp.eq.s32.totalorder %s16, 1
    %p118 = por %p116, %p117
    %p119 = scmp.ne.s32.totalorder %s110, %s111
    %p120 = scmp.eq.s32.totalorder %s16, 0
    %p121 = por %p119, %p120
    %p122 = scmp.ne.s32.totalorder %s110, %s111
    %p123 = scmp.eq.s32.totalorder %s17, 1
    %p124 = por %p122, %p123
    %p126 = scmp.ne.s32.totalorder %s111, %s125
    %p127 = scmp.eq.s32.totalorder %s17, 0
    %p128 = por %p126, %p127
    %s129 = ssub.s32 %s11, %s18
    %p130 = scmp.eq.s32.totalorder %s129, 0
    %s132 = sadd.s32 %s131, 1
    %s133 = scalar_select %p130, %s131, %s132
    %p136 = pneg %p130
    %p137 = scmp.eq.s32.totalorder %s11, 1
    %p138 = por %p136, %p137
    %p139 = scmp.ne.s32.totalorder %s131, %s134
    %p140 = scmp.eq.s32.totalorder %s11, 0
    %p141 = por %p139, %p140
    %p142 = scmp.ne.s32.totalorder %s131, %s134
    %p143 = scmp.eq.s32.totalorder %s16, 1
    %p144 = por %p142, %p143
    %p145 = scmp.ne.s32.totalorder %s134, %s135
    %p146 = scmp.eq.s32.totalorder %s16, 0
    %p147 = por %p145, %p146
    %p148 = scmp.ne.s32.totalorder %s134, %s135
    %p149 = scmp.eq.s32.totalorder %s17, 1
    %p150 = por %p148, %p149
    %p152 = scmp.ne.s32.totalorder %s135, %s151
    %p153 = scmp.eq.s32.totalorder %s17, 0
    %p154 = por %p152, %p153
    %p155 = scmp.le.s32.totalorder 1, %s11
    %p156 = scmp.lt.s32.totalorder %s11, 3
    %p157 = pnand %p155, %p156
    %p158 = pneg %p157
    // Predicated region
    $region9: #{tpu_custom_call.1} parent=5 // pred_check
      _
    $region10: #{tpu_custom_call.1} parent=5 // pred_check_branch
      %160 = sbr.rel (%p157) target = $region12
    $region11: #{tpu_custom_call.1} parent=5 // pred_region
      %s161 = ssub.s32 %s11, 1
      // Predicated region
      $region13: #{tpu_custom_call.1} parent=11 // pred_check
        %p162 = pneg %p58
      $region14: #{tpu_custom_call.1} parent=11 // pred_check_branch
        %164 = sbr.rel (%p162) target = $region16
      $region15: #{tpu_custom_call.1} parent=11 // pred_region
        _
      $region16: #{tpu_custom_call.1} parent=11 // pred_fallthru
        _
      // Predicated region
      $region17: #{tpu_custom_call.1} parent=11 // pred_check
        %p165 = pneg %p79
      $region18: #{tpu_custom_call.1} parent=11 // pred_check_branch
        %167 = sbr.rel (%p165) target = $region20
      $region19: #{tpu_custom_call.1} parent=11 // pred_region
        _
      $region20: #{tpu_custom_call.1} parent=11 // pred_fallthru
        _
      // Predicated region
      $region21: #{tpu_custom_call.1} parent=11 // pred_check
        %p168 = pneg %p100
      $region22: #{tpu_custom_call.1} parent=11 // pred_check_branch
        %170 = sbr.rel (%p168) target = $region24
      $region23: #{tpu_custom_call.1} parent=11 // pred_region
        _
      $region24: #{tpu_custom_call.1} parent=11 // pred_fallthru
        _
      // Predicated region
      $region25: #{tpu_custom_call.1} parent=11 // pred_check
        %p171 = pneg %p121
      $region26: #{tpu_custom_call.1} parent=11 // pred_check_branch
        %173 = sbr.rel (%p171) target = $region28
      $region27: #{tpu_custom_call.1} parent=11 // pred_region
        _
      $region28: #{tpu_custom_call.1} parent=11 // pred_fallthru
        _
    $region12: #{tpu_custom_call.1} parent=5 // pred_fallthru
      _
    %p174 = scmp.lt.s32.totalorder %s11, 2
    // Predicated region
    $region29: #{tpu_custom_call.1} parent=5 // pred_check
      %p175 = pneg %p174
    $region30: #{tpu_custom_call.1} parent=5 // pred_check_branch
      %177 = sbr.rel (%p175) target = $region32
    $region31: #{tpu_custom_call.1} parent=5 // pred_region
      // Predicated region
      $region33: #{tpu_custom_call.1} parent=31 // pred_check
        %p178 = pneg %p31
      $region34: #{tpu_custom_call.1} parent=31 // pred_check_branch
        %180 = sbr.rel (%p178) target = $region36
      $region35: #{tpu_custom_call.1} parent=31 // pred_region
        %s181 = smul.u32 4, %s11
        %p182 = scmp.lt.s32.totalorder %s181, 7
        %s183 = scalar_select %p182, %s181, 7
        %s184 = smul.addr %s183, 8
        %s185 = scalar_lea.vmem %s0, %s184
        %s186 = smul.u32 4, %s11
      $region36: #{tpu_custom_call.1} parent=31 // pred_fallthru
        _
    $region32: #{tpu_custom_call.1} parent=5 // pred_fallthru
      _
    %p187 = scmp.le.s32.totalorder 1, %s11
    %p188 = scmp.lt.s32.totalorder %s11, 3
    %p189 = pnand %p187, %p188
    %p190 = pneg %p189
    // Predicated region
    $region37: #{tpu_custom_call.1} parent=5 // pred_check
      _
    $region38: #{tpu_custom_call.1} parent=5 // pred_check_branch
      %192 = sbr.rel (%p189) target = $region40
    $region39: #{tpu_custom_call.1} parent=5 // pred_region
      %s193 = ssub.s32 %s11, 1
      %s194 = smul.u32 4, %s16
      %p195 = scmp.lt.s32.totalorder %s194, 7
      %s196 = scalar_select %p195, %s194, 7
      %s197 = smul.addr %s196, 8
      %s198 = scalar_lea.vmem %s0, %s197
      %p199 = pneg %p37
      %p200 = pneg %p34
      %p201 = pneg %p58
      %p202 = pneg %p55
      %p203 = pneg %p79
      %p204 = pneg %p76
      %p205 = pneg %p100
      %p206 = pneg %p97
      %p207 = pneg %p121
      %p208 = pneg %p118
      %p209 = pneg %p147
      %p210 = pneg %p144
      %s211 = smul.u32 4, %s16
      %p212 = scmp.lt.s32.totalorder %s211, 7
      %s213 = scalar_select %p212, %s211, 7
      %s214 = smul.addr %s213, 8
      %s215 = scalar_lea.vmem %s5, %s214
      %s216 = smul.u32 4, %s16
      %p217 = scmp.lt.s32.totalorder %s216, 7
      %s218 = scalar_select %p217, %s216, 7
      %s219 = smul.addr %s218, 8
      %s220 = scalar_lea.vmem %s0, %s219
      %s221 = smul.u32 4, %s16
      %s222 = smul.u32 4, %s16
      %p223 = scmp.lt.s32.totalorder %s222, 7
      %s224 = scalar_select %p223, %s222, 7
      %s225 = smul.addr %s224, 8
      %s226 = scalar_lea.vmem %s5, %s225
      %s227 = smul.u32 4, %s16
      %v228 = vld [vmem:[%s220] sm:$0xff]
      %v229 = vld [vmem:[%s220 + $0x8] sm:$0xff]
      %v230 = vld [vmem:[%s220 + $0x10] sm:$0xff]
      %v231 = vld [vmem:[%s220 + $0x18] sm:$0xff]
      %v232 = vld [vmem:[%s3] sm:$0xff]
      %v233 = vld [vmem:[%s3 + $0x8] sm:$0xff]
      %v234 = vld [vmem:[%s3 + $0x10] sm:$0xff]
      %v235 = vld [vmem:[%s3 + $0x18] sm:$0xff]
      %vm236 = vcmask 130048
      %v238 = vsel %vm236, %v228, 0
      %v241 = vsel %vm236, %v229, 0
      %v244 = vsel %vm236, %v230, 0
      %v247 = vsel %vm236, %v231, 0
      %249 = vmatprep.subr.mxu0 0.0
      %250 = vmatpush1.msra.mxu0 0.0
      %251 = vmatprep.subr.mxu0 0.0
      %252 = vmatpush1.msra.mxu0 0.0
      %253 = vmatprep.subr.mxu0 0.0
      %254 = vmatpush1.msra.mxu0 0.0
      %255 = vmatprep.subr.mxu0 0.0
      %256 = vmatpush1.msra.mxu0 0.0
      %257 = vmatprep.subr.mxu0 0.0
      %258 = vmatpush1.msra.mxu0 0.0
      %259 = vmatprep.subr.mxu0 0.0
      %260 = vmatpush1.msra.mxu0 0.0
      %261 = vmatprep.subr.mxu0 0.0
      %262 = vmatpush1.msra.mxu0 0.0
      %263 = vmatprep.subr.mxu0 0.0
      %264 = vmatpush1.msra.mxu0 0.0
      %265 = vmatprep.subr.mxu0 0.0
      %266 = vmatpush1.msra.mxu0 0.0
      %267 = vmatprep.subr.mxu0 0.0
      %268 = vmatpush1.msra.mxu0 0.0
      %269 = vmatprep.subr.mxu0 0.0
      %270 = vmatpush1.msra.mxu0 0.0
      %271 = vmatprep.subr.mxu0 0.0
      %272 = vmatpush1.msra.mxu0 0.0
      %273 = vmatprep.subr.mxu0 0.0
      %274 = vmatpush1.msra.mxu0 0.0
      %275 = vmatprep.subr.mxu0 0.0
      %276 = vmatpush1.msra.mxu0 0.0
      %v277 = vand.u32 %v235, 4294901760
      %278 = vmatprep.subr.mxu0 %v277
      %v279 = vand.u32 %v234, 4294901760
      %280 = vmatpush1.msra.mxu0 %v279
      %v281 = vand.u32 %v233, 4294901760
      %282 = vmatprep.subr.mxu0 %v281
      %v283 = vand.u32 %v232, 4294901760
      %284 = vmatpush1.msra.mxu0 %v283
      %285 = vmatprep.subr.mxu0 0.0
      %286 = vmatpush2.msra.mxu0 0.0
      %287 = vmatprep.subr.mxu0 0.0
      %288 = vmatpush2.msra.mxu0 0.0
      %289 = vmatprep.subr.mxu0 0.0
      %290 = vmatpush2.msra.mxu0 0.0
      %291 = vmatprep.subr.mxu0 0.0
      %292 = vmatpush2.msra.mxu0 0.0
      %293 = vmatprep.subr.mxu0 0.0
      %294 = vmatpush2.msra.mxu0 0.0
      %295 = vmatprep.subr.mxu0 0.0
      %296 = vmatpush2.msra.mxu0 0.0
      %297 = vmatprep.subr.mxu0 0.0
      %298 = vmatpush2.msra.mxu0 0.0
      %299 = vmatprep.subr.mxu0 0.0
      %300 = vmatpush2.msra.mxu0 0.0
      %301 = vmatprep.subr.mxu0 0.0
      %302 = vmatpush2.msra.mxu0 0.0
      %303 = vmatprep.subr.mxu0 0.0
      %304 = vmatpush2.msra.mxu0 0.0
      %305 = vmatprep.subr.mxu0 0.0
      %306 = vmatpush2.msra.mxu0 0.0
      %307 = vmatprep.subr.mxu0 0.0
      %308 = vmatpush2.msra.mxu0 0.0
      %309 = vmatprep.subr.mxu0 0.0
      %310 = vmatpush2.msra.mxu0 0.0
      %311 = vmatprep.subr.mxu0 0.0
      %312 = vmatpush2.msra.mxu0 0.0
      %313 = vmatprep.subr.mxu0 0.0
      %314 = vmatpush2.msra.mxu0 0.0
      %315 = vmatprep.subr.mxu0 0.0
      %316 = vmatpush2.msra.mxu0 0.0
      %317 = vmatprep.mubr.f32.mxu0 0.0
      %v318 = vand.u32 %v238, 4294901760
      %v319 = vsub.f32 %v238, %v318
      %v320 = vand.u32 %v319, 4294901760
      %v321 = vsub.f32 %v319, %v320
      %v322 = vand.u32 %v321, 4294901760
      %323 = vmatmul.mubr.f32.gmra.mxu0 %v322
      %v324 = vpop.f32.mrf.mxu0
      %v325 = vadd.f32 0.0, %v324
      %v326 = vpop.f32.mrf.mxu0
      %v327 = vadd.f32 0.0, %v326
      %328 = vmatprep.mubr.f32.mxu0 0.0
      %v329 = vand.u32 %v241, 4294901760
      %v330 = vsub.f32 %v241, %v329
      %v331 = vand.u32 %v330, 4294901760
      %v332 = vsub.f32 %v330, %v331
      %v333 = vand.u32 %v332, 4294901760
      %334 = vmatmul.mubr.f32.gmra.mxu0 %v333
      %v335 = vpop.f32.mrf.mxu0
      %v336 = vadd.f32 0.0, %v335
      %v337 = vpop.f32.mrf.mxu0
      %v338 = vadd.f32 0.0, %v337
      %339 = vmatprep.mubr.f32.mxu0 0.0
      %v340 = vand.u32 %v244, 4294901760
      %v341 = vsub.f32 %v244, %v340
      %v342 = vand.u32 %v341, 4294901760
      %v343 = vsub.f32 %v341, %v342
      %v344 = vand.u32 %v343, 4294901760
      %345 = vmatmul.mubr.f32.gmra.mxu0 %v344
      %v346 = vpop.f32.mrf.mxu0
      %v347 = vadd.f32 0.0, %v346
      %v348 = vpop.f32.mrf.mxu0
      %v349 = vadd.f32 0.0, %v348
      %350 = vmatprep.mubr.f32.mxu0 0.0
      %v351 = vand.u32 %v247, 4294901760
      %v352 = vsub.f32 %v247, %v351
      %v353 = vand.u32 %v352, 4294901760
      %v354 = vsub.f32 %v352, %v353
      %v355 = vand.u32 %v354, 4294901760
      %356 = vmatmul.mubr.f32.gmra.mxu0 %v355
      %v357 = vpop.f32.mrf.mxu0
      %v358 = vadd.f32 0.0, %v357
      %v359 = vpop.f32.mrf.mxu0
      %v360 = vadd.f32 0.0, %v359
      %361 = vdwg.mxu0
      %362 = vmatprep.subr.mxu0 0.0
      %363 = vmatpush1.msra.mxu0 0.0
      %364 = vmatprep.subr.mxu0 0.0
      %365 = vmatpush1.msra.mxu0 0.0
      %366 = vmatprep.subr.mxu0 0.0
      %367 = vmatpush1.msra.mxu0 0.0
      %368 = vmatprep.subr.mxu0 0.0
      %369 = vmatpush1.msra.mxu0 0.0
      %370 = vmatprep.subr.mxu0 0.0
      %371 = vmatpush1.msra.mxu0 0.0
      %372 = vmatprep.subr.mxu0 0.0
      %373 = vmatpush1.msra.mxu0 0.0
      %374 = vmatprep.subr.mxu0 0.0
      %375 = vmatpush1.msra.mxu0 0.0
      %376 = vmatprep.subr.mxu0 0.0
      %377 = vmatpush1.msra.mxu0 0.0
      %378 = vmatprep.subr.mxu0 0.0
      %379 = vmatpush1.msra.mxu0 0.0
      %380 = vmatprep.subr.mxu0 0.0
      %381 = vmatpush1.msra.mxu0 0.0
      %382 = vmatprep.subr.mxu0 0.0
      %383 = vmatpush1.msra.mxu0 0.0
      %384 = vmatprep.subr.mxu0 0.0
      %385 = vmatpush1.msra.mxu0 0.0
      %386 = vmatprep.subr.mxu0 0.0
      %387 = vmatpush1.msra.mxu0 0.0
      %388 = vmatprep.subr.mxu0 0.0
      %389 = vmatpush1.msra.mxu0 0.0
      %v390 = vand.u32 %v235, 4294901760
      %v391 = vsub.f32 %v235, %v390
      %v392 = vand.u32 %v391, 4294901760
      %v393 = vsub.f32 %v391, %v392
      %v394 = vand.u32 %v393, 4294901760
      %395 = vmatprep.subr.mxu0 %v394
      %v396 = vand.u32 %v234, 4294901760
      %v397 = vsub.f32 %v234, %v396
      %v398 = vand.u32 %v397, 4294901760
      %v399 = vsub.f32 %v397, %v398
      %v400 = vand.u32 %v399, 4294901760
      %401 = vmatpush1.msra.mxu0 %v400
      %v402 = vand.u32 %v233, 4294901760
      %v403 = vsub.f32 %v233, %v402
      %v404 = vand.u32 %v403, 4294901760
      %v405 = vsub.f32 %v403, %v404
      %v406 = vand.u32 %v405, 4294901760
      %407 = vmatprep.subr.mxu0 %v406
      %v408 = vand.u32 %v232, 4294901760
      %v409 = vsub.f32 %v232, %v408
      %v410 = vand.u32 %v409, 4294901760
      %v411 = vsub.f32 %v409, %v410
      %v412 = vand.u32 %v411, 4294901760
      %413 = vmatpush1.msra.mxu0 %v412
      %414 = vmatprep.subr.mxu0 0.0
      %415 = vmatpush2.msra.mxu0 0.0
      %416 = vmatprep.subr.mxu0 0.0
      %417 = vmatpush2.msra.mxu0 0.0
      %418 = vmatprep.subr.mxu0 0.0
      %419 = vmatpush2.msra.mxu0 0.0
      %420 = vmatprep.subr.mxu0 0.0
      %421 = vmatpush2.msra.mxu0 0.0
      %422 = vmatprep.subr.mxu0 0.0
      %423 = vmatpush2.msra.mxu0 0.0
      %424 = vmatprep.subr.mxu0 0.0
      %425 = vmatpush2.msra.mxu0 0.0
      %426 = vmatprep.subr.mxu0 0.0
      %427 = vmatpush2.msra.mxu0 0.0
      %428 = vmatprep.subr.mxu0 0.0
      %429 = vmatpush2.msra.mxu0 0.0
      %430 = vmatprep.subr.mxu0 0.0
      %431 = vmatpush2.msra.mxu0 0.0
      %432 = vmatprep.subr.mxu0 0.0
      %433 = vmatpush2.msra.mxu0 0.0
      %434 = vmatprep.subr.mxu0 0.0
      %435 = vmatpush2.msra.mxu0 0.0
      %436 = vmatprep.subr.mxu0 0.0
      %437 = vmatpush2.msra.mxu0 0.0
      %438 = vmatprep.subr.mxu0 0.0
      %439 = vmatpush2.msra.mxu0 0.0
      %440 = vmatprep.subr.mxu0 0.0
      %441 = vmatpush2.msra.mxu0 0.0
      %442 = vmatprep.subr.mxu0 0.0
      %443 = vmatpush2.msra.mxu0 0.0
      %444 = vmatprep.subr.mxu0 0.0
      %445 = vmatpush2.msra.mxu0 0.0
      %446 = vmatprep.mubr.f32.mxu0 0.0
      %v447 = vand.u32 %v238, 4294901760
      %448 = vmatmul.mubr.f32.gmra.mxu0 %v447
      %v449 = vpop.f32.mrf.mxu0
      %v450 = vadd.f32 %v325, %v449
      %v451 = vpop.f32.mrf.mxu0
      %v452 = vadd.f32 %v327, %v451
      %453 = vmatprep.mubr.f32.mxu0 0.0
      %v454 = vand.u32 %v241, 4294901760
      %455 = vmatmul.mubr.f32.gmra.mxu0 %v454
      %v456 = vpop.f32.mrf.mxu0
      %v457 = vadd.f32 %v336, %v456
      %v458 = vpop.f32.mrf.mxu0
      %v459 = vadd.f32 %v338, %v458
      %460 = vmatprep.mubr.f32.mxu0 0.0
      %v461 = vand.u32 %v244, 4294901760
      %462 = vmatmul.mubr.f32.gmra.mxu0 %v461
      %v463 = vpop.f32.mrf.mxu0
      %v464 = vadd.f32 %v347, %v463
      %v465 = vpop.f32.mrf.mxu0
      %v466 = vadd.f32 %v349, %v465
      %467 = vmatprep.mubr.f32.mxu0 0.0
      %v468 = vand.u32 %v247, 4294901760
      %469 = vmatmul.mubr.f32.gmra.mxu0 %v468
      %v470 = vpop.f32.mrf.mxu0
      %v471 = vadd.f32 %v358, %v470
      %v472 = vpop.f32.mrf.mxu0
      %v473 = vadd.f32 %v360, %v472
      %474 = vdwg.mxu0
      %475 = vmatprep.subr.mxu0 0.0
      %476 = vmatpush1.msra.mxu0 0.0
      %477 = vmatprep.subr.mxu0 0.0
      %478 = vmatpush1.msra.mxu0 0.0
      %479 = vmatprep.subr.mxu0 0.0
      %480 = vmatpush1.msra.mxu0 0.0
      %481 = vmatprep.subr.mxu0 0.0
      %482 = vmatpush1.msra.mxu0 0.0
      %483 = vmatprep.subr.mxu0 0.0
      %484 = vmatpush1.msra.mxu0 0.0
      %485 = vmatprep.subr.mxu0 0.0
      %486 = vmatpush1.msra.mxu0 0.0
      %487 = vmatprep.subr.mxu0 0.0
      %488 = vmatpush1.msra.mxu0 0.0
      %489 = vmatprep.subr.mxu0 0.0
      %490 = vmatpush1.msra.mxu0 0.0
      %491 = vmatprep.subr.mxu0 0.0
      %492 = vmatpush1.msra.mxu0 0.0
      %493 = vmatprep.subr.mxu0 0.0
      %494 = vmatpush1.msra.mxu0 0.0
      %495 = vmatprep.subr.mxu0 0.0
      %496 = vmatpush1.msra.mxu0 0.0
      %497 = vmatprep.subr.mxu0 0.0
      %498 = vmatpush1.msra.mxu0 0.0
      %499 = vmatprep.subr.mxu0 0.0
      %500 = vmatpush1.msra.mxu0 0.0
      %501 = vmatprep.subr.mxu0 0.0
      %502 = vmatpush1.msra.mxu0 0.0
      %v503 = vand.u32 %v235, 4294901760
      %v504 = vsub.f32 %v235, %v503
      %505 = vmatprep.subr.mxu0 %v504
      %v506 = vand.u32 %v234, 4294901760
      %v507 = vsub.f32 %v234, %v506
      %508 = vmatpush1.msra.mxu0 %v507
      %v509 = vand.u32 %v233, 4294901760
      %v510 = vsub.f32 %v233, %v509
      %511 = vmatprep.subr.mxu0 %v510
      %v512 = vand.u32 %v232, 4294901760
      %v513 = vsub.f32 %v232, %v512
      %514 = vmatpush1.msra.mxu0 %v513
      %515 = vmatprep.subr.mxu0 0.0
      %516 = vmatpush2.msra.mxu0 0.0
      %517 = vmatprep.subr.mxu0 0.0
      %518 = vmatpush2.msra.mxu0 0.0
      %519 = vmatprep.subr.mxu0 0.0
      %520 = vmatpush2.msra.mxu0 0.0
      %521 = vmatprep.subr.mxu0 0.0
      %522 = vmatpush2.msra.mxu0 0.0
      %523 = vmatprep.subr.mxu0 0.0
      %524 = vmatpush2.msra.mxu0 0.0
      %525 = vmatprep.subr.mxu0 0.0
      %526 = vmatpush2.msra.mxu0 0.0
      %527 = vmatprep.subr.mxu0 0.0
      %528 = vmatpush2.msra.mxu0 0.0
      %529 = vmatprep.subr.mxu0 0.0
      %530 = vmatpush2.msra.mxu0 0.0
      %531 = vmatprep.subr.mxu0 0.0
      %532 = vmatpush2.msra.mxu0 0.0
      %533 = vmatprep.subr.mxu0 0.0
      %534 = vmatpush2.msra.mxu0 0.0
      %535 = vmatprep.subr.mxu0 0.0
      %536 = vmatpush2.msra.mxu0 0.0
      %537 = vmatprep.subr.mxu0 0.0
      %538 = vmatpush2.msra.mxu0 0.0
      %539 = vmatprep.subr.mxu0 0.0
      %540 = vmatpush2.msra.mxu0 0.0
      %541 = vmatprep.subr.mxu0 0.0
      %542 = vmatpush2.msra.mxu0 0.0
      %543 = vmatprep.subr.mxu0 0.0
      %544 = vmatpush2.msra.mxu0 0.0
      %545 = vmatprep.subr.mxu0 0.0
      %546 = vmatpush2.msra.mxu0 0.0
      %547 = vmatprep.mubr.f32.mxu0 0.0
      %v548 = vand.u32 %v238, 4294901760
      %v549 = vsub.f32 %v238, %v548
      %550 = vmatmul.mubr.f32.gmra.mxu0 %v549
      %v551 = vpop.f32.mrf.mxu0
      %v552 = vadd.f32 %v450, %v551
      %v553 = vpop.f32.mrf.mxu0
      %v554 = vadd.f32 %v452, %v553
      %555 = vmatprep.mubr.f32.mxu0 0.0
      %v556 = vand.u32 %v241, 4294901760
      %v557 = vsub.f32 %v241, %v556
      %558 = vmatmul.mubr.f32.gmra.mxu0 %v557
      %v559 = vpop.f32.mrf.mxu0
      %v560 = vadd.f32 %v457, %v559
      %v561 = vpop.f32.mrf.mxu0
      %v562 = vadd.f32 %v459, %v561
      %563 = vmatprep.mubr.f32.mxu0 0.0
      %v564 = vand.u32 %v244, 4294901760
      %v565 = vsub.f32 %v244, %v564
      %566 = vmatmul.mubr.f32.gmra.mxu0 %v565
      %v567 = vpop.f32.mrf.mxu0
      %v568 = vadd.f32 %v464, %v567
      %v569 = vpop.f32.mrf.mxu0
      %v570 = vadd.f32 %v466, %v569
      %571 = vmatprep.mubr.f32.mxu0 0.0
      %v572 = vand.u32 %v247, 4294901760
      %v573 = vsub.f32 %v247, %v572
      %574 = vmatmul.mubr.f32.gmra.mxu0 %v573
      %v575 = vpop.f32.mrf.mxu0
      %v576 = vadd.f32 %v471, %v575
      %v577 = vpop.f32.mrf.mxu0
      %v578 = vadd.f32 %v473, %v577
      %579 = vdwg.mxu0
      %580 = vmatprep.subr.mxu0 0.0
      %581 = vmatpush1.msra.mxu0 0.0
      %582 = vmatprep.subr.mxu0 0.0
      %583 = vmatpush1.msra.mxu0 0.0
      %584 = vmatprep.subr.mxu0 0.0
      %585 = vmatpush1.msra.mxu0 0.0
      %586 = vmatprep.subr.mxu0 0.0
      %587 = vmatpush1.msra.mxu0 0.0
      %588 = vmatprep.subr.mxu0 0.0
      %589 = vmatpush1.msra.mxu0 0.0
      %590 = vmatprep.subr.mxu0 0.0
      %591 = vmatpush1.msra.mxu0 0.0
      %592 = vmatprep.subr.mxu0 0.0
      %593 = vmatpush1.msra.mxu0 0.0
      %594 = vmatprep.subr.mxu0 0.0
      %595 = vmatpush1.msra.mxu0 0.0
      %596 = vmatprep.subr.mxu0 0.0
      %597 = vmatpush1.msra.mxu0 0.0
      %598 = vmatprep.subr.mxu0 0.0
      %599 = vmatpush1.msra.mxu0 0.0
      %600 = vmatprep.subr.mxu0 0.0
      %601 = vmatpush1.msra.mxu0 0.0
      %602 = vmatprep.subr.mxu0 0.0
      %603 = vmatpush1.msra.mxu0 0.0
      %604 = vmatprep.subr.mxu0 0.0
      %605 = vmatpush1.msra.mxu0 0.0
      %606 = vmatprep.subr.mxu0 0.0
      %607 = vmatpush1.msra.mxu0 0.0
      %v608 = vand.u32 %v235, 4294901760
      %609 = vmatprep.subr.mxu0 %v608
      %v610 = vand.u32 %v234, 4294901760
      %611 = vmatpush1.msra.mxu0 %v610
      %v612 = vand.u32 %v233, 4294901760
      %613 = vmatprep.subr.mxu0 %v612
      %v614 = vand.u32 %v232, 4294901760
      %615 = vmatpush1.msra.mxu0 %v614
      %616 = vmatprep.subr.mxu0 0.0
      %617 = vmatpush2.msra.mxu0 0.0
      %618 = vmatprep.subr.mxu0 0.0
      %619 = vmatpush2.msra.mxu0 0.0
      %620 = vmatprep.subr.mxu0 0.0
      %621 = vmatpush2.msra.mxu0 0.0
      %622 = vmatprep.subr.mxu0 0.0
      %623 = vmatpush2.msra.mxu0 0.0
      %624 = vmatprep.subr.mxu0 0.0
      %625 = vmatpush2.msra.mxu0 0.0
      %626 = vmatprep.subr.mxu0 0.0
      %627 = vmatpush2.msra.mxu0 0.0
      %628 = vmatprep.subr.mxu0 0.0
      %629 = vmatpush2.msra.mxu0 0.0
      %630 = vmatprep.subr.mxu0 0.0
      %631 = vmatpush2.msra.mxu0 0.0
      %632 = vmatprep.subr.mxu0 0.0
      %633 = vmatpush2.msra.mxu0 0.0
      %634 = vmatprep.subr.mxu0 0.0
      %635 = vmatpush2.msra.mxu0 0.0
      %636 = vmatprep.subr.mxu0 0.0
      %637 = vmatpush2.msra.mxu0 0.0
      %638 = vmatprep.subr.mxu0 0.0
      %639 = vmatpush2.msra.mxu0 0.0
      %640 = vmatprep.subr.mxu0 0.0
      %641 = vmatpush2.msra.mxu0 0.0
      %642 = vmatprep.subr.mxu0 0.0
      %643 = vmatpush2.msra.mxu0 0.0
      %644 = vmatprep.subr.mxu0 0.0
      %645 = vmatpush2.msra.mxu0 0.0
      %646 = vmatprep.subr.mxu0 0.0
      %647 = vmatpush2.msra.mxu0 0.0
      %648 = vmatprep.mubr.f32.mxu0 0.0
      %v649 = vand.u32 %v238, 4294901760
      %v650 = vsub.f32 %v238, %v649
      %v651 = vand.u32 %v650, 4294901760
      %652 = vmatmul.mubr.f32.gmra.mxu0 %v651
      %v653 = vpop.f32.mrf.mxu0
      %v654 = vadd.f32 %v552, %v653
      %v655 = vpop.f32.mrf.mxu0
      %v656 = vadd.f32 %v554, %v655
      %657 = vmatprep.mubr.f32.mxu0 0.0
      %v658 = vand.u32 %v241, 4294901760
      %v659 = vsub.f32 %v241, %v658
      %v660 = vand.u32 %v659, 4294901760
      %661 = vmatmul.mubr.f32.gmra.mxu0 %v660
      %v662 = vpop.f32.mrf.mxu0
      %v663 = vadd.f32 %v560, %v662
      %v664 = vpop.f32.mrf.mxu0
      %v665 = vadd.f32 %v562, %v664
      %666 = vmatprep.mubr.f32.mxu0 0.0
      %v667 = vand.u32 %v244, 4294901760
      %v668 = vsub.f32 %v244, %v667
      %v669 = vand.u32 %v668, 4294901760
      %670 = vmatmul.mubr.f32.gmra.mxu0 %v669
      %v671 = vpop.f32.mrf.mxu0
      %v672 = vadd.f32 %v568, %v671
      %v673 = vpop.f32.mrf.mxu0
      %v674 = vadd.f32 %v570, %v673
      %675 = vmatprep.mubr.f32.mxu0 0.0
      %v676 = vand.u32 %v247, 4294901760
      %v677 = vsub.f32 %v247, %v676
      %v678 = vand.u32 %v677, 4294901760
      %679 = vmatmul.mubr.f32.gmra.mxu0 %v678
      %v680 = vpop.f32.mrf.mxu0
      %v681 = vadd.f32 %v576, %v680
      %v682 = vpop.f32.mrf.mxu0
      %v683 = vadd.f32 %v578, %v682
      %684 = vdwg.mxu0
      %685 = vmatprep.subr.mxu0 0.0
      %686 = vmatpush1.msra.mxu0 0.0
      %687 = vmatprep.subr.mxu0 0.0
      %688 = vmatpush1.msra.mxu0 0.0
      %689 = vmatprep.subr.mxu0 0.0
      %690 = vmatpush1.msra.mxu0 0.0
      %691 = vmatprep.subr.mxu0 0.0
      %692 = vmatpush1.msra.mxu0 0.0
      %693 = vmatprep.subr.mxu0 0.0
      %694 = vmatpush1.msra.mxu0 0.0
      %695 = vmatprep.subr.mxu0 0.0
      %696 = vmatpush1.msra.mxu0 0.0
      %697 = vmatprep.subr.mxu0 0.0
      %698 = vmatpush1.msra.mxu0 0.0
      %699 = vmatprep.subr.mxu0 0.0
      %700 = vmatpush1.msra.mxu0 0.0
      %701 = vmatprep.subr.mxu0 0.0
      %702 = vmatpush1.msra.mxu0 0.0
      %703 = vmatprep.subr.mxu0 0.0
      %704 = vmatpush1.msra.mxu0 0.0
      %705 = vmatprep.subr.mxu0 0.0
      %706 = vmatpush1.msra.mxu0 0.0
      %707 = vmatprep.subr.mxu0 0.0
      %708 = vmatpush1.msra.mxu0 0.0
      %709 = vmatprep.subr.mxu0 0.0
      %710 = vmatpush1.msra.mxu0 0.0
      %711 = vmatprep.subr.mxu0 0.0
      %712 = vmatpush1.msra.mxu0 0.0
      %v713 = vand.u32 %v235, 4294901760
      %v714 = vsub.f32 %v235, %v713
      %v715 = vand.u32 %v714, 4294901760
      %716 = vmatprep.subr.mxu0 %v715
      %v717 = vand.u32 %v234, 4294901760
      %v718 = vsub.f32 %v234, %v717
      %v719 = vand.u32 %v718, 4294901760
      %720 = vmatpush1.msra.mxu0 %v719
      %v721 = vand.u32 %v233, 4294901760
      %v722 = vsub.f32 %v233, %v721
      %v723 = vand.u32 %v722, 4294901760
      %724 = vmatprep.subr.mxu0 %v723
      %v725 = vand.u32 %v232, 4294901760
      %v726 = vsub.f32 %v232, %v725
      %v727 = vand.u32 %v726, 4294901760
      %728 = vmatpush1.msra.mxu0 %v727
      %729 = vmatprep.subr.mxu0 0.0
      %730 = vmatpush2.msra.mxu0 0.0
      %731 = vmatprep.subr.mxu0 0.0
      %732 = vmatpush2.msra.mxu0 0.0
      %733 = vmatprep.subr.mxu0 0.0
      %734 = vmatpush2.msra.mxu0 0.0
      %735 = vmatprep.subr.mxu0 0.0
      %736 = vmatpush2.msra.mxu0 0.0
      %737 = vmatprep.subr.mxu0 0.0
      %738 = vmatpush2.msra.mxu0 0.0
      %739 = vmatprep.subr.mxu0 0.0
      %740 = vmatpush2.msra.mxu0 0.0
      %741 = vmatprep.subr.mxu0 0.0
      %742 = vmatpush2.msra.mxu0 0.0
      %743 = vmatprep.subr.mxu0 0.0
      %744 = vmatpush2.msra.mxu0 0.0
      %745 = vmatprep.subr.mxu0 0.0
      %746 = vmatpush2.msra.mxu0 0.0
      %747 = vmatprep.subr.mxu0 0.0
      %748 = vmatpush2.msra.mxu0 0.0
      %749 = vmatprep.subr.mxu0 0.0
      %750 = vmatpush2.msra.mxu0 0.0
      %751 = vmatprep.subr.mxu0 0.0
      %752 = vmatpush2.msra.mxu0 0.0
      %753 = vmatprep.subr.mxu0 0.0
      %754 = vmatpush2.msra.mxu0 0.0
      %755 = vmatprep.subr.mxu0 0.0
      %756 = vmatpush2.msra.mxu0 0.0
      %757 = vmatprep.subr.mxu0 0.0
      %758 = vmatpush2.msra.mxu0 0.0
      %759 = vmatprep.subr.mxu0 0.0
      %760 = vmatpush2.msra.mxu0 0.0
      %761 = vmatprep.mubr.f32.mxu0 0.0
      %v762 = vand.u32 %v238, 4294901760
      %763 = vmatmul.mubr.f32.gmra.mxu0 %v762
      %v764 = vpop.f32.mrf.mxu0
      %v765 = vadd.f32 %v654, %v764
      %v766 = vpop.f32.mrf.mxu0
      %v767 = vadd.f32 %v656, %v766
      %768 = vmatprep.mubr.f32.mxu0 0.0
      %v769 = vand.u32 %v241, 4294901760
      %770 = vmatmul.mubr.f32.gmra.mxu0 %v769
      %v771 = vpop.f32.mrf.mxu0
      %v772 = vadd.f32 %v663, %v771
      %v773 = vpop.f32.mrf.mxu0
      %v774 = vadd.f32 %v665, %v773
      %775 = vmatprep.mubr.f32.mxu0 0.0
      %v776 = vand.u32 %v244, 4294901760
      %777 = vmatmul.mubr.f32.gmra.mxu0 %v776
      %v778 = vpop.f32.mrf.mxu0
      %v779 = vadd.f32 %v672, %v778
      %v780 = vpop.f32.mrf.mxu0
      %v781 = vadd.f32 %v674, %v780
      %782 = vmatprep.mubr.f32.mxu0 0.0
      %v783 = vand.u32 %v247, 4294901760
      %784 = vmatmul.mubr.f32.gmra.mxu0 %v783
      %v785 = vpop.f32.mrf.mxu0
      %v786 = vadd.f32 %v681, %v785
      %v787 = vpop.f32.mrf.mxu0
      %v788 = vadd.f32 %v683, %v787
      %789 = vdwg.mxu0
      %790 = vmatprep.subr.mxu0 0.0
      %791 = vmatpush1.msra.mxu0 0.0
      %792 = vmatprep.subr.mxu0 0.0
      %793 = vmatpush1.msra.mxu0 0.0
      %794 = vmatprep.subr.mxu0 0.0
      %795 = vmatpush1.msra.mxu0 0.0
      %796 = vmatprep.subr.mxu0 0.0
      %797 = vmatpush1.msra.mxu0 0.0
      %798 = vmatprep.subr.mxu0 0.0
      %799 = vmatpush1.msra.mxu0 0.0
      %800 = vmatprep.subr.mxu0 0.0
      %801 = vmatpush1.msra.mxu0 0.0
      %802 = vmatprep.subr.mxu0 0.0
      %803 = vmatpush1.msra.mxu0 0.0
      %804 = vmatprep.subr.mxu0 0.0
      %805 = vmatpush1.msra.mxu0 0.0
      %806 = vmatprep.subr.mxu0 0.0
      %807 = vmatpush1.msra.mxu0 0.0
      %808 = vmatprep.subr.mxu0 0.0
      %809 = vmatpush1.msra.mxu0 0.0
      %810 = vmatprep.subr.mxu0 0.0
      %811 = vmatpush1.msra.mxu0 0.0
      %812 = vmatprep.subr.mxu0 0.0
      %813 = vmatpush1.msra.mxu0 0.0
      %814 = vmatprep.subr.mxu0 0.0
      %815 = vmatpush1.msra.mxu0 0.0
      %816 = vmatprep.subr.mxu0 0.0
      %817 = vmatpush1.msra.mxu0 0.0
      %v818 = vand.u32 %v235, 4294901760
      %819 = vmatprep.subr.mxu0 %v818
      %v820 = vand.u32 %v234, 4294901760
      %821 = vmatpush1.msra.mxu0 %v820
      %v822 = vand.u32 %v233, 4294901760
      %823 = vmatprep.subr.mxu0 %v822
      %v824 = vand.u32 %v232, 4294901760
      %825 = vmatpush1.msra.mxu0 %v824
      %826 = vmatprep.subr.mxu0 0.0
      %827 = vmatpush2.msra.mxu0 0.0
      %828 = vmatprep.subr.mxu0 0.0
      %829 = vmatpush2.msra.mxu0 0.0
      %830 = vmatprep.subr.mxu0 0.0
      %831 = vmatpush2.msra.mxu0 0.0
      %832 = vmatprep.subr.mxu0 0.0
      %833 = vmatpush2.msra.mxu0 0.0
      %834 = vmatprep.subr.mxu0 0.0
      %835 = vmatpush2.msra.mxu0 0.0
      %836 = vmatprep.subr.mxu0 0.0
      %837 = vmatpush2.msra.mxu0 0.0
      %838 = vmatprep.subr.mxu0 0.0
      %839 = vmatpush2.msra.mxu0 0.0
      %840 = vmatprep.subr.mxu0 0.0
      %841 = vmatpush2.msra.mxu0 0.0
      %842 = vmatprep.subr.mxu0 0.0
      %843 = vmatpush2.msra.mxu0 0.0
      %844 = vmatprep.subr.mxu0 0.0
      %845 = vmatpush2.msra.mxu0 0.0
      %846 = vmatprep.subr.mxu0 0.0
      %847 = vmatpush2.msra.mxu0 0.0
      %848 = vmatprep.subr.mxu0 0.0
      %849 = vmatpush2.msra.mxu0 0.0
      %850 = vmatprep.subr.mxu0 0.0
      %851 = vmatpush2.msra.mxu0 0.0
      %852 = vmatprep.subr.mxu0 0.0
      %853 = vmatpush2.msra.mxu0 0.0
      %854 = vmatprep.subr.mxu0 0.0
      %855 = vmatpush2.msra.mxu0 0.0
      %856 = vmatprep.subr.mxu0 0.0
      %857 = vmatpush2.msra.mxu0 0.0
      %858 = vmatprep.mubr.f32.mxu0 0.0
      %v859 = vand.u32 %v238, 4294901760
      %860 = vmatmul.mubr.f32.gmra.mxu0 %v859
      %v861 = vpop.f32.mrf.mxu0
      %v862 = vadd.f32 %v765, %v861
      %v863 = vpop.f32.mrf.mxu0
      %v864 = vadd.f32 %v767, %v863
      %865 = vmatprep.mubr.f32.mxu0 0.0
      %v866 = vand.u32 %v241, 4294901760
      %867 = vmatmul.mubr.f32.gmra.mxu0 %v866
      %v868 = vpop.f32.mrf.mxu0
      %v869 = vadd.f32 %v772, %v868
      %v870 = vpop.f32.mrf.mxu0
      %v871 = vadd.f32 %v774, %v870
      %872 = vmatprep.mubr.f32.mxu0 0.0
      %v873 = vand.u32 %v244, 4294901760
      %874 = vmatmul.mubr.f32.gmra.mxu0 %v873
      %v875 = vpop.f32.mrf.mxu0
      %v876 = vadd.f32 %v779, %v875
      %v877 = vpop.f32.mrf.mxu0
      %v878 = vadd.f32 %v781, %v877
      %879 = vmatprep.mubr.f32.mxu0 0.0
      %v880 = vand.u32 %v247, 4294901760
      %881 = vmatmul.mubr.f32.gmra.mxu0 %v880
      %v882 = vpop.f32.mrf.mxu0
      %v883 = vadd.f32 %v786, %v882
      %v884 = vpop.f32.mrf.mxu0
      %v885 = vadd.f32 %v788, %v884
      %886 = vdwg.mxu0
      %v887 = vld [vmem:[%s1] sm:$0xff]
      %v888 = vld [vmem:[%s1 + $0x8] sm:$0xff]
      %v889 = vld [vmem:[%s1 + $0x10] sm:$0xff]
      %v890 = vld [vmem:[%s1 + $0x18] sm:$0xff]
      %v891 = vld [vmem:[%s1 + $0x20] sm:$0xff]
      %v892 = vld [vmem:[%s1 + $0x28] sm:$0xff]
      %v893 = vld [vmem:[%s1 + $0x30] sm:$0xff]
      %v894 = vld [vmem:[%s1 + $0x38] sm:$0xff]
      %v895 = vld [vmem:[%s2] sm:$0xff]
      %v896 = vld [vmem:[%s2 + $0x8] sm:$0xff]
      %v897 = vld [vmem:[%s2 + $0x10] sm:$0xff]
      %v898 = vld [vmem:[%s2 + $0x18] sm:$0xff]
      %v899 = vld [vmem:[%s2 + $0x20] sm:$0xff]
      %v900 = vld [vmem:[%s2 + $0x28] sm:$0xff]
      %v901 = vld [vmem:[%s2 + $0x30] sm:$0xff]
      %v902 = vld [vmem:[%s2 + $0x38] sm:$0xff]
      %vm903 = vcmask 261120
      %v905 = vsel %vm903, %v887, 0
      %v908 = vsel %vm903, %v888, 0
      %v911 = vsel %vm903, %v889, 0
      %v914 = vsel %vm903, %v890, 0
      %v917 = vsel %vm903, %v891, 0
      %v920 = vsel %vm903, %v892, 0
      %v923 = vsel %vm903, %v893, 0
      %v926 = vsel %vm903, %v894, 0
      %928 = vmatprep.subr.mxu0 0.0
      %929 = vmatpush1.msra.mxu0 0.0
      %930 = vmatprep.subr.mxu0 0.0
      %931 = vmatpush1.msra.mxu0 0.0
      %932 = vmatprep.subr.mxu0 0.0
      %933 = vmatpush1.msra.mxu0 0.0
      %934 = vmatprep.subr.mxu0 0.0
      %935 = vmatpush1.msra.mxu0 0.0
      %936 = vmatprep.subr.mxu0 0.0
      %937 = vmatpush1.msra.mxu0 0.0
      %938 = vmatprep.subr.mxu0 0.0
      %939 = vmatpush1.msra.mxu0 0.0
      %940 = vmatprep.subr.mxu0 0.0
      %941 = vmatpush1.msra.mxu0 0.0
      %942 = vmatprep.subr.mxu0 0.0
      %943 = vmatpush1.msra.mxu0 0.0
      %944 = vmatprep.subr.mxu0 0.0
      %945 = vmatpush1.msra.mxu0 0.0
      %946 = vmatprep.subr.mxu0 0.0
      %947 = vmatpush1.msra.mxu0 0.0
      %948 = vmatprep.subr.mxu0 0.0
      %949 = vmatpush1.msra.mxu0 0.0
      %950 = vmatprep.subr.mxu0 0.0
      %951 = vmatpush1.msra.mxu0 0.0
      %952 = vmatprep.subr.mxu0 0.0
      %v953 = vand.u32 %v883, 4294901760
      %954 = vmatpush1.msra.mxu0 %v953
      %955 = vmatprep.subr.mxu0 0.0
      %v956 = vand.u32 %v876, 4294901760
      %957 = vmatpush1.msra.mxu0 %v956
      %958 = vmatprep.subr.mxu0 0.0
      %v959 = vand.u32 %v869, 4294901760
      %960 = vmatpush1.msra.mxu0 %v959
      %961 = vmatprep.subr.mxu0 0.0
      %v962 = vand.u32 %v862, 4294901760
      %963 = vmatpush1.msra.mxu0 %v962
      %964 = vmatprep.subr.mxu0 0.0
      %965 = vmatpush2.msra.mxu0 0.0
      %966 = vmatprep.subr.mxu0 0.0
      %967 = vmatpush2.msra.mxu0 0.0
      %968 = vmatprep.subr.mxu0 0.0
      %969 = vmatpush2.msra.mxu0 0.0
      %970 = vmatprep.subr.mxu0 0.0
      %971 = vmatpush2.msra.mxu0 0.0
      %972 = vmatprep.subr.mxu0 0.0
      %973 = vmatpush2.msra.mxu0 0.0
      %974 = vmatprep.subr.mxu0 0.0
      %975 = vmatpush2.msra.mxu0 0.0
      %976 = vmatprep.subr.mxu0 0.0
      %977 = vmatpush2.msra.mxu0 0.0
      %978 = vmatprep.subr.mxu0 0.0
      %979 = vmatpush2.msra.mxu0 0.0
      %980 = vmatprep.subr.mxu0 0.0
      %981 = vmatpush2.msra.mxu0 0.0
      %982 = vmatprep.subr.mxu0 0.0
      %983 = vmatpush2.msra.mxu0 0.0
      %984 = vmatprep.subr.mxu0 0.0
      %985 = vmatpush2.msra.mxu0 0.0
      %986 = vmatprep.subr.mxu0 0.0
      %987 = vmatpush2.msra.mxu0 0.0
      %988 = vmatprep.subr.mxu0 0.0
      %989 = vmatpush2.msra.mxu0 0.0
      %990 = vmatprep.subr.mxu0 0.0
      %991 = vmatpush2.msra.mxu0 0.0
      %992 = vmatprep.subr.mxu0 0.0
      %993 = vmatpush2.msra.mxu0 0.0
      %994 = vmatprep.subr.mxu0 0.0
      %995 = vmatpush2.msra.mxu0 0.0
      %996 = vmatprep.mubr.f32.mxu0 0.0
      %v997 = vand.u32 %v905, 4294901760
      %v998 = vsub.f32 %v905, %v997
      %v999 = vand.u32 %v998, 4294901760
      %v1000 = vsub.f32 %v998, %v999
      %v1001 = vand.u32 %v1000, 4294901760
      %1002 = vmatmul.mubr.f32.gmra.mxu0 %v1001
      %v1003 = vpop.f32.mrf.mxu0
      %v1004 = vadd.f32 %v895, %v1003
      %v1005 = vpop.f32.mrf.mxu0
      %1006 = vmatprep.mubr.f32.mxu0 0.0
      %v1007 = vand.u32 %v908, 4294901760
      %v1008 = vsub.f32 %v908, %v1007
      %v1009 = vand.u32 %v1008, 4294901760
      %v1010 = vsub.f32 %v1008, %v1009
      %v1011 = vand.u32 %v1010, 4294901760
      %1012 = vmatmul.mubr.f32.gmra.mxu0 %v1011
      %v1013 = vpop.f32.mrf.mxu0
      %v1014 = vadd.f32 %v896, %v1013
      %v1015 = vpop.f32.mrf.mxu0
      %1016 = vmatprep.mubr.f32.mxu0 0.0
      %v1017 = vand.u32 %v911, 4294901760
      %v1018 = vsub.f32 %v911, %v1017
      %v1019 = vand.u32 %v1018, 4294901760
      %v1020 = vsub.f32 %v1018, %v1019
      %v1021 = vand.u32 %v1020, 4294901760
      %1022 = vmatmul.mubr.f32.gmra.mxu0 %v1021
      %v1023 = vpop.f32.mrf.mxu0
      %v1024 = vadd.f32 %v897, %v1023
      %v1025 = vpop.f32.mrf.mxu0
      %1026 = vmatprep.mubr.f32.mxu0 0.0
      %v1027 = vand.u32 %v914, 4294901760
      %v1028 = vsub.f32 %v914, %v1027
      %v1029 = vand.u32 %v1028, 4294901760
      %v1030 = vsub.f32 %v1028, %v1029
      %v1031 = vand.u32 %v1030, 4294901760
      %1032 = vmatmul.mubr.f32.gmra.mxu0 %v1031
      %v1033 = vpop.f32.mrf.mxu0
      %v1034 = vadd.f32 %v898, %v1033
      %v1035 = vpop.f32.mrf.mxu0
      %1036 = vmatprep.mubr.f32.mxu0 0.0
      %v1037 = vand.u32 %v917, 4294901760
      %v1038 = vsub.f32 %v917, %v1037
      %v1039 = vand.u32 %v1038, 4294901760
      %v1040 = vsub.f32 %v1038, %v1039
      %v1041 = vand.u32 %v1040, 4294901760
      %1042 = vmatmul.mubr.f32.gmra.mxu0 %v1041
      %v1043 = vpop.f32.mrf.mxu0
      %v1044 = vadd.f32 %v899, %v1043
      %v1045 = vpop.f32.mrf.mxu0
      %1046 = vmatprep.mubr.f32.mxu0 0.0
      %v1047 = vand.u32 %v920, 4294901760
      %v1048 = vsub.f32 %v920, %v1047
      %v1049 = vand.u32 %v1048, 4294901760
      %v1050 = vsub.f32 %v1048, %v1049
      %v1051 = vand.u32 %v1050, 4294901760
      %1052 = vmatmul.mubr.f32.gmra.mxu0 %v1051
      %v1053 = vpop.f32.mrf.mxu0
      %v1054 = vadd.f32 %v900, %v1053
      %v1055 = vpop.f32.mrf.mxu0
      %1056 = vmatprep.mubr.f32.mxu0 0.0
      %v1057 = vand.u32 %v923, 4294901760
      %v1058 = vsub.f32 %v923, %v1057
      %v1059 = vand.u32 %v1058, 4294901760
      %v1060 = vsub.f32 %v1058, %v1059
      %v1061 = vand.u32 %v1060, 4294901760
      %1062 = vmatmul.mubr.f32.gmra.mxu0 %v1061
      %v1063 = vpop.f32.mrf.mxu0
      %v1064 = vadd.f32 %v901, %v1063
      %v1065 = vpop.f32.mrf.mxu0
      %1066 = vmatprep.mubr.f32.mxu0 0.0
      %v1067 = vand.u32 %v926, 4294901760
      %v1068 = vsub.f32 %v926, %v1067
      %v1069 = vand.u32 %v1068, 4294901760
      %v1070 = vsub.f32 %v1068, %v1069
      %v1071 = vand.u32 %v1070, 4294901760
      %1072 = vmatmul.mubr.f32.gmra.mxu0 %v1071
      %v1073 = vpop.f32.mrf.mxu0
      %v1074 = vadd.f32 %v902, %v1073
      %v1075 = vpop.f32.mrf.mxu0
      %1076 = vdwg.mxu0
      %1077 = vmatprep.subr.mxu0 0.0
      %1078 = vmatpush1.msra.mxu0 0.0
      %1079 = vmatprep.subr.mxu0 0.0
      %1080 = vmatpush1.msra.mxu0 0.0
      %1081 = vmatprep.subr.mxu0 0.0
      %1082 = vmatpush1.msra.mxu0 0.0
      %1083 = vmatprep.subr.mxu0 0.0
      %1084 = vmatpush1.msra.mxu0 0.0
      %1085 = vmatprep.subr.mxu0 0.0
      %1086 = vmatpush1.msra.mxu0 0.0
      %1087 = vmatprep.subr.mxu0 0.0
      %1088 = vmatpush1.msra.mxu0 0.0
      %1089 = vmatprep.subr.mxu0 0.0
      %1090 = vmatpush1.msra.mxu0 0.0
      %1091 = vmatprep.subr.mxu0 0.0
      %1092 = vmatpush1.msra.mxu0 0.0
      %1093 = vmatprep.subr.mxu0 0.0
      %1094 = vmatpush1.msra.mxu0 0.0
      %1095 = vmatprep.subr.mxu0 0.0
      %1096 = vmatpush1.msra.mxu0 0.0
      %1097 = vmatprep.subr.mxu0 0.0
      %1098 = vmatpush1.msra.mxu0 0.0
      %1099 = vmatprep.subr.mxu0 0.0
      %1100 = vmatpush1.msra.mxu0 0.0
      %1101 = vmatprep.subr.mxu0 0.0
      %v1102 = vand.u32 %v883, 4294901760
      %v1103 = vsub.f32 %v883, %v1102
      %v1104 = vand.u32 %v1103, 4294901760
      %v1105 = vsub.f32 %v1103, %v1104
      %v1106 = vand.u32 %v1105, 4294901760
      %1107 = vmatpush1.msra.mxu0 %v1106
      %1108 = vmatprep.subr.mxu0 0.0
      %v1109 = vand.u32 %v876, 4294901760
      %v1110 = vsub.f32 %v876, %v1109
      %v1111 = vand.u32 %v1110, 4294901760
      %v1112 = vsub.f32 %v1110, %v1111
      %v1113 = vand.u32 %v1112, 4294901760
      %1114 = vmatpush1.msra.mxu0 %v1113
      %1115 = vmatprep.subr.mxu0 0.0
      %v1116 = vand.u32 %v869, 4294901760
      %v1117 = vsub.f32 %v869, %v1116
      %v1118 = vand.u32 %v1117, 4294901760
      %v1119 = vsub.f32 %v1117, %v1118
      %v1120 = vand.u32 %v1119, 4294901760
      %1121 = vmatpush1.msra.mxu0 %v1120
      %1122 = vmatprep.subr.mxu0 0.0
      %v1123 = vand.u32 %v862, 4294901760
      %v1124 = vsub.f32 %v862, %v1123
      %v1125 = vand.u32 %v1124, 4294901760
      %v1126 = vsub.f32 %v1124, %v1125
      %v1127 = vand.u32 %v1126, 4294901760
      %1128 = vmatpush1.msra.mxu0 %v1127
      %1129 = vmatprep.subr.mxu0 0.0
      %1130 = vmatpush2.msra.mxu0 0.0
      %1131 = vmatprep.subr.mxu0 0.0
      %1132 = vmatpush2.msra.mxu0 0.0
      %1133 = vmatprep.subr.mxu0 0.0
      %1134 = vmatpush2.msra.mxu0 0.0
      %1135 = vmatprep.subr.mxu0 0.0
      %1136 = vmatpush2.msra.mxu0 0.0
      %1137 = vmatprep.subr.mxu0 0.0
      %1138 = vmatpush2.msra.mxu0 0.0
      %1139 = vmatprep.subr.mxu0 0.0
      %1140 = vmatpush2.msra.mxu0 0.0
      %1141 = vmatprep.subr.mxu0 0.0
      %1142 = vmatpush2.msra.mxu0 0.0
      %1143 = vmatprep.subr.mxu0 0.0
      %1144 = vmatpush2.msra.mxu0 0.0
      %1145 = vmatprep.subr.mxu0 0.0
      %1146 = vmatpush2.msra.mxu0 0.0
      %1147 = vmatprep.subr.mxu0 0.0
      %1148 = vmatpush2.msra.mxu0 0.0
      %1149 = vmatprep.subr.mxu0 0.0
      %1150 = vmatpush2.msra.mxu0 0.0
      %1151 = vmatprep.subr.mxu0 0.0
      %1152 = vmatpush2.msra.mxu0 0.0
      %1153 = vmatprep.subr.mxu0 0.0
      %1154 = vmatpush2.msra.mxu0 0.0
      %1155 = vmatprep.subr.mxu0 0.0
      %1156 = vmatpush2.msra.mxu0 0.0
      %1157 = vmatprep.subr.mxu0 0.0
      %1158 = vmatpush2.msra.mxu0 0.0
      %1159 = vmatprep.subr.mxu0 0.0
      %1160 = vmatpush2.msra.mxu0 0.0
      %1161 = vmatprep.mubr.f32.mxu0 0.0
      %v1162 = vand.u32 %v905, 4294901760
      %1163 = vmatmul.mubr.f32.gmra.mxu0 %v1162
      %v1164 = vpop.f32.mrf.mxu0
      %v1165 = vadd.f32 %v1004, %v1164
      %v1166 = vpop.f32.mrf.mxu0
      %1167 = vmatprep.mubr.f32.mxu0 0.0
      %v1168 = vand.u32 %v908, 4294901760
      %1169 = vmatmul.mubr.f32.gmra.mxu0 %v1168
      %v1170 = vpop.f32.mrf.mxu0
      %v1171 = vadd.f32 %v1014, %v1170
      %v1172 = vpop.f32.mrf.mxu0
      %1173 = vmatprep.mubr.f32.mxu0 0.0
      %v1174 = vand.u32 %v911, 4294901760
      %1175 = vmatmul.mubr.f32.gmra.mxu0 %v1174
      %v1176 = vpop.f32.mrf.mxu0
      %v1177 = vadd.f32 %v1024, %v1176
      %v1178 = vpop.f32.mrf.mxu0
      %1179 = vmatprep.mubr.f32.mxu0 0.0
      %v1180 = vand.u32 %v914, 4294901760
      %1181 = vmatmul.mubr.f32.gmra.mxu0 %v1180
      %v1182 = vpop.f32.mrf.mxu0
      %v1183 = vadd.f32 %v1034, %v1182
      %v1184 = vpop.f32.mrf.mxu0
      %1185 = vmatprep.mubr.f32.mxu0 0.0
      %v1186 = vand.u32 %v917, 4294901760
      %1187 = vmatmul.mubr.f32.gmra.mxu0 %v1186
      %v1188 = vpop.f32.mrf.mxu0
      %v1189 = vadd.f32 %v1044, %v1188
      %v1190 = vpop.f32.mrf.mxu0
      %1191 = vmatprep.mubr.f32.mxu0 0.0
      %v1192 = vand.u32 %v920, 4294901760
      %1193 = vmatmul.mubr.f32.gmra.mxu0 %v1192
      %v1194 = vpop.f32.mrf.mxu0
      %v1195 = vadd.f32 %v1054, %v1194
      %v1196 = vpop.f32.mrf.mxu0
      %1197 = vmatprep.mubr.f32.mxu0 0.0
      %v1198 = vand.u32 %v923, 4294901760
      %1199 = vmatmul.mubr.f32.gmra.mxu0 %v1198
      %v1200 = vpop.f32.mrf.mxu0
      %v1201 = vadd.f32 %v1064, %v1200
      %v1202 = vpop.f32.mrf.mxu0
      %1203 = vmatprep.mubr.f32.mxu0 0.0
      %v1204 = vand.u32 %v926, 4294901760
      %1205 = vmatmul.mubr.f32.gmra.mxu0 %v1204
      %v1206 = vpop.f32.mrf.mxu0
      %v1207 = vadd.f32 %v1074, %v1206
      %v1208 = vpop.f32.mrf.mxu0
      %1209 = vdwg.mxu0
      %1210 = vmatprep.subr.mxu0 0.0
      %1211 = vmatpush1.msra.mxu0 0.0
      %1212 = vmatprep.subr.mxu0 0.0
      %1213 = vmatpush1.msra.mxu0 0.0
      %1214 = vmatprep.subr.mxu0 0.0
      %1215 = vmatpush1.msra.mxu0 0.0
      %1216 = vmatprep.subr.mxu0 0.0
      %1217 = vmatpush1.msra.mxu0 0.0
      %1218 = vmatprep.subr.mxu0 0.0
      %1219 = vmatpush1.msra.mxu0 0.0
      %1220 = vmatprep.subr.mxu0 0.0
      %1221 = vmatpush1.msra.mxu0 0.0
      %1222 = vmatprep.subr.mxu0 0.0
      %1223 = vmatpush1.msra.mxu0 0.0
      %1224 = vmatprep.subr.mxu0 0.0
      %1225 = vmatpush1.msra.mxu0 0.0
      %1226 = vmatprep.subr.mxu0 0.0
      %1227 = vmatpush1.msra.mxu0 0.0
      %1228 = vmatprep.subr.mxu0 0.0
      %1229 = vmatpush1.msra.mxu0 0.0
      %1230 = vmatprep.subr.mxu0 0.0
      %1231 = vmatpush1.msra.mxu0 0.0
      %1232 = vmatprep.subr.mxu0 0.0
      %1233 = vmatpush1.msra.mxu0 0.0
      %1234 = vmatprep.subr.mxu0 0.0
      %v1235 = vand.u32 %v883, 4294901760
      %v1236 = vsub.f32 %v883, %v1235
      %1237 = vmatpush1.msra.mxu0 %v1236
      %1238 = vmatprep.subr.mxu0 0.0
      %v1239 = vand.u32 %v876, 4294901760
      %v1240 = vsub.f32 %v876, %v1239
      %1241 = vmatpush1.msra.mxu0 %v1240
      %1242 = vmatprep.subr.mxu0 0.0
      %v1243 = vand.u32 %v869, 4294901760
      %v1244 = vsub.f32 %v869, %v1243
      %1245 = vmatpush1.msra.mxu0 %v1244
      %1246 = vmatprep.subr.mxu0 0.0
      %v1247 = vand.u32 %v862, 4294901760
      %v1248 = vsub.f32 %v862, %v1247
      %1249 = vmatpush1.msra.mxu0 %v1248
      %1250 = vmatprep.subr.mxu0 0.0
      %1251 = vmatpush2.msra.mxu0 0.0
      %1252 = vmatprep.subr.mxu0 0.0
      %1253 = vmatpush2.msra.mxu0 0.0
      %1254 = vmatprep.subr.mxu0 0.0
      %1255 = vmatpush2.msra.mxu0 0.0
      %1256 = vmatprep.subr.mxu0 0.0
      %1257 = vmatpush2.msra.mxu0 0.0
      %1258 = vmatprep.subr.mxu0 0.0
      %1259 = vmatpush2.msra.mxu0 0.0
      %1260 = vmatprep.subr.mxu0 0.0
      %1261 = vmatpush2.msra.mxu0 0.0
      %1262 = vmatprep.subr.mxu0 0.0
      %1263 = vmatpush2.msra.mxu0 0.0
      %1264 = vmatprep.subr.mxu0 0.0
      %1265 = vmatpush2.msra.mxu0 0.0
      %1266 = vmatprep.subr.mxu0 0.0
      %1267 = vmatpush2.msra.mxu0 0.0
      %1268 = vmatprep.subr.mxu0 0.0
      %1269 = vmatpush2.msra.mxu0 0.0
      %1270 = vmatprep.subr.mxu0 0.0
      %1271 = vmatpush2.msra.mxu0 0.0
      %1272 = vmatprep.subr.mxu0 0.0
      %1273 = vmatpush2.msra.mxu0 0.0
      %1274 = vmatprep.subr.mxu0 0.0
      %1275 = vmatpush2.msra.mxu0 0.0
      %1276 = vmatprep.subr.mxu0 0.0
      %1277 = vmatpush2.msra.mxu0 0.0
      %1278 = vmatprep.subr.mxu0 0.0
      %1279 = vmatpush2.msra.mxu0 0.0
      %1280 = vmatprep.subr.mxu0 0.0
      %1281 = vmatpush2.msra.mxu0 0.0
      %1282 = vmatprep.mubr.f32.mxu0 0.0
      %v1283 = vand.u32 %v905, 4294901760
      %v1284 = vsub.f32 %v905, %v1283
      %1285 = vmatmul.mubr.f32.gmra.mxu0 %v1284
      %v1286 = vpop.f32.mrf.mxu0
      %v1287 = vadd.f32 %v1165, %v1286
      %v1288 = vpop.f32.mrf.mxu0
      %1289 = vmatprep.mubr.f32.mxu0 0.0
      %v1290 = vand.u32 %v908, 4294901760
      %v1291 = vsub.f32 %v908, %v1290
      %1292 = vmatmul.mubr.f32.gmra.mxu0 %v1291
      %v1293 = vpop.f32.mrf.mxu0
      %v1294 = vadd.f32 %v1171, %v1293
      %v1295 = vpop.f32.mrf.mxu0
      %1296 = vmatprep.mubr.f32.mxu0 0.0
      %v1297 = vand.u32 %v911, 4294901760
      %v1298 = vsub.f32 %v911, %v1297
      %1299 = vmatmul.mubr.f32.gmra.mxu0 %v1298
      %v1300 = vpop.f32.mrf.mxu0
      %v1301 = vadd.f32 %v1177, %v1300
      %v1302 = vpop.f32.mrf.mxu0
      %1303 = vmatprep.mubr.f32.mxu0 0.0
      %v1304 = vand.u32 %v914, 4294901760
      %v1305 = vsub.f32 %v914, %v1304
      %1306 = vmatmul.mubr.f32.gmra.mxu0 %v1305
      %v1307 = vpop.f32.mrf.mxu0
      %v1308 = vadd.f32 %v1183, %v1307
      %v1309 = vpop.f32.mrf.mxu0
      %1310 = vmatprep.mubr.f32.mxu0 0.0
      %v1311 = vand.u32 %v917, 4294901760
      %v1312 = vsub.f32 %v917, %v1311
      %1313 = vmatmul.mubr.f32.gmra.mxu0 %v1312
      %v1314 = vpop.f32.mrf.mxu0
      %v1315 = vadd.f32 %v1189, %v1314
      %v1316 = vpop.f32.mrf.mxu0
      %1317 = vmatprep.mubr.f32.mxu0 0.0
      %v1318 = vand.u32 %v920, 4294901760
      %v1319 = vsub.f32 %v920, %v1318
      %1320 = vmatmul.mubr.f32.gmra.mxu0 %v1319
      %v1321 = vpop.f32.mrf.mxu0
      %v1322 = vadd.f32 %v1195, %v1321
      %v1323 = vpop.f32.mrf.mxu0
      %1324 = vmatprep.mubr.f32.mxu0 0.0
      %v1325 = vand.u32 %v923, 4294901760
      %v1326 = vsub.f32 %v923, %v1325
      %1327 = vmatmul.mubr.f32.gmra.mxu0 %v1326
      %v1328 = vpop.f32.mrf.mxu0
      %v1329 = vadd.f32 %v1201, %v1328
      %v1330 = vpop.f32.mrf.mxu0
      %1331 = vmatprep.mubr.f32.mxu0 0.0
      %v1332 = vand.u32 %v926, 4294901760
      %v1333 = vsub.f32 %v926, %v1332
      %1334 = vmatmul.mubr.f32.gmra.mxu0 %v1333
      %v1335 = vpop.f32.mrf.mxu0
      %v1336 = vadd.f32 %v1207, %v1335
      %v1337 = vpop.f32.mrf.mxu0
      %1338 = vdwg.mxu0
      %1339 = vmatprep.subr.mxu0 0.0
      %1340 = vmatpush1.msra.mxu0 0.0
      %1341 = vmatprep.subr.mxu0 0.0
      %1342 = vmatpush1.msra.mxu0 0.0
      %1343 = vmatprep.subr.mxu0 0.0
      %1344 = vmatpush1.msra.mxu0 0.0
      %1345 = vmatprep.subr.mxu0 0.0
      %1346 = vmatpush1.msra.mxu0 0.0
      %1347 = vmatprep.subr.mxu0 0.0
      %1348 = vmatpush1.msra.mxu0 0.0
      %1349 = vmatprep.subr.mxu0 0.0
      %1350 = vmatpush1.msra.mxu0 0.0
      %1351 = vmatprep.subr.mxu0 0.0
      %1352 = vmatpush1.msra.mxu0 0.0
      %1353 = vmatprep.subr.mxu0 0.0
      %1354 = vmatpush1.msra.mxu0 0.0
      %1355 = vmatprep.subr.mxu0 0.0
      %1356 = vmatpush1.msra.mxu0 0.0
      %1357 = vmatprep.subr.mxu0 0.0
      %1358 = vmatpush1.msra.mxu0 0.0
      %1359 = vmatprep.subr.mxu0 0.0
      %1360 = vmatpush1.msra.mxu0 0.0
      %1361 = vmatprep.subr.mxu0 0.0
      %1362 = vmatpush1.msra.mxu0 0.0
      %1363 = vmatprep.subr.mxu0 0.0
      %v1364 = vand.u32 %v883, 4294901760
      %1365 = vmatpush1.msra.mxu0 %v1364
      %1366 = vmatprep.subr.mxu0 0.0
      %v1367 = vand.u32 %v876, 4294901760
      %1368 = vmatpush1.msra.mxu0 %v1367
      %1369 = vmatprep.subr.mxu0 0.0
      %v1370 = vand.u32 %v869, 4294901760
      %1371 = vmatpush1.msra.mxu0 %v1370
      %1372 = vmatprep.subr.mxu0 0.0
      %v1373 = vand.u32 %v862, 4294901760
      %1374 = vmatpush1.msra.mxu0 %v1373
      %1375 = vmatprep.subr.mxu0 0.0
      %1376 = vmatpush2.msra.mxu0 0.0
      %1377 = vmatprep.subr.mxu0 0.0
      %1378 = vmatpush2.msra.mxu0 0.0
      %1379 = vmatprep.subr.mxu0 0.0
      %1380 = vmatpush2.msra.mxu0 0.0
      %1381 = vmatprep.subr.mxu0 0.0
      %1382 = vmatpush2.msra.mxu0 0.0
      %1383 = vmatprep.subr.mxu0 0.0
      %1384 = vmatpush2.msra.mxu0 0.0
      %1385 = vmatprep.subr.mxu0 0.0
      %1386 = vmatpush2.msra.mxu0 0.0
      %1387 = vmatprep.subr.mxu0 0.0
      %1388 = vmatpush2.msra.mxu0 0.0
      %1389 = vmatprep.subr.mxu0 0.0
      %1390 = vmatpush2.msra.mxu0 0.0
      %1391 = vmatprep.subr.mxu0 0.0
      %1392 = vmatpush2.msra.mxu0 0.0
      %1393 = vmatprep.subr.mxu0 0.0
      %1394 = vmatpush2.msra.mxu0 0.0
      %1395 = vmatprep.subr.mxu0 0.0
      %1396 = vmatpush2.msra.mxu0 0.0
      %1397 = vmatprep.subr.mxu0 0.0
      %1398 = vmatpush2.msra.mxu0 0.0
      %1399 = vmatprep.subr.mxu0 0.0
      %1400 = vmatpush2.msra.mxu0 0.0
      %1401 = vmatprep.subr.mxu0 0.0
      %1402 = vmatpush2.msra.mxu0 0.0
      %1403 = vmatprep.subr.mxu0 0.0
      %1404 = vmatpush2.msra.mxu0 0.0
      %1405 = vmatprep.subr.mxu0 0.0
      %1406 = vmatpush2.msra.mxu0 0.0
      %1407 = vmatprep.mubr.f32.mxu0 0.0
      %v1408 = vand.u32 %v905, 4294901760
      %v1409 = vsub.f32 %v905, %v1408
      %v1410 = vand.u32 %v1409, 4294901760
      %1411 = vmatmul.mubr.f32.gmra.mxu0 %v1410
      %v1412 = vpop.f32.mrf.mxu0
      %v1413 = vadd.f32 %v1287, %v1412
      %v1414 = vpop.f32.mrf.mxu0
      %1415 = vmatprep.mubr.f32.mxu0 0.0
      %v1416 = vand.u32 %v908, 4294901760
      %v1417 = vsub.f32 %v908, %v1416
      %v1418 = vand.u32 %v1417, 4294901760
      %1419 = vmatmul.mubr.f32.gmra.mxu0 %v1418
      %v1420 = vpop.f32.mrf.mxu0
      %v1421 = vadd.f32 %v1294, %v1420
      %v1422 = vpop.f32.mrf.mxu0
      %1423 = vmatprep.mubr.f32.mxu0 0.0
      %v1424 = vand.u32 %v911, 4294901760
      %v1425 = vsub.f32 %v911, %v1424
      %v1426 = vand.u32 %v1425, 4294901760
      %1427 = vmatmul.mubr.f32.gmra.mxu0 %v1426
      %v1428 = vpop.f32.mrf.mxu0
      %v1429 = vadd.f32 %v1301, %v1428
      %v1430 = vpop.f32.mrf.mxu0
      %1431 = vmatprep.mubr.f32.mxu0 0.0
      %v1432 = vand.u32 %v914, 4294901760
      %v1433 = vsub.f32 %v914, %v1432
      %v1434 = vand.u32 %v1433, 4294901760
      %1435 = vmatmul.mubr.f32.gmra.mxu0 %v1434
      %v1436 = vpop.f32.mrf.mxu0
      %v1437 = vadd.f32 %v1308, %v1436
      %v1438 = vpop.f32.mrf.mxu0
      %1439 = vmatprep.mubr.f32.mxu0 0.0
      %v1440 = vand.u32 %v917, 4294901760
      %v1441 = vsub.f32 %v917, %v1440
      %v1442 = vand.u32 %v1441, 4294901760
      %1443 = vmatmul.mubr.f32.gmra.mxu0 %v1442
      %v1444 = vpop.f32.mrf.mxu0
      %v1445 = vadd.f32 %v1315, %v1444
      %v1446 = vpop.f32.mrf.mxu0
      %1447 = vmatprep.mubr.f32.mxu0 0.0
      %v1448 = vand.u32 %v920, 4294901760
      %v1449 = vsub.f32 %v920, %v1448
      %v1450 = vand.u32 %v1449, 4294901760
      %1451 = vmatmul.mubr.f32.gmra.mxu0 %v1450
      %v1452 = vpop.f32.mrf.mxu0
      %v1453 = vadd.f32 %v1322, %v1452
      %v1454 = vpop.f32.mrf.mxu0
      %1455 = vmatprep.mubr.f32.mxu0 0.0
      %v1456 = vand.u32 %v923, 4294901760
      %v1457 = vsub.f32 %v923, %v1456
      %v1458 = vand.u32 %v1457, 4294901760
      %1459 = vmatmul.mubr.f32.gmra.mxu0 %v1458
      %v1460 = vpop.f32.mrf.mxu0
      %v1461 = vadd.f32 %v1329, %v1460
      %v1462 = vpop.f32.mrf.mxu0
      %1463 = vmatprep.mubr.f32.mxu0 0.0
      %v1464 = vand.u32 %v926, 4294901760
      %v1465 = vsub.f32 %v926, %v1464
      %v1466 = vand.u32 %v1465, 4294901760
      %1467 = vmatmul.mubr.f32.gmra.mxu0 %v1466
      %v1468 = vpop.f32.mrf.mxu0
      %v1469 = vadd.f32 %v1336, %v1468
      %v1470 = vpop.f32.mrf.mxu0
      %1471 = vdwg.mxu0
      %1472 = vmatprep.subr.mxu0 0.0
      %1473 = vmatpush1.msra.mxu0 0.0
      %1474 = vmatprep.subr.mxu0 0.0
      %1475 = vmatpush1.msra.mxu0 0.0
      %1476 = vmatprep.subr.mxu0 0.0
      %1477 = vmatpush1.msra.mxu0 0.0
      %1478 = vmatprep.subr.mxu0 0.0
      %1479 = vmatpush1.msra.mxu0 0.0
      %1480 = vmatprep.subr.mxu0 0.0
      %1481 = vmatpush1.msra.mxu0 0.0
      %1482 = vmatprep.subr.mxu0 0.0
      %1483 = vmatpush1.msra.mxu0 0.0
      %1484 = vmatprep.subr.mxu0 0.0
      %1485 = vmatpush1.msra.mxu0 0.0
      %1486 = vmatprep.subr.mxu0 0.0
      %1487 = vmatpush1.msra.mxu0 0.0
      %1488 = vmatprep.subr.mxu0 0.0
      %1489 = vmatpush1.msra.mxu0 0.0
      %1490 = vmatprep.subr.mxu0 0.0
      %1491 = vmatpush1.msra.mxu0 0.0
      %1492 = vmatprep.subr.mxu0 0.0
      %1493 = vmatpush1.msra.mxu0 0.0
      %1494 = vmatprep.subr.mxu0 0.0
      %1495 = vmatpush1.msra.mxu0 0.0
      %1496 = vmatprep.subr.mxu0 0.0
      %v1497 = vand.u32 %v883, 4294901760
      %v1498 = vsub.f32 %v883, %v1497
      %v1499 = vand.u32 %v1498, 4294901760
      %1500 = vmatpush1.msra.mxu0 %v1499
      %1501 = vmatprep.subr.mxu0 0.0
      %v1502 = vand.u32 %v876, 4294901760
      %v1503 = vsub.f32 %v876, %v1502
      %v1504 = vand.u32 %v1503, 4294901760
      %1505 = vmatpush1.msra.mxu0 %v1504
      %1506 = vmatprep.subr.mxu0 0.0
      %v1507 = vand.u32 %v869, 4294901760
      %v1508 = vsub.f32 %v869, %v1507
      %v1509 = vand.u32 %v1508, 4294901760
      %1510 = vmatpush1.msra.mxu0 %v1509
      %1511 = vmatprep.subr.mxu0 0.0
      %v1512 = vand.u32 %v862, 4294901760
      %v1513 = vsub.f32 %v862, %v1512
      %v1514 = vand.u32 %v1513, 4294901760
      %1515 = vmatpush1.msra.mxu0 %v1514
      %1516 = vmatprep.subr.mxu0 0.0
      %1517 = vmatpush2.msra.mxu0 0.0
      %1518 = vmatprep.subr.mxu0 0.0
      %1519 = vmatpush2.msra.mxu0 0.0
      %1520 = vmatprep.subr.mxu0 0.0
      %1521 = vmatpush2.msra.mxu0 0.0
      %1522 = vmatprep.subr.mxu0 0.0
      %1523 = vmatpush2.msra.mxu0 0.0
      %1524 = vmatprep.subr.mxu0 0.0
      %1525 = vmatpush2.msra.mxu0 0.0
      %1526 = vmatprep.subr.mxu0 0.0
      %1527 = vmatpush2.msra.mxu0 0.0
      %1528 = vmatprep.subr.mxu0 0.0
      %1529 = vmatpush2.msra.mxu0 0.0
      %1530 = vmatprep.subr.mxu0 0.0
      %1531 = vmatpush2.msra.mxu0 0.0
      %1532 = vmatprep.subr.mxu0 0.0
      %1533 = vmatpush2.msra.mxu0 0.0
      %1534 = vmatprep.subr.mxu0 0.0
      %1535 = vmatpush2.msra.mxu0 0.0
      %1536 = vmatprep.subr.mxu0 0.0
      %1537 = vmatpush2.msra.mxu0 0.0
      %1538 = vmatprep.subr.mxu0 0.0
      %1539 = vmatpush2.msra.mxu0 0.0
      %1540 = vmatprep.subr.mxu0 0.0
      %1541 = vmatpush2.msra.mxu0 0.0
      %1542 = vmatprep.subr.mxu0 0.0
      %1543 = vmatpush2.msra.mxu0 0.0
      %1544 = vmatprep.subr.mxu0 0.0
      %1545 = vmatpush2.msra.mxu0 0.0
      %1546 = vmatprep.subr.mxu0 0.0
      %1547 = vmatpush2.msra.mxu0 0.0
      %1548 = vmatprep.mubr.f32.mxu0 0.0
      %v1549 = vand.u32 %v905, 4294901760
      %1550 = vmatmul.mubr.f32.gmra.mxu0 %v1549
      %v1551 = vpop.f32.mrf.mxu0
      %v1552 = vadd.f32 %v1413, %v1551
      %v1553 = vpop.f32.mrf.mxu0
      %1554 = vmatprep.mubr.f32.mxu0 0.0
      %v1555 = vand.u32 %v908, 4294901760
      %1556 = vmatmul.mubr.f32.gmra.mxu0 %v1555
      %v1557 = vpop.f32.mrf.mxu0
      %v1558 = vadd.f32 %v1421, %v1557
      %v1559 = vpop.f32.mrf.mxu0
      %1560 = vmatprep.mubr.f32.mxu0 0.0
      %v1561 = vand.u32 %v911, 4294901760
      %1562 = vmatmul.mubr.f32.gmra.mxu0 %v1561
      %v1563 = vpop.f32.mrf.mxu0
      %v1564 = vadd.f32 %v1429, %v1563
      %v1565 = vpop.f32.mrf.mxu0
      %1566 = vmatprep.mubr.f32.mxu0 0.0
      %v1567 = vand.u32 %v914, 4294901760
      %1568 = vmatmul.mubr.f32.gmra.mxu0 %v1567
      %v1569 = vpop.f32.mrf.mxu0
      %v1570 = vadd.f32 %v1437, %v1569
      %v1571 = vpop.f32.mrf.mxu0
      %1572 = vmatprep.mubr.f32.mxu0 0.0
      %v1573 = vand.u32 %v917, 4294901760
      %1574 = vmatmul.mubr.f32.gmra.mxu0 %v1573
      %v1575 = vpop.f32.mrf.mxu0
      %v1576 = vadd.f32 %v1445, %v1575
      %v1577 = vpop.f32.mrf.mxu0
      %1578 = vmatprep.mubr.f32.mxu0 0.0
      %v1579 = vand.u32 %v920, 4294901760
      %1580 = vmatmul.mubr.f32.gmra.mxu0 %v1579
      %v1581 = vpop.f32.mrf.mxu0
      %v1582 = vadd.f32 %v1453, %v1581
      %v1583 = vpop.f32.mrf.mxu0
      %1584 = vmatprep.mubr.f32.mxu0 0.0
      %v1585 = vand.u32 %v923, 4294901760
      %1586 = vmatmul.mubr.f32.gmra.mxu0 %v1585
      %v1587 = vpop.f32.mrf.mxu0
      %v1588 = vadd.f32 %v1461, %v1587
      %v1589 = vpop.f32.mrf.mxu0
      %1590 = vmatprep.mubr.f32.mxu0 0.0
      %v1591 = vand.u32 %v926, 4294901760
      %1592 = vmatmul.mubr.f32.gmra.mxu0 %v1591
      %v1593 = vpop.f32.mrf.mxu0
      %v1594 = vadd.f32 %v1469, %v1593
      %v1595 = vpop.f32.mrf.mxu0
      %1596 = vdwg.mxu0
      %1597 = vmatprep.subr.mxu0 0.0
      %1598 = vmatpush1.msra.mxu0 0.0
      %1599 = vmatprep.subr.mxu0 0.0
      %1600 = vmatpush1.msra.mxu0 0.0
      %1601 = vmatprep.subr.mxu0 0.0
      %1602 = vmatpush1.msra.mxu0 0.0
      %1603 = vmatprep.subr.mxu0 0.0
      %1604 = vmatpush1.msra.mxu0 0.0
      %1605 = vmatprep.subr.mxu0 0.0
      %1606 = vmatpush1.msra.mxu0 0.0
      %1607 = vmatprep.subr.mxu0 0.0
      %1608 = vmatpush1.msra.mxu0 0.0
      %1609 = vmatprep.subr.mxu0 0.0
      %1610 = vmatpush1.msra.mxu0 0.0
      %1611 = vmatprep.subr.mxu0 0.0
      %1612 = vmatpush1.msra.mxu0 0.0
      %1613 = vmatprep.subr.mxu0 0.0
      %1614 = vmatpush1.msra.mxu0 0.0
      %1615 = vmatprep.subr.mxu0 0.0
      %1616 = vmatpush1.msra.mxu0 0.0
      %1617 = vmatprep.subr.mxu0 0.0
      %1618 = vmatpush1.msra.mxu0 0.0
      %1619 = vmatprep.subr.mxu0 0.0
      %1620 = vmatpush1.msra.mxu0 0.0
      %1621 = vmatprep.subr.mxu0 0.0
      %v1622 = vand.u32 %v883, 4294901760
      %1623 = vmatpush1.msra.mxu0 %v1622
      %1624 = vmatprep.subr.mxu0 0.0
      %v1625 = vand.u32 %v876, 4294901760
      %1626 = vmatpush1.msra.mxu0 %v1625
      %1627 = vmatprep.subr.mxu0 0.0
      %v1628 = vand.u32 %v869, 4294901760
      %1629 = vmatpush1.msra.mxu0 %v1628
      %1630 = vmatprep.subr.mxu0 0.0
      %v1631 = vand.u32 %v862, 4294901760
      %1632 = vmatpush1.msra.mxu0 %v1631
      %1633 = vmatprep.subr.mxu0 0.0
      %1634 = vmatpush2.msra.mxu0 0.0
      %1635 = vmatprep.subr.mxu0 0.0
      %1636 = vmatpush2.msra.mxu0 0.0
      %1637 = vmatprep.subr.mxu0 0.0
      %1638 = vmatpush2.msra.mxu0 0.0
      %1639 = vmatprep.subr.mxu0 0.0
      %1640 = vmatpush2.msra.mxu0 0.0
      %1641 = vmatprep.subr.mxu0 0.0
      %1642 = vmatpush2.msra.mxu0 0.0
      %1643 = vmatprep.subr.mxu0 0.0
      %1644 = vmatpush2.msra.mxu0 0.0
      %1645 = vmatprep.subr.mxu0 0.0
      %1646 = vmatpush2.msra.mxu0 0.0
      %1647 = vmatprep.subr.mxu0 0.0
      %1648 = vmatpush2.msra.mxu0 0.0
      %1649 = vmatprep.subr.mxu0 0.0
      %1650 = vmatpush2.msra.mxu0 0.0
      %1651 = vmatprep.subr.mxu0 0.0
      %1652 = vmatpush2.msra.mxu0 0.0
      %1653 = vmatprep.subr.mxu0 0.0
      %1654 = vmatpush2.msra.mxu0 0.0
      %1655 = vmatprep.subr.mxu0 0.0
      %1656 = vmatpush2.msra.mxu0 0.0
      %1657 = vmatprep.subr.mxu0 0.0
      %1658 = vmatpush2.msra.mxu0 0.0
      %1659 = vmatprep.subr.mxu0 0.0
      %1660 = vmatpush2.msra.mxu0 0.0
      %1661 = vmatprep.subr.mxu0 0.0
      %1662 = vmatpush2.msra.mxu0 0.0
      %1663 = vmatprep.subr.mxu0 0.0
      %1664 = vmatpush2.msra.mxu0 0.0
      %1665 = vmatprep.mubr.f32.mxu0 0.0
      %v1666 = vand.u32 %v905, 4294901760
      %1667 = vmatmul.mubr.f32.gmra.mxu0 %v1666
      %v1668 = vpop.f32.mrf.mxu0
      %v1669 = vadd.f32 %v1552, %v1668
      %v1670 = vpop.f32.mrf.mxu0
      %1671 = vmatprep.mubr.f32.mxu0 0.0
      %v1672 = vand.u32 %v908, 4294901760
      %1673 = vmatmul.mubr.f32.gmra.mxu0 %v1672
      %v1674 = vpop.f32.mrf.mxu0
      %v1675 = vadd.f32 %v1558, %v1674
      %v1676 = vpop.f32.mrf.mxu0
      %1677 = vmatprep.mubr.f32.mxu0 0.0
      %v1678 = vand.u32 %v911, 4294901760
      %1679 = vmatmul.mubr.f32.gmra.mxu0 %v1678
      %v1680 = vpop.f32.mrf.mxu0
      %v1681 = vadd.f32 %v1564, %v1680
      %v1682 = vpop.f32.mrf.mxu0
      %1683 = vmatprep.mubr.f32.mxu0 0.0
      %v1684 = vand.u32 %v914, 4294901760
      %1685 = vmatmul.mubr.f32.gmra.mxu0 %v1684
      %v1686 = vpop.f32.mrf.mxu0
      %v1687 = vadd.f32 %v1570, %v1686
      %v1688 = vpop.f32.mrf.mxu0
      %1689 = vmatprep.mubr.f32.mxu0 0.0
      %v1690 = vand.u32 %v917, 4294901760
      %1691 = vmatmul.mubr.f32.gmra.mxu0 %v1690
      %v1692 = vpop.f32.mrf.mxu0
      %v1693 = vadd.f32 %v1576, %v1692
      %v1694 = vpop.f32.mrf.mxu0
      %1695 = vmatprep.mubr.f32.mxu0 0.0
      %v1696 = vand.u32 %v920, 4294901760
      %1697 = vmatmul.mubr.f32.gmra.mxu0 %v1696
      %v1698 = vpop.f32.mrf.mxu0
      %v1699 = vadd.f32 %v1582, %v1698
      %v1700 = vpop.f32.mrf.mxu0
      %1701 = vmatprep.mubr.f32.mxu0 0.0
      %v1702 = vand.u32 %v923, 4294901760
      %1703 = vmatmul.mubr.f32.gmra.mxu0 %v1702
      %v1704 = vpop.f32.mrf.mxu0
      %v1705 = vadd.f32 %v1588, %v1704
      %v1706 = vpop.f32.mrf.mxu0
      %1707 = vmatprep.mubr.f32.mxu0 0.0
      %v1708 = vand.u32 %v926, 4294901760
      %1709 = vmatmul.mubr.f32.gmra.mxu0 %v1708
      %v1710 = vpop.f32.mrf.mxu0
      %v1711 = vadd.f32 %v1594, %v1710
      %v1712 = vpop.f32.mrf.mxu0
      %1713 = vdwg.mxu0
      %1714 = vmatprep.subr.mxu0 0.0
      %1715 = vmatpush1.msra.mxu0 0.0
      %1716 = vmatprep.subr.mxu0 0.0
      %1717 = vmatpush1.msra.mxu0 0.0
      %1718 = vmatprep.subr.mxu0 0.0
      %1719 = vmatpush1.msra.mxu0 0.0
      %1720 = vmatprep.subr.mxu0 0.0
      %1721 = vmatpush1.msra.mxu0 0.0
      %1722 = vmatprep.subr.mxu0 0.0
      %1723 = vmatpush1.msra.mxu0 0.0
      %1724 = vmatprep.subr.mxu0 0.0
      %1725 = vmatpush1.msra.mxu0 0.0
      %1726 = vmatprep.subr.mxu0 0.0
      %1727 = vmatpush1.msra.mxu0 0.0
      %1728 = vmatprep.subr.mxu0 0.0
      %1729 = vmatpush1.msra.mxu0 0.0
      %1730 = vmatprep.subr.mxu0 0.0
      %1731 = vmatpush1.msra.mxu0 0.0
      %1732 = vmatprep.subr.mxu0 0.0
      %1733 = vmatpush1.msra.mxu0 0.0
      %1734 = vmatprep.subr.mxu0 0.0
      %1735 = vmatpush1.msra.mxu0 0.0
      %1736 = vmatprep.subr.mxu0 0.0
      %1737 = vmatpush1.msra.mxu0 0.0
      %1738 = vmatprep.subr.mxu0 0.0
      %v1739 = vand.u32 %v885, 4294901760
      %1740 = vmatpush1.msra.mxu0 %v1739
      %1741 = vmatprep.subr.mxu0 0.0
      %v1742 = vand.u32 %v878, 4294901760
      %1743 = vmatpush1.msra.mxu0 %v1742
      %1744 = vmatprep.subr.mxu0 0.0
      %v1745 = vand.u32 %v871, 4294901760
      %1746 = vmatpush1.msra.mxu0 %v1745
      %1747 = vmatprep.subr.mxu0 0.0
      %v1748 = vand.u32 %v864, 4294901760
      %1749 = vmatpush1.msra.mxu0 %v1748
      %1750 = vmatprep.subr.mxu0 0.0
      %1751 = vmatpush2.msra.mxu0 0.0
      %1752 = vmatprep.subr.mxu0 0.0
      %1753 = vmatpush2.msra.mxu0 0.0
      %1754 = vmatprep.subr.mxu0 0.0
      %1755 = vmatpush2.msra.mxu0 0.0
      %1756 = vmatprep.subr.mxu0 0.0
      %1757 = vmatpush2.msra.mxu0 0.0
      %1758 = vmatprep.subr.mxu0 0.0
      %1759 = vmatpush2.msra.mxu0 0.0
      %1760 = vmatprep.subr.mxu0 0.0
      %1761 = vmatpush2.msra.mxu0 0.0
      %1762 = vmatprep.subr.mxu0 0.0
      %1763 = vmatpush2.msra.mxu0 0.0
      %1764 = vmatprep.subr.mxu0 0.0
      %1765 = vmatpush2.msra.mxu0 0.0
      %1766 = vmatprep.subr.mxu0 0.0
      %1767 = vmatpush2.msra.mxu0 0.0
      %1768 = vmatprep.subr.mxu0 0.0
      %1769 = vmatpush2.msra.mxu0 0.0
      %1770 = vmatprep.subr.mxu0 0.0
      %1771 = vmatpush2.msra.mxu0 0.0
      %1772 = vmatprep.subr.mxu0 0.0
      %1773 = vmatpush2.msra.mxu0 0.0
      %1774 = vmatprep.subr.mxu0 0.0
      %1775 = vmatpush2.msra.mxu0 0.0
      %1776 = vmatprep.subr.mxu0 0.0
      %1777 = vmatpush2.msra.mxu0 0.0
      %1778 = vmatprep.subr.mxu0 0.0
      %1779 = vmatpush2.msra.mxu0 0.0
      %1780 = vmatprep.subr.mxu0 0.0
      %1781 = vmatpush2.msra.mxu0 0.0
      %1782 = vmatprep.mubr.f32.mxu0 0.0
      %v1783 = vand.u32 %v905, 4294901760
      %v1784 = vsub.f32 %v905, %v1783
      %v1785 = vand.u32 %v1784, 4294901760
      %v1786 = vsub.f32 %v1784, %v1785
      %v1787 = vand.u32 %v1786, 4294901760
      %1788 = vmatmul.mubr.f32.gmra.mxu0 %v1787
      %v1789 = vpop.f32.mrf.mxu0
      %v1790 = vadd.f32 0.0, %v1789
      %v1791 = vpop.f32.mrf.mxu0
      %1792 = vmatprep.mubr.f32.mxu0 0.0
      %v1793 = vand.u32 %v908, 4294901760
      %v1794 = vsub.f32 %v908, %v1793
      %v1795 = vand.u32 %v1794, 4294901760
      %v1796 = vsub.f32 %v1794, %v1795
      %v1797 = vand.u32 %v1796, 4294901760
      %1798 = vmatmul.mubr.f32.gmra.mxu0 %v1797
      %v1799 = vpop.f32.mrf.mxu0
      %v1800 = vadd.f32 0.0, %v1799
      %v1801 = vpop.f32.mrf.mxu0
      %1802 = vmatprep.mubr.f32.mxu0 0.0
      %v1803 = vand.u32 %v911, 4294901760
      %v1804 = vsub.f32 %v911, %v1803
      %v1805 = vand.u32 %v1804, 4294901760
      %v1806 = vsub.f32 %v1804, %v1805
      %v1807 = vand.u32 %v1806, 4294901760
      %1808 = vmatmul.mubr.f32.gmra.mxu0 %v1807
      %v1809 = vpop.f32.mrf.mxu0
      %v1810 = vadd.f32 0.0, %v1809
      %v1811 = vpop.f32.mrf.mxu0
      %1812 = vmatprep.mubr.f32.mxu0 0.0
      %v1813 = vand.u32 %v914, 4294901760
      %v1814 = vsub.f32 %v914, %v1813
      %v1815 = vand.u32 %v1814, 4294901760
      %v1816 = vsub.f32 %v1814, %v1815
      %v1817 = vand.u32 %v1816, 4294901760
      %1818 = vmatmul.mubr.f32.gmra.mxu0 %v1817
      %v1819 = vpop.f32.mrf.mxu0
      %v1820 = vadd.f32 0.0, %v1819
      %v1821 = vpop.f32.mrf.mxu0
      %1822 = vmatprep.mubr.f32.mxu0 0.0
      %v1823 = vand.u32 %v917, 4294901760
      %v1824 = vsub.f32 %v917, %v1823
      %v1825 = vand.u32 %v1824, 4294901760
      %v1826 = vsub.f32 %v1824, %v1825
      %v1827 = vand.u32 %v1826, 4294901760
      %1828 = vmatmul.mubr.f32.gmra.mxu0 %v1827
      %v1829 = vpop.f32.mrf.mxu0
      %v1830 = vadd.f32 0.0, %v1829
      %v1831 = vpop.f32.mrf.mxu0
      %1832 = vmatprep.mubr.f32.mxu0 0.0
      %v1833 = vand.u32 %v920, 4294901760
      %v1834 = vsub.f32 %v920, %v1833
      %v1835 = vand.u32 %v1834, 4294901760
      %v1836 = vsub.f32 %v1834, %v1835
      %v1837 = vand.u32 %v1836, 4294901760
      %1838 = vmatmul.mubr.f32.gmra.mxu0 %v1837
      %v1839 = vpop.f32.mrf.mxu0
      %v1840 = vadd.f32 0.0, %v1839
      %v1841 = vpop.f32.mrf.mxu0
      %1842 = vmatprep.mubr.f32.mxu0 0.0
      %v1843 = vand.u32 %v923, 4294901760
      %v1844 = vsub.f32 %v923, %v1843
      %v1845 = vand.u32 %v1844, 4294901760
      %v1846 = vsub.f32 %v1844, %v1845
      %v1847 = vand.u32 %v1846, 4294901760
      %1848 = vmatmul.mubr.f32.gmra.mxu0 %v1847
      %v1849 = vpop.f32.mrf.mxu0
      %v1850 = vadd.f32 0.0, %v1849
      %v1851 = vpop.f32.mrf.mxu0
      %1852 = vmatprep.mubr.f32.mxu0 0.0
      %v1853 = vand.u32 %v926, 4294901760
      %v1854 = vsub.f32 %v926, %v1853
      %v1855 = vand.u32 %v1854, 4294901760
      %v1856 = vsub.f32 %v1854, %v1855
      %v1857 = vand.u32 %v1856, 4294901760
      %1858 = vmatmul.mubr.f32.gmra.mxu0 %v1857
      %v1859 = vpop.f32.mrf.mxu0
      %v1860 = vadd.f32 0.0, %v1859
      %v1861 = vpop.f32.mrf.mxu0
      %1862 = vdwg.mxu0
      %1863 = vmatprep.subr.mxu0 0.0
      %1864 = vmatpush1.msra.mxu0 0.0
      %1865 = vmatprep.subr.mxu0 0.0
      %1866 = vmatpush1.msra.mxu0 0.0
      %1867 = vmatprep.subr.mxu0 0.0
      %1868 = vmatpush1.msra.mxu0 0.0
      %1869 = vmatprep.subr.mxu0 0.0
      %1870 = vmatpush1.msra.mxu0 0.0
      %1871 = vmatprep.subr.mxu0 0.0
      %1872 = vmatpush1.msra.mxu0 0.0
      %1873 = vmatprep.subr.mxu0 0.0
      %1874 = vmatpush1.msra.mxu0 0.0
      %1875 = vmatprep.subr.mxu0 0.0
      %1876 = vmatpush1.msra.mxu0 0.0
      %1877 = vmatprep.subr.mxu0 0.0
      %1878 = vmatpush1.msra.mxu0 0.0
      %1879 = vmatprep.subr.mxu0 0.0
      %1880 = vmatpush1.msra.mxu0 0.0
      %1881 = vmatprep.subr.mxu0 0.0
      %1882 = vmatpush1.msra.mxu0 0.0
      %1883 = vmatprep.subr.mxu0 0.0
      %1884 = vmatpush1.msra.mxu0 0.0
      %1885 = vmatprep.subr.mxu0 0.0
      %1886 = vmatpush1.msra.mxu0 0.0
      %1887 = vmatprep.subr.mxu0 0.0
      %v1888 = vand.u32 %v885, 4294901760
      %v1889 = vsub.f32 %v885, %v1888
      %v1890 = vand.u32 %v1889, 4294901760
      %v1891 = vsub.f32 %v1889, %v1890
      %v1892 = vand.u32 %v1891, 4294901760
      %1893 = vmatpush1.msra.mxu0 %v1892
      %1894 = vmatprep.subr.mxu0 0.0
      %v1895 = vand.u32 %v878, 4294901760
      %v1896 = vsub.f32 %v878, %v1895
      %v1897 = vand.u32 %v1896, 4294901760
      %v1898 = vsub.f32 %v1896, %v1897
      %v1899 = vand.u32 %v1898, 4294901760
      %1900 = vmatpush1.msra.mxu0 %v1899
      %1901 = vmatprep.subr.mxu0 0.0
      %v1902 = vand.u32 %v871, 4294901760
      %v1903 = vsub.f32 %v871, %v1902
      %v1904 = vand.u32 %v1903, 4294901760
      %v1905 = vsub.f32 %v1903, %v1904
      %v1906 = vand.u32 %v1905, 4294901760
      %1907 = vmatpush1.msra.mxu0 %v1906
      %1908 = vmatprep.subr.mxu0 0.0
      %v1909 = vand.u32 %v864, 4294901760
      %v1910 = vsub.f32 %v864, %v1909
      %v1911 = vand.u32 %v1910, 4294901760
      %v1912 = vsub.f32 %v1910, %v1911
      %v1913 = vand.u32 %v1912, 4294901760
      %1914 = vmatpush1.msra.mxu0 %v1913
      %1915 = vmatprep.subr.mxu0 0.0
      %1916 = vmatpush2.msra.mxu0 0.0
      %1917 = vmatprep.subr.mxu0 0.0
      %1918 = vmatpush2.msra.mxu0 0.0
      %1919 = vmatprep.subr.mxu0 0.0
      %1920 = vmatpush2.msra.mxu0 0.0
      %1921 = vmatprep.subr.mxu0 0.0
      %1922 = vmatpush2.msra.mxu0 0.0
      %1923 = vmatprep.subr.mxu0 0.0
      %1924 = vmatpush2.msra.mxu0 0.0
      %1925 = vmatprep.subr.mxu0 0.0
      %1926 = vmatpush2.msra.mxu0 0.0
      %1927 = vmatprep.subr.mxu0 0.0
      %1928 = vmatpush2.msra.mxu0 0.0
      %1929 = vmatprep.subr.mxu0 0.0
      %1930 = vmatpush2.msra.mxu0 0.0
      %1931 = vmatprep.subr.mxu0 0.0
      %1932 = vmatpush2.msra.mxu0 0.0
      %1933 = vmatprep.subr.mxu0 0.0
      %1934 = vmatpush2.msra.mxu0 0.0
      %1935 = vmatprep.subr.mxu0 0.0
      %1936 = vmatpush2.msra.mxu0 0.0
      %1937 = vmatprep.subr.mxu0 0.0
      %1938 = vmatpush2.msra.mxu0 0.0
      %1939 = vmatprep.subr.mxu0 0.0
      %1940 = vmatpush2.msra.mxu0 0.0
      %1941 = vmatprep.subr.mxu0 0.0
      %1942 = vmatpush2.msra.mxu0 0.0
      %1943 = vmatprep.subr.mxu0 0.0
      %1944 = vmatpush2.msra.mxu0 0.0
      %1945 = vmatprep.subr.mxu0 0.0
      %1946 = vmatpush2.msra.mxu0 0.0
      %1947 = vmatprep.mubr.f32.mxu0 0.0
      %v1948 = vand.u32 %v905, 4294901760
      %1949 = vmatmul.mubr.f32.gmra.mxu0 %v1948
      %v1950 = vpop.f32.mrf.mxu0
      %v1951 = vadd.f32 %v1790, %v1950
      %v1952 = vpop.f32.mrf.mxu0
      %1953 = vmatprep.mubr.f32.mxu0 0.0
      %v1954 = vand.u32 %v908, 4294901760
      %1955 = vmatmul.mubr.f32.gmra.mxu0 %v1954
      %v1956 = vpop.f32.mrf.mxu0
      %v1957 = vadd.f32 %v1800, %v1956
      %v1958 = vpop.f32.mrf.mxu0
      %1959 = vmatprep.mubr.f32.mxu0 0.0
      %v1960 = vand.u32 %v911, 4294901760
      %1961 = vmatmul.mubr.f32.gmra.mxu0 %v1960
      %v1962 = vpop.f32.mrf.mxu0
      %v1963 = vadd.f32 %v1810, %v1962
      %v1964 = vpop.f32.mrf.mxu0
      %1965 = vmatprep.mubr.f32.mxu0 0.0
      %v1966 = vand.u32 %v914, 4294901760
      %1967 = vmatmul.mubr.f32.gmra.mxu0 %v1966
      %v1968 = vpop.f32.mrf.mxu0
      %v1969 = vadd.f32 %v1820, %v1968
      %v1970 = vpop.f32.mrf.mxu0
      %1971 = vmatprep.mubr.f32.mxu0 0.0
      %v1972 = vand.u32 %v917, 4294901760
      %1973 = vmatmul.mubr.f32.gmra.mxu0 %v1972
      %v1974 = vpop.f32.mrf.mxu0
      %v1975 = vadd.f32 %v1830, %v1974
      %v1976 = vpop.f32.mrf.mxu0
      %1977 = vmatprep.mubr.f32.mxu0 0.0
      %v1978 = vand.u32 %v920, 4294901760
      %1979 = vmatmul.mubr.f32.gmra.mxu0 %v1978
      %v1980 = vpop.f32.mrf.mxu0
      %v1981 = vadd.f32 %v1840, %v1980
      %v1982 = vpop.f32.mrf.mxu0
      %1983 = vmatprep.mubr.f32.mxu0 0.0
      %v1984 = vand.u32 %v923, 4294901760
      %1985 = vmatmul.mubr.f32.gmra.mxu0 %v1984
      %v1986 = vpop.f32.mrf.mxu0
      %v1987 = vadd.f32 %v1850, %v1986
      %v1988 = vpop.f32.mrf.mxu0
      %1989 = vmatprep.mubr.f32.mxu0 0.0
      %v1990 = vand.u32 %v926, 4294901760
      %1991 = vmatmul.mubr.f32.gmra.mxu0 %v1990
      %v1992 = vpop.f32.mrf.mxu0
      %v1993 = vadd.f32 %v1860, %v1992
      %v1994 = vpop.f32.mrf.mxu0
      %1995 = vdwg.mxu0
      %1996 = vmatprep.subr.mxu0 0.0
      %1997 = vmatpush1.msra.mxu0 0.0
      %1998 = vmatprep.subr.mxu0 0.0
      %1999 = vmatpush1.msra.mxu0 0.0
      %2000 = vmatprep.subr.mxu0 0.0
      %2001 = vmatpush1.msra.mxu0 0.0
      %2002 = vmatprep.subr.mxu0 0.0
      %2003 = vmatpush1.msra.mxu0 0.0
      %2004 = vmatprep.subr.mxu0 0.0
      %2005 = vmatpush1.msra.mxu0 0.0
      %2006 = vmatprep.subr.mxu0 0.0
      %2007 = vmatpush1.msra.mxu0 0.0
      %2008 = vmatprep.subr.mxu0 0.0
      %2009 = vmatpush1.msra.mxu0 0.0
      %2010 = vmatprep.subr.mxu0 0.0
      %2011 = vmatpush1.msra.mxu0 0.0
      %2012 = vmatprep.subr.mxu0 0.0
      %2013 = vmatpush1.msra.mxu0 0.0
      %2014 = vmatprep.subr.mxu0 0.0
      %2015 = vmatpush1.msra.mxu0 0.0
      %2016 = vmatprep.subr.mxu0 0.0
      %2017 = vmatpush1.msra.mxu0 0.0
      %2018 = vmatprep.subr.mxu0 0.0
      %2019 = vmatpush1.msra.mxu0 0.0
      %2020 = vmatprep.subr.mxu0 0.0
      %v2021 = vand.u32 %v885, 4294901760
      %v2022 = vsub.f32 %v885, %v2021
      %2023 = vmatpush1.msra.mxu0 %v2022
      %2024 = vmatprep.subr.mxu0 0.0
      %v2025 = vand.u32 %v878, 4294901760
      %v2026 = vsub.f32 %v878, %v2025
      %2027 = vmatpush1.msra.mxu0 %v2026
      %2028 = vmatprep.subr.mxu0 0.0
      %v2029 = vand.u32 %v871, 4294901760
      %v2030 = vsub.f32 %v871, %v2029
      %2031 = vmatpush1.msra.mxu0 %v2030
      %2032 = vmatprep.subr.mxu0 0.0
      %v2033 = vand.u32 %v864, 4294901760
      %v2034 = vsub.f32 %v864, %v2033
      %2035 = vmatpush1.msra.mxu0 %v2034
      %2036 = vmatprep.subr.mxu0 0.0
      %2037 = vmatpush2.msra.mxu0 0.0
      %2038 = vmatprep.subr.mxu0 0.0
      %2039 = vmatpush2.msra.mxu0 0.0
      %2040 = vmatprep.subr.mxu0 0.0
      %2041 = vmatpush2.msra.mxu0 0.0
      %2042 = vmatprep.subr.mxu0 0.0
      %2043 = vmatpush2.msra.mxu0 0.0
      %2044 = vmatprep.subr.mxu0 0.0
      %2045 = vmatpush2.msra.mxu0 0.0
      %2046 = vmatprep.subr.mxu0 0.0
      %2047 = vmatpush2.msra.mxu0 0.0
      %2048 = vmatprep.subr.mxu0 0.0
      %2049 = vmatpush2.msra.mxu0 0.0
      %2050 = vmatprep.subr.mxu0 0.0
      %2051 = vmatpush2.msra.mxu0 0.0
      %2052 = vmatprep.subr.mxu0 0.0
      %2053 = vmatpush2.msra.mxu0 0.0
      %2054 = vmatprep.subr.mxu0 0.0
      %2055 = vmatpush2.msra.mxu0 0.0
      %2056 = vmatprep.subr.mxu0 0.0
      %2057 = vmatpush2.msra.mxu0 0.0
      %2058 = vmatprep.subr.mxu0 0.0
      %2059 = vmatpush2.msra.mxu0 0.0
      %2060 = vmatprep.subr.mxu0 0.0
      %2061 = vmatpush2.msra.mxu0 0.0
      %2062 = vmatprep.subr.mxu0 0.0
      %2063 = vmatpush2.msra.mxu0 0.0
      %2064 = vmatprep.subr.mxu0 0.0
      %2065 = vmatpush2.msra.mxu0 0.0
      %2066 = vmatprep.subr.mxu0 0.0
      %2067 = vmatpush2.msra.mxu0 0.0
      %2068 = vmatprep.mubr.f32.mxu0 0.0
      %v2069 = vand.u32 %v905, 4294901760
      %v2070 = vsub.f32 %v905, %v2069
      %2071 = vmatmul.mubr.f32.gmra.mxu0 %v2070
      %v2072 = vpop.f32.mrf.mxu0
      %v2073 = vadd.f32 %v1951, %v2072
      %v2074 = vpop.f32.mrf.mxu0
      %2075 = vmatprep.mubr.f32.mxu0 0.0
      %v2076 = vand.u32 %v908, 4294901760
      %v2077 = vsub.f32 %v908, %v2076
      %2078 = vmatmul.mubr.f32.gmra.mxu0 %v2077
      %v2079 = vpop.f32.mrf.mxu0
      %v2080 = vadd.f32 %v1957, %v2079
      %v2081 = vpop.f32.mrf.mxu0
      %2082 = vmatprep.mubr.f32.mxu0 0.0
      %v2083 = vand.u32 %v911, 4294901760
      %v2084 = vsub.f32 %v911, %v2083
      %2085 = vmatmul.mubr.f32.gmra.mxu0 %v2084
      %v2086 = vpop.f32.mrf.mxu0
      %v2087 = vadd.f32 %v1963, %v2086
      %v2088 = vpop.f32.mrf.mxu0
      %2089 = vmatprep.mubr.f32.mxu0 0.0
      %v2090 = vand.u32 %v914, 4294901760
      %v2091 = vsub.f32 %v914, %v2090
      %2092 = vmatmul.mubr.f32.gmra.mxu0 %v2091
      %v2093 = vpop.f32.mrf.mxu0
      %v2094 = vadd.f32 %v1969, %v2093
      %v2095 = vpop.f32.mrf.mxu0
      %2096 = vmatprep.mubr.f32.mxu0 0.0
      %v2097 = vand.u32 %v917, 4294901760
      %v2098 = vsub.f32 %v917, %v2097
      %2099 = vmatmul.mubr.f32.gmra.mxu0 %v2098
      %v2100 = vpop.f32.mrf.mxu0
      %v2101 = vadd.f32 %v1975, %v2100
      %v2102 = vpop.f32.mrf.mxu0
      %2103 = vmatprep.mubr.f32.mxu0 0.0
      %v2104 = vand.u32 %v920, 4294901760
      %v2105 = vsub.f32 %v920, %v2104
      %2106 = vmatmul.mubr.f32.gmra.mxu0 %v2105
      %v2107 = vpop.f32.mrf.mxu0
      %v2108 = vadd.f32 %v1981, %v2107
      %v2109 = vpop.f32.mrf.mxu0
      %2110 = vmatprep.mubr.f32.mxu0 0.0
      %v2111 = vand.u32 %v923, 4294901760
      %v2112 = vsub.f32 %v923, %v2111
      %2113 = vmatmul.mubr.f32.gmra.mxu0 %v2112
      %v2114 = vpop.f32.mrf.mxu0
      %v2115 = vadd.f32 %v1987, %v2114
      %v2116 = vpop.f32.mrf.mxu0
      %2117 = vmatprep.mubr.f32.mxu0 0.0
      %v2118 = vand.u32 %v926, 4294901760
      %v2119 = vsub.f32 %v926, %v2118
      %2120 = vmatmul.mubr.f32.gmra.mxu0 %v2119
      %v2121 = vpop.f32.mrf.mxu0
      %v2122 = vadd.f32 %v1993, %v2121
      %v2123 = vpop.f32.mrf.mxu0
      %2124 = vdwg.mxu0
      %2125 = vmatprep.subr.mxu0 0.0
      %2126 = vmatpush1.msra.mxu0 0.0
      %2127 = vmatprep.subr.mxu0 0.0
      %2128 = vmatpush1.msra.mxu0 0.0
      %2129 = vmatprep.subr.mxu0 0.0
      %2130 = vmatpush1.msra.mxu0 0.0
      %2131 = vmatprep.subr.mxu0 0.0
      %2132 = vmatpush1.msra.mxu0 0.0
      %2133 = vmatprep.subr.mxu0 0.0
      %2134 = vmatpush1.msra.mxu0 0.0
      %2135 = vmatprep.subr.mxu0 0.0
      %2136 = vmatpush1.msra.mxu0 0.0
      %2137 = vmatprep.subr.mxu0 0.0
      %2138 = vmatpush1.msra.mxu0 0.0
      %2139 = vmatprep.subr.mxu0 0.0
      %2140 = vmatpush1.msra.mxu0 0.0
      %2141 = vmatprep.subr.mxu0 0.0
      %2142 = vmatpush1.msra.mxu0 0.0
      %2143 = vmatprep.subr.mxu0 0.0
      %2144 = vmatpush1.msra.mxu0 0.0
      %2145 = vmatprep.subr.mxu0 0.0
      %2146 = vmatpush1.msra.mxu0 0.0
      %2147 = vmatprep.subr.mxu0 0.0
      %2148 = vmatpush1.msra.mxu0 0.0
      %2149 = vmatprep.subr.mxu0 0.0
      %v2150 = vand.u32 %v885, 4294901760
      %2151 = vmatpush1.msra.mxu0 %v2150
      %2152 = vmatprep.subr.mxu0 0.0
      %v2153 = vand.u32 %v878, 4294901760
      %2154 = vmatpush1.msra.mxu0 %v2153
      %2155 = vmatprep.subr.mxu0 0.0
      %v2156 = vand.u32 %v871, 4294901760
      %2157 = vmatpush1.msra.mxu0 %v2156
      %2158 = vmatprep.subr.mxu0 0.0
      %v2159 = vand.u32 %v864, 4294901760
      %2160 = vmatpush1.msra.mxu0 %v2159
      %2161 = vmatprep.subr.mxu0 0.0
      %2162 = vmatpush2.msra.mxu0 0.0
      %2163 = vmatprep.subr.mxu0 0.0
      %2164 = vmatpush2.msra.mxu0 0.0
      %2165 = vmatprep.subr.mxu0 0.0
      %2166 = vmatpush2.msra.mxu0 0.0
      %2167 = vmatprep.subr.mxu0 0.0
      %2168 = vmatpush2.msra.mxu0 0.0
      %2169 = vmatprep.subr.mxu0 0.0
      %2170 = vmatpush2.msra.mxu0 0.0
      %2171 = vmatprep.subr.mxu0 0.0
      %2172 = vmatpush2.msra.mxu0 0.0
      %2173 = vmatprep.subr.mxu0 0.0
      %2174 = vmatpush2.msra.mxu0 0.0
      %2175 = vmatprep.subr.mxu0 0.0
      %2176 = vmatpush2.msra.mxu0 0.0
      %2177 = vmatprep.subr.mxu0 0.0
      %2178 = vmatpush2.msra.mxu0 0.0
      %2179 = vmatprep.subr.mxu0 0.0
      %2180 = vmatpush2.msra.mxu0 0.0
      %2181 = vmatprep.subr.mxu0 0.0
      %2182 = vmatpush2.msra.mxu0 0.0
      %2183 = vmatprep.subr.mxu0 0.0
      %2184 = vmatpush2.msra.mxu0 0.0
      %2185 = vmatprep.subr.mxu0 0.0
      %2186 = vmatpush2.msra.mxu0 0.0
      %2187 = vmatprep.subr.mxu0 0.0
      %2188 = vmatpush2.msra.mxu0 0.0
      %2189 = vmatprep.subr.mxu0 0.0
      %2190 = vmatpush2.msra.mxu0 0.0
      %2191 = vmatprep.subr.mxu0 0.0
      %2192 = vmatpush2.msra.mxu0 0.0
      %2193 = vmatprep.mubr.f32.mxu0 0.0
      %v2194 = vand.u32 %v905, 4294901760
      %v2195 = vsub.f32 %v905, %v2194
      %v2196 = vand.u32 %v2195, 4294901760
      %2197 = vmatmul.mubr.f32.gmra.mxu0 %v2196
      %v2198 = vpop.f32.mrf.mxu0
      %v2199 = vadd.f32 %v2073, %v2198
      %v2200 = vpop.f32.mrf.mxu0
      %2201 = vmatprep.mubr.f32.mxu0 0.0
      %v2202 = vand.u32 %v908, 4294901760
      %v2203 = vsub.f32 %v908, %v2202
      %v2204 = vand.u32 %v2203, 4294901760
      %2205 = vmatmul.mubr.f32.gmra.mxu0 %v2204
      %v2206 = vpop.f32.mrf.mxu0
      %v2207 = vadd.f32 %v2080, %v2206
      %v2208 = vpop.f32.mrf.mxu0
      %2209 = vmatprep.mubr.f32.mxu0 0.0
      %v2210 = vand.u32 %v911, 4294901760
      %v2211 = vsub.f32 %v911, %v2210
      %v2212 = vand.u32 %v2211, 4294901760
      %2213 = vmatmul.mubr.f32.gmra.mxu0 %v2212
      %v2214 = vpop.f32.mrf.mxu0
      %v2215 = vadd.f32 %v2087, %v2214
      %v2216 = vpop.f32.mrf.mxu0
      %2217 = vmatprep.mubr.f32.mxu0 0.0
      %v2218 = vand.u32 %v914, 4294901760
      %v2219 = vsub.f32 %v914, %v2218
      %v2220 = vand.u32 %v2219, 4294901760
      %2221 = vmatmul.mubr.f32.gmra.mxu0 %v2220
      %v2222 = vpop.f32.mrf.mxu0
      %v2223 = vadd.f32 %v2094, %v2222
      %v2224 = vpop.f32.mrf.mxu0
      %2225 = vmatprep.mubr.f32.mxu0 0.0
      %v2226 = vand.u32 %v917, 4294901760
      %v2227 = vsub.f32 %v917, %v2226
      %v2228 = vand.u32 %v2227, 4294901760
      %2229 = vmatmul.mubr.f32.gmra.mxu0 %v2228
      %v2230 = vpop.f32.mrf.mxu0
      %v2231 = vadd.f32 %v2101, %v2230
      %v2232 = vpop.f32.mrf.mxu0
      %2233 = vmatprep.mubr.f32.mxu0 0.0
      %v2234 = vand.u32 %v920, 4294901760
      %v2235 = vsub.f32 %v920, %v2234
      %v2236 = vand.u32 %v2235, 4294901760
      %2237 = vmatmul.mubr.f32.gmra.mxu0 %v2236
      %v2238 = vpop.f32.mrf.mxu0
      %v2239 = vadd.f32 %v2108, %v2238
      %v2240 = vpop.f32.mrf.mxu0
      %2241 = vmatprep.mubr.f32.mxu0 0.0
      %v2242 = vand.u32 %v923, 4294901760
      %v2243 = vsub.f32 %v923, %v2242
      %v2244 = vand.u32 %v2243, 4294901760
      %2245 = vmatmul.mubr.f32.gmra.mxu0 %v2244
      %v2246 = vpop.f32.mrf.mxu0
      %v2247 = vadd.f32 %v2115, %v2246
      %v2248 = vpop.f32.mrf.mxu0
      %2249 = vmatprep.mubr.f32.mxu0 0.0
      %v2250 = vand.u32 %v926, 4294901760
      %v2251 = vsub.f32 %v926, %v2250
      %v2252 = vand.u32 %v2251, 4294901760
      %2253 = vmatmul.mubr.f32.gmra.mxu0 %v2252
      %v2254 = vpop.f32.mrf.mxu0
      %v2255 = vadd.f32 %v2122, %v2254
      %v2256 = vpop.f32.mrf.mxu0
      %2257 = vdwg.mxu0
      %2258 = vmatprep.subr.mxu0 0.0
      %2259 = vmatpush1.msra.mxu0 0.0
      %2260 = vmatprep.subr.mxu0 0.0
      %2261 = vmatpush1.msra.mxu0 0.0
      %2262 = vmatprep.subr.mxu0 0.0
      %2263 = vmatpush1.msra.mxu0 0.0
      %2264 = vmatprep.subr.mxu0 0.0
      %2265 = vmatpush1.msra.mxu0 0.0
      %2266 = vmatprep.subr.mxu0 0.0
      %2267 = vmatpush1.msra.mxu0 0.0
      %2268 = vmatprep.subr.mxu0 0.0
      %2269 = vmatpush1.msra.mxu0 0.0
      %2270 = vmatprep.subr.mxu0 0.0
      %2271 = vmatpush1.msra.mxu0 0.0
      %2272 = vmatprep.subr.mxu0 0.0
      %2273 = vmatpush1.msra.mxu0 0.0
      %2274 = vmatprep.subr.mxu0 0.0
      %2275 = vmatpush1.msra.mxu0 0.0
      %2276 = vmatprep.subr.mxu0 0.0
      %2277 = vmatpush1.msra.mxu0 0.0
      %2278 = vmatprep.subr.mxu0 0.0
      %2279 = vmatpush1.msra.mxu0 0.0
      %2280 = vmatprep.subr.mxu0 0.0
      %2281 = vmatpush1.msra.mxu0 0.0
      %2282 = vmatprep.subr.mxu0 0.0
      %v2283 = vand.u32 %v885, 4294901760
      %v2284 = vsub.f32 %v885, %v2283
      %v2285 = vand.u32 %v2284, 4294901760
      %2286 = vmatpush1.msra.mxu0 %v2285
      %2287 = vmatprep.subr.mxu0 0.0
      %v2288 = vand.u32 %v878, 4294901760
      %v2289 = vsub.f32 %v878, %v2288
      %v2290 = vand.u32 %v2289, 4294901760
      %2291 = vmatpush1.msra.mxu0 %v2290
      %2292 = vmatprep.subr.mxu0 0.0
      %v2293 = vand.u32 %v871, 4294901760
      %v2294 = vsub.f32 %v871, %v2293
      %v2295 = vand.u32 %v2294, 4294901760
      %2296 = vmatpush1.msra.mxu0 %v2295
      %2297 = vmatprep.subr.mxu0 0.0
      %v2298 = vand.u32 %v864, 4294901760
      %v2299 = vsub.f32 %v864, %v2298
      %v2300 = vand.u32 %v2299, 4294901760
      %2301 = vmatpush1.msra.mxu0 %v2300
      %2302 = vmatprep.subr.mxu0 0.0
      %2303 = vmatpush2.msra.mxu0 0.0
      %2304 = vmatprep.subr.mxu0 0.0
      %2305 = vmatpush2.msra.mxu0 0.0
      %2306 = vmatprep.subr.mxu0 0.0
      %2307 = vmatpush2.msra.mxu0 0.0
      %2308 = vmatprep.subr.mxu0 0.0
      %2309 = vmatpush2.msra.mxu0 0.0
      %2310 = vmatprep.subr.mxu0 0.0
      %2311 = vmatpush2.msra.mxu0 0.0
      %2312 = vmatprep.subr.mxu0 0.0
      %2313 = vmatpush2.msra.mxu0 0.0
      %2314 = vmatprep.subr.mxu0 0.0
      %2315 = vmatpush2.msra.mxu0 0.0
      %2316 = vmatprep.subr.mxu0 0.0
      %2317 = vmatpush2.msra.mxu0 0.0
      %2318 = vmatprep.subr.mxu0 0.0
      %2319 = vmatpush2.msra.mxu0 0.0
      %2320 = vmatprep.subr.mxu0 0.0
      %2321 = vmatpush2.msra.mxu0 0.0
      %2322 = vmatprep.subr.mxu0 0.0
      %2323 = vmatpush2.msra.mxu0 0.0
      %2324 = vmatprep.subr.mxu0 0.0
      %2325 = vmatpush2.msra.mxu0 0.0
      %2326 = vmatprep.subr.mxu0 0.0
      %2327 = vmatpush2.msra.mxu0 0.0
      %2328 = vmatprep.subr.mxu0 0.0
      %2329 = vmatpush2.msra.mxu0 0.0
      %2330 = vmatprep.subr.mxu0 0.0
      %2331 = vmatpush2.msra.mxu0 0.0
      %2332 = vmatprep.subr.mxu0 0.0
      %2333 = vmatpush2.msra.mxu0 0.0
      %2334 = vmatprep.mubr.f32.mxu0 0.0
      %v2335 = vand.u32 %v905, 4294901760
      %2336 = vmatmul.mubr.f32.gmra.mxu0 %v2335
      %v2337 = vpop.f32.mrf.mxu0
      %v2338 = vadd.f32 %v2199, %v2337
      %v2339 = vpop.f32.mrf.mxu0
      %2340 = vmatprep.mubr.f32.mxu0 0.0
      %v2341 = vand.u32 %v908, 4294901760
      %2342 = vmatmul.mubr.f32.gmra.mxu0 %v2341
      %v2343 = vpop.f32.mrf.mxu0
      %v2344 = vadd.f32 %v2207, %v2343
      %v2345 = vpop.f32.mrf.mxu0
      %2346 = vmatprep.mubr.f32.mxu0 0.0
      %v2347 = vand.u32 %v911, 4294901760
      %2348 = vmatmul.mubr.f32.gmra.mxu0 %v2347
      %v2349 = vpop.f32.mrf.mxu0
      %v2350 = vadd.f32 %v2215, %v2349
      %v2351 = vpop.f32.mrf.mxu0
      %2352 = vmatprep.mubr.f32.mxu0 0.0
      %v2353 = vand.u32 %v914, 4294901760
      %2354 = vmatmul.mubr.f32.gmra.mxu0 %v2353
      %v2355 = vpop.f32.mrf.mxu0
      %v2356 = vadd.f32 %v2223, %v2355
      %v2357 = vpop.f32.mrf.mxu0
      %2358 = vmatprep.mubr.f32.mxu0 0.0
      %v2359 = vand.u32 %v917, 4294901760
      %2360 = vmatmul.mubr.f32.gmra.mxu0 %v2359
      %v2361 = vpop.f32.mrf.mxu0
      %v2362 = vadd.f32 %v2231, %v2361
      %v2363 = vpop.f32.mrf.mxu0
      %2364 = vmatprep.mubr.f32.mxu0 0.0
      %v2365 = vand.u32 %v920, 4294901760
      %2366 = vmatmul.mubr.f32.gmra.mxu0 %v2365
      %v2367 = vpop.f32.mrf.mxu0
      %v2368 = vadd.f32 %v2239, %v2367
      %v2369 = vpop.f32.mrf.mxu0
      %2370 = vmatprep.mubr.f32.mxu0 0.0
      %v2371 = vand.u32 %v923, 4294901760
      %2372 = vmatmul.mubr.f32.gmra.mxu0 %v2371
      %v2373 = vpop.f32.mrf.mxu0
      %v2374 = vadd.f32 %v2247, %v2373
      %v2375 = vpop.f32.mrf.mxu0
      %2376 = vmatprep.mubr.f32.mxu0 0.0
      %v2377 = vand.u32 %v926, 4294901760
      %2378 = vmatmul.mubr.f32.gmra.mxu0 %v2377
      %v2379 = vpop.f32.mrf.mxu0
      %v2380 = vadd.f32 %v2255, %v2379
      %v2381 = vpop.f32.mrf.mxu0
      %2382 = vdwg.mxu0
      %2383 = vmatprep.subr.mxu0 0.0
      %2384 = vmatpush1.msra.mxu0 0.0
      %2385 = vmatprep.subr.mxu0 0.0
      %2386 = vmatpush1.msra.mxu0 0.0
      %2387 = vmatprep.subr.mxu0 0.0
      %2388 = vmatpush1.msra.mxu0 0.0
      %2389 = vmatprep.subr.mxu0 0.0
      %2390 = vmatpush1.msra.mxu0 0.0
      %2391 = vmatprep.subr.mxu0 0.0
      %2392 = vmatpush1.msra.mxu0 0.0
      %2393 = vmatprep.subr.mxu0 0.0
      %2394 = vmatpush1.msra.mxu0 0.0
      %2395 = vmatprep.subr.mxu0 0.0
      %2396 = vmatpush1.msra.mxu0 0.0
      %2397 = vmatprep.subr.mxu0 0.0
      %2398 = vmatpush1.msra.mxu0 0.0
      %2399 = vmatprep.subr.mxu0 0.0
      %2400 = vmatpush1.msra.mxu0 0.0
      %2401 = vmatprep.subr.mxu0 0.0
      %2402 = vmatpush1.msra.mxu0 0.0
      %2403 = vmatprep.subr.mxu0 0.0
      %2404 = vmatpush1.msra.mxu0 0.0
      %2405 = vmatprep.subr.mxu0 0.0
      %2406 = vmatpush1.msra.mxu0 0.0
      %2407 = vmatprep.subr.mxu0 0.0
      %v2408 = vand.u32 %v885, 4294901760
      %2409 = vmatpush1.msra.mxu0 %v2408
      %2410 = vmatprep.subr.mxu0 0.0
      %v2411 = vand.u32 %v878, 4294901760
      %2412 = vmatpush1.msra.mxu0 %v2411
      %2413 = vmatprep.subr.mxu0 0.0
      %v2414 = vand.u32 %v871, 4294901760
      %2415 = vmatpush1.msra.mxu0 %v2414
      %2416 = vmatprep.subr.mxu0 0.0
      %v2417 = vand.u32 %v864, 4294901760
      %2418 = vmatpush1.msra.mxu0 %v2417
      %2419 = vmatprep.subr.mxu0 0.0
      %2420 = vmatpush2.msra.mxu0 0.0
      %2421 = vmatprep.subr.mxu0 0.0
      %2422 = vmatpush2.msra.mxu0 0.0
      %2423 = vmatprep.subr.mxu0 0.0
      %2424 = vmatpush2.msra.mxu0 0.0
      %2425 = vmatprep.subr.mxu0 0.0
      %2426 = vmatpush2.msra.mxu0 0.0
      %2427 = vmatprep.subr.mxu0 0.0
      %2428 = vmatpush2.msra.mxu0 0.0
      %2429 = vmatprep.subr.mxu0 0.0
      %2430 = vmatpush2.msra.mxu0 0.0
      %2431 = vmatprep.subr.mxu0 0.0
      %2432 = vmatpush2.msra.mxu0 0.0
      %2433 = vmatprep.subr.mxu0 0.0
      %2434 = vmatpush2.msra.mxu0 0.0
      %2435 = vmatprep.subr.mxu0 0.0
      %2436 = vmatpush2.msra.mxu0 0.0
      %2437 = vmatprep.subr.mxu0 0.0
      %2438 = vmatpush2.msra.mxu0 0.0
      %2439 = vmatprep.subr.mxu0 0.0
      %2440 = vmatpush2.msra.mxu0 0.0
      %2441 = vmatprep.subr.mxu0 0.0
      %2442 = vmatpush2.msra.mxu0 0.0
      %2443 = vmatprep.subr.mxu0 0.0
      %2444 = vmatpush2.msra.mxu0 0.0
      %2445 = vmatprep.subr.mxu0 0.0
      %2446 = vmatpush2.msra.mxu0 0.0
      %2447 = vmatprep.subr.mxu0 0.0
      %2448 = vmatpush2.msra.mxu0 0.0
      %2449 = vmatprep.subr.mxu0 0.0
      %2450 = vmatpush2.msra.mxu0 0.0
      %2451 = vmatprep.mubr.f32.mxu0 0.0
      %v2452 = vand.u32 %v905, 4294901760
      %2453 = vmatmul.mubr.f32.gmra.mxu0 %v2452
      %v2454 = vpop.f32.mrf.mxu0
      %v2455 = vadd.f32 %v2338, %v2454
      %v2456 = vpop.f32.mrf.mxu0
      %2457 = vmatprep.mubr.f32.mxu0 0.0
      %v2458 = vand.u32 %v908, 4294901760
      %2459 = vmatmul.mubr.f32.gmra.mxu0 %v2458
      %v2460 = vpop.f32.mrf.mxu0
      %v2461 = vadd.f32 %v2344, %v2460
      %v2462 = vpop.f32.mrf.mxu0
      %2463 = vmatprep.mubr.f32.mxu0 0.0
      %v2464 = vand.u32 %v911, 4294901760
      %2465 = vmatmul.mubr.f32.gmra.mxu0 %v2464
      %v2466 = vpop.f32.mrf.mxu0
      %v2467 = vadd.f32 %v2350, %v2466
      %v2468 = vpop.f32.mrf.mxu0
      %2469 = vmatprep.mubr.f32.mxu0 0.0
      %v2470 = vand.u32 %v914, 4294901760
      %2471 = vmatmul.mubr.f32.gmra.mxu0 %v2470
      %v2472 = vpop.f32.mrf.mxu0
      %v2473 = vadd.f32 %v2356, %v2472
      %v2474 = vpop.f32.mrf.mxu0
      %2475 = vmatprep.mubr.f32.mxu0 0.0
      %v2476 = vand.u32 %v917, 4294901760
      %2477 = vmatmul.mubr.f32.gmra.mxu0 %v2476
      %v2478 = vpop.f32.mrf.mxu0
      %v2479 = vadd.f32 %v2362, %v2478
      %v2480 = vpop.f32.mrf.mxu0
      %2481 = vmatprep.mubr.f32.mxu0 0.0
      %v2482 = vand.u32 %v920, 4294901760
      %2483 = vmatmul.mubr.f32.gmra.mxu0 %v2482
      %v2484 = vpop.f32.mrf.mxu0
      %v2485 = vadd.f32 %v2368, %v2484
      %v2486 = vpop.f32.mrf.mxu0
      %2487 = vmatprep.mubr.f32.mxu0 0.0
      %v2488 = vand.u32 %v923, 4294901760
      %2489 = vmatmul.mubr.f32.gmra.mxu0 %v2488
      %v2490 = vpop.f32.mrf.mxu0
      %v2491 = vadd.f32 %v2374, %v2490
      %v2492 = vpop.f32.mrf.mxu0
      %2493 = vmatprep.mubr.f32.mxu0 0.0
      %v2494 = vand.u32 %v926, 4294901760
      %2495 = vmatmul.mubr.f32.gmra.mxu0 %v2494
      %v2496 = vpop.f32.mrf.mxu0
      %v2497 = vadd.f32 %v2380, %v2496
      %v2498 = vpop.f32.mrf.mxu0
      %2499 = vdwg.mxu0
      %2500 = vmatprep.subr.mxu0 0.0
      %2501 = vmatpush1.xpose.msra.mxu0 0.0
      %2502 = vmatprep.subr.mxu0 0.0
      %2503 = vmatpush1.xpose.msra.mxu0 0.0
      %2504 = vmatprep.subr.mxu0 0.0
      %2505 = vmatpush1.xpose.msra.mxu0 0.0
      %2506 = vmatprep.subr.mxu0 0.0
      %2507 = vmatpush1.xpose.msra.mxu0 0.0
      %2508 = vmatprep.subr.mxu0 0.0
      %2509 = vmatpush1.xpose.msra.mxu0 0.0
      %2510 = vmatprep.subr.mxu0 0.0
      %2511 = vmatpush1.xpose.msra.mxu0 0.0
      %2512 = vmatprep.subr.mxu0 0.0
      %2513 = vmatpush1.xpose.msra.mxu0 0.0
      %2514 = vmatprep.subr.mxu0 0.0
      %2515 = vmatpush1.xpose.msra.mxu0 0.0
      %2516 = vmatprep.subr.mxu0 0.0
      %2517 = vmatpush1.xpose.msra.mxu0 0.0
      %2518 = vmatprep.subr.mxu0 0.0
      %2519 = vmatpush1.xpose.msra.mxu0 0.0
      %2520 = vmatprep.subr.mxu0 0.0
      %2521 = vmatpush1.xpose.msra.mxu0 0.0
      %2522 = vmatprep.subr.mxu0 0.0
      %2523 = vmatpush1.xpose.msra.mxu0 0.0
      %2524 = vmatprep.subr.mxu0 0.0
      %v2525 = vand.u32 %v1687, 4294901760
      %2526 = vmatpush1.xpose.msra.mxu0 %v2525
      %2527 = vmatprep.subr.mxu0 0.0
      %v2528 = vand.u32 %v1681, 4294901760
      %2529 = vmatpush1.xpose.msra.mxu0 %v2528
      %2530 = vmatprep.subr.mxu0 0.0
      %v2531 = vand.u32 %v1675, 4294901760
      %2532 = vmatpush1.xpose.msra.mxu0 %v2531
      %2533 = vmatprep.subr.mxu0 0.0
      %v2534 = vand.u32 %v1669, 4294901760
      %2535 = vmatpush1.xpose.msra.mxu0 %v2534
      %2536 = vmatprep.subr.mxu0 0.0
      %2537 = vmatpush2.xpose.msra.mxu0 0.0
      %2538 = vmatprep.subr.mxu0 0.0
      %2539 = vmatpush2.xpose.msra.mxu0 0.0
      %2540 = vmatprep.subr.mxu0 0.0
      %2541 = vmatpush2.xpose.msra.mxu0 0.0
      %2542 = vmatprep.subr.mxu0 0.0
      %2543 = vmatpush2.xpose.msra.mxu0 0.0
      %2544 = vmatprep.subr.mxu0 0.0
      %2545 = vmatpush2.xpose.msra.mxu0 0.0
      %2546 = vmatprep.subr.mxu0 0.0
      %2547 = vmatpush2.xpose.msra.mxu0 0.0
      %2548 = vmatprep.subr.mxu0 0.0
      %2549 = vmatpush2.xpose.msra.mxu0 0.0
      %2550 = vmatprep.subr.mxu0 0.0
      %2551 = vmatpush2.xpose.msra.mxu0 0.0
      %2552 = vmatprep.subr.mxu0 0.0
      %2553 = vmatpush2.xpose.msra.mxu0 0.0
      %2554 = vmatprep.subr.mxu0 0.0
      %2555 = vmatpush2.xpose.msra.mxu0 0.0
      %2556 = vmatprep.subr.mxu0 0.0
      %2557 = vmatpush2.xpose.msra.mxu0 0.0
      %2558 = vmatprep.subr.mxu0 0.0
      %2559 = vmatpush2.xpose.msra.mxu0 0.0
      %2560 = vmatprep.subr.mxu0 0.0
      %2561 = vmatpush2.xpose.msra.mxu0 0.0
      %2562 = vmatprep.subr.mxu0 0.0
      %2563 = vmatpush2.xpose.msra.mxu0 0.0
      %2564 = vmatprep.subr.mxu0 0.0
      %2565 = vmatpush2.xpose.msra.mxu0 0.0
      %2566 = vmatprep.subr.mxu0 0.0
      %2567 = vmatpush2.xpose.msra.mxu0 0.0
      %2568 = vmatprep.mubr.f32.mxu0 0.0
      %v2569 = vand.u32 %v862, 4294901760
      %v2570 = vsub.f32 %v862, %v2569
      %v2571 = vand.u32 %v2570, 4294901760
      %v2572 = vsub.f32 %v2570, %v2571
      %v2573 = vand.u32 %v2572, 4294901760
      %2574 = vmatmul.mubr.f32.gmra.mxu0 %v2573
      %v2575 = vpop.f32.mrf.mxu0
      %v2576 = vadd.f32 0.0, %v2575
      %v2577 = vpop.f32.mrf.mxu0
      %2578 = vmatprep.mubr.f32.mxu0 0.0
      %v2579 = vand.u32 %v869, 4294901760
      %v2580 = vsub.f32 %v869, %v2579
      %v2581 = vand.u32 %v2580, 4294901760
      %v2582 = vsub.f32 %v2580, %v2581
      %v2583 = vand.u32 %v2582, 4294901760
      %2584 = vmatmul.mubr.f32.gmra.mxu0 %v2583
      %v2585 = vpop.f32.mrf.mxu0
      %v2586 = vadd.f32 0.0, %v2585
      %v2587 = vpop.f32.mrf.mxu0
      %2588 = vmatprep.mubr.f32.mxu0 0.0
      %v2589 = vand.u32 %v876, 4294901760
      %v2590 = vsub.f32 %v876, %v2589
      %v2591 = vand.u32 %v2590, 4294901760
      %v2592 = vsub.f32 %v2590, %v2591
      %v2593 = vand.u32 %v2592, 4294901760
      %2594 = vmatmul.mubr.f32.gmra.mxu0 %v2593
      %v2595 = vpop.f32.mrf.mxu0
      %v2596 = vadd.f32 0.0, %v2595
      %v2597 = vpop.f32.mrf.mxu0
      %2598 = vmatprep.mubr.f32.mxu0 0.0
      %v2599 = vand.u32 %v883, 4294901760
      %v2600 = vsub.f32 %v883, %v2599
      %v2601 = vand.u32 %v2600, 4294901760
      %v2602 = vsub.f32 %v2600, %v2601
      %v2603 = vand.u32 %v2602, 4294901760
      %2604 = vmatmul.mubr.f32.gmra.mxu0 %v2603
      %v2605 = vpop.f32.mrf.mxu0
      %v2606 = vadd.f32 0.0, %v2605
      %v2607 = vpop.f32.mrf.mxu0
      %2608 = vmatprep.mubr.f32.mxu0 0.0
      %v2609 = vand.u32 %v864, 4294901760
      %v2610 = vsub.f32 %v864, %v2609
      %v2611 = vand.u32 %v2610, 4294901760
      %v2612 = vsub.f32 %v2610, %v2611
      %v2613 = vand.u32 %v2612, 4294901760
      %2614 = vmatmul.mubr.f32.gmra.mxu0 %v2613
      %v2615 = vpop.f32.mrf.mxu0
      %v2616 = vadd.f32 0.0, %v2615
      %v2617 = vpop.f32.mrf.mxu0
      %2618 = vmatprep.mubr.f32.mxu0 0.0
      %v2619 = vand.u32 %v871, 4294901760
      %v2620 = vsub.f32 %v871, %v2619
      %v2621 = vand.u32 %v2620, 4294901760
      %v2622 = vsub.f32 %v2620, %v2621
      %v2623 = vand.u32 %v2622, 4294901760
      %2624 = vmatmul.mubr.f32.gmra.mxu0 %v2623
      %v2625 = vpop.f32.mrf.mxu0
      %v2626 = vadd.f32 0.0, %v2625
      %v2627 = vpop.f32.mrf.mxu0
      %2628 = vmatprep.mubr.f32.mxu0 0.0
      %v2629 = vand.u32 %v878, 4294901760
      %v2630 = vsub.f32 %v878, %v2629
      %v2631 = vand.u32 %v2630, 4294901760
      %v2632 = vsub.f32 %v2630, %v2631
      %v2633 = vand.u32 %v2632, 4294901760
      %2634 = vmatmul.mubr.f32.gmra.mxu0 %v2633
      %v2635 = vpop.f32.mrf.mxu0
      %v2636 = vadd.f32 0.0, %v2635
      %v2637 = vpop.f32.mrf.mxu0
      %2638 = vmatprep.mubr.f32.mxu0 0.0
      %v2639 = vand.u32 %v885, 4294901760
      %v2640 = vsub.f32 %v885, %v2639
      %v2641 = vand.u32 %v2640, 4294901760
      %v2642 = vsub.f32 %v2640, %v2641
      %v2643 = vand.u32 %v2642, 4294901760
      %2644 = vmatmul.mubr.f32.gmra.mxu0 %v2643
      %v2645 = vpop.f32.mrf.mxu0
      %v2646 = vadd.f32 0.0, %v2645
      %v2647 = vpop.f32.mrf.mxu0
      %2648 = vdwg.mxu0
      %2649 = vmatprep.subr.mxu0 0.0
      %2650 = vmatpush1.xpose.msra.mxu0 0.0
      %2651 = vmatprep.subr.mxu0 0.0
      %2652 = vmatpush1.xpose.msra.mxu0 0.0
      %2653 = vmatprep.subr.mxu0 0.0
      %2654 = vmatpush1.xpose.msra.mxu0 0.0
      %2655 = vmatprep.subr.mxu0 0.0
      %2656 = vmatpush1.xpose.msra.mxu0 0.0
      %2657 = vmatprep.subr.mxu0 0.0
      %2658 = vmatpush1.xpose.msra.mxu0 0.0
      %2659 = vmatprep.subr.mxu0 0.0
      %2660 = vmatpush1.xpose.msra.mxu0 0.0
      %2661 = vmatprep.subr.mxu0 0.0
      %2662 = vmatpush1.xpose.msra.mxu0 0.0
      %2663 = vmatprep.subr.mxu0 0.0
      %2664 = vmatpush1.xpose.msra.mxu0 0.0
      %2665 = vmatprep.subr.mxu0 0.0
      %2666 = vmatpush1.xpose.msra.mxu0 0.0
      %2667 = vmatprep.subr.mxu0 0.0
      %2668 = vmatpush1.xpose.msra.mxu0 0.0
      %2669 = vmatprep.subr.mxu0 0.0
      %2670 = vmatpush1.xpose.msra.mxu0 0.0
      %2671 = vmatprep.subr.mxu0 0.0
      %2672 = vmatpush1.xpose.msra.mxu0 0.0
      %2673 = vmatprep.subr.mxu0 0.0
      %v2674 = vand.u32 %v1687, 4294901760
      %v2675 = vsub.f32 %v1687, %v2674
      %v2676 = vand.u32 %v2675, 4294901760
      %v2677 = vsub.f32 %v2675, %v2676
      %v2678 = vand.u32 %v2677, 4294901760
      %2679 = vmatpush1.xpose.msra.mxu0 %v2678
      %2680 = vmatprep.subr.mxu0 0.0
      %v2681 = vand.u32 %v1681, 4294901760
      %v2682 = vsub.f32 %v1681, %v2681
      %v2683 = vand.u32 %v2682, 4294901760
      %v2684 = vsub.f32 %v2682, %v2683
      %v2685 = vand.u32 %v2684, 4294901760
      %2686 = vmatpush1.xpose.msra.mxu0 %v2685
      %2687 = vmatprep.subr.mxu0 0.0
      %v2688 = vand.u32 %v1675, 4294901760
      %v2689 = vsub.f32 %v1675, %v2688
      %v2690 = vand.u32 %v2689, 4294901760
      %v2691 = vsub.f32 %v2689, %v2690
      %v2692 = vand.u32 %v2691, 4294901760
      %2693 = vmatpush1.xpose.msra.mxu0 %v2692
      %2694 = vmatprep.subr.mxu0 0.0
      %v2695 = vand.u32 %v1669, 4294901760
      %v2696 = vsub.f32 %v1669, %v2695
      %v2697 = vand.u32 %v2696, 4294901760
      %v2698 = vsub.f32 %v2696, %v2697
      %v2699 = vand.u32 %v2698, 4294901760
      %2700 = vmatpush1.xpose.msra.mxu0 %v2699
      %2701 = vmatprep.subr.mxu0 0.0
      %2702 = vmatpush2.xpose.msra.mxu0 0.0
      %2703 = vmatprep.subr.mxu0 0.0
      %2704 = vmatpush2.xpose.msra.mxu0 0.0
      %2705 = vmatprep.subr.mxu0 0.0
      %2706 = vmatpush2.xpose.msra.mxu0 0.0
      %2707 = vmatprep.subr.mxu0 0.0
      %2708 = vmatpush2.xpose.msra.mxu0 0.0
      %2709 = vmatprep.subr.mxu0 0.0
      %2710 = vmatpush2.xpose.msra.mxu0 0.0
      %2711 = vmatprep.subr.mxu0 0.0
      %2712 = vmatpush2.xpose.msra.mxu0 0.0
      %2713 = vmatprep.subr.mxu0 0.0
      %2714 = vmatpush2.xpose.msra.mxu0 0.0
      %2715 = vmatprep.subr.mxu0 0.0
      %2716 = vmatpush2.xpose.msra.mxu0 0.0
      %2717 = vmatprep.subr.mxu0 0.0
      %2718 = vmatpush2.xpose.msra.mxu0 0.0
      %2719 = vmatprep.subr.mxu0 0.0
      %2720 = vmatpush2.xpose.msra.mxu0 0.0
      %2721 = vmatprep.subr.mxu0 0.0
      %2722 = vmatpush2.xpose.msra.mxu0 0.0
      %2723 = vmatprep.subr.mxu0 0.0
      %2724 = vmatpush2.xpose.msra.mxu0 0.0
      %2725 = vmatprep.subr.mxu0 0.0
      %2726 = vmatpush2.xpose.msra.mxu0 0.0
      %2727 = vmatprep.subr.mxu0 0.0
      %2728 = vmatpush2.xpose.msra.mxu0 0.0
      %2729 = vmatprep.subr.mxu0 0.0
      %2730 = vmatpush2.xpose.msra.mxu0 0.0
      %2731 = vmatprep.subr.mxu0 0.0
      %2732 = vmatpush2.xpose.msra.mxu0 0.0
      %2733 = vmatprep.mubr.f32.mxu0 0.0
      %v2734 = vand.u32 %v862, 4294901760
      %2735 = vmatmul.mubr.f32.gmra.mxu0 %v2734
      %v2736 = vpop.f32.mrf.mxu0
      %v2737 = vadd.f32 %v2576, %v2736
      %v2738 = vpop.f32.mrf.mxu0
      %2739 = vmatprep.mubr.f32.mxu0 0.0
      %v2740 = vand.u32 %v869, 4294901760
      %2741 = vmatmul.mubr.f32.gmra.mxu0 %v2740
      %v2742 = vpop.f32.mrf.mxu0
      %v2743 = vadd.f32 %v2586, %v2742
      %v2744 = vpop.f32.mrf.mxu0
      %2745 = vmatprep.mubr.f32.mxu0 0.0
      %v2746 = vand.u32 %v876, 4294901760
      %2747 = vmatmul.mubr.f32.gmra.mxu0 %v2746
      %v2748 = vpop.f32.mrf.mxu0
      %v2749 = vadd.f32 %v2596, %v2748
      %v2750 = vpop.f32.mrf.mxu0
      %2751 = vmatprep.mubr.f32.mxu0 0.0
      %v2752 = vand.u32 %v883, 4294901760
      %2753 = vmatmul.mubr.f32.gmra.mxu0 %v2752
      %v2754 = vpop.f32.mrf.mxu0
      %v2755 = vadd.f32 %v2606, %v2754
      %v2756 = vpop.f32.mrf.mxu0
      %2757 = vmatprep.mubr.f32.mxu0 0.0
      %v2758 = vand.u32 %v864, 4294901760
      %2759 = vmatmul.mubr.f32.gmra.mxu0 %v2758
      %v2760 = vpop.f32.mrf.mxu0
      %v2761 = vadd.f32 %v2616, %v2760
      %v2762 = vpop.f32.mrf.mxu0
      %2763 = vmatprep.mubr.f32.mxu0 0.0
      %v2764 = vand.u32 %v871, 4294901760
      %2765 = vmatmul.mubr.f32.gmra.mxu0 %v2764
      %v2766 = vpop.f32.mrf.mxu0
      %v2767 = vadd.f32 %v2626, %v2766
      %v2768 = vpop.f32.mrf.mxu0
      %2769 = vmatprep.mubr.f32.mxu0 0.0
      %v2770 = vand.u32 %v878, 4294901760
      %2771 = vmatmul.mubr.f32.gmra.mxu0 %v2770
      %v2772 = vpop.f32.mrf.mxu0
      %v2773 = vadd.f32 %v2636, %v2772
      %v2774 = vpop.f32.mrf.mxu0
      %2775 = vmatprep.mubr.f32.mxu0 0.0
      %v2776 = vand.u32 %v885, 4294901760
      %2777 = vmatmul.mubr.f32.gmra.mxu0 %v2776
      %v2778 = vpop.f32.mrf.mxu0
      %v2779 = vadd.f32 %v2646, %v2778
      %v2780 = vpop.f32.mrf.mxu0
      %2781 = vdwg.mxu0
      %2782 = vmatprep.subr.mxu0 0.0
      %2783 = vmatpush1.xpose.msra.mxu0 0.0
      %2784 = vmatprep.subr.mxu0 0.0
      %2785 = vmatpush1.xpose.msra.mxu0 0.0
      %2786 = vmatprep.subr.mxu0 0.0
      %2787 = vmatpush1.xpose.msra.mxu0 0.0
      %2788 = vmatprep.subr.mxu0 0.0
      %2789 = vmatpush1.xpose.msra.mxu0 0.0
      %2790 = vmatprep.subr.mxu0 0.0
      %2791 = vmatpush1.xpose.msra.mxu0 0.0
      %2792 = vmatprep.subr.mxu0 0.0
      %2793 = vmatpush1.xpose.msra.mxu0 0.0
      %2794 = vmatprep.subr.mxu0 0.0
      %2795 = vmatpush1.xpose.msra.mxu0 0.0
      %2796 = vmatprep.subr.mxu0 0.0
      %2797 = vmatpush1.xpose.msra.mxu0 0.0
      %2798 = vmatprep.subr.mxu0 0.0
      %2799 = vmatpush1.xpose.msra.mxu0 0.0
      %2800 = vmatprep.subr.mxu0 0.0
      %2801 = vmatpush1.xpose.msra.mxu0 0.0
      %2802 = vmatprep.subr.mxu0 0.0
      %2803 = vmatpush1.xpose.msra.mxu0 0.0
      %2804 = vmatprep.subr.mxu0 0.0
      %2805 = vmatpush1.xpose.msra.mxu0 0.0
      %2806 = vmatprep.subr.mxu0 0.0
      %v2807 = vand.u32 %v1687, 4294901760
      %v2808 = vsub.f32 %v1687, %v2807
      %2809 = vmatpush1.xpose.msra.mxu0 %v2808
      %2810 = vmatprep.subr.mxu0 0.0
      %v2811 = vand.u32 %v1681, 4294901760
      %v2812 = vsub.f32 %v1681, %v2811
      %2813 = vmatpush1.xpose.msra.mxu0 %v2812
      %2814 = vmatprep.subr.mxu0 0.0
      %v2815 = vand.u32 %v1675, 4294901760
      %v2816 = vsub.f32 %v1675, %v2815
      %2817 = vmatpush1.xpose.msra.mxu0 %v2816
      %2818 = vmatprep.subr.mxu0 0.0
      %v2819 = vand.u32 %v1669, 4294901760
      %v2820 = vsub.f32 %v1669, %v2819
      %2821 = vmatpush1.xpose.msra.mxu0 %v2820
      %2822 = vmatprep.subr.mxu0 0.0
      %2823 = vmatpush2.xpose.msra.mxu0 0.0
      %2824 = vmatprep.subr.mxu0 0.0
      %2825 = vmatpush2.xpose.msra.mxu0 0.0
      %2826 = vmatprep.subr.mxu0 0.0
      %2827 = vmatpush2.xpose.msra.mxu0 0.0
      %2828 = vmatprep.subr.mxu0 0.0
      %2829 = vmatpush2.xpose.msra.mxu0 0.0
      %2830 = vmatprep.subr.mxu0 0.0
      %2831 = vmatpush2.xpose.msra.mxu0 0.0
      %2832 = vmatprep.subr.mxu0 0.0
      %2833 = vmatpush2.xpose.msra.mxu0 0.0
      %2834 = vmatprep.subr.mxu0 0.0
      %2835 = vmatpush2.xpose.msra.mxu0 0.0
      %2836 = vmatprep.subr.mxu0 0.0
      %2837 = vmatpush2.xpose.msra.mxu0 0.0
      %2838 = vmatprep.subr.mxu0 0.0
      %2839 = vmatpush2.xpose.msra.mxu0 0.0
      %2840 = vmatprep.subr.mxu0 0.0
      %2841 = vmatpush2.xpose.msra.mxu0 0.0
      %2842 = vmatprep.subr.mxu0 0.0
      %2843 = vmatpush2.xpose.msra.mxu0 0.0
      %2844 = vmatprep.subr.mxu0 0.0
      %2845 = vmatpush2.xpose.msra.mxu0 0.0
      %2846 = vmatprep.subr.mxu0 0.0
      %2847 = vmatpush2.xpose.msra.mxu0 0.0
      %2848 = vmatprep.subr.mxu0 0.0
      %2849 = vmatpush2.xpose.msra.mxu0 0.0
      %2850 = vmatprep.subr.mxu0 0.0
      %2851 = vmatpush2.xpose.msra.mxu0 0.0
      %2852 = vmatprep.subr.mxu0 0.0
      %2853 = vmatpush2.xpose.msra.mxu0 0.0
      %2854 = vmatprep.mubr.f32.mxu0 0.0
      %v2855 = vand.u32 %v862, 4294901760
      %v2856 = vsub.f32 %v862, %v2855
      %2857 = vmatmul.mubr.f32.gmra.mxu0 %v2856
      %v2858 = vpop.f32.mrf.mxu0
      %v2859 = vadd.f32 %v2737, %v2858
      %v2860 = vpop.f32.mrf.mxu0
      %2861 = vmatprep.mubr.f32.mxu0 0.0
      %v2862 = vand.u32 %v869, 4294901760
      %v2863 = vsub.f32 %v869, %v2862
      %2864 = vmatmul.mubr.f32.gmra.mxu0 %v2863
      %v2865 = vpop.f32.mrf.mxu0
      %v2866 = vadd.f32 %v2743, %v2865
      %v2867 = vpop.f32.mrf.mxu0
      %2868 = vmatprep.mubr.f32.mxu0 0.0
      %v2869 = vand.u32 %v876, 4294901760
      %v2870 = vsub.f32 %v876, %v2869
      %2871 = vmatmul.mubr.f32.gmra.mxu0 %v2870
      %v2872 = vpop.f32.mrf.mxu0
      %v2873 = vadd.f32 %v2749, %v2872
      %v2874 = vpop.f32.mrf.mxu0
      %2875 = vmatprep.mubr.f32.mxu0 0.0
      %v2876 = vand.u32 %v883, 4294901760
      %v2877 = vsub.f32 %v883, %v2876
      %2878 = vmatmul.mubr.f32.gmra.mxu0 %v2877
      %v2879 = vpop.f32.mrf.mxu0
      %v2880 = vadd.f32 %v2755, %v2879
      %v2881 = vpop.f32.mrf.mxu0
      %2882 = vmatprep.mubr.f32.mxu0 0.0
      %v2883 = vand.u32 %v864, 4294901760
      %v2884 = vsub.f32 %v864, %v2883
      %2885 = vmatmul.mubr.f32.gmra.mxu0 %v2884
      %v2886 = vpop.f32.mrf.mxu0
      %v2887 = vadd.f32 %v2761, %v2886
      %v2888 = vpop.f32.mrf.mxu0
      %2889 = vmatprep.mubr.f32.mxu0 0.0
      %v2890 = vand.u32 %v871, 4294901760
      %v2891 = vsub.f32 %v871, %v2890
      %2892 = vmatmul.mubr.f32.gmra.mxu0 %v2891
      %v2893 = vpop.f32.mrf.mxu0
      %v2894 = vadd.f32 %v2767, %v2893
      %v2895 = vpop.f32.mrf.mxu0
      %2896 = vmatprep.mubr.f32.mxu0 0.0
      %v2897 = vand.u32 %v878, 4294901760
      %v2898 = vsub.f32 %v878, %v2897
      %2899 = vmatmul.mubr.f32.gmra.mxu0 %v2898
      %v2900 = vpop.f32.mrf.mxu0
      %v2901 = vadd.f32 %v2773, %v2900
      %v2902 = vpop.f32.mrf.mxu0
      %2903 = vmatprep.mubr.f32.mxu0 0.0
      %v2904 = vand.u32 %v885, 4294901760
      %v2905 = vsub.f32 %v885, %v2904
      %2906 = vmatmul.mubr.f32.gmra.mxu0 %v2905
      %v2907 = vpop.f32.mrf.mxu0
      %v2908 = vadd.f32 %v2779, %v2907
      %v2909 = vpop.f32.mrf.mxu0
      %2910 = vdwg.mxu0
      %2911 = vmatprep.subr.mxu0 0.0
      %2912 = vmatpush1.xpose.msra.mxu0 0.0
      %2913 = vmatprep.subr.mxu0 0.0
      %2914 = vmatpush1.xpose.msra.mxu0 0.0
      %2915 = vmatprep.subr.mxu0 0.0
      %2916 = vmatpush1.xpose.msra.mxu0 0.0
      %2917 = vmatprep.subr.mxu0 0.0
      %2918 = vmatpush1.xpose.msra.mxu0 0.0
      %2919 = vmatprep.subr.mxu0 0.0
      %2920 = vmatpush1.xpose.msra.mxu0 0.0
      %2921 = vmatprep.subr.mxu0 0.0
      %2922 = vmatpush1.xpose.msra.mxu0 0.0
      %2923 = vmatprep.subr.mxu0 0.0
      %2924 = vmatpush1.xpose.msra.mxu0 0.0
      %2925 = vmatprep.subr.mxu0 0.0
      %2926 = vmatpush1.xpose.msra.mxu0 0.0
      %2927 = vmatprep.subr.mxu0 0.0
      %2928 = vmatpush1.xpose.msra.mxu0 0.0
      %2929 = vmatprep.subr.mxu0 0.0
      %2930 = vmatpush1.xpose.msra.mxu0 0.0
      %2931 = vmatprep.subr.mxu0 0.0
      %2932 = vmatpush1.xpose.msra.mxu0 0.0
      %2933 = vmatprep.subr.mxu0 0.0
      %2934 = vmatpush1.xpose.msra.mxu0 0.0
      %2935 = vmatprep.subr.mxu0 0.0
      %v2936 = vand.u32 %v1687, 4294901760
      %2937 = vmatpush1.xpose.msra.mxu0 %v2936
      %2938 = vmatprep.subr.mxu0 0.0
      %v2939 = vand.u32 %v1681, 4294901760
      %2940 = vmatpush1.xpose.msra.mxu0 %v2939
      %2941 = vmatprep.subr.mxu0 0.0
      %v2942 = vand.u32 %v1675, 4294901760
      %2943 = vmatpush1.xpose.msra.mxu0 %v2942
      %2944 = vmatprep.subr.mxu0 0.0
      %v2945 = vand.u32 %v1669, 4294901760
      %2946 = vmatpush1.xpose.msra.mxu0 %v2945
      %2947 = vmatprep.subr.mxu0 0.0
      %2948 = vmatpush2.xpose.msra.mxu0 0.0
      %2949 = vmatprep.subr.mxu0 0.0
      %2950 = vmatpush2.xpose.msra.mxu0 0.0
      %2951 = vmatprep.subr.mxu0 0.0
      %2952 = vmatpush2.xpose.msra.mxu0 0.0
      %2953 = vmatprep.subr.mxu0 0.0
      %2954 = vmatpush2.xpose.msra.mxu0 0.0
      %2955 = vmatprep.subr.mxu0 0.0
      %2956 = vmatpush2.xpose.msra.mxu0 0.0
      %2957 = vmatprep.subr.mxu0 0.0
      %2958 = vmatpush2.xpose.msra.mxu0 0.0
      %2959 = vmatprep.subr.mxu0 0.0
      %2960 = vmatpush2.xpose.msra.mxu0 0.0
      %2961 = vmatprep.subr.mxu0 0.0
      %2962 = vmatpush2.xpose.msra.mxu0 0.0
      %2963 = vmatprep.subr.mxu0 0.0
      %2964 = vmatpush2.xpose.msra.mxu0 0.0
      %2965 = vmatprep.subr.mxu0 0.0
      %2966 = vmatpush2.xpose.msra.mxu0 0.0
      %2967 = vmatprep.subr.mxu0 0.0
      %2968 = vmatpush2.xpose.msra.mxu0 0.0
      %2969 = vmatprep.subr.mxu0 0.0
      %2970 = vmatpush2.xpose.msra.mxu0 0.0
      %2971 = vmatprep.subr.mxu0 0.0
      %2972 = vmatpush2.xpose.msra.mxu0 0.0
      %2973 = vmatprep.subr.mxu0 0.0
      %2974 = vmatpush2.xpose.msra.mxu0 0.0
      %2975 = vmatprep.subr.mxu0 0.0
      %2976 = vmatpush2.xpose.msra.mxu0 0.0
      %2977 = vmatprep.subr.mxu0 0.0
      %2978 = vmatpush2.xpose.msra.mxu0 0.0
      %2979 = vmatprep.mubr.f32.mxu0 0.0
      %v2980 = vand.u32 %v862, 4294901760
      %v2981 = vsub.f32 %v862, %v2980
      %v2982 = vand.u32 %v2981, 4294901760
      %2983 = vmatmul.mubr.f32.gmra.mxu0 %v2982
      %v2984 = vpop.f32.mrf.mxu0
      %v2985 = vadd.f32 %v2859, %v2984
      %v2986 = vpop.f32.mrf.mxu0
      %2987 = vmatprep.mubr.f32.mxu0 0.0
      %v2988 = vand.u32 %v869, 4294901760
      %v2989 = vsub.f32 %v869, %v2988
      %v2990 = vand.u32 %v2989, 4294901760
      %2991 = vmatmul.mubr.f32.gmra.mxu0 %v2990
      %v2992 = vpop.f32.mrf.mxu0
      %v2993 = vadd.f32 %v2866, %v2992
      %v2994 = vpop.f32.mrf.mxu0
      %2995 = vmatprep.mubr.f32.mxu0 0.0
      %v2996 = vand.u32 %v876, 4294901760
      %v2997 = vsub.f32 %v876, %v2996
      %v2998 = vand.u32 %v2997, 4294901760
      %2999 = vmatmul.mubr.f32.gmra.mxu0 %v2998
      %v3000 = vpop.f32.mrf.mxu0
      %v3001 = vadd.f32 %v2873, %v3000
      %v3002 = vpop.f32.mrf.mxu0
      %3003 = vmatprep.mubr.f32.mxu0 0.0
      %v3004 = vand.u32 %v883, 4294901760
      %v3005 = vsub.f32 %v883, %v3004
      %v3006 = vand.u32 %v3005, 4294901760
      %3007 = vmatmul.mubr.f32.gmra.mxu0 %v3006
      %v3008 = vpop.f32.mrf.mxu0
      %v3009 = vadd.f32 %v2880, %v3008
      %v3010 = vpop.f32.mrf.mxu0
      %3011 = vmatprep.mubr.f32.mxu0 0.0
      %v3012 = vand.u32 %v864, 4294901760
      %v3013 = vsub.f32 %v864, %v3012
      %v3014 = vand.u32 %v3013, 4294901760
      %3015 = vmatmul.mubr.f32.gmra.mxu0 %v3014
      %v3016 = vpop.f32.mrf.mxu0
      %v3017 = vadd.f32 %v2887, %v3016
      %v3018 = vpop.f32.mrf.mxu0
      %3019 = vmatprep.mubr.f32.mxu0 0.0
      %v3020 = vand.u32 %v871, 4294901760
      %v3021 = vsub.f32 %v871, %v3020
      %v3022 = vand.u32 %v3021, 4294901760
      %3023 = vmatmul.mubr.f32.gmra.mxu0 %v3022
      %v3024 = vpop.f32.mrf.mxu0
      %v3025 = vadd.f32 %v2894, %v3024
      %v3026 = vpop.f32.mrf.mxu0
      %3027 = vmatprep.mubr.f32.mxu0 0.0
      %v3028 = vand.u32 %v878, 4294901760
      %v3029 = vsub.f32 %v878, %v3028
      %v3030 = vand.u32 %v3029, 4294901760
      %3031 = vmatmul.mubr.f32.gmra.mxu0 %v3030
      %v3032 = vpop.f32.mrf.mxu0
      %v3033 = vadd.f32 %v2901, %v3032
      %v3034 = vpop.f32.mrf.mxu0
      %3035 = vmatprep.mubr.f32.mxu0 0.0
      %v3036 = vand.u32 %v885, 4294901760
      %v3037 = vsub.f32 %v885, %v3036
      %v3038 = vand.u32 %v3037, 4294901760
      %3039 = vmatmul.mubr.f32.gmra.mxu0 %v3038
      %v3040 = vpop.f32.mrf.mxu0
      %v3041 = vadd.f32 %v2908, %v3040
      %v3042 = vpop.f32.mrf.mxu0
      %3043 = vdwg.mxu0
      %3044 = vmatprep.subr.mxu0 0.0
      %3045 = vmatpush1.xpose.msra.mxu0 0.0
      %3046 = vmatprep.subr.mxu0 0.0
      %3047 = vmatpush1.xpose.msra.mxu0 0.0
      %3048 = vmatprep.subr.mxu0 0.0
      %3049 = vmatpush1.xpose.msra.mxu0 0.0
      %3050 = vmatprep.subr.mxu0 0.0
      %3051 = vmatpush1.xpose.msra.mxu0 0.0
      %3052 = vmatprep.subr.mxu0 0.0
      %3053 = vmatpush1.xpose.msra.mxu0 0.0
      %3054 = vmatprep.subr.mxu0 0.0
      %3055 = vmatpush1.xpose.msra.mxu0 0.0
      %3056 = vmatprep.subr.mxu0 0.0
      %3057 = vmatpush1.xpose.msra.mxu0 0.0
      %3058 = vmatprep.subr.mxu0 0.0
      %3059 = vmatpush1.xpose.msra.mxu0 0.0
      %3060 = vmatprep.subr.mxu0 0.0
      %3061 = vmatpush1.xpose.msra.mxu0 0.0
      %3062 = vmatprep.subr.mxu0 0.0
      %3063 = vmatpush1.xpose.msra.mxu0 0.0
      %3064 = vmatprep.subr.mxu0 0.0
      %3065 = vmatpush1.xpose.msra.mxu0 0.0
      %3066 = vmatprep.subr.mxu0 0.0
      %3067 = vmatpush1.xpose.msra.mxu0 0.0
      %3068 = vmatprep.subr.mxu0 0.0
      %v3069 = vand.u32 %v1687, 4294901760
      %v3070 = vsub.f32 %v1687, %v3069
      %v3071 = vand.u32 %v3070, 4294901760
      %3072 = vmatpush1.xpose.msra.mxu0 %v3071
      %3073 = vmatprep.subr.mxu0 0.0
      %v3074 = vand.u32 %v1681, 4294901760
      %v3075 = vsub.f32 %v1681, %v3074
      %v3076 = vand.u32 %v3075, 4294901760
      %3077 = vmatpush1.xpose.msra.mxu0 %v3076
      %3078 = vmatprep.subr.mxu0 0.0
      %v3079 = vand.u32 %v1675, 4294901760
      %v3080 = vsub.f32 %v1675, %v3079
      %v3081 = vand.u32 %v3080, 4294901760
      %3082 = vmatpush1.xpose.msra.mxu0 %v3081
      %3083 = vmatprep.subr.mxu0 0.0
      %v3084 = vand.u32 %v1669, 4294901760
      %v3085 = vsub.f32 %v1669, %v3084
      %v3086 = vand.u32 %v3085, 4294901760
      %3087 = vmatpush1.xpose.msra.mxu0 %v3086
      %3088 = vmatprep.subr.mxu0 0.0
      %3089 = vmatpush2.xpose.msra.mxu0 0.0
      %3090 = vmatprep.subr.mxu0 0.0
      %3091 = vmatpush2.xpose.msra.mxu0 0.0
      %3092 = vmatprep.subr.mxu0 0.0
      %3093 = vmatpush2.xpose.msra.mxu0 0.0
      %3094 = vmatprep.subr.mxu0 0.0
      %3095 = vmatpush2.xpose.msra.mxu0 0.0
      %3096 = vmatprep.subr.mxu0 0.0
      %3097 = vmatpush2.xpose.msra.mxu0 0.0
      %3098 = vmatprep.subr.mxu0 0.0
      %3099 = vmatpush2.xpose.msra.mxu0 0.0
      %3100 = vmatprep.subr.mxu0 0.0
      %3101 = vmatpush2.xpose.msra.mxu0 0.0
      %3102 = vmatprep.subr.mxu0 0.0
      %3103 = vmatpush2.xpose.msra.mxu0 0.0
      %3104 = vmatprep.subr.mxu0 0.0
      %3105 = vmatpush2.xpose.msra.mxu0 0.0
      %3106 = vmatprep.subr.mxu0 0.0
      %3107 = vmatpush2.xpose.msra.mxu0 0.0
      %3108 = vmatprep.subr.mxu0 0.0
      %3109 = vmatpush2.xpose.msra.mxu0 0.0
      %3110 = vmatprep.subr.mxu0 0.0
      %3111 = vmatpush2.xpose.msra.mxu0 0.0
      %3112 = vmatprep.subr.mxu0 0.0
      %3113 = vmatpush2.xpose.msra.mxu0 0.0
      %3114 = vmatprep.subr.mxu0 0.0
      %3115 = vmatpush2.xpose.msra.mxu0 0.0
      %3116 = vmatprep.subr.mxu0 0.0
      %3117 = vmatpush2.xpose.msra.mxu0 0.0
      %3118 = vmatprep.subr.mxu0 0.0
      %3119 = vmatpush2.xpose.msra.mxu0 0.0
      %3120 = vmatprep.mubr.f32.mxu0 0.0
      %v3121 = vand.u32 %v862, 4294901760
      %3122 = vmatmul.mubr.f32.gmra.mxu0 %v3121
      %v3123 = vpop.f32.mrf.mxu0
      %v3124 = vadd.f32 %v2985, %v3123
      %v3125 = vpop.f32.mrf.mxu0
      %3126 = vmatprep.mubr.f32.mxu0 0.0
      %v3127 = vand.u32 %v869, 4294901760
      %3128 = vmatmul.mubr.f32.gmra.mxu0 %v3127
      %v3129 = vpop.f32.mrf.mxu0
      %v3130 = vadd.f32 %v2993, %v3129
      %v3131 = vpop.f32.mrf.mxu0
      %3132 = vmatprep.mubr.f32.mxu0 0.0
      %v3133 = vand.u32 %v876, 4294901760
      %3134 = vmatmul.mubr.f32.gmra.mxu0 %v3133
      %v3135 = vpop.f32.mrf.mxu0
      %v3136 = vadd.f32 %v3001, %v3135
      %v3137 = vpop.f32.mrf.mxu0
      %3138 = vmatprep.mubr.f32.mxu0 0.0
      %v3139 = vand.u32 %v883, 4294901760
      %3140 = vmatmul.mubr.f32.gmra.mxu0 %v3139
      %v3141 = vpop.f32.mrf.mxu0
      %v3142 = vadd.f32 %v3009, %v3141
      %v3143 = vpop.f32.mrf.mxu0
      %3144 = vmatprep.mubr.f32.mxu0 0.0
      %v3145 = vand.u32 %v864, 4294901760
      %3146 = vmatmul.mubr.f32.gmra.mxu0 %v3145
      %v3147 = vpop.f32.mrf.mxu0
      %v3148 = vadd.f32 %v3017, %v3147
      %v3149 = vpop.f32.mrf.mxu0
      %3150 = vmatprep.mubr.f32.mxu0 0.0
      %v3151 = vand.u32 %v871, 4294901760
      %3152 = vmatmul.mubr.f32.gmra.mxu0 %v3151
      %v3153 = vpop.f32.mrf.mxu0
      %v3154 = vadd.f32 %v3025, %v3153
      %v3155 = vpop.f32.mrf.mxu0
      %3156 = vmatprep.mubr.f32.mxu0 0.0
      %v3157 = vand.u32 %v878, 4294901760
      %3158 = vmatmul.mubr.f32.gmra.mxu0 %v3157
      %v3159 = vpop.f32.mrf.mxu0
      %v3160 = vadd.f32 %v3033, %v3159
      %v3161 = vpop.f32.mrf.mxu0
      %3162 = vmatprep.mubr.f32.mxu0 0.0
      %v3163 = vand.u32 %v885, 4294901760
      %3164 = vmatmul.mubr.f32.gmra.mxu0 %v3163
      %v3165 = vpop.f32.mrf.mxu0
      %v3166 = vadd.f32 %v3041, %v3165
      %v3167 = vpop.f32.mrf.mxu0
      %3168 = vdwg.mxu0
      %3169 = vmatprep.subr.mxu0 0.0
      %3170 = vmatpush1.xpose.msra.mxu0 0.0
      %3171 = vmatprep.subr.mxu0 0.0
      %3172 = vmatpush1.xpose.msra.mxu0 0.0
      %3173 = vmatprep.subr.mxu0 0.0
      %3174 = vmatpush1.xpose.msra.mxu0 0.0
      %3175 = vmatprep.subr.mxu0 0.0
      %3176 = vmatpush1.xpose.msra.mxu0 0.0
      %3177 = vmatprep.subr.mxu0 0.0
      %3178 = vmatpush1.xpose.msra.mxu0 0.0
      %3179 = vmatprep.subr.mxu0 0.0
      %3180 = vmatpush1.xpose.msra.mxu0 0.0
      %3181 = vmatprep.subr.mxu0 0.0
      %3182 = vmatpush1.xpose.msra.mxu0 0.0
      %3183 = vmatprep.subr.mxu0 0.0
      %3184 = vmatpush1.xpose.msra.mxu0 0.0
      %3185 = vmatprep.subr.mxu0 0.0
      %3186 = vmatpush1.xpose.msra.mxu0 0.0
      %3187 = vmatprep.subr.mxu0 0.0
      %3188 = vmatpush1.xpose.msra.mxu0 0.0
      %3189 = vmatprep.subr.mxu0 0.0
      %3190 = vmatpush1.xpose.msra.mxu0 0.0
      %3191 = vmatprep.subr.mxu0 0.0
      %3192 = vmatpush1.xpose.msra.mxu0 0.0
      %3193 = vmatprep.subr.mxu0 0.0
      %v3194 = vand.u32 %v1687, 4294901760
      %3195 = vmatpush1.xpose.msra.mxu0 %v3194
      %3196 = vmatprep.subr.mxu0 0.0
      %v3197 = vand.u32 %v1681, 4294901760
      %3198 = vmatpush1.xpose.msra.mxu0 %v3197
      %3199 = vmatprep.subr.mxu0 0.0
      %v3200 = vand.u32 %v1675, 4294901760
      %3201 = vmatpush1.xpose.msra.mxu0 %v3200
      %3202 = vmatprep.subr.mxu0 0.0
      %v3203 = vand.u32 %v1669, 4294901760
      %3204 = vmatpush1.xpose.msra.mxu0 %v3203
      %3205 = vmatprep.subr.mxu0 0.0
      %3206 = vmatpush2.xpose.msra.mxu0 0.0
      %3207 = vmatprep.subr.mxu0 0.0
      %3208 = vmatpush2.xpose.msra.mxu0 0.0
      %3209 = vmatprep.subr.mxu0 0.0
      %3210 = vmatpush2.xpose.msra.mxu0 0.0
      %3211 = vmatprep.subr.mxu0 0.0
      %3212 = vmatpush2.xpose.msra.mxu0 0.0
      %3213 = vmatprep.subr.mxu0 0.0
      %3214 = vmatpush2.xpose.msra.mxu0 0.0
      %3215 = vmatprep.subr.mxu0 0.0
      %3216 = vmatpush2.xpose.msra.mxu0 0.0
      %3217 = vmatprep.subr.mxu0 0.0
      %3218 = vmatpush2.xpose.msra.mxu0 0.0
      %3219 = vmatprep.subr.mxu0 0.0
      %3220 = vmatpush2.xpose.msra.mxu0 0.0
      %3221 = vmatprep.subr.mxu0 0.0
      %3222 = vmatpush2.xpose.msra.mxu0 0.0
      %3223 = vmatprep.subr.mxu0 0.0
      %3224 = vmatpush2.xpose.msra.mxu0 0.0
      %3225 = vmatprep.subr.mxu0 0.0
      %3226 = vmatpush2.xpose.msra.mxu0 0.0
      %3227 = vmatprep.subr.mxu0 0.0
      %3228 = vmatpush2.xpose.msra.mxu0 0.0
      %3229 = vmatprep.subr.mxu0 0.0
      %3230 = vmatpush2.xpose.msra.mxu0 0.0
      %3231 = vmatprep.subr.mxu0 0.0
      %3232 = vmatpush2.xpose.msra.mxu0 0.0
      %3233 = vmatprep.subr.mxu0 0.0
      %3234 = vmatpush2.xpose.msra.mxu0 0.0
      %3235 = vmatprep.subr.mxu0 0.0
      %3236 = vmatpush2.xpose.msra.mxu0 0.0
      %3237 = vmatprep.mubr.f32.mxu0 0.0
      %v3238 = vand.u32 %v862, 4294901760
      %3239 = vmatmul.mubr.f32.gmra.mxu0 %v3238
      %v3240 = vpop.f32.mrf.mxu0
      %v3241 = vadd.f32 %v3124, %v3240
      %v3242 = vpop.f32.mrf.mxu0
      %3243 = vmatprep.mubr.f32.mxu0 0.0
      %v3244 = vand.u32 %v869, 4294901760
      %3245 = vmatmul.mubr.f32.gmra.mxu0 %v3244
      %v3246 = vpop.f32.mrf.mxu0
      %v3247 = vadd.f32 %v3130, %v3246
      %v3248 = vpop.f32.mrf.mxu0
      %3249 = vmatprep.mubr.f32.mxu0 0.0
      %v3250 = vand.u32 %v876, 4294901760
      %3251 = vmatmul.mubr.f32.gmra.mxu0 %v3250
      %v3252 = vpop.f32.mrf.mxu0
      %v3253 = vadd.f32 %v3136, %v3252
      %v3254 = vpop.f32.mrf.mxu0
      %3255 = vmatprep.mubr.f32.mxu0 0.0
      %v3256 = vand.u32 %v883, 4294901760
      %3257 = vmatmul.mubr.f32.gmra.mxu0 %v3256
      %v3258 = vpop.f32.mrf.mxu0
      %v3259 = vadd.f32 %v3142, %v3258
      %v3260 = vpop.f32.mrf.mxu0
      %3261 = vmatprep.mubr.f32.mxu0 0.0
      %v3262 = vand.u32 %v864, 4294901760
      %3263 = vmatmul.mubr.f32.gmra.mxu0 %v3262
      %v3264 = vpop.f32.mrf.mxu0
      %v3265 = vadd.f32 %v3148, %v3264
      %v3266 = vpop.f32.mrf.mxu0
      %3267 = vmatprep.mubr.f32.mxu0 0.0
      %v3268 = vand.u32 %v871, 4294901760
      %3269 = vmatmul.mubr.f32.gmra.mxu0 %v3268
      %v3270 = vpop.f32.mrf.mxu0
      %v3271 = vadd.f32 %v3154, %v3270
      %v3272 = vpop.f32.mrf.mxu0
      %3273 = vmatprep.mubr.f32.mxu0 0.0
      %v3274 = vand.u32 %v878, 4294901760
      %3275 = vmatmul.mubr.f32.gmra.mxu0 %v3274
      %v3276 = vpop.f32.mrf.mxu0
      %v3277 = vadd.f32 %v3160, %v3276
      %v3278 = vpop.f32.mrf.mxu0
      %3279 = vmatprep.mubr.f32.mxu0 0.0
      %v3280 = vand.u32 %v885, 4294901760
      %3281 = vmatmul.mubr.f32.gmra.mxu0 %v3280
      %v3282 = vpop.f32.mrf.mxu0
      %v3283 = vadd.f32 %v3166, %v3282
      %v3284 = vpop.f32.mrf.mxu0
      %3285 = vdwg.mxu0
      %3286 = vmatprep.subr.mxu0 0.0
      %3287 = vmatpush1.xpose.msra.mxu0 0.0
      %3288 = vmatprep.subr.mxu0 0.0
      %3289 = vmatpush1.xpose.msra.mxu0 0.0
      %3290 = vmatprep.subr.mxu0 0.0
      %3291 = vmatpush1.xpose.msra.mxu0 0.0
      %3292 = vmatprep.subr.mxu0 0.0
      %3293 = vmatpush1.xpose.msra.mxu0 0.0
      %3294 = vmatprep.subr.mxu0 0.0
      %3295 = vmatpush1.xpose.msra.mxu0 0.0
      %3296 = vmatprep.subr.mxu0 0.0
      %3297 = vmatpush1.xpose.msra.mxu0 0.0
      %3298 = vmatprep.subr.mxu0 0.0
      %3299 = vmatpush1.xpose.msra.mxu0 0.0
      %3300 = vmatprep.subr.mxu0 0.0
      %3301 = vmatpush1.xpose.msra.mxu0 0.0
      %3302 = vmatprep.subr.mxu0 0.0
      %3303 = vmatpush1.xpose.msra.mxu0 0.0
      %3304 = vmatprep.subr.mxu0 0.0
      %3305 = vmatpush1.xpose.msra.mxu0 0.0
      %3306 = vmatprep.subr.mxu0 0.0
      %3307 = vmatpush1.xpose.msra.mxu0 0.0
      %3308 = vmatprep.subr.mxu0 0.0
      %3309 = vmatpush1.xpose.msra.mxu0 0.0
      %3310 = vmatprep.subr.mxu0 0.0
      %v3311 = vand.u32 %v2473, 4294901760
      %3312 = vmatpush1.xpose.msra.mxu0 %v3311
      %3313 = vmatprep.subr.mxu0 0.0
      %v3314 = vand.u32 %v2467, 4294901760
      %3315 = vmatpush1.xpose.msra.mxu0 %v3314
      %3316 = vmatprep.subr.mxu0 0.0
      %v3317 = vand.u32 %v2461, 4294901760
      %3318 = vmatpush1.xpose.msra.mxu0 %v3317
      %3319 = vmatprep.subr.mxu0 0.0
      %v3320 = vand.u32 %v2455, 4294901760
      %3321 = vmatpush1.xpose.msra.mxu0 %v3320
      %3322 = vmatprep.subr.mxu0 0.0
      %3323 = vmatpush2.xpose.msra.mxu0 0.0
      %3324 = vmatprep.subr.mxu0 0.0
      %3325 = vmatpush2.xpose.msra.mxu0 0.0
      %3326 = vmatprep.subr.mxu0 0.0
      %3327 = vmatpush2.xpose.msra.mxu0 0.0
      %3328 = vmatprep.subr.mxu0 0.0
      %3329 = vmatpush2.xpose.msra.mxu0 0.0
      %3330 = vmatprep.subr.mxu0 0.0
      %3331 = vmatpush2.xpose.msra.mxu0 0.0
      %3332 = vmatprep.subr.mxu0 0.0
      %3333 = vmatpush2.xpose.msra.mxu0 0.0
      %3334 = vmatprep.subr.mxu0 0.0
      %3335 = vmatpush2.xpose.msra.mxu0 0.0
      %3336 = vmatprep.subr.mxu0 0.0
      %3337 = vmatpush2.xpose.msra.mxu0 0.0
      %3338 = vmatprep.subr.mxu0 0.0
      %3339 = vmatpush2.xpose.msra.mxu0 0.0
      %3340 = vmatprep.subr.mxu0 0.0
      %3341 = vmatpush2.xpose.msra.mxu0 0.0
      %3342 = vmatprep.subr.mxu0 0.0
      %3343 = vmatpush2.xpose.msra.mxu0 0.0
      %3344 = vmatprep.subr.mxu0 0.0
      %3345 = vmatpush2.xpose.msra.mxu0 0.0
      %3346 = vmatprep.subr.mxu0 0.0
      %3347 = vmatpush2.xpose.msra.mxu0 0.0
      %3348 = vmatprep.subr.mxu0 0.0
      %3349 = vmatpush2.xpose.msra.mxu0 0.0
      %3350 = vmatprep.subr.mxu0 0.0
      %3351 = vmatpush2.xpose.msra.mxu0 0.0
      %3352 = vmatprep.subr.mxu0 0.0
      %3353 = vmatpush2.xpose.msra.mxu0 0.0
      %3354 = vmatprep.mubr.f32.mxu0 0.0
      %v3355 = vand.u32 %v862, 4294901760
      %v3356 = vsub.f32 %v862, %v3355
      %v3357 = vand.u32 %v3356, 4294901760
      %v3358 = vsub.f32 %v3356, %v3357
      %v3359 = vand.u32 %v3358, 4294901760
      %3360 = vmatmul.mubr.f32.gmra.mxu0 %v3359
      %v3361 = vpop.f32.mrf.mxu0
      %v3362 = vadd.f32 0.0, %v3361
      %v3363 = vpop.f32.mrf.mxu0
      %3364 = vmatprep.mubr.f32.mxu0 0.0
      %v3365 = vand.u32 %v869, 4294901760
      %v3366 = vsub.f32 %v869, %v3365
      %v3367 = vand.u32 %v3366, 4294901760
      %v3368 = vsub.f32 %v3366, %v3367
      %v3369 = vand.u32 %v3368, 4294901760
      %3370 = vmatmul.mubr.f32.gmra.mxu0 %v3369
      %v3371 = vpop.f32.mrf.mxu0
      %v3372 = vadd.f32 0.0, %v3371
      %v3373 = vpop.f32.mrf.mxu0
      %3374 = vmatprep.mubr.f32.mxu0 0.0
      %v3375 = vand.u32 %v876, 4294901760
      %v3376 = vsub.f32 %v876, %v3375
      %v3377 = vand.u32 %v3376, 4294901760
      %v3378 = vsub.f32 %v3376, %v3377
      %v3379 = vand.u32 %v3378, 4294901760
      %3380 = vmatmul.mubr.f32.gmra.mxu0 %v3379
      %v3381 = vpop.f32.mrf.mxu0
      %v3382 = vadd.f32 0.0, %v3381
      %v3383 = vpop.f32.mrf.mxu0
      %3384 = vmatprep.mubr.f32.mxu0 0.0
      %v3385 = vand.u32 %v883, 4294901760
      %v3386 = vsub.f32 %v883, %v3385
      %v3387 = vand.u32 %v3386, 4294901760
      %v3388 = vsub.f32 %v3386, %v3387
      %v3389 = vand.u32 %v3388, 4294901760
      %3390 = vmatmul.mubr.f32.gmra.mxu0 %v3389
      %v3391 = vpop.f32.mrf.mxu0
      %v3392 = vadd.f32 0.0, %v3391
      %v3393 = vpop.f32.mrf.mxu0
      %3394 = vmatprep.mubr.f32.mxu0 0.0
      %v3395 = vand.u32 %v864, 4294901760
      %v3396 = vsub.f32 %v864, %v3395
      %v3397 = vand.u32 %v3396, 4294901760
      %v3398 = vsub.f32 %v3396, %v3397
      %v3399 = vand.u32 %v3398, 4294901760
      %3400 = vmatmul.mubr.f32.gmra.mxu0 %v3399
      %v3401 = vpop.f32.mrf.mxu0
      %v3402 = vadd.f32 0.0, %v3401
      %v3403 = vpop.f32.mrf.mxu0
      %3404 = vmatprep.mubr.f32.mxu0 0.0
      %v3405 = vand.u32 %v871, 4294901760
      %v3406 = vsub.f32 %v871, %v3405
      %v3407 = vand.u32 %v3406, 4294901760
      %v3408 = vsub.f32 %v3406, %v3407
      %v3409 = vand.u32 %v3408, 4294901760
      %3410 = vmatmul.mubr.f32.gmra.mxu0 %v3409
      %v3411 = vpop.f32.mrf.mxu0
      %v3412 = vadd.f32 0.0, %v3411
      %v3413 = vpop.f32.mrf.mxu0
      %3414 = vmatprep.mubr.f32.mxu0 0.0
      %v3415 = vand.u32 %v878, 4294901760
      %v3416 = vsub.f32 %v878, %v3415
      %v3417 = vand.u32 %v3416, 4294901760
      %v3418 = vsub.f32 %v3416, %v3417
      %v3419 = vand.u32 %v3418, 4294901760
      %3420 = vmatmul.mubr.f32.gmra.mxu0 %v3419
      %v3421 = vpop.f32.mrf.mxu0
      %v3422 = vadd.f32 0.0, %v3421
      %v3423 = vpop.f32.mrf.mxu0
      %3424 = vmatprep.mubr.f32.mxu0 0.0
      %v3425 = vand.u32 %v885, 4294901760
      %v3426 = vsub.f32 %v885, %v3425
      %v3427 = vand.u32 %v3426, 4294901760
      %v3428 = vsub.f32 %v3426, %v3427
      %v3429 = vand.u32 %v3428, 4294901760
      %3430 = vmatmul.mubr.f32.gmra.mxu0 %v3429
      %v3431 = vpop.f32.mrf.mxu0
      %v3432 = vadd.f32 0.0, %v3431
      %v3433 = vpop.f32.mrf.mxu0
      %3434 = vdwg.mxu0
      %3435 = vmatprep.subr.mxu0 0.0
      %3436 = vmatpush1.xpose.msra.mxu0 0.0
      %3437 = vmatprep.subr.mxu0 0.0
      %3438 = vmatpush1.xpose.msra.mxu0 0.0
      %3439 = vmatprep.subr.mxu0 0.0
      %3440 = vmatpush1.xpose.msra.mxu0 0.0
      %3441 = vmatprep.subr.mxu0 0.0
      %3442 = vmatpush1.xpose.msra.mxu0 0.0
      %3443 = vmatprep.subr.mxu0 0.0
      %3444 = vmatpush1.xpose.msra.mxu0 0.0
      %3445 = vmatprep.subr.mxu0 0.0
      %3446 = vmatpush1.xpose.msra.mxu0 0.0
      %3447 = vmatprep.subr.mxu0 0.0
      %3448 = vmatpush1.xpose.msra.mxu0 0.0
      %3449 = vmatprep.subr.mxu0 0.0
      %3450 = vmatpush1.xpose.msra.mxu0 0.0
      %3451 = vmatprep.subr.mxu0 0.0
      %3452 = vmatpush1.xpose.msra.mxu0 0.0
      %3453 = vmatprep.subr.mxu0 0.0
      %3454 = vmatpush1.xpose.msra.mxu0 0.0
      %3455 = vmatprep.subr.mxu0 0.0
      %3456 = vmatpush1.xpose.msra.mxu0 0.0
      %3457 = vmatprep.subr.mxu0 0.0
      %3458 = vmatpush1.xpose.msra.mxu0 0.0
      %3459 = vmatprep.subr.mxu0 0.0
      %v3460 = vand.u32 %v2473, 4294901760
      %v3461 = vsub.f32 %v2473, %v3460
      %v3462 = vand.u32 %v3461, 4294901760
      %v3463 = vsub.f32 %v3461, %v3462
      %v3464 = vand.u32 %v3463, 4294901760
      %3465 = vmatpush1.xpose.msra.mxu0 %v3464
      %3466 = vmatprep.subr.mxu0 0.0
      %v3467 = vand.u32 %v2467, 4294901760
      %v3468 = vsub.f32 %v2467, %v3467
      %v3469 = vand.u32 %v3468, 4294901760
      %v3470 = vsub.f32 %v3468, %v3469
      %v3471 = vand.u32 %v3470, 4294901760
      %3472 = vmatpush1.xpose.msra.mxu0 %v3471
      %3473 = vmatprep.subr.mxu0 0.0
      %v3474 = vand.u32 %v2461, 4294901760
      %v3475 = vsub.f32 %v2461, %v3474
      %v3476 = vand.u32 %v3475, 4294901760
      %v3477 = vsub.f32 %v3475, %v3476
      %v3478 = vand.u32 %v3477, 4294901760
      %3479 = vmatpush1.xpose.msra.mxu0 %v3478
      %3480 = vmatprep.subr.mxu0 0.0
      %v3481 = vand.u32 %v2455, 4294901760
      %v3482 = vsub.f32 %v2455, %v3481
      %v3483 = vand.u32 %v3482, 4294901760
      %v3484 = vsub.f32 %v3482, %v3483
      %v3485 = vand.u32 %v3484, 4294901760
      %3486 = vmatpush1.xpose.msra.mxu0 %v3485
      %3487 = vmatprep.subr.mxu0 0.0
      %3488 = vmatpush2.xpose.msra.mxu0 0.0
      %3489 = vmatprep.subr.mxu0 0.0
      %3490 = vmatpush2.xpose.msra.mxu0 0.0
      %3491 = vmatprep.subr.mxu0 0.0
      %3492 = vmatpush2.xpose.msra.mxu0 0.0
      %3493 = vmatprep.subr.mxu0 0.0
      %3494 = vmatpush2.xpose.msra.mxu0 0.0
      %3495 = vmatprep.subr.mxu0 0.0
      %3496 = vmatpush2.xpose.msra.mxu0 0.0
      %3497 = vmatprep.subr.mxu0 0.0
      %3498 = vmatpush2.xpose.msra.mxu0 0.0
      %3499 = vmatprep.subr.mxu0 0.0
      %3500 = vmatpush2.xpose.msra.mxu0 0.0
      %3501 = vmatprep.subr.mxu0 0.0
      %3502 = vmatpush2.xpose.msra.mxu0 0.0
      %3503 = vmatprep.subr.mxu0 0.0
      %3504 = vmatpush2.xpose.msra.mxu0 0.0
      %3505 = vmatprep.subr.mxu0 0.0
      %3506 = vmatpush2.xpose.msra.mxu0 0.0
      %3507 = vmatprep.subr.mxu0 0.0
      %3508 = vmatpush2.xpose.msra.mxu0 0.0
      %3509 = vmatprep.subr.mxu0 0.0
      %3510 = vmatpush2.xpose.msra.mxu0 0.0
      %3511 = vmatprep.subr.mxu0 0.0
      %3512 = vmatpush2.xpose.msra.mxu0 0.0
      %3513 = vmatprep.subr.mxu0 0.0
      %3514 = vmatpush2.xpose.msra.mxu0 0.0
      %3515 = vmatprep.subr.mxu0 0.0
      %3516 = vmatpush2.xpose.msra.mxu0 0.0
      %3517 = vmatprep.subr.mxu0 0.0
      %3518 = vmatpush2.xpose.msra.mxu0 0.0
      %3519 = vmatprep.mubr.f32.mxu0 0.0
      %v3520 = vand.u32 %v862, 4294901760
      %3521 = vmatmul.mubr.f32.gmra.mxu0 %v3520
      %v3522 = vpop.f32.mrf.mxu0
      %v3523 = vadd.f32 %v3362, %v3522
      %v3524 = vpop.f32.mrf.mxu0
      %3525 = vmatprep.mubr.f32.mxu0 0.0
      %v3526 = vand.u32 %v869, 4294901760
      %3527 = vmatmul.mubr.f32.gmra.mxu0 %v3526
      %v3528 = vpop.f32.mrf.mxu0
      %v3529 = vadd.f32 %v3372, %v3528
      %v3530 = vpop.f32.mrf.mxu0
      %3531 = vmatprep.mubr.f32.mxu0 0.0
      %v3532 = vand.u32 %v876, 4294901760
      %3533 = vmatmul.mubr.f32.gmra.mxu0 %v3532
      %v3534 = vpop.f32.mrf.mxu0
      %v3535 = vadd.f32 %v3382, %v3534
      %v3536 = vpop.f32.mrf.mxu0
      %3537 = vmatprep.mubr.f32.mxu0 0.0
      %v3538 = vand.u32 %v883, 4294901760
      %3539 = vmatmul.mubr.f32.gmra.mxu0 %v3538
      %v3540 = vpop.f32.mrf.mxu0
      %v3541 = vadd.f32 %v3392, %v3540
      %v3542 = vpop.f32.mrf.mxu0
      %3543 = vmatprep.mubr.f32.mxu0 0.0
      %v3544 = vand.u32 %v864, 4294901760
      %3545 = vmatmul.mubr.f32.gmra.mxu0 %v3544
      %v3546 = vpop.f32.mrf.mxu0
      %v3547 = vadd.f32 %v3402, %v3546
      %v3548 = vpop.f32.mrf.mxu0
      %3549 = vmatprep.mubr.f32.mxu0 0.0
      %v3550 = vand.u32 %v871, 4294901760
      %3551 = vmatmul.mubr.f32.gmra.mxu0 %v3550
      %v3552 = vpop.f32.mrf.mxu0
      %v3553 = vadd.f32 %v3412, %v3552
      %v3554 = vpop.f32.mrf.mxu0
      %3555 = vmatprep.mubr.f32.mxu0 0.0
      %v3556 = vand.u32 %v878, 4294901760
      %3557 = vmatmul.mubr.f32.gmra.mxu0 %v3556
      %v3558 = vpop.f32.mrf.mxu0
      %v3559 = vadd.f32 %v3422, %v3558
      %v3560 = vpop.f32.mrf.mxu0
      %3561 = vmatprep.mubr.f32.mxu0 0.0
      %v3562 = vand.u32 %v885, 4294901760
      %3563 = vmatmul.mubr.f32.gmra.mxu0 %v3562
      %v3564 = vpop.f32.mrf.mxu0
      %v3565 = vadd.f32 %v3432, %v3564
      %v3566 = vpop.f32.mrf.mxu0
      %3567 = vdwg.mxu0
      %3568 = vmatprep.subr.mxu0 0.0
      %3569 = vmatpush1.xpose.msra.mxu0 0.0
      %3570 = vmatprep.subr.mxu0 0.0
      %3571 = vmatpush1.xpose.msra.mxu0 0.0
      %3572 = vmatprep.subr.mxu0 0.0
      %3573 = vmatpush1.xpose.msra.mxu0 0.0
      %3574 = vmatprep.subr.mxu0 0.0
      %3575 = vmatpush1.xpose.msra.mxu0 0.0
      %3576 = vmatprep.subr.mxu0 0.0
      %3577 = vmatpush1.xpose.msra.mxu0 0.0
      %3578 = vmatprep.subr.mxu0 0.0
      %3579 = vmatpush1.xpose.msra.mxu0 0.0
      %3580 = vmatprep.subr.mxu0 0.0
      %3581 = vmatpush1.xpose.msra.mxu0 0.0
      %3582 = vmatprep.subr.mxu0 0.0
      %3583 = vmatpush1.xpose.msra.mxu0 0.0
      %3584 = vmatprep.subr.mxu0 0.0
      %3585 = vmatpush1.xpose.msra.mxu0 0.0
      %3586 = vmatprep.subr.mxu0 0.0
      %3587 = vmatpush1.xpose.msra.mxu0 0.0
      %3588 = vmatprep.subr.mxu0 0.0
      %3589 = vmatpush1.xpose.msra.mxu0 0.0
      %3590 = vmatprep.subr.mxu0 0.0
      %3591 = vmatpush1.xpose.msra.mxu0 0.0
      %3592 = vmatprep.subr.mxu0 0.0
      %v3593 = vand.u32 %v2473, 4294901760
      %v3594 = vsub.f32 %v2473, %v3593
      %3595 = vmatpush1.xpose.msra.mxu0 %v3594
      %3596 = vmatprep.subr.mxu0 0.0
      %v3597 = vand.u32 %v2467, 4294901760
      %v3598 = vsub.f32 %v2467, %v3597
      %3599 = vmatpush1.xpose.msra.mxu0 %v3598
      %3600 = vmatprep.subr.mxu0 0.0
      %v3601 = vand.u32 %v2461, 4294901760
      %v3602 = vsub.f32 %v2461, %v3601
      %3603 = vmatpush1.xpose.msra.mxu0 %v3602
      %3604 = vmatprep.subr.mxu0 0.0
      %v3605 = vand.u32 %v2455, 4294901760
      %v3606 = vsub.f32 %v2455, %v3605
      %3607 = vmatpush1.xpose.msra.mxu0 %v3606
      %3608 = vmatprep.subr.mxu0 0.0
      %3609 = vmatpush2.xpose.msra.mxu0 0.0
      %3610 = vmatprep.subr.mxu0 0.0
      %3611 = vmatpush2.xpose.msra.mxu0 0.0
      %3612 = vmatprep.subr.mxu0 0.0
      %3613 = vmatpush2.xpose.msra.mxu0 0.0
      %3614 = vmatprep.subr.mxu0 0.0
      %3615 = vmatpush2.xpose.msra.mxu0 0.0
      %3616 = vmatprep.subr.mxu0 0.0
      %3617 = vmatpush2.xpose.msra.mxu0 0.0
      %3618 = vmatprep.subr.mxu0 0.0
      %3619 = vmatpush2.xpose.msra.mxu0 0.0
      %3620 = vmatprep.subr.mxu0 0.0
      %3621 = vmatpush2.xpose.msra.mxu0 0.0
      %3622 = vmatprep.subr.mxu0 0.0
      %3623 = vmatpush2.xpose.msra.mxu0 0.0
      %3624 = vmatprep.subr.mxu0 0.0
      %3625 = vmatpush2.xpose.msra.mxu0 0.0
      %3626 = vmatprep.subr.mxu0 0.0
      %3627 = vmatpush2.xpose.msra.mxu0 0.0
      %3628 = vmatprep.subr.mxu0 0.0
      %3629 = vmatpush2.xpose.msra.mxu0 0.0
      %3630 = vmatprep.subr.mxu0 0.0
      %3631 = vmatpush2.xpose.msra.mxu0 0.0
      %3632 = vmatprep.subr.mxu0 0.0
      %3633 = vmatpush2.xpose.msra.mxu0 0.0
      %3634 = vmatprep.subr.mxu0 0.0
      %3635 = vmatpush2.xpose.msra.mxu0 0.0
      %3636 = vmatprep.subr.mxu0 0.0
      %3637 = vmatpush2.xpose.msra.mxu0 0.0
      %3638 = vmatprep.subr.mxu0 0.0
      %3639 = vmatpush2.xpose.msra.mxu0 0.0
      %3640 = vmatprep.mubr.f32.mxu0 0.0
      %v3641 = vand.u32 %v862, 4294901760
      %v3642 = vsub.f32 %v862, %v3641
      %3643 = vmatmul.mubr.f32.gmra.mxu0 %v3642
      %v3644 = vpop.f32.mrf.mxu0
      %v3645 = vadd.f32 %v3523, %v3644
      %v3646 = vpop.f32.mrf.mxu0
      %3647 = vmatprep.mubr.f32.mxu0 0.0
      %v3648 = vand.u32 %v869, 4294901760
      %v3649 = vsub.f32 %v869, %v3648
      %3650 = vmatmul.mubr.f32.gmra.mxu0 %v3649
      %v3651 = vpop.f32.mrf.mxu0
      %v3652 = vadd.f32 %v3529, %v3651
      %v3653 = vpop.f32.mrf.mxu0
      %3654 = vmatprep.mubr.f32.mxu0 0.0
      %v3655 = vand.u32 %v876, 4294901760
      %v3656 = vsub.f32 %v876, %v3655
      %3657 = vmatmul.mubr.f32.gmra.mxu0 %v3656
      %v3658 = vpop.f32.mrf.mxu0
      %v3659 = vadd.f32 %v3535, %v3658
      %v3660 = vpop.f32.mrf.mxu0
      %3661 = vmatprep.mubr.f32.mxu0 0.0
      %v3662 = vand.u32 %v883, 4294901760
      %v3663 = vsub.f32 %v883, %v3662
      %3664 = vmatmul.mubr.f32.gmra.mxu0 %v3663
      %v3665 = vpop.f32.mrf.mxu0
      %v3666 = vadd.f32 %v3541, %v3665
      %v3667 = vpop.f32.mrf.mxu0
      %3668 = vmatprep.mubr.f32.mxu0 0.0
      %v3669 = vand.u32 %v864, 4294901760
      %v3670 = vsub.f32 %v864, %v3669
      %3671 = vmatmul.mubr.f32.gmra.mxu0 %v3670
      %v3672 = vpop.f32.mrf.mxu0
      %v3673 = vadd.f32 %v3547, %v3672
      %v3674 = vpop.f32.mrf.mxu0
      %3675 = vmatprep.mubr.f32.mxu0 0.0
      %v3676 = vand.u32 %v871, 4294901760
      %v3677 = vsub.f32 %v871, %v3676
      %3678 = vmatmul.mubr.f32.gmra.mxu0 %v3677
      %v3679 = vpop.f32.mrf.mxu0
      %v3680 = vadd.f32 %v3553, %v3679
      %v3681 = vpop.f32.mrf.mxu0
      %3682 = vmatprep.mubr.f32.mxu0 0.0
      %v3683 = vand.u32 %v878, 4294901760
      %v3684 = vsub.f32 %v878, %v3683
      %3685 = vmatmul.mubr.f32.gmra.mxu0 %v3684
      %v3686 = vpop.f32.mrf.mxu0
      %v3687 = vadd.f32 %v3559, %v3686
      %v3688 = vpop.f32.mrf.mxu0
      %3689 = vmatprep.mubr.f32.mxu0 0.0
      %v3690 = vand.u32 %v885, 4294901760
      %v3691 = vsub.f32 %v885, %v3690
      %3692 = vmatmul.mubr.f32.gmra.mxu0 %v3691
      %v3693 = vpop.f32.mrf.mxu0
      %v3694 = vadd.f32 %v3565, %v3693
      %v3695 = vpop.f32.mrf.mxu0
      %3696 = vdwg.mxu0
      %3697 = vmatprep.subr.mxu0 0.0
      %3698 = vmatpush1.xpose.msra.mxu0 0.0
      %3699 = vmatprep.subr.mxu0 0.0
      %3700 = vmatpush1.xpose.msra.mxu0 0.0
      %3701 = vmatprep.subr.mxu0 0.0
      %3702 = vmatpush1.xpose.msra.mxu0 0.0
      %3703 = vmatprep.subr.mxu0 0.0
      %3704 = vmatpush1.xpose.msra.mxu0 0.0
      %3705 = vmatprep.subr.mxu0 0.0
      %3706 = vmatpush1.xpose.msra.mxu0 0.0
      %3707 = vmatprep.subr.mxu0 0.0
      %3708 = vmatpush1.xpose.msra.mxu0 0.0
      %3709 = vmatprep.subr.mxu0 0.0
      %3710 = vmatpush1.xpose.msra.mxu0 0.0
      %3711 = vmatprep.subr.mxu0 0.0
      %3712 = vmatpush1.xpose.msra.mxu0 0.0
      %3713 = vmatprep.subr.mxu0 0.0
      %3714 = vmatpush1.xpose.msra.mxu0 0.0
      %3715 = vmatprep.subr.mxu0 0.0
      %3716 = vmatpush1.xpose.msra.mxu0 0.0
      %3717 = vmatprep.subr.mxu0 0.0
      %3718 = vmatpush1.xpose.msra.mxu0 0.0
      %3719 = vmatprep.subr.mxu0 0.0
      %3720 = vmatpush1.xpose.msra.mxu0 0.0
      %3721 = vmatprep.subr.mxu0 0.0
      %v3722 = vand.u32 %v2473, 4294901760
      %3723 = vmatpush1.xpose.msra.mxu0 %v3722
      %3724 = vmatprep.subr.mxu0 0.0
      %v3725 = vand.u32 %v2467, 4294901760
      %3726 = vmatpush1.xpose.msra.mxu0 %v3725
      %3727 = vmatprep.subr.mxu0 0.0
      %v3728 = vand.u32 %v2461, 4294901760
      %3729 = vmatpush1.xpose.msra.mxu0 %v3728
      %3730 = vmatprep.subr.mxu0 0.0
      %v3731 = vand.u32 %v2455, 4294901760
      %3732 = vmatpush1.xpose.msra.mxu0 %v3731
      %3733 = vmatprep.subr.mxu0 0.0
      %3734 = vmatpush2.xpose.msra.mxu0 0.0
      %3735 = vmatprep.subr.mxu0 0.0
      %3736 = vmatpush2.xpose.msra.mxu0 0.0
      %3737 = vmatprep.subr.mxu0 0.0
      %3738 = vmatpush2.xpose.msra.mxu0 0.0
      %3739 = vmatprep.subr.mxu0 0.0
      %3740 = vmatpush2.xpose.msra.mxu0 0.0
      %3741 = vmatprep.subr.mxu0 0.0
      %3742 = vmatpush2.xpose.msra.mxu0 0.0
      %3743 = vmatprep.subr.mxu0 0.0
      %3744 = vmatpush2.xpose.msra.mxu0 0.0
      %3745 = vmatprep.subr.mxu0 0.0
      %3746 = vmatpush2.xpose.msra.mxu0 0.0
      %3747 = vmatprep.subr.mxu0 0.0
      %3748 = vmatpush2.xpose.msra.mxu0 0.0
      %3749 = vmatprep.subr.mxu0 0.0
      %3750 = vmatpush2.xpose.msra.mxu0 0.0
      %3751 = vmatprep.subr.mxu0 0.0
      %3752 = vmatpush2.xpose.msra.mxu0 0.0
      %3753 = vmatprep.subr.mxu0 0.0
      %3754 = vmatpush2.xpose.msra.mxu0 0.0
      %3755 = vmatprep.subr.mxu0 0.0
      %3756 = vmatpush2.xpose.msra.mxu0 0.0
      %3757 = vmatprep.subr.mxu0 0.0
      %3758 = vmatpush2.xpose.msra.mxu0 0.0
      %3759 = vmatprep.subr.mxu0 0.0
      %3760 = vmatpush2.xpose.msra.mxu0 0.0
      %3761 = vmatprep.subr.mxu0 0.0
      %3762 = vmatpush2.xpose.msra.mxu0 0.0
      %3763 = vmatprep.subr.mxu0 0.0
      %3764 = vmatpush2.xpose.msra.mxu0 0.0
      %3765 = vmatprep.mubr.f32.mxu0 0.0
      %v3766 = vand.u32 %v862, 4294901760
      %v3767 = vsub.f32 %v862, %v3766
      %v3768 = vand.u32 %v3767, 4294901760
      %3769 = vmatmul.mubr.f32.gmra.mxu0 %v3768
      %v3770 = vpop.f32.mrf.mxu0
      %v3771 = vadd.f32 %v3645, %v3770
      %v3772 = vpop.f32.mrf.mxu0
      %3773 = vmatprep.mubr.f32.mxu0 0.0
      %v3774 = vand.u32 %v869, 4294901760
      %v3775 = vsub.f32 %v869, %v3774
      %v3776 = vand.u32 %v3775, 4294901760
      %3777 = vmatmul.mubr.f32.gmra.mxu0 %v3776
      %v3778 = vpop.f32.mrf.mxu0
      %v3779 = vadd.f32 %v3652, %v3778
      %v3780 = vpop.f32.mrf.mxu0
      %3781 = vmatprep.mubr.f32.mxu0 0.0
      %v3782 = vand.u32 %v876, 4294901760
      %v3783 = vsub.f32 %v876, %v3782
      %v3784 = vand.u32 %v3783, 4294901760
      %3785 = vmatmul.mubr.f32.gmra.mxu0 %v3784
      %v3786 = vpop.f32.mrf.mxu0
      %v3787 = vadd.f32 %v3659, %v3786
      %v3788 = vpop.f32.mrf.mxu0
      %3789 = vmatprep.mubr.f32.mxu0 0.0
      %v3790 = vand.u32 %v883, 4294901760
      %v3791 = vsub.f32 %v883, %v3790
      %v3792 = vand.u32 %v3791, 4294901760
      %3793 = vmatmul.mubr.f32.gmra.mxu0 %v3792
      %v3794 = vpop.f32.mrf.mxu0
      %v3795 = vadd.f32 %v3666, %v3794
      %v3796 = vpop.f32.mrf.mxu0
      %3797 = vmatprep.mubr.f32.mxu0 0.0
      %v3798 = vand.u32 %v864, 4294901760
      %v3799 = vsub.f32 %v864, %v3798
      %v3800 = vand.u32 %v3799, 4294901760
      %3801 = vmatmul.mubr.f32.gmra.mxu0 %v3800
      %v3802 = vpop.f32.mrf.mxu0
      %v3803 = vadd.f32 %v3673, %v3802
      %v3804 = vpop.f32.mrf.mxu0
      %3805 = vmatprep.mubr.f32.mxu0 0.0
      %v3806 = vand.u32 %v871, 4294901760
      %v3807 = vsub.f32 %v871, %v3806
      %v3808 = vand.u32 %v3807, 4294901760
      %3809 = vmatmul.mubr.f32.gmra.mxu0 %v3808
      %v3810 = vpop.f32.mrf.mxu0
      %v3811 = vadd.f32 %v3680, %v3810
      %v3812 = vpop.f32.mrf.mxu0
      %3813 = vmatprep.mubr.f32.mxu0 0.0
      %v3814 = vand.u32 %v878, 4294901760
      %v3815 = vsub.f32 %v878, %v3814
      %v3816 = vand.u32 %v3815, 4294901760
      %3817 = vmatmul.mubr.f32.gmra.mxu0 %v3816
      %v3818 = vpop.f32.mrf.mxu0
      %v3819 = vadd.f32 %v3687, %v3818
      %v3820 = vpop.f32.mrf.mxu0
      %3821 = vmatprep.mubr.f32.mxu0 0.0
      %v3822 = vand.u32 %v885, 4294901760
      %v3823 = vsub.f32 %v885, %v3822
      %v3824 = vand.u32 %v3823, 4294901760
      %3825 = vmatmul.mubr.f32.gmra.mxu0 %v3824
      %v3826 = vpop.f32.mrf.mxu0
      %v3827 = vadd.f32 %v3694, %v3826
      %v3828 = vpop.f32.mrf.mxu0
      %3829 = vdwg.mxu0
      %3830 = vmatprep.subr.mxu0 0.0
      %3831 = vmatpush1.xpose.msra.mxu0 0.0
      %3832 = vmatprep.subr.mxu0 0.0
      %3833 = vmatpush1.xpose.msra.mxu0 0.0
      %3834 = vmatprep.subr.mxu0 0.0
      %3835 = vmatpush1.xpose.msra.mxu0 0.0
      %3836 = vmatprep.subr.mxu0 0.0
      %3837 = vmatpush1.xpose.msra.mxu0 0.0
      %3838 = vmatprep.subr.mxu0 0.0
      %3839 = vmatpush1.xpose.msra.mxu0 0.0
      %3840 = vmatprep.subr.mxu0 0.0
      %3841 = vmatpush1.xpose.msra.mxu0 0.0
      %3842 = vmatprep.subr.mxu0 0.0
      %3843 = vmatpush1.xpose.msra.mxu0 0.0
      %3844 = vmatprep.subr.mxu0 0.0
      %3845 = vmatpush1.xpose.msra.mxu0 0.0
      %3846 = vmatprep.subr.mxu0 0.0
      %3847 = vmatpush1.xpose.msra.mxu0 0.0
      %3848 = vmatprep.subr.mxu0 0.0
      %3849 = vmatpush1.xpose.msra.mxu0 0.0
      %3850 = vmatprep.subr.mxu0 0.0
      %3851 = vmatpush1.xpose.msra.mxu0 0.0
      %3852 = vmatprep.subr.mxu0 0.0
      %3853 = vmatpush1.xpose.msra.mxu0 0.0
      %3854 = vmatprep.subr.mxu0 0.0
      %v3855 = vand.u32 %v2473, 4294901760
      %v3856 = vsub.f32 %v2473, %v3855
      %v3857 = vand.u32 %v3856, 4294901760
      %3858 = vmatpush1.xpose.msra.mxu0 %v3857
      %3859 = vmatprep.subr.mxu0 0.0
      %v3860 = vand.u32 %v2467, 4294901760
      %v3861 = vsub.f32 %v2467, %v3860
      %v3862 = vand.u32 %v3861, 4294901760
      %3863 = vmatpush1.xpose.msra.mxu0 %v3862
      %3864 = vmatprep.subr.mxu0 0.0
      %v3865 = vand.u32 %v2461, 4294901760
      %v3866 = vsub.f32 %v2461, %v3865
      %v3867 = vand.u32 %v3866, 4294901760
      %3868 = vmatpush1.xpose.msra.mxu0 %v3867
      %3869 = vmatprep.subr.mxu0 0.0
      %v3870 = vand.u32 %v2455, 4294901760
      %v3871 = vsub.f32 %v2455, %v3870
      %v3872 = vand.u32 %v3871, 4294901760
      %3873 = vmatpush1.xpose.msra.mxu0 %v3872
      %3874 = vmatprep.subr.mxu0 0.0
      %3875 = vmatpush2.xpose.msra.mxu0 0.0
      %3876 = vmatprep.subr.mxu0 0.0
      %3877 = vmatpush2.xpose.msra.mxu0 0.0
      %3878 = vmatprep.subr.mxu0 0.0
      %3879 = vmatpush2.xpose.msra.mxu0 0.0
      %3880 = vmatprep.subr.mxu0 0.0
      %3881 = vmatpush2.xpose.msra.mxu0 0.0
      %3882 = vmatprep.subr.mxu0 0.0
      %3883 = vmatpush2.xpose.msra.mxu0 0.0
      %3884 = vmatprep.subr.mxu0 0.0
      %3885 = vmatpush2.xpose.msra.mxu0 0.0
      %3886 = vmatprep.subr.mxu0 0.0
      %3887 = vmatpush2.xpose.msra.mxu0 0.0
      %3888 = vmatprep.subr.mxu0 0.0
      %3889 = vmatpush2.xpose.msra.mxu0 0.0
      %3890 = vmatprep.subr.mxu0 0.0
      %3891 = vmatpush2.xpose.msra.mxu0 0.0
      %3892 = vmatprep.subr.mxu0 0.0
      %3893 = vmatpush2.xpose.msra.mxu0 0.0
      %3894 = vmatprep.subr.mxu0 0.0
      %3895 = vmatpush2.xpose.msra.mxu0 0.0
      %3896 = vmatprep.subr.mxu0 0.0
      %3897 = vmatpush2.xpose.msra.mxu0 0.0
      %3898 = vmatprep.subr.mxu0 0.0
      %3899 = vmatpush2.xpose.msra.mxu0 0.0
      %3900 = vmatprep.subr.mxu0 0.0
      %3901 = vmatpush2.xpose.msra.mxu0 0.0
      %3902 = vmatprep.subr.mxu0 0.0
      %3903 = vmatpush2.xpose.msra.mxu0 0.0
      %3904 = vmatprep.subr.mxu0 0.0
      %3905 = vmatpush2.xpose.msra.mxu0 0.0
      %3906 = vmatprep.mubr.f32.mxu0 0.0
      %v3907 = vand.u32 %v862, 4294901760
      %3908 = vmatmul.mubr.f32.gmra.mxu0 %v3907
      %v3909 = vpop.f32.mrf.mxu0
      %v3910 = vadd.f32 %v3771, %v3909
      %v3911 = vpop.f32.mrf.mxu0
      %3912 = vmatprep.mubr.f32.mxu0 0.0
      %v3913 = vand.u32 %v869, 4294901760
      %3914 = vmatmul.mubr.f32.gmra.mxu0 %v3913
      %v3915 = vpop.f32.mrf.mxu0
      %v3916 = vadd.f32 %v3779, %v3915
      %v3917 = vpop.f32.mrf.mxu0
      %3918 = vmatprep.mubr.f32.mxu0 0.0
      %v3919 = vand.u32 %v876, 4294901760
      %3920 = vmatmul.mubr.f32.gmra.mxu0 %v3919
      %v3921 = vpop.f32.mrf.mxu0
      %v3922 = vadd.f32 %v3787, %v3921
      %v3923 = vpop.f32.mrf.mxu0
      %3924 = vmatprep.mubr.f32.mxu0 0.0
      %v3925 = vand.u32 %v883, 4294901760
      %3926 = vmatmul.mubr.f32.gmra.mxu0 %v3925
      %v3927 = vpop.f32.mrf.mxu0
      %v3928 = vadd.f32 %v3795, %v3927
      %v3929 = vpop.f32.mrf.mxu0
      %3930 = vmatprep.mubr.f32.mxu0 0.0
      %v3931 = vand.u32 %v864, 4294901760
      %3932 = vmatmul.mubr.f32.gmra.mxu0 %v3931
      %v3933 = vpop.f32.mrf.mxu0
      %v3934 = vadd.f32 %v3803, %v3933
      %v3935 = vpop.f32.mrf.mxu0
      %3936 = vmatprep.mubr.f32.mxu0 0.0
      %v3937 = vand.u32 %v871, 4294901760
      %3938 = vmatmul.mubr.f32.gmra.mxu0 %v3937
      %v3939 = vpop.f32.mrf.mxu0
      %v3940 = vadd.f32 %v3811, %v3939
      %v3941 = vpop.f32.mrf.mxu0
      %3942 = vmatprep.mubr.f32.mxu0 0.0
      %v3943 = vand.u32 %v878, 4294901760
      %3944 = vmatmul.mubr.f32.gmra.mxu0 %v3943
      %v3945 = vpop.f32.mrf.mxu0
      %v3946 = vadd.f32 %v3819, %v3945
      %v3947 = vpop.f32.mrf.mxu0
      %3948 = vmatprep.mubr.f32.mxu0 0.0
      %v3949 = vand.u32 %v885, 4294901760
      %3950 = vmatmul.mubr.f32.gmra.mxu0 %v3949
      %v3951 = vpop.f32.mrf.mxu0
      %v3952 = vadd.f32 %v3827, %v3951
      %v3953 = vpop.f32.mrf.mxu0
      %3954 = vdwg.mxu0
      %3955 = vmatprep.subr.mxu0 0.0
      %3956 = vmatpush1.xpose.msra.mxu0 0.0
      %3957 = vmatprep.subr.mxu0 0.0
      %3958 = vmatpush1.xpose.msra.mxu0 0.0
      %3959 = vmatprep.subr.mxu0 0.0
      %3960 = vmatpush1.xpose.msra.mxu0 0.0
      %3961 = vmatprep.subr.mxu0 0.0
      %3962 = vmatpush1.xpose.msra.mxu0 0.0
      %3963 = vmatprep.subr.mxu0 0.0
      %3964 = vmatpush1.xpose.msra.mxu0 0.0
      %3965 = vmatprep.subr.mxu0 0.0
      %3966 = vmatpush1.xpose.msra.mxu0 0.0
      %3967 = vmatprep.subr.mxu0 0.0
      %3968 = vmatpush1.xpose.msra.mxu0 0.0
      %3969 = vmatprep.subr.mxu0 0.0
      %3970 = vmatpush1.xpose.msra.mxu0 0.0
      %3971 = vmatprep.subr.mxu0 0.0
      %3972 = vmatpush1.xpose.msra.mxu0 0.0
      %3973 = vmatprep.subr.mxu0 0.0
      %3974 = vmatpush1.xpose.msra.mxu0 0.0
      %3975 = vmatprep.subr.mxu0 0.0
      %3976 = vmatpush1.xpose.msra.mxu0 0.0
      %3977 = vmatprep.subr.mxu0 0.0
      %3978 = vmatpush1.xpose.msra.mxu0 0.0
      %3979 = vmatprep.subr.mxu0 0.0
      %v3980 = vand.u32 %v2473, 4294901760
      %3981 = vmatpush1.xpose.msra.mxu0 %v3980
      %3982 = vmatprep.subr.mxu0 0.0
      %v3983 = vand.u32 %v2467, 4294901760
      %3984 = vmatpush1.xpose.msra.mxu0 %v3983
      %3985 = vmatprep.subr.mxu0 0.0
      %v3986 = vand.u32 %v2461, 4294901760
      %3987 = vmatpush1.xpose.msra.mxu0 %v3986
      %3988 = vmatprep.subr.mxu0 0.0
      %v3989 = vand.u32 %v2455, 4294901760
      %3990 = vmatpush1.xpose.msra.mxu0 %v3989
      %3991 = vmatprep.subr.mxu0 0.0
      %3992 = vmatpush2.xpose.msra.mxu0 0.0
      %3993 = vmatprep.subr.mxu0 0.0
      %3994 = vmatpush2.xpose.msra.mxu0 0.0
      %3995 = vmatprep.subr.mxu0 0.0
      %3996 = vmatpush2.xpose.msra.mxu0 0.0
      %3997 = vmatprep.subr.mxu0 0.0
      %3998 = vmatpush2.xpose.msra.mxu0 0.0
      %3999 = vmatprep.subr.mxu0 0.0
      %4000 = vmatpush2.xpose.msra.mxu0 0.0
      %4001 = vmatprep.subr.mxu0 0.0
      %4002 = vmatpush2.xpose.msra.mxu0 0.0
      %4003 = vmatprep.subr.mxu0 0.0
      %4004 = vmatpush2.xpose.msra.mxu0 0.0
      %4005 = vmatprep.subr.mxu0 0.0
      %4006 = vmatpush2.xpose.msra.mxu0 0.0
      %4007 = vmatprep.subr.mxu0 0.0
      %4008 = vmatpush2.xpose.msra.mxu0 0.0
      %4009 = vmatprep.subr.mxu0 0.0
      %4010 = vmatpush2.xpose.msra.mxu0 0.0
      %4011 = vmatprep.subr.mxu0 0.0
      %4012 = vmatpush2.xpose.msra.mxu0 0.0
      %4013 = vmatprep.subr.mxu0 0.0
      %4014 = vmatpush2.xpose.msra.mxu0 0.0
      %4015 = vmatprep.subr.mxu0 0.0
      %4016 = vmatpush2.xpose.msra.mxu0 0.0
      %4017 = vmatprep.subr.mxu0 0.0
      %4018 = vmatpush2.xpose.msra.mxu0 0.0
      %4019 = vmatprep.subr.mxu0 0.0
      %4020 = vmatpush2.xpose.msra.mxu0 0.0
      %4021 = vmatprep.subr.mxu0 0.0
      %4022 = vmatpush2.xpose.msra.mxu0 0.0
      %4023 = vmatprep.mubr.f32.mxu0 0.0
      %v4024 = vand.u32 %v862, 4294901760
      %4025 = vmatmul.mubr.f32.gmra.mxu0 %v4024
      %v4026 = vpop.f32.mrf.mxu0
      %v4027 = vadd.f32 %v3910, %v4026
      %v4028 = vpop.f32.mrf.mxu0
      %4029 = vmatprep.mubr.f32.mxu0 0.0
      %v4030 = vand.u32 %v869, 4294901760
      %4031 = vmatmul.mubr.f32.gmra.mxu0 %v4030
      %v4032 = vpop.f32.mrf.mxu0
      %v4033 = vadd.f32 %v3916, %v4032
      %v4034 = vpop.f32.mrf.mxu0
      %4035 = vmatprep.mubr.f32.mxu0 0.0
      %v4036 = vand.u32 %v876, 4294901760
      %4037 = vmatmul.mubr.f32.gmra.mxu0 %v4036
      %v4038 = vpop.f32.mrf.mxu0
      %v4039 = vadd.f32 %v3922, %v4038
      %v4040 = vpop.f32.mrf.mxu0
      %4041 = vmatprep.mubr.f32.mxu0 0.0
      %v4042 = vand.u32 %v883, 4294901760
      %4043 = vmatmul.mubr.f32.gmra.mxu0 %v4042
      %v4044 = vpop.f32.mrf.mxu0
      %v4045 = vadd.f32 %v3928, %v4044
      %v4046 = vpop.f32.mrf.mxu0
      %4047 = vmatprep.mubr.f32.mxu0 0.0
      %v4048 = vand.u32 %v864, 4294901760
      %4049 = vmatmul.mubr.f32.gmra.mxu0 %v4048
      %v4050 = vpop.f32.mrf.mxu0
      %v4051 = vadd.f32 %v3934, %v4050
      %v4052 = vpop.f32.mrf.mxu0
      %4053 = vmatprep.mubr.f32.mxu0 0.0
      %v4054 = vand.u32 %v871, 4294901760
      %4055 = vmatmul.mubr.f32.gmra.mxu0 %v4054
      %v4056 = vpop.f32.mrf.mxu0
      %v4057 = vadd.f32 %v3940, %v4056
      %v4058 = vpop.f32.mrf.mxu0
      %4059 = vmatprep.mubr.f32.mxu0 0.0
      %v4060 = vand.u32 %v878, 4294901760
      %4061 = vmatmul.mubr.f32.gmra.mxu0 %v4060
      %v4062 = vpop.f32.mrf.mxu0
      %v4063 = vadd.f32 %v3946, %v4062
      %v4064 = vpop.f32.mrf.mxu0
      %4065 = vmatprep.mubr.f32.mxu0 0.0
      %v4066 = vand.u32 %v885, 4294901760
      %4067 = vmatmul.mubr.f32.gmra.mxu0 %v4066
      %v4068 = vpop.f32.mrf.mxu0
      %v4069 = vadd.f32 %v3952, %v4068
      %v4070 = vpop.f32.mrf.mxu0
      %4071 = vdwg.mxu0
      %v4072 = vsub.f32 %v3241, %v4051
      %v4073 = vsub.f32 %v3247, %v4057
      %v4074 = vsub.f32 %v3253, %v4063
      %v4075 = vsub.f32 %v3259, %v4069
      %v4076 = vadd.f32 %v4027, %v3265
      %v4077 = vadd.f32 %v4033, %v3271
      %v4078 = vadd.f32 %v4039, %v3277
      %v4079 = vadd.f32 %v4045, %v3283
      %v4080 = vmul.f32 %v4072, %v4072
      %v4081 = vmul.f32 %v4073, %v4073
      %v4082 = vmul.f32 %v4074, %v4074
      %v4083 = vmul.f32 %v4075, %v4075
      %v4084 = vmul.f32 %v4076, %v4076
      %v4085 = vmul.f32 %v4077, %v4077
      %v4086 = vmul.f32 %v4078, %v4078
      %v4087 = vmul.f32 %v4079, %v4079
      %v4088 = vadd.f32 %v4080, %v4084
      %v4089 = vadd.f32 %v4081, %v4085
      %v4090 = vadd.f32 %v4082, %v4086
      %v4091 = vadd.f32 %v4083, %v4087
      %v4092 = vrsqrt.pop %v4088
      %v4093 = vmul.f32 %v4088, %v4092
      %vm4094 = vcmp.eq.f32.partialorder %v4088, inf
      %v4095 = vsel %vm4094, %v4088, %v4093
      %vm4096 = vcmp.eq.f32.partialorder %v4088, 0.0
      %v4097 = vand.u32 %v4088, 2147483648
      %v4098 = vsel %vm4096, %v4097, %v4095
      %v4099 = vrsqrt.pop %v4089
      %v4100 = vmul.f32 %v4089, %v4099
      %vm4101 = vcmp.eq.f32.partialorder %v4089, inf
      %v4102 = vsel %vm4101, %v4089, %v4100
      %vm4103 = vcmp.eq.f32.partialorder %v4089, 0.0
      %v4104 = vand.u32 %v4089, 2147483648
      %v4105 = vsel %vm4103, %v4104, %v4102
      %v4106 = vrsqrt.pop %v4090
      %v4107 = vmul.f32 %v4090, %v4106
      %vm4108 = vcmp.eq.f32.partialorder %v4090, inf
      %v4109 = vsel %vm4108, %v4090, %v4107
      %vm4110 = vcmp.eq.f32.partialorder %v4090, 0.0
      %v4111 = vand.u32 %v4090, 2147483648
      %v4112 = vsel %vm4110, %v4111, %v4109
      %v4113 = vrsqrt.pop %v4091
      %v4114 = vmul.f32 %v4091, %v4113
      %vm4115 = vcmp.eq.f32.partialorder %v4091, inf
      %v4116 = vsel %vm4115, %v4091, %v4114
      %vm4117 = vcmp.eq.f32.partialorder %v4091, 0.0
      %v4118 = vand.u32 %v4091, 2147483648
      %v4119 = vsel %vm4117, %v4118, %v4116
      %v4120 = vmul.f32 %v4098, 0.083333336
      %v4121 = vmul.f32 %v4105, 0.083333336
      %v4122 = vmul.f32 %v4112, 0.083333336
      %v4123 = vmul.f32 %v4119, 0.083333336
      %v4124 = vsel %vm903, %v4120, -inf
      %4125 = vmax.xlane.f32.xlu0 %v4124
      %v4126 = vpop.xlane.xlu0 %4125
      %v4127 = vsel %vm903, %v4121, -inf
      %4128 = vmax.xlane.f32.xlu0 %v4127
      %v4129 = vpop.xlane.xlu0 %4128
      %v4130 = vsel %vm903, %v4122, -inf
      %4131 = vmax.xlane.f32.xlu0 %v4130
      %v4132 = vpop.xlane.xlu0 %4131
      %v4133 = vsel %vm903, %v4123, -inf
      %4134 = vmax.xlane.f32.xlu0 %v4133
      %v4135 = vpop.xlane.xlu0 %4134
      %v4136 = vsub.f32 %v4120, %v4126
      %v4137 = vsub.f32 %v4121, %v4129
      %v4138 = vsub.f32 %v4122, %v4132
      %v4139 = vsub.f32 %v4123, %v4135
      %v4140 = vmul.f32 %v4136, 1.442695
      %v4141 = vpow.pop %v4140
      %v4142 = vmul.f32 %v4137, 1.442695
      %v4143 = vpow.pop %v4142
      %v4144 = vmul.f32 %v4138, 1.442695
      %v4145 = vpow.pop %v4144
      %v4146 = vmul.f32 %v4139, 1.442695
      %v4147 = vpow.pop %v4146
      %v4148 = vsel %vm903, %v4141, 0.0
      %4149 = vadd.xlane.f32.xlu0 %v4148
      %v4150 = vpop.xlane.xlu0 %4149
      %v4151 = vsel %vm903, %v4143, 0.0
      %4152 = vadd.xlane.f32.xlu0 %v4151
      %v4153 = vpop.xlane.xlu0 %4152
      %v4154 = vsel %vm903, %v4145, 0.0
      %4155 = vadd.xlane.f32.xlu0 %v4154
      %v4156 = vpop.xlane.xlu0 %4155
      %v4157 = vsel %vm903, %v4147, 0.0
      %4158 = vadd.xlane.f32.xlu0 %v4157
      %v4159 = vpop.xlane.xlu0 %4158
      %v4160 = vrcp.pop %v4150
      %v4161 = vmul.f32 %v4141, %v4160
      %v4162 = vrcp.pop %v4153
      %v4163 = vmul.f32 %v4143, %v4162
      %v4164 = vrcp.pop %v4156
      %v4165 = vmul.f32 %v4145, %v4164
      %v4166 = vrcp.pop %v4159
      %v4167 = vmul.f32 %v4147, %v4166
      %v4169 = vsel %vm903, %v4161, 0
      %v4172 = vsel %vm903, %v4163, 0
      %v4175 = vsel %vm903, %v4165, 0
      %v4178 = vsel %vm903, %v4167, 0
      %4180 = vmatprep.subr.mxu0 0.0
      %4181 = vmatpush1.msra.mxu0 0.0
      %4182 = vmatprep.subr.mxu0 0.0
      %4183 = vmatpush1.msra.mxu0 0.0
      %4184 = vmatprep.subr.mxu0 0.0
      %4185 = vmatpush1.msra.mxu0 0.0
      %4186 = vmatprep.subr.mxu0 0.0
      %4187 = vmatpush1.msra.mxu0 0.0
      %4188 = vmatprep.subr.mxu0 0.0
      %4189 = vmatpush1.msra.mxu0 0.0
      %4190 = vmatprep.subr.mxu0 0.0
      %4191 = vmatpush1.msra.mxu0 0.0
      %4192 = vmatprep.subr.mxu0 0.0
      %4193 = vmatpush1.msra.mxu0 0.0
      %4194 = vmatprep.subr.mxu0 0.0
      %4195 = vmatpush1.msra.mxu0 0.0
      %4196 = vmatprep.subr.mxu0 0.0
      %4197 = vmatpush1.msra.mxu0 0.0
      %4198 = vmatprep.subr.mxu0 0.0
      %4199 = vmatpush1.msra.mxu0 0.0
      %4200 = vmatprep.subr.mxu0 0.0
      %4201 = vmatpush1.msra.mxu0 0.0
      %4202 = vmatprep.subr.mxu0 0.0
      %4203 = vmatpush1.msra.mxu0 0.0
      %4204 = vmatprep.subr.mxu0 0.0
      %v4205 = vand.u32 %v1711, 4294901760
      %4206 = vmatpush1.msra.mxu0 %v4205
      %4207 = vmatprep.subr.mxu0 0.0
      %v4208 = vand.u32 %v1705, 4294901760
      %4209 = vmatpush1.msra.mxu0 %v4208
      %4210 = vmatprep.subr.mxu0 0.0
      %v4211 = vand.u32 %v1699, 4294901760
      %4212 = vmatpush1.msra.mxu0 %v4211
      %4213 = vmatprep.subr.mxu0 0.0
      %v4214 = vand.u32 %v1693, 4294901760
      %4215 = vmatpush1.msra.mxu0 %v4214
      %4216 = vmatprep.subr.mxu0 0.0
      %4217 = vmatpush2.msra.mxu0 0.0
      %4218 = vmatprep.subr.mxu0 0.0
      %4219 = vmatpush2.msra.mxu0 0.0
      %4220 = vmatprep.subr.mxu0 0.0
      %4221 = vmatpush2.msra.mxu0 0.0
      %4222 = vmatprep.subr.mxu0 0.0
      %4223 = vmatpush2.msra.mxu0 0.0
      %4224 = vmatprep.subr.mxu0 0.0
      %4225 = vmatpush2.msra.mxu0 0.0
      %4226 = vmatprep.subr.mxu0 0.0
      %4227 = vmatpush2.msra.mxu0 0.0
      %4228 = vmatprep.subr.mxu0 0.0
      %4229 = vmatpush2.msra.mxu0 0.0
      %4230 = vmatprep.subr.mxu0 0.0
      %4231 = vmatpush2.msra.mxu0 0.0
      %4232 = vmatprep.subr.mxu0 0.0
      %4233 = vmatpush2.msra.mxu0 0.0
      %4234 = vmatprep.subr.mxu0 0.0
      %4235 = vmatpush2.msra.mxu0 0.0
      %4236 = vmatprep.subr.mxu0 0.0
      %4237 = vmatpush2.msra.mxu0 0.0
      %4238 = vmatprep.subr.mxu0 0.0
      %4239 = vmatpush2.msra.mxu0 0.0
      %4240 = vmatprep.subr.mxu0 0.0
      %4241 = vmatpush2.msra.mxu0 0.0
      %4242 = vmatprep.subr.mxu0 0.0
      %4243 = vmatpush2.msra.mxu0 0.0
      %4244 = vmatprep.subr.mxu0 0.0
      %4245 = vmatpush2.msra.mxu0 0.0
      %4246 = vmatprep.subr.mxu0 0.0
      %4247 = vmatpush2.msra.mxu0 0.0
      %4248 = vmatprep.mubr.f32.mxu0 0.0
      %v4249 = vand.u32 %v4169, 4294901760
      %v4250 = vsub.f32 %v4169, %v4249
      %v4251 = vand.u32 %v4250, 4294901760
      %v4252 = vsub.f32 %v4250, %v4251
      %v4253 = vand.u32 %v4252, 4294901760
      %4254 = vmatmul.mubr.f32.gmra.mxu0 %v4253
      %v4255 = vpop.f32.mrf.mxu0
      %v4256 = vadd.f32 0.0, %v4255
      %v4257 = vpop.f32.mrf.mxu0
      %4258 = vmatprep.mubr.f32.mxu0 0.0
      %v4259 = vand.u32 %v4172, 4294901760
      %v4260 = vsub.f32 %v4172, %v4259
      %v4261 = vand.u32 %v4260, 4294901760
      %v4262 = vsub.f32 %v4260, %v4261
      %v4263 = vand.u32 %v4262, 4294901760
      %4264 = vmatmul.mubr.f32.gmra.mxu0 %v4263
      %v4265 = vpop.f32.mrf.mxu0
      %v4266 = vadd.f32 0.0, %v4265
      %v4267 = vpop.f32.mrf.mxu0
      %4268 = vmatprep.mubr.f32.mxu0 0.0
      %v4269 = vand.u32 %v4175, 4294901760
      %v4270 = vsub.f32 %v4175, %v4269
      %v4271 = vand.u32 %v4270, 4294901760
      %v4272 = vsub.f32 %v4270, %v4271
      %v4273 = vand.u32 %v4272, 4294901760
      %4274 = vmatmul.mubr.f32.gmra.mxu0 %v4273
      %v4275 = vpop.f32.mrf.mxu0
      %v4276 = vadd.f32 0.0, %v4275
      %v4277 = vpop.f32.mrf.mxu0
      %4278 = vmatprep.mubr.f32.mxu0 0.0
      %v4279 = vand.u32 %v4178, 4294901760
      %v4280 = vsub.f32 %v4178, %v4279
      %v4281 = vand.u32 %v4280, 4294901760
      %v4282 = vsub.f32 %v4280, %v4281
      %v4283 = vand.u32 %v4282, 4294901760
      %4284 = vmatmul.mubr.f32.gmra.mxu0 %v4283
      %v4285 = vpop.f32.mrf.mxu0
      %v4286 = vadd.f32 0.0, %v4285
      %v4287 = vpop.f32.mrf.mxu0
      %4288 = vdwg.mxu0
      %4289 = vmatprep.subr.mxu0 0.0
      %4290 = vmatpush1.msra.mxu0 0.0
      %4291 = vmatprep.subr.mxu0 0.0
      %4292 = vmatpush1.msra.mxu0 0.0
      %4293 = vmatprep.subr.mxu0 0.0
      %4294 = vmatpush1.msra.mxu0 0.0
      %4295 = vmatprep.subr.mxu0 0.0
      %4296 = vmatpush1.msra.mxu0 0.0
      %4297 = vmatprep.subr.mxu0 0.0
      %4298 = vmatpush1.msra.mxu0 0.0
      %4299 = vmatprep.subr.mxu0 0.0
      %4300 = vmatpush1.msra.mxu0 0.0
      %4301 = vmatprep.subr.mxu0 0.0
      %4302 = vmatpush1.msra.mxu0 0.0
      %4303 = vmatprep.subr.mxu0 0.0
      %4304 = vmatpush1.msra.mxu0 0.0
      %4305 = vmatprep.subr.mxu0 0.0
      %4306 = vmatpush1.msra.mxu0 0.0
      %4307 = vmatprep.subr.mxu0 0.0
      %4308 = vmatpush1.msra.mxu0 0.0
      %4309 = vmatprep.subr.mxu0 0.0
      %4310 = vmatpush1.msra.mxu0 0.0
      %4311 = vmatprep.subr.mxu0 0.0
      %4312 = vmatpush1.msra.mxu0 0.0
      %4313 = vmatprep.subr.mxu0 0.0
      %v4314 = vand.u32 %v1711, 4294901760
      %v4315 = vsub.f32 %v1711, %v4314
      %v4316 = vand.u32 %v4315, 4294901760
      %v4317 = vsub.f32 %v4315, %v4316
      %v4318 = vand.u32 %v4317, 4294901760
      %4319 = vmatpush1.msra.mxu0 %v4318
      %4320 = vmatprep.subr.mxu0 0.0
      %v4321 = vand.u32 %v1705, 4294901760
      %v4322 = vsub.f32 %v1705, %v4321
      %v4323 = vand.u32 %v4322, 4294901760
      %v4324 = vsub.f32 %v4322, %v4323
      %v4325 = vand.u32 %v4324, 4294901760
      %4326 = vmatpush1.msra.mxu0 %v4325
      %4327 = vmatprep.subr.mxu0 0.0
      %v4328 = vand.u32 %v1699, 4294901760
      %v4329 = vsub.f32 %v1699, %v4328
      %v4330 = vand.u32 %v4329, 4294901760
      %v4331 = vsub.f32 %v4329, %v4330
      %v4332 = vand.u32 %v4331, 4294901760
      %4333 = vmatpush1.msra.mxu0 %v4332
      %4334 = vmatprep.subr.mxu0 0.0
      %v4335 = vand.u32 %v1693, 4294901760
      %v4336 = vsub.f32 %v1693, %v4335
      %v4337 = vand.u32 %v4336, 4294901760
      %v4338 = vsub.f32 %v4336, %v4337
      %v4339 = vand.u32 %v4338, 4294901760
      %4340 = vmatpush1.msra.mxu0 %v4339
      %4341 = vmatprep.subr.mxu0 0.0
      %4342 = vmatpush2.msra.mxu0 0.0
      %4343 = vmatprep.subr.mxu0 0.0
      %4344 = vmatpush2.msra.mxu0 0.0
      %4345 = vmatprep.subr.mxu0 0.0
      %4346 = vmatpush2.msra.mxu0 0.0
      %4347 = vmatprep.subr.mxu0 0.0
      %4348 = vmatpush2.msra.mxu0 0.0
      %4349 = vmatprep.subr.mxu0 0.0
      %4350 = vmatpush2.msra.mxu0 0.0
      %4351 = vmatprep.subr.mxu0 0.0
      %4352 = vmatpush2.msra.mxu0 0.0
      %4353 = vmatprep.subr.mxu0 0.0
      %4354 = vmatpush2.msra.mxu0 0.0
      %4355 = vmatprep.subr.mxu0 0.0
      %4356 = vmatpush2.msra.mxu0 0.0
      %4357 = vmatprep.subr.mxu0 0.0
      %4358 = vmatpush2.msra.mxu0 0.0
      %4359 = vmatprep.subr.mxu0 0.0
      %4360 = vmatpush2.msra.mxu0 0.0
      %4361 = vmatprep.subr.mxu0 0.0
      %4362 = vmatpush2.msra.mxu0 0.0
      %4363 = vmatprep.subr.mxu0 0.0
      %4364 = vmatpush2.msra.mxu0 0.0
      %4365 = vmatprep.subr.mxu0 0.0
      %4366 = vmatpush2.msra.mxu0 0.0
      %4367 = vmatprep.subr.mxu0 0.0
      %4368 = vmatpush2.msra.mxu0 0.0
      %4369 = vmatprep.subr.mxu0 0.0
      %4370 = vmatpush2.msra.mxu0 0.0
      %4371 = vmatprep.subr.mxu0 0.0
      %4372 = vmatpush2.msra.mxu0 0.0
      %4373 = vmatprep.mubr.f32.mxu0 0.0
      %v4374 = vand.u32 %v4169, 4294901760
      %4375 = vmatmul.mubr.f32.gmra.mxu0 %v4374
      %v4376 = vpop.f32.mrf.mxu0
      %v4377 = vadd.f32 %v4256, %v4376
      %v4378 = vpop.f32.mrf.mxu0
      %4379 = vmatprep.mubr.f32.mxu0 0.0
      %v4380 = vand.u32 %v4172, 4294901760
      %4381 = vmatmul.mubr.f32.gmra.mxu0 %v4380
      %v4382 = vpop.f32.mrf.mxu0
      %v4383 = vadd.f32 %v4266, %v4382
      %v4384 = vpop.f32.mrf.mxu0
      %4385 = vmatprep.mubr.f32.mxu0 0.0
      %v4386 = vand.u32 %v4175, 4294901760
      %4387 = vmatmul.mubr.f32.gmra.mxu0 %v4386
      %v4388 = vpop.f32.mrf.mxu0
      %v4389 = vadd.f32 %v4276, %v4388
      %v4390 = vpop.f32.mrf.mxu0
      %4391 = vmatprep.mubr.f32.mxu0 0.0
      %v4392 = vand.u32 %v4178, 4294901760
      %4393 = vmatmul.mubr.f32.gmra.mxu0 %v4392
      %v4394 = vpop.f32.mrf.mxu0
      %v4395 = vadd.f32 %v4286, %v4394
      %v4396 = vpop.f32.mrf.mxu0
      %4397 = vdwg.mxu0
      %4398 = vmatprep.subr.mxu0 0.0
      %4399 = vmatpush1.msra.mxu0 0.0
      %4400 = vmatprep.subr.mxu0 0.0
      %4401 = vmatpush1.msra.mxu0 0.0
      %4402 = vmatprep.subr.mxu0 0.0
      %4403 = vmatpush1.msra.mxu0 0.0
      %4404 = vmatprep.subr.mxu0 0.0
      %4405 = vmatpush1.msra.mxu0 0.0
      %4406 = vmatprep.subr.mxu0 0.0
      %4407 = vmatpush1.msra.mxu0 0.0
      %4408 = vmatprep.subr.mxu0 0.0
      %4409 = vmatpush1.msra.mxu0 0.0
      %4410 = vmatprep.subr.mxu0 0.0
      %4411 = vmatpush1.msra.mxu0 0.0
      %4412 = vmatprep.subr.mxu0 0.0
      %4413 = vmatpush1.msra.mxu0 0.0
      %4414 = vmatprep.subr.mxu0 0.0
      %4415 = vmatpush1.msra.mxu0 0.0
      %4416 = vmatprep.subr.mxu0 0.0
      %4417 = vmatpush1.msra.mxu0 0.0
      %4418 = vmatprep.subr.mxu0 0.0
      %4419 = vmatpush1.msra.mxu0 0.0
      %4420 = vmatprep.subr.mxu0 0.0
      %4421 = vmatpush1.msra.mxu0 0.0
      %4422 = vmatprep.subr.mxu0 0.0
      %v4423 = vand.u32 %v1711, 4294901760
      %v4424 = vsub.f32 %v1711, %v4423
      %4425 = vmatpush1.msra.mxu0 %v4424
      %4426 = vmatprep.subr.mxu0 0.0
      %v4427 = vand.u32 %v1705, 4294901760
      %v4428 = vsub.f32 %v1705, %v4427
      %4429 = vmatpush1.msra.mxu0 %v4428
      %4430 = vmatprep.subr.mxu0 0.0
      %v4431 = vand.u32 %v1699, 4294901760
      %v4432 = vsub.f32 %v1699, %v4431
      %4433 = vmatpush1.msra.mxu0 %v4432
      %4434 = vmatprep.subr.mxu0 0.0
      %v4435 = vand.u32 %v1693, 4294901760
      %v4436 = vsub.f32 %v1693, %v4435
      %4437 = vmatpush1.msra.mxu0 %v4436
      %4438 = vmatprep.subr.mxu0 0.0
      %4439 = vmatpush2.msra.mxu0 0.0
      %4440 = vmatprep.subr.mxu0 0.0
      %4441 = vmatpush2.msra.mxu0 0.0
      %4442 = vmatprep.subr.mxu0 0.0
      %4443 = vmatpush2.msra.mxu0 0.0
      %4444 = vmatprep.subr.mxu0 0.0
      %4445 = vmatpush2.msra.mxu0 0.0
      %4446 = vmatprep.subr.mxu0 0.0
      %4447 = vmatpush2.msra.mxu0 0.0
      %4448 = vmatprep.subr.mxu0 0.0
      %4449 = vmatpush2.msra.mxu0 0.0
      %4450 = vmatprep.subr.mxu0 0.0
      %4451 = vmatpush2.msra.mxu0 0.0
      %4452 = vmatprep.subr.mxu0 0.0
      %4453 = vmatpush2.msra.mxu0 0.0
      %4454 = vmatprep.subr.mxu0 0.0
      %4455 = vmatpush2.msra.mxu0 0.0
      %4456 = vmatprep.subr.mxu0 0.0
      %4457 = vmatpush2.msra.mxu0 0.0
      %4458 = vmatprep.subr.mxu0 0.0
      %4459 = vmatpush2.msra.mxu0 0.0
      %4460 = vmatprep.subr.mxu0 0.0
      %4461 = vmatpush2.msra.mxu0 0.0
      %4462 = vmatprep.subr.mxu0 0.0
      %4463 = vmatpush2.msra.mxu0 0.0
      %4464 = vmatprep.subr.mxu0 0.0
      %4465 = vmatpush2.msra.mxu0 0.0
      %4466 = vmatprep.subr.mxu0 0.0
      %4467 = vmatpush2.msra.mxu0 0.0
      %4468 = vmatprep.subr.mxu0 0.0
      %4469 = vmatpush2.msra.mxu0 0.0
      %4470 = vmatprep.mubr.f32.mxu0 0.0
      %v4471 = vand.u32 %v4169, 4294901760
      %v4472 = vsub.f32 %v4169, %v4471
      %4473 = vmatmul.mubr.f32.gmra.mxu0 %v4472
      %v4474 = vpop.f32.mrf.mxu0
      %v4475 = vadd.f32 %v4377, %v4474
      %v4476 = vpop.f32.mrf.mxu0
      %4477 = vmatprep.mubr.f32.mxu0 0.0
      %v4478 = vand.u32 %v4172, 4294901760
      %v4479 = vsub.f32 %v4172, %v4478
      %4480 = vmatmul.mubr.f32.gmra.mxu0 %v4479
      %v4481 = vpop.f32.mrf.mxu0
      %v4482 = vadd.f32 %v4383, %v4481
      %v4483 = vpop.f32.mrf.mxu0
      %4484 = vmatprep.mubr.f32.mxu0 0.0
      %v4485 = vand.u32 %v4175, 4294901760
      %v4486 = vsub.f32 %v4175, %v4485
      %4487 = vmatmul.mubr.f32.gmra.mxu0 %v4486
      %v4488 = vpop.f32.mrf.mxu0
      %v4489 = vadd.f32 %v4389, %v4488
      %v4490 = vpop.f32.mrf.mxu0
      %4491 = vmatprep.mubr.f32.mxu0 0.0
      %v4492 = vand.u32 %v4178, 4294901760
      %v4493 = vsub.f32 %v4178, %v4492
      %4494 = vmatmul.mubr.f32.gmra.mxu0 %v4493
      %v4495 = vpop.f32.mrf.mxu0
      %v4496 = vadd.f32 %v4395, %v4495
      %v4497 = vpop.f32.mrf.mxu0
      %4498 = vdwg.mxu0
      %4499 = vmatprep.subr.mxu0 0.0
      %4500 = vmatpush1.msra.mxu0 0.0
      %4501 = vmatprep.subr.mxu0 0.0
      %4502 = vmatpush1.msra.mxu0 0.0
      %4503 = vmatprep.subr.mxu0 0.0
      %4504 = vmatpush1.msra.mxu0 0.0
      %4505 = vmatprep.subr.mxu0 0.0
      %4506 = vmatpush1.msra.mxu0 0.0
      %4507 = vmatprep.subr.mxu0 0.0
      %4508 = vmatpush1.msra.mxu0 0.0
      %4509 = vmatprep.subr.mxu0 0.0
      %4510 = vmatpush1.msra.mxu0 0.0
      %4511 = vmatprep.subr.mxu0 0.0
      %4512 = vmatpush1.msra.mxu0 0.0
      %4513 = vmatprep.subr.mxu0 0.0
      %4514 = vmatpush1.msra.mxu0 0.0
      %4515 = vmatprep.subr.mxu0 0.0
      %4516 = vmatpush1.msra.mxu0 0.0
      %4517 = vmatprep.subr.mxu0 0.0
      %4518 = vmatpush1.msra.mxu0 0.0
      %4519 = vmatprep.subr.mxu0 0.0
      %4520 = vmatpush1.msra.mxu0 0.0
      %4521 = vmatprep.subr.mxu0 0.0
      %4522 = vmatpush1.msra.mxu0 0.0
      %4523 = vmatprep.subr.mxu0 0.0
      %v4524 = vand.u32 %v1711, 4294901760
      %4525 = vmatpush1.msra.mxu0 %v4524
      %4526 = vmatprep.subr.mxu0 0.0
      %v4527 = vand.u32 %v1705, 4294901760
      %4528 = vmatpush1.msra.mxu0 %v4527
      %4529 = vmatprep.subr.mxu0 0.0
      %v4530 = vand.u32 %v1699, 4294901760
      %4531 = vmatpush1.msra.mxu0 %v4530
      %4532 = vmatprep.subr.mxu0 0.0
      %v4533 = vand.u32 %v1693, 4294901760
      %4534 = vmatpush1.msra.mxu0 %v4533
      %4535 = vmatprep.subr.mxu0 0.0
      %4536 = vmatpush2.msra.mxu0 0.0
      %4537 = vmatprep.subr.mxu0 0.0
      %4538 = vmatpush2.msra.mxu0 0.0
      %4539 = vmatprep.subr.mxu0 0.0
      %4540 = vmatpush2.msra.mxu0 0.0
      %4541 = vmatprep.subr.mxu0 0.0
      %4542 = vmatpush2.msra.mxu0 0.0
      %4543 = vmatprep.subr.mxu0 0.0
      %4544 = vmatpush2.msra.mxu0 0.0
      %4545 = vmatprep.subr.mxu0 0.0
      %4546 = vmatpush2.msra.mxu0 0.0
      %4547 = vmatprep.subr.mxu0 0.0
      %4548 = vmatpush2.msra.mxu0 0.0
      %4549 = vmatprep.subr.mxu0 0.0
      %4550 = vmatpush2.msra.mxu0 0.0
      %4551 = vmatprep.subr.mxu0 0.0
      %4552 = vmatpush2.msra.mxu0 0.0
      %4553 = vmatprep.subr.mxu0 0.0
      %4554 = vmatpush2.msra.mxu0 0.0
      %4555 = vmatprep.subr.mxu0 0.0
      %4556 = vmatpush2.msra.mxu0 0.0
      %4557 = vmatprep.subr.mxu0 0.0
      %4558 = vmatpush2.msra.mxu0 0.0
      %4559 = vmatprep.subr.mxu0 0.0
      %4560 = vmatpush2.msra.mxu0 0.0
      %4561 = vmatprep.subr.mxu0 0.0
      %4562 = vmatpush2.msra.mxu0 0.0
      %4563 = vmatprep.subr.mxu0 0.0
      %4564 = vmatpush2.msra.mxu0 0.0
      %4565 = vmatprep.subr.mxu0 0.0
      %4566 = vmatpush2.msra.mxu0 0.0
      %4567 = vmatprep.mubr.f32.mxu0 0.0
      %v4568 = vand.u32 %v4169, 4294901760
      %v4569 = vsub.f32 %v4169, %v4568
      %v4570 = vand.u32 %v4569, 4294901760
      %4571 = vmatmul.mubr.f32.gmra.mxu0 %v4570
      %v4572 = vpop.f32.mrf.mxu0
      %v4573 = vadd.f32 %v4475, %v4572
      %v4574 = vpop.f32.mrf.mxu0
      %4575 = vmatprep.mubr.f32.mxu0 0.0
      %v4576 = vand.u32 %v4172, 4294901760
      %v4577 = vsub.f32 %v4172, %v4576
      %v4578 = vand.u32 %v4577, 4294901760
      %4579 = vmatmul.mubr.f32.gmra.mxu0 %v4578
      %v4580 = vpop.f32.mrf.mxu0
      %v4581 = vadd.f32 %v4482, %v4580
      %v4582 = vpop.f32.mrf.mxu0
      %4583 = vmatprep.mubr.f32.mxu0 0.0
      %v4584 = vand.u32 %v4175, 4294901760
      %v4585 = vsub.f32 %v4175, %v4584
      %v4586 = vand.u32 %v4585, 4294901760
      %4587 = vmatmul.mubr.f32.gmra.mxu0 %v4586
      %v4588 = vpop.f32.mrf.mxu0
      %v4589 = vadd.f32 %v4489, %v4588
      %v4590 = vpop.f32.mrf.mxu0
      %4591 = vmatprep.mubr.f32.mxu0 0.0
      %v4592 = vand.u32 %v4178, 4294901760
      %v4593 = vsub.f32 %v4178, %v4592
      %v4594 = vand.u32 %v4593, 4294901760
      %4595 = vmatmul.mubr.f32.gmra.mxu0 %v4594
      %v4596 = vpop.f32.mrf.mxu0
      %v4597 = vadd.f32 %v4496, %v4596
      %v4598 = vpop.f32.mrf.mxu0
      %4599 = vdwg.mxu0
      %4600 = vmatprep.subr.mxu0 0.0
      %4601 = vmatpush1.msra.mxu0 0.0
      %4602 = vmatprep.subr.mxu0 0.0
      %4603 = vmatpush1.msra.mxu0 0.0
      %4604 = vmatprep.subr.mxu0 0.0
      %4605 = vmatpush1.msra.mxu0 0.0
      %4606 = vmatprep.subr.mxu0 0.0
      %4607 = vmatpush1.msra.mxu0 0.0
      %4608 = vmatprep.subr.mxu0 0.0
      %4609 = vmatpush1.msra.mxu0 0.0
      %4610 = vmatprep.subr.mxu0 0.0
      %4611 = vmatpush1.msra.mxu0 0.0
      %4612 = vmatprep.subr.mxu0 0.0
      %4613 = vmatpush1.msra.mxu0 0.0
      %4614 = vmatprep.subr.mxu0 0.0
      %4615 = vmatpush1.msra.mxu0 0.0
      %4616 = vmatprep.subr.mxu0 0.0
      %4617 = vmatpush1.msra.mxu0 0.0
      %4618 = vmatprep.subr.mxu0 0.0
      %4619 = vmatpush1.msra.mxu0 0.0
      %4620 = vmatprep.subr.mxu0 0.0
      %4621 = vmatpush1.msra.mxu0 0.0
      %4622 = vmatprep.subr.mxu0 0.0
      %4623 = vmatpush1.msra.mxu0 0.0
      %4624 = vmatprep.subr.mxu0 0.0
      %v4625 = vand.u32 %v1711, 4294901760
      %v4626 = vsub.f32 %v1711, %v4625
      %v4627 = vand.u32 %v4626, 4294901760
      %4628 = vmatpush1.msra.mxu0 %v4627
      %4629 = vmatprep.subr.mxu0 0.0
      %v4630 = vand.u32 %v1705, 4294901760
      %v4631 = vsub.f32 %v1705, %v4630
      %v4632 = vand.u32 %v4631, 4294901760
      %4633 = vmatpush1.msra.mxu0 %v4632
      %4634 = vmatprep.subr.mxu0 0.0
      %v4635 = vand.u32 %v1699, 4294901760
      %v4636 = vsub.f32 %v1699, %v4635
      %v4637 = vand.u32 %v4636, 4294901760
      %4638 = vmatpush1.msra.mxu0 %v4637
      %4639 = vmatprep.subr.mxu0 0.0
      %v4640 = vand.u32 %v1693, 4294901760
      %v4641 = vsub.f32 %v1693, %v4640
      %v4642 = vand.u32 %v4641, 4294901760
      %4643 = vmatpush1.msra.mxu0 %v4642
      %4644 = vmatprep.subr.mxu0 0.0
      %4645 = vmatpush2.msra.mxu0 0.0
      %4646 = vmatprep.subr.mxu0 0.0
      %4647 = vmatpush2.msra.mxu0 0.0
      %4648 = vmatprep.subr.mxu0 0.0
      %4649 = vmatpush2.msra.mxu0 0.0
      %4650 = vmatprep.subr.mxu0 0.0
      %4651 = vmatpush2.msra.mxu0 0.0
      %4652 = vmatprep.subr.mxu0 0.0
      %4653 = vmatpush2.msra.mxu0 0.0
      %4654 = vmatprep.subr.mxu0 0.0
      %4655 = vmatpush2.msra.mxu0 0.0
      %4656 = vmatprep.subr.mxu0 0.0
      %4657 = vmatpush2.msra.mxu0 0.0
      %4658 = vmatprep.subr.mxu0 0.0
      %4659 = vmatpush2.msra.mxu0 0.0
      %4660 = vmatprep.subr.mxu0 0.0
      %4661 = vmatpush2.msra.mxu0 0.0
      %4662 = vmatprep.subr.mxu0 0.0
      %4663 = vmatpush2.msra.mxu0 0.0
      %4664 = vmatprep.subr.mxu0 0.0
      %4665 = vmatpush2.msra.mxu0 0.0
      %4666 = vmatprep.subr.mxu0 0.0
      %4667 = vmatpush2.msra.mxu0 0.0
      %4668 = vmatprep.subr.mxu0 0.0
      %4669 = vmatpush2.msra.mxu0 0.0
      %4670 = vmatprep.subr.mxu0 0.0
      %4671 = vmatpush2.msra.mxu0 0.0
      %4672 = vmatprep.subr.mxu0 0.0
      %4673 = vmatpush2.msra.mxu0 0.0
      %4674 = vmatprep.subr.mxu0 0.0
      %4675 = vmatpush2.msra.mxu0 0.0
      %4676 = vmatprep.mubr.f32.mxu0 0.0
      %v4677 = vand.u32 %v4169, 4294901760
      %4678 = vmatmul.mubr.f32.gmra.mxu0 %v4677
      %v4679 = vpop.f32.mrf.mxu0
      %v4680 = vadd.f32 %v4573, %v4679
      %v4681 = vpop.f32.mrf.mxu0
      %4682 = vmatprep.mubr.f32.mxu0 0.0
      %v4683 = vand.u32 %v4172, 4294901760
      %4684 = vmatmul.mubr.f32.gmra.mxu0 %v4683
      %v4685 = vpop.f32.mrf.mxu0
      %v4686 = vadd.f32 %v4581, %v4685
      %v4687 = vpop.f32.mrf.mxu0
      %4688 = vmatprep.mubr.f32.mxu0 0.0
      %v4689 = vand.u32 %v4175, 4294901760
      %4690 = vmatmul.mubr.f32.gmra.mxu0 %v4689
      %v4691 = vpop.f32.mrf.mxu0
      %v4692 = vadd.f32 %v4589, %v4691
      %v4693 = vpop.f32.mrf.mxu0
      %4694 = vmatprep.mubr.f32.mxu0 0.0
      %v4695 = vand.u32 %v4178, 4294901760
      %4696 = vmatmul.mubr.f32.gmra.mxu0 %v4695
      %v4697 = vpop.f32.mrf.mxu0
      %v4698 = vadd.f32 %v4597, %v4697
      %v4699 = vpop.f32.mrf.mxu0
      %4700 = vdwg.mxu0
      %4701 = vmatprep.subr.mxu0 0.0
      %4702 = vmatpush1.msra.mxu0 0.0
      %4703 = vmatprep.subr.mxu0 0.0
      %4704 = vmatpush1.msra.mxu0 0.0
      %4705 = vmatprep.subr.mxu0 0.0
      %4706 = vmatpush1.msra.mxu0 0.0
      %4707 = vmatprep.subr.mxu0 0.0
      %4708 = vmatpush1.msra.mxu0 0.0
      %4709 = vmatprep.subr.mxu0 0.0
      %4710 = vmatpush1.msra.mxu0 0.0
      %4711 = vmatprep.subr.mxu0 0.0
      %4712 = vmatpush1.msra.mxu0 0.0
      %4713 = vmatprep.subr.mxu0 0.0
      %4714 = vmatpush1.msra.mxu0 0.0
      %4715 = vmatprep.subr.mxu0 0.0
      %4716 = vmatpush1.msra.mxu0 0.0
      %4717 = vmatprep.subr.mxu0 0.0
      %4718 = vmatpush1.msra.mxu0 0.0
      %4719 = vmatprep.subr.mxu0 0.0
      %4720 = vmatpush1.msra.mxu0 0.0
      %4721 = vmatprep.subr.mxu0 0.0
      %4722 = vmatpush1.msra.mxu0 0.0
      %4723 = vmatprep.subr.mxu0 0.0
      %4724 = vmatpush1.msra.mxu0 0.0
      %4725 = vmatprep.subr.mxu0 0.0
      %v4726 = vand.u32 %v1711, 4294901760
      %4727 = vmatpush1.msra.mxu0 %v4726
      %4728 = vmatprep.subr.mxu0 0.0
      %v4729 = vand.u32 %v1705, 4294901760
      %4730 = vmatpush1.msra.mxu0 %v4729
      %4731 = vmatprep.subr.mxu0 0.0
      %v4732 = vand.u32 %v1699, 4294901760
      %4733 = vmatpush1.msra.mxu0 %v4732
      %4734 = vmatprep.subr.mxu0 0.0
      %v4735 = vand.u32 %v1693, 4294901760
      %4736 = vmatpush1.msra.mxu0 %v4735
      %4737 = vmatprep.subr.mxu0 0.0
      %4738 = vmatpush2.msra.mxu0 0.0
      %4739 = vmatprep.subr.mxu0 0.0
      %4740 = vmatpush2.msra.mxu0 0.0
      %4741 = vmatprep.subr.mxu0 0.0
      %4742 = vmatpush2.msra.mxu0 0.0
      %4743 = vmatprep.subr.mxu0 0.0
      %4744 = vmatpush2.msra.mxu0 0.0
      %4745 = vmatprep.subr.mxu0 0.0
      %4746 = vmatpush2.msra.mxu0 0.0
      %4747 = vmatprep.subr.mxu0 0.0
      %4748 = vmatpush2.msra.mxu0 0.0
      %4749 = vmatprep.subr.mxu0 0.0
      %4750 = vmatpush2.msra.mxu0 0.0
      %4751 = vmatprep.subr.mxu0 0.0
      %4752 = vmatpush2.msra.mxu0 0.0
      %4753 = vmatprep.subr.mxu0 0.0
      %4754 = vmatpush2.msra.mxu0 0.0
      %4755 = vmatprep.subr.mxu0 0.0
      %4756 = vmatpush2.msra.mxu0 0.0
      %4757 = vmatprep.subr.mxu0 0.0
      %4758 = vmatpush2.msra.mxu0 0.0
      %4759 = vmatprep.subr.mxu0 0.0
      %4760 = vmatpush2.msra.mxu0 0.0
      %4761 = vmatprep.subr.mxu0 0.0
      %4762 = vmatpush2.msra.mxu0 0.0
      %4763 = vmatprep.subr.mxu0 0.0
      %4764 = vmatpush2.msra.mxu0 0.0
      %4765 = vmatprep.subr.mxu0 0.0
      %4766 = vmatpush2.msra.mxu0 0.0
      %4767 = vmatprep.subr.mxu0 0.0
      %4768 = vmatpush2.msra.mxu0 0.0
      %4769 = vmatprep.mubr.f32.mxu0 0.0
      %v4770 = vand.u32 %v4169, 4294901760
      %4771 = vmatmul.mubr.f32.gmra.mxu0 %v4770
      %v4772 = vpop.f32.mrf.mxu0
      %v4773 = vadd.f32 %v4680, %v4772
      %v4774 = vpop.f32.mrf.mxu0
      %4775 = vmatprep.mubr.f32.mxu0 0.0
      %v4776 = vand.u32 %v4172, 4294901760
      %4777 = vmatmul.mubr.f32.gmra.mxu0 %v4776
      %v4778 = vpop.f32.mrf.mxu0
      %v4779 = vadd.f32 %v4686, %v4778
      %v4780 = vpop.f32.mrf.mxu0
      %4781 = vmatprep.mubr.f32.mxu0 0.0
      %v4782 = vand.u32 %v4175, 4294901760
      %4783 = vmatmul.mubr.f32.gmra.mxu0 %v4782
      %v4784 = vpop.f32.mrf.mxu0
      %v4785 = vadd.f32 %v4692, %v4784
      %v4786 = vpop.f32.mrf.mxu0
      %4787 = vmatprep.mubr.f32.mxu0 0.0
      %v4788 = vand.u32 %v4178, 4294901760
      %4789 = vmatmul.mubr.f32.gmra.mxu0 %v4788
      %v4790 = vpop.f32.mrf.mxu0
      %v4791 = vadd.f32 %v4698, %v4790
      %v4792 = vpop.f32.mrf.mxu0
      %4793 = vdwg.mxu0
      %4794 = vst [vmem:[#allocation2] sm:$0xff] %v4773
      %4795 = vst [vmem:[#allocation2 + $0x10] sm:$0xff] %v4779
      %4796 = vst [vmem:[#allocation2 + $0x20] sm:$0xff] %v4785
      %4797 = vst [vmem:[#allocation2 + $0x30] sm:$0xff] %v4791
      %4798 = vmatprep.subr.mxu0 0.0
      %4799 = vmatpush1.msra.mxu0 0.0
      %4800 = vmatprep.subr.mxu0 0.0
      %4801 = vmatpush1.msra.mxu0 0.0
      %4802 = vmatprep.subr.mxu0 0.0
      %4803 = vmatpush1.msra.mxu0 0.0
      %4804 = vmatprep.subr.mxu0 0.0
      %4805 = vmatpush1.msra.mxu0 0.0
      %4806 = vmatprep.subr.mxu0 0.0
      %4807 = vmatpush1.msra.mxu0 0.0
      %4808 = vmatprep.subr.mxu0 0.0
      %4809 = vmatpush1.msra.mxu0 0.0
      %4810 = vmatprep.subr.mxu0 0.0
      %4811 = vmatpush1.msra.mxu0 0.0
      %4812 = vmatprep.subr.mxu0 0.0
      %4813 = vmatpush1.msra.mxu0 0.0
      %4814 = vmatprep.subr.mxu0 0.0
      %4815 = vmatpush1.msra.mxu0 0.0
      %4816 = vmatprep.subr.mxu0 0.0
      %4817 = vmatpush1.msra.mxu0 0.0
      %4818 = vmatprep.subr.mxu0 0.0
      %4819 = vmatpush1.msra.mxu0 0.0
      %4820 = vmatprep.subr.mxu0 0.0
      %4821 = vmatpush1.msra.mxu0 0.0
      %4822 = vmatprep.subr.mxu0 0.0
      %v4823 = vand.u32 %v2497, 4294901760
      %4824 = vmatpush1.msra.mxu0 %v4823
      %4825 = vmatprep.subr.mxu0 0.0
      %v4826 = vand.u32 %v2491, 4294901760
      %4827 = vmatpush1.msra.mxu0 %v4826
      %4828 = vmatprep.subr.mxu0 0.0
      %v4829 = vand.u32 %v2485, 4294901760
      %4830 = vmatpush1.msra.mxu0 %v4829
      %4831 = vmatprep.subr.mxu0 0.0
      %v4832 = vand.u32 %v2479, 4294901760
      %4833 = vmatpush1.msra.mxu0 %v4832
      %4834 = vmatprep.subr.mxu0 0.0
      %4835 = vmatpush2.msra.mxu0 0.0
      %4836 = vmatprep.subr.mxu0 0.0
      %4837 = vmatpush2.msra.mxu0 0.0
      %4838 = vmatprep.subr.mxu0 0.0
      %4839 = vmatpush2.msra.mxu0 0.0
      %4840 = vmatprep.subr.mxu0 0.0
      %4841 = vmatpush2.msra.mxu0 0.0
      %4842 = vmatprep.subr.mxu0 0.0
      %4843 = vmatpush2.msra.mxu0 0.0
      %4844 = vmatprep.subr.mxu0 0.0
      %4845 = vmatpush2.msra.mxu0 0.0
      %4846 = vmatprep.subr.mxu0 0.0
      %4847 = vmatpush2.msra.mxu0 0.0
      %4848 = vmatprep.subr.mxu0 0.0
      %4849 = vmatpush2.msra.mxu0 0.0
      %4850 = vmatprep.subr.mxu0 0.0
      %4851 = vmatpush2.msra.mxu0 0.0
      %4852 = vmatprep.subr.mxu0 0.0
      %4853 = vmatpush2.msra.mxu0 0.0
      %4854 = vmatprep.subr.mxu0 0.0
      %4855 = vmatpush2.msra.mxu0 0.0
      %4856 = vmatprep.subr.mxu0 0.0
      %4857 = vmatpush2.msra.mxu0 0.0
      %4858 = vmatprep.subr.mxu0 0.0
      %4859 = vmatpush2.msra.mxu0 0.0
      %4860 = vmatprep.subr.mxu0 0.0
      %4861 = vmatpush2.msra.mxu0 0.0
      %4862 = vmatprep.subr.mxu0 0.0
      %4863 = vmatpush2.msra.mxu0 0.0
      %4864 = vmatprep.subr.mxu0 0.0
      %4865 = vmatpush2.msra.mxu0 0.0
      %4866 = vmatprep.mubr.f32.mxu0 0.0
      %v4867 = vand.u32 %v4169, 4294901760
      %v4868 = vsub.f32 %v4169, %v4867
      %v4869 = vand.u32 %v4868, 4294901760
      %v4870 = vsub.f32 %v4868, %v4869
      %v4871 = vand.u32 %v4870, 4294901760
      %4872 = vmatmul.mubr.f32.gmra.mxu0 %v4871
      %v4873 = vpop.f32.mrf.mxu0
      %v4874 = vadd.f32 0.0, %v4873
      %v4875 = vpop.f32.mrf.mxu0
      %4876 = vmatprep.mubr.f32.mxu0 0.0
      %v4877 = vand.u32 %v4172, 4294901760
      %v4878 = vsub.f32 %v4172, %v4877
      %v4879 = vand.u32 %v4878, 4294901760
      %v4880 = vsub.f32 %v4878, %v4879
      %v4881 = vand.u32 %v4880, 4294901760
      %4882 = vmatmul.mubr.f32.gmra.mxu0 %v4881
      %v4883 = vpop.f32.mrf.mxu0
      %v4884 = vadd.f32 0.0, %v4883
      %v4885 = vpop.f32.mrf.mxu0
      %4886 = vmatprep.mubr.f32.mxu0 0.0
      %v4887 = vand.u32 %v4175, 4294901760
      %v4888 = vsub.f32 %v4175, %v4887
      %v4889 = vand.u32 %v4888, 4294901760
      %v4890 = vsub.f32 %v4888, %v4889
      %v4891 = vand.u32 %v4890, 4294901760
      %4892 = vmatmul.mubr.f32.gmra.mxu0 %v4891
      %v4893 = vpop.f32.mrf.mxu0
      %v4894 = vadd.f32 0.0, %v4893
      %v4895 = vpop.f32.mrf.mxu0
      %4896 = vmatprep.mubr.f32.mxu0 0.0
      %v4897 = vand.u32 %v4178, 4294901760
      %v4898 = vsub.f32 %v4178, %v4897
      %v4899 = vand.u32 %v4898, 4294901760
      %v4900 = vsub.f32 %v4898, %v4899
      %v4901 = vand.u32 %v4900, 4294901760
      %4902 = vmatmul.mubr.f32.gmra.mxu0 %v4901
      %v4903 = vpop.f32.mrf.mxu0
      %v4904 = vadd.f32 0.0, %v4903
      %v4905 = vpop.f32.mrf.mxu0
      %4906 = vdwg.mxu0
      %4907 = vmatprep.subr.mxu0 0.0
      %4908 = vmatpush1.msra.mxu0 0.0
      %4909 = vmatprep.subr.mxu0 0.0
      %4910 = vmatpush1.msra.mxu0 0.0
      %4911 = vmatprep.subr.mxu0 0.0
      %4912 = vmatpush1.msra.mxu0 0.0
      %4913 = vmatprep.subr.mxu0 0.0
      %4914 = vmatpush1.msra.mxu0 0.0
      %4915 = vmatprep.subr.mxu0 0.0
      %4916 = vmatpush1.msra.mxu0 0.0
      %4917 = vmatprep.subr.mxu0 0.0
      %4918 = vmatpush1.msra.mxu0 0.0
      %4919 = vmatprep.subr.mxu0 0.0
      %4920 = vmatpush1.msra.mxu0 0.0
      %4921 = vmatprep.subr.mxu0 0.0
      %4922 = vmatpush1.msra.mxu0 0.0
      %4923 = vmatprep.subr.mxu0 0.0
      %4924 = vmatpush1.msra.mxu0 0.0
      %4925 = vmatprep.subr.mxu0 0.0
      %4926 = vmatpush1.msra.mxu0 0.0
      %4927 = vmatprep.subr.mxu0 0.0
      %4928 = vmatpush1.msra.mxu0 0.0
      %4929 = vmatprep.subr.mxu0 0.0
      %4930 = vmatpush1.msra.mxu0 0.0
      %4931 = vmatprep.subr.mxu0 0.0
      %v4932 = vand.u32 %v2497, 4294901760
      %v4933 = vsub.f32 %v2497, %v4932
      %v4934 = vand.u32 %v4933, 4294901760
      %v4935 = vsub.f32 %v4933, %v4934
      %v4936 = vand.u32 %v4935, 4294901760
      %4937 = vmatpush1.msra.mxu0 %v4936
      %4938 = vmatprep.subr.mxu0 0.0
      %v4939 = vand.u32 %v2491, 4294901760
      %v4940 = vsub.f32 %v2491, %v4939
      %v4941 = vand.u32 %v4940, 4294901760
      %v4942 = vsub.f32 %v4940, %v4941
      %v4943 = vand.u32 %v4942, 4294901760
      %4944 = vmatpush1.msra.mxu0 %v4943
      %4945 = vmatprep.subr.mxu0 0.0
      %v4946 = vand.u32 %v2485, 4294901760
      %v4947 = vsub.f32 %v2485, %v4946
      %v4948 = vand.u32 %v4947, 4294901760
      %v4949 = vsub.f32 %v4947, %v4948
      %v4950 = vand.u32 %v4949, 4294901760
      %4951 = vmatpush1.msra.mxu0 %v4950
      %4952 = vmatprep.subr.mxu0 0.0
      %v4953 = vand.u32 %v2479, 4294901760
      %v4954 = vsub.f32 %v2479, %v4953
      %v4955 = vand.u32 %v4954, 4294901760
      %v4956 = vsub.f32 %v4954, %v4955
      %v4957 = vand.u32 %v4956, 4294901760
      %4958 = vmatpush1.msra.mxu0 %v4957
      %4959 = vmatprep.subr.mxu0 0.0
      %4960 = vmatpush2.msra.mxu0 0.0
      %4961 = vmatprep.subr.mxu0 0.0
      %4962 = vmatpush2.msra.mxu0 0.0
      %4963 = vmatprep.subr.mxu0 0.0
      %4964 = vmatpush2.msra.mxu0 0.0
      %4965 = vmatprep.subr.mxu0 0.0
      %4966 = vmatpush2.msra.mxu0 0.0
      %4967 = vmatprep.subr.mxu0 0.0
      %4968 = vmatpush2.msra.mxu0 0.0
      %4969 = vmatprep.subr.mxu0 0.0
      %4970 = vmatpush2.msra.mxu0 0.0
      %4971 = vmatprep.subr.mxu0 0.0
      %4972 = vmatpush2.msra.mxu0 0.0
      %4973 = vmatprep.subr.mxu0 0.0
      %4974 = vmatpush2.msra.mxu0 0.0
      %4975 = vmatprep.subr.mxu0 0.0
      %4976 = vmatpush2.msra.mxu0 0.0
      %4977 = vmatprep.subr.mxu0 0.0
      %4978 = vmatpush2.msra.mxu0 0.0
      %4979 = vmatprep.subr.mxu0 0.0
      %4980 = vmatpush2.msra.mxu0 0.0
      %4981 = vmatprep.subr.mxu0 0.0
      %4982 = vmatpush2.msra.mxu0 0.0
      %4983 = vmatprep.subr.mxu0 0.0
      %4984 = vmatpush2.msra.mxu0 0.0
      %4985 = vmatprep.subr.mxu0 0.0
      %4986 = vmatpush2.msra.mxu0 0.0
      %4987 = vmatprep.subr.mxu0 0.0
      %4988 = vmatpush2.msra.mxu0 0.0
      %4989 = vmatprep.subr.mxu0 0.0
      %4990 = vmatpush2.msra.mxu0 0.0
      %4991 = vmatprep.mubr.f32.mxu0 0.0
      %v4992 = vand.u32 %v4169, 4294901760
      %4993 = vmatmul.mubr.f32.gmra.mxu0 %v4992
      %v4994 = vpop.f32.mrf.mxu0
      %v4995 = vadd.f32 %v4874, %v4994
      %v4996 = vpop.f32.mrf.mxu0
      %4997 = vmatprep.mubr.f32.mxu0 0.0
      %v4998 = vand.u32 %v4172, 4294901760
      %4999 = vmatmul.mubr.f32.gmra.mxu0 %v4998
      %v5000 = vpop.f32.mrf.mxu0
      %v5001 = vadd.f32 %v4884, %v5000
      %v5002 = vpop.f32.mrf.mxu0
      %5003 = vmatprep.mubr.f32.mxu0 0.0
      %v5004 = vand.u32 %v4175, 4294901760
      %5005 = vmatmul.mubr.f32.gmra.mxu0 %v5004
      %v5006 = vpop.f32.mrf.mxu0
      %v5007 = vadd.f32 %v4894, %v5006
      %v5008 = vpop.f32.mrf.mxu0
      %5009 = vmatprep.mubr.f32.mxu0 0.0
      %v5010 = vand.u32 %v4178, 4294901760
      %5011 = vmatmul.mubr.f32.gmra.mxu0 %v5010
      %v5012 = vpop.f32.mrf.mxu0
      %v5013 = vadd.f32 %v4904, %v5012
      %v5014 = vpop.f32.mrf.mxu0
      %5015 = vdwg.mxu0
      %5016 = vmatprep.subr.mxu0 0.0
      %5017 = vmatpush1.msra.mxu0 0.0
      %5018 = vmatprep.subr.mxu0 0.0
      %5019 = vmatpush1.msra.mxu0 0.0
      %5020 = vmatprep.subr.mxu0 0.0
      %5021 = vmatpush1.msra.mxu0 0.0
      %5022 = vmatprep.subr.mxu0 0.0
      %5023 = vmatpush1.msra.mxu0 0.0
      %5024 = vmatprep.subr.mxu0 0.0
      %5025 = vmatpush1.msra.mxu0 0.0
      %5026 = vmatprep.subr.mxu0 0.0
      %5027 = vmatpush1.msra.mxu0 0.0
      %5028 = vmatprep.subr.mxu0 0.0
      %5029 = vmatpush1.msra.mxu0 0.0
      %5030 = vmatprep.subr.mxu0 0.0
      %5031 = vmatpush1.msra.mxu0 0.0
      %5032 = vmatprep.subr.mxu0 0.0
      %5033 = vmatpush1.msra.mxu0 0.0
      %5034 = vmatprep.subr.mxu0 0.0
      %5035 = vmatpush1.msra.mxu0 0.0
      %5036 = vmatprep.subr.mxu0 0.0
      %5037 = vmatpush1.msra.mxu0 0.0
      %5038 = vmatprep.subr.mxu0 0.0
      %5039 = vmatpush1.msra.mxu0 0.0
      %5040 = vmatprep.subr.mxu0 0.0
      %v5041 = vand.u32 %v2497, 4294901760
      %v5042 = vsub.f32 %v2497, %v5041
      %5043 = vmatpush1.msra.mxu0 %v5042
      %5044 = vmatprep.subr.mxu0 0.0
      %v5045 = vand.u32 %v2491, 4294901760
      %v5046 = vsub.f32 %v2491, %v5045
      %5047 = vmatpush1.msra.mxu0 %v5046
      %5048 = vmatprep.subr.mxu0 0.0
      %v5049 = vand.u32 %v2485, 4294901760
      %v5050 = vsub.f32 %v2485, %v5049
      %5051 = vmatpush1.msra.mxu0 %v5050
      %5052 = vmatprep.subr.mxu0 0.0
      %v5053 = vand.u32 %v2479, 4294901760
      %v5054 = vsub.f32 %v2479, %v5053
      %5055 = vmatpush1.msra.mxu0 %v5054
      %5056 = vmatprep.subr.mxu0 0.0
      %5057 = vmatpush2.msra.mxu0 0.0
      %5058 = vmatprep.subr.mxu0 0.0
      %5059 = vmatpush2.msra.mxu0 0.0
      %5060 = vmatprep.subr.mxu0 0.0
      %5061 = vmatpush2.msra.mxu0 0.0
      %5062 = vmatprep.subr.mxu0 0.0
      %5063 = vmatpush2.msra.mxu0 0.0
      %5064 = vmatprep.subr.mxu0 0.0
      %5065 = vmatpush2.msra.mxu0 0.0
      %5066 = vmatprep.subr.mxu0 0.0
      %5067 = vmatpush2.msra.mxu0 0.0
      %5068 = vmatprep.subr.mxu0 0.0
      %5069 = vmatpush2.msra.mxu0 0.0
      %5070 = vmatprep.subr.mxu0 0.0
      %5071 = vmatpush2.msra.mxu0 0.0
      %5072 = vmatprep.subr.mxu0 0.0
      %5073 = vmatpush2.msra.mxu0 0.0
      %5074 = vmatprep.subr.mxu0 0.0
      %5075 = vmatpush2.msra.mxu0 0.0
      %5076 = vmatprep.subr.mxu0 0.0
      %5077 = vmatpush2.msra.mxu0 0.0
      %5078 = vmatprep.subr.mxu0 0.0
      %5079 = vmatpush2.msra.mxu0 0.0
      %5080 = vmatprep.subr.mxu0 0.0
      %5081 = vmatpush2.msra.mxu0 0.0
      %5082 = vmatprep.subr.mxu0 0.0
      %5083 = vmatpush2.msra.mxu0 0.0
      %5084 = vmatprep.subr.mxu0 0.0
      %5085 = vmatpush2.msra.mxu0 0.0
      %5086 = vmatprep.subr.mxu0 0.0
      %5087 = vmatpush2.msra.mxu0 0.0
      %5088 = vmatprep.mubr.f32.mxu0 0.0
      %v5089 = vand.u32 %v4169, 4294901760
      %v5090 = vsub.f32 %v4169, %v5089
      %5091 = vmatmul.mubr.f32.gmra.mxu0 %v5090
      %v5092 = vpop.f32.mrf.mxu0
      %v5093 = vadd.f32 %v4995, %v5092
      %v5094 = vpop.f32.mrf.mxu0
      %5095 = vmatprep.mubr.f32.mxu0 0.0
      %v5096 = vand.u32 %v4172, 4294901760
      %v5097 = vsub.f32 %v4172, %v5096
      %5098 = vmatmul.mubr.f32.gmra.mxu0 %v5097
      %v5099 = vpop.f32.mrf.mxu0
      %v5100 = vadd.f32 %v5001, %v5099
      %v5101 = vpop.f32.mrf.mxu0
      %5102 = vmatprep.mubr.f32.mxu0 0.0
      %v5103 = vand.u32 %v4175, 4294901760
      %v5104 = vsub.f32 %v4175, %v5103
      %5105 = vmatmul.mubr.f32.gmra.mxu0 %v5104
      %v5106 = vpop.f32.mrf.mxu0
      %v5107 = vadd.f32 %v5007, %v5106
      %v5108 = vpop.f32.mrf.mxu0
      %5109 = vmatprep.mubr.f32.mxu0 0.0
      %v5110 = vand.u32 %v4178, 4294901760
      %v5111 = vsub.f32 %v4178, %v5110
      %5112 = vmatmul.mubr.f32.gmra.mxu0 %v5111
      %v5113 = vpop.f32.mrf.mxu0
      %v5114 = vadd.f32 %v5013, %v5113
      %v5115 = vpop.f32.mrf.mxu0
      %5116 = vdwg.mxu0
      %5117 = vmatprep.subr.mxu0 0.0
      %5118 = vmatpush1.msra.mxu0 0.0
      %5119 = vmatprep.subr.mxu0 0.0
      %5120 = vmatpush1.msra.mxu0 0.0
      %5121 = vmatprep.subr.mxu0 0.0
      %5122 = vmatpush1.msra.mxu0 0.0
      %5123 = vmatprep.subr.mxu0 0.0
      %5124 = vmatpush1.msra.mxu0 0.0
      %5125 = vmatprep.subr.mxu0 0.0
      %5126 = vmatpush1.msra.mxu0 0.0
      %5127 = vmatprep.subr.mxu0 0.0
      %5128 = vmatpush1.msra.mxu0 0.0
      %5129 = vmatprep.subr.mxu0 0.0
      %5130 = vmatpush1.msra.mxu0 0.0
      %5131 = vmatprep.subr.mxu0 0.0
      %5132 = vmatpush1.msra.mxu0 0.0
      %5133 = vmatprep.subr.mxu0 0.0
      %5134 = vmatpush1.msra.mxu0 0.0
      %5135 = vmatprep.subr.mxu0 0.0
      %5136 = vmatpush1.msra.mxu0 0.0
      %5137 = vmatprep.subr.mxu0 0.0
      %5138 = vmatpush1.msra.mxu0 0.0
      %5139 = vmatprep.subr.mxu0 0.0
      %5140 = vmatpush1.msra.mxu0 0.0
      %5141 = vmatprep.subr.mxu0 0.0
      %v5142 = vand.u32 %v2497, 4294901760
      %5143 = vmatpush1.msra.mxu0 %v5142
      %5144 = vmatprep.subr.mxu0 0.0
      %v5145 = vand.u32 %v2491, 4294901760
      %5146 = vmatpush1.msra.mxu0 %v5145
      %5147 = vmatprep.subr.mxu0 0.0
      %v5148 = vand.u32 %v2485, 4294901760
      %5149 = vmatpush1.msra.mxu0 %v5148
      %5150 = vmatprep.subr.mxu0 0.0
      %v5151 = vand.u32 %v2479, 4294901760
      %5152 = vmatpush1.msra.mxu0 %v5151
      %5153 = vmatprep.subr.mxu0 0.0
      %5154 = vmatpush2.msra.mxu0 0.0
      %5155 = vmatprep.subr.mxu0 0.0
      %5156 = vmatpush2.msra.mxu0 0.0
      %5157 = vmatprep.subr.mxu0 0.0
      %5158 = vmatpush2.msra.mxu0 0.0
      %5159 = vmatprep.subr.mxu0 0.0
      %5160 = vmatpush2.msra.mxu0 0.0
      %5161 = vmatprep.subr.mxu0 0.0
      %5162 = vmatpush2.msra.mxu0 0.0
      %5163 = vmatprep.subr.mxu0 0.0
      %5164 = vmatpush2.msra.mxu0 0.0
      %5165 = vmatprep.subr.mxu0 0.0
      %5166 = vmatpush2.msra.mxu0 0.0
      %5167 = vmatprep.subr.mxu0 0.0
      %5168 = vmatpush2.msra.mxu0 0.0
      %5169 = vmatprep.subr.mxu0 0.0
      %5170 = vmatpush2.msra.mxu0 0.0
      %5171 = vmatprep.subr.mxu0 0.0
      %5172 = vmatpush2.msra.mxu0 0.0
      %5173 = vmatprep.subr.mxu0 0.0
      %5174 = vmatpush2.msra.mxu0 0.0
      %5175 = vmatprep.subr.mxu0 0.0
      %5176 = vmatpush2.msra.mxu0 0.0
      %5177 = vmatprep.subr.mxu0 0.0
      %5178 = vmatpush2.msra.mxu0 0.0
      %5179 = vmatprep.subr.mxu0 0.0
      %5180 = vmatpush2.msra.mxu0 0.0
      %5181 = vmatprep.subr.mxu0 0.0
      %5182 = vmatpush2.msra.mxu0 0.0
      %5183 = vmatprep.subr.mxu0 0.0
      %5184 = vmatpush2.msra.mxu0 0.0
      %5185 = vmatprep.mubr.f32.mxu0 0.0
      %v5186 = vand.u32 %v4169, 4294901760
      %v5187 = vsub.f32 %v4169, %v5186
      %v5188 = vand.u32 %v5187, 4294901760
      %5189 = vmatmul.mubr.f32.gmra.mxu0 %v5188
      %v5190 = vpop.f32.mrf.mxu0
      %v5191 = vadd.f32 %v5093, %v5190
      %v5192 = vpop.f32.mrf.mxu0
      %5193 = vmatprep.mubr.f32.mxu0 0.0
      %v5194 = vand.u32 %v4172, 4294901760
      %v5195 = vsub.f32 %v4172, %v5194
      %v5196 = vand.u32 %v5195, 4294901760
      %5197 = vmatmul.mubr.f32.gmra.mxu0 %v5196
      %v5198 = vpop.f32.mrf.mxu0
      %v5199 = vadd.f32 %v5100, %v5198
      %v5200 = vpop.f32.mrf.mxu0
      %5201 = vmatprep.mubr.f32.mxu0 0.0
      %v5202 = vand.u32 %v4175, 4294901760
      %v5203 = vsub.f32 %v4175, %v5202
      %v5204 = vand.u32 %v5203, 4294901760
      %5205 = vmatmul.mubr.f32.gmra.mxu0 %v5204
      %v5206 = vpop.f32.mrf.mxu0
      %v5207 = vadd.f32 %v5107, %v5206
      %v5208 = vpop.f32.mrf.mxu0
      %5209 = vmatprep.mubr.f32.mxu0 0.0
      %v5210 = vand.u32 %v4178, 4294901760
      %v5211 = vsub.f32 %v4178, %v5210
      %v5212 = vand.u32 %v5211, 4294901760
      %5213 = vmatmul.mubr.f32.gmra.mxu0 %v5212
      %v5214 = vpop.f32.mrf.mxu0
      %v5215 = vadd.f32 %v5114, %v5214
      %v5216 = vpop.f32.mrf.mxu0
      %5217 = vdwg.mxu0
      %5218 = vmatprep.subr.mxu0 0.0
      %5219 = vmatpush1.msra.mxu0 0.0
      %5220 = vmatprep.subr.mxu0 0.0
      %5221 = vmatpush1.msra.mxu0 0.0
      %5222 = vmatprep.subr.mxu0 0.0
      %5223 = vmatpush1.msra.mxu0 0.0
      %5224 = vmatprep.subr.mxu0 0.0
      %5225 = vmatpush1.msra.mxu0 0.0
      %5226 = vmatprep.subr.mxu0 0.0
      %5227 = vmatpush1.msra.mxu0 0.0
      %5228 = vmatprep.subr.mxu0 0.0
      %5229 = vmatpush1.msra.mxu0 0.0
      %5230 = vmatprep.subr.mxu0 0.0
      %5231 = vmatpush1.msra.mxu0 0.0
      %5232 = vmatprep.subr.mxu0 0.0
      %5233 = vmatpush1.msra.mxu0 0.0
      %5234 = vmatprep.subr.mxu0 0.0
      %5235 = vmatpush1.msra.mxu0 0.0
      %5236 = vmatprep.subr.mxu0 0.0
      %5237 = vmatpush1.msra.mxu0 0.0
      %5238 = vmatprep.subr.mxu0 0.0
      %5239 = vmatpush1.msra.mxu0 0.0
      %5240 = vmatprep.subr.mxu0 0.0
      %5241 = vmatpush1.msra.mxu0 0.0
      %5242 = vmatprep.subr.mxu0 0.0
      %v5243 = vand.u32 %v2497, 4294901760
      %v5244 = vsub.f32 %v2497, %v5243
      %v5245 = vand.u32 %v5244, 4294901760
      %5246 = vmatpush1.msra.mxu0 %v5245
      %5247 = vmatprep.subr.mxu0 0.0
      %v5248 = vand.u32 %v2491, 4294901760
      %v5249 = vsub.f32 %v2491, %v5248
      %v5250 = vand.u32 %v5249, 4294901760
      %5251 = vmatpush1.msra.mxu0 %v5250
      %5252 = vmatprep.subr.mxu0 0.0
      %v5253 = vand.u32 %v2485, 4294901760
      %v5254 = vsub.f32 %v2485, %v5253
      %v5255 = vand.u32 %v5254, 4294901760
      %5256 = vmatpush1.msra.mxu0 %v5255
      %5257 = vmatprep.subr.mxu0 0.0
      %v5258 = vand.u32 %v2479, 4294901760
      %v5259 = vsub.f32 %v2479, %v5258
      %v5260 = vand.u32 %v5259, 4294901760
      %5261 = vmatpush1.msra.mxu0 %v5260
      %5262 = vmatprep.subr.mxu0 0.0
      %5263 = vmatpush2.msra.mxu0 0.0
      %5264 = vmatprep.subr.mxu0 0.0
      %5265 = vmatpush2.msra.mxu0 0.0
      %5266 = vmatprep.subr.mxu0 0.0
      %5267 = vmatpush2.msra.mxu0 0.0
      %5268 = vmatprep.subr.mxu0 0.0
      %5269 = vmatpush2.msra.mxu0 0.0
      %5270 = vmatprep.subr.mxu0 0.0
      %5271 = vmatpush2.msra.mxu0 0.0
      %5272 = vmatprep.subr.mxu0 0.0
      %5273 = vmatpush2.msra.mxu0 0.0
      %5274 = vmatprep.subr.mxu0 0.0
      %5275 = vmatpush2.msra.mxu0 0.0
      %5276 = vmatprep.subr.mxu0 0.0
      %5277 = vmatpush2.msra.mxu0 0.0
      %5278 = vmatprep.subr.mxu0 0.0
      %5279 = vmatpush2.msra.mxu0 0.0
      %5280 = vmatprep.subr.mxu0 0.0
      %5281 = vmatpush2.msra.mxu0 0.0
      %5282 = vmatprep.subr.mxu0 0.0
      %5283 = vmatpush2.msra.mxu0 0.0
      %5284 = vmatprep.subr.mxu0 0.0
      %5285 = vmatpush2.msra.mxu0 0.0
      %5286 = vmatprep.subr.mxu0 0.0
      %5287 = vmatpush2.msra.mxu0 0.0
      %5288 = vmatprep.subr.mxu0 0.0
      %5289 = vmatpush2.msra.mxu0 0.0
      %5290 = vmatprep.subr.mxu0 0.0
      %5291 = vmatpush2.msra.mxu0 0.0
      %5292 = vmatprep.subr.mxu0 0.0
      %5293 = vmatpush2.msra.mxu0 0.0
      %5294 = vmatprep.mubr.f32.mxu0 0.0
      %v5295 = vand.u32 %v4169, 4294901760
      %5296 = vmatmul.mubr.f32.gmra.mxu0 %v5295
      %v5297 = vpop.f32.mrf.mxu0
      %v5298 = vadd.f32 %v5191, %v5297
      %v5299 = vpop.f32.mrf.mxu0
      %5300 = vmatprep.mubr.f32.mxu0 0.0
      %v5301 = vand.u32 %v4172, 4294901760
      %5302 = vmatmul.mubr.f32.gmra.mxu0 %v5301
      %v5303 = vpop.f32.mrf.mxu0
      %v5304 = vadd.f32 %v5199, %v5303
      %v5305 = vpop.f32.mrf.mxu0
      %5306 = vmatprep.mubr.f32.mxu0 0.0
      %v5307 = vand.u32 %v4175, 4294901760
      %5308 = vmatmul.mubr.f32.gmra.mxu0 %v5307
      %v5309 = vpop.f32.mrf.mxu0
      %v5310 = vadd.f32 %v5207, %v5309
      %v5311 = vpop.f32.mrf.mxu0
      %5312 = vmatprep.mubr.f32.mxu0 0.0
      %v5313 = vand.u32 %v4178, 4294901760
      %5314 = vmatmul.mubr.f32.gmra.mxu0 %v5313
      %v5315 = vpop.f32.mrf.mxu0
      %v5316 = vadd.f32 %v5215, %v5315
      %v5317 = vpop.f32.mrf.mxu0
      %5318 = vdwg.mxu0
      %5319 = vmatprep.subr.mxu0 0.0
      %5320 = vmatpush1.msra.mxu0 0.0
      %5321 = vmatprep.subr.mxu0 0.0
      %5322 = vmatpush1.msra.mxu0 0.0
      %5323 = vmatprep.subr.mxu0 0.0
      %5324 = vmatpush1.msra.mxu0 0.0
      %5325 = vmatprep.subr.mxu0 0.0
      %5326 = vmatpush1.msra.mxu0 0.0
      %5327 = vmatprep.subr.mxu0 0.0
      %5328 = vmatpush1.msra.mxu0 0.0
      %5329 = vmatprep.subr.mxu0 0.0
      %5330 = vmatpush1.msra.mxu0 0.0
      %5331 = vmatprep.subr.mxu0 0.0
      %5332 = vmatpush1.msra.mxu0 0.0
      %5333 = vmatprep.subr.mxu0 0.0
      %5334 = vmatpush1.msra.mxu0 0.0
      %5335 = vmatprep.subr.mxu0 0.0
      %5336 = vmatpush1.msra.mxu0 0.0
      %5337 = vmatprep.subr.mxu0 0.0
      %5338 = vmatpush1.msra.mxu0 0.0
      %5339 = vmatprep.subr.mxu0 0.0
      %5340 = vmatpush1.msra.mxu0 0.0
      %5341 = vmatprep.subr.mxu0 0.0
      %5342 = vmatpush1.msra.mxu0 0.0
      %5343 = vmatprep.subr.mxu0 0.0
      %v5344 = vand.u32 %v2497, 4294901760
      %5345 = vmatpush1.msra.mxu0 %v5344
      %5346 = vmatprep.subr.mxu0 0.0
      %v5347 = vand.u32 %v2491, 4294901760
      %5348 = vmatpush1.msra.mxu0 %v5347
      %5349 = vmatprep.subr.mxu0 0.0
      %v5350 = vand.u32 %v2485, 4294901760
      %5351 = vmatpush1.msra.mxu0 %v5350
      %5352 = vmatprep.subr.mxu0 0.0
      %v5353 = vand.u32 %v2479, 4294901760
      %5354 = vmatpush1.msra.mxu0 %v5353
      %5355 = vmatprep.subr.mxu0 0.0
      %5356 = vmatpush2.msra.mxu0 0.0
      %5357 = vmatprep.subr.mxu0 0.0
      %5358 = vmatpush2.msra.mxu0 0.0
      %5359 = vmatprep.subr.mxu0 0.0
      %5360 = vmatpush2.msra.mxu0 0.0
      %5361 = vmatprep.subr.mxu0 0.0
      %5362 = vmatpush2.msra.mxu0 0.0
      %5363 = vmatprep.subr.mxu0 0.0
      %5364 = vmatpush2.msra.mxu0 0.0
      %5365 = vmatprep.subr.mxu0 0.0
      %5366 = vmatpush2.msra.mxu0 0.0
      %5367 = vmatprep.subr.mxu0 0.0
      %5368 = vmatpush2.msra.mxu0 0.0
      %5369 = vmatprep.subr.mxu0 0.0
      %5370 = vmatpush2.msra.mxu0 0.0
      %5371 = vmatprep.subr.mxu0 0.0
      %5372 = vmatpush2.msra.mxu0 0.0
      %5373 = vmatprep.subr.mxu0 0.0
      %5374 = vmatpush2.msra.mxu0 0.0
      %5375 = vmatprep.subr.mxu0 0.0
      %5376 = vmatpush2.msra.mxu0 0.0
      %5377 = vmatprep.subr.mxu0 0.0
      %5378 = vmatpush2.msra.mxu0 0.0
      %5379 = vmatprep.subr.mxu0 0.0
      %5380 = vmatpush2.msra.mxu0 0.0
      %5381 = vmatprep.subr.mxu0 0.0
      %5382 = vmatpush2.msra.mxu0 0.0
      %5383 = vmatprep.subr.mxu0 0.0
      %5384 = vmatpush2.msra.mxu0 0.0
      %5385 = vmatprep.subr.mxu0 0.0
      %5386 = vmatpush2.msra.mxu0 0.0
      %5387 = vmatprep.mubr.f32.mxu0 0.0
      %v5388 = vand.u32 %v4169, 4294901760
      %5389 = vmatmul.mubr.f32.gmra.mxu0 %v5388
      %v5390 = vpop.f32.mrf.mxu0
      %v5391 = vadd.f32 %v5298, %v5390
      %v5392 = vpop.f32.mrf.mxu0
      %5393 = vmatprep.mubr.f32.mxu0 0.0
      %v5394 = vand.u32 %v4172, 4294901760
      %5395 = vmatmul.mubr.f32.gmra.mxu0 %v5394
      %v5396 = vpop.f32.mrf.mxu0
      %v5397 = vadd.f32 %v5304, %v5396
      %v5398 = vpop.f32.mrf.mxu0
      %5399 = vmatprep.mubr.f32.mxu0 0.0
      %v5400 = vand.u32 %v4175, 4294901760
      %5401 = vmatmul.mubr.f32.gmra.mxu0 %v5400
      %v5402 = vpop.f32.mrf.mxu0
      %v5403 = vadd.f32 %v5310, %v5402
      %v5404 = vpop.f32.mrf.mxu0
      %5405 = vmatprep.mubr.f32.mxu0 0.0
      %v5406 = vand.u32 %v4178, 4294901760
      %5407 = vmatmul.mubr.f32.gmra.mxu0 %v5406
      %v5408 = vpop.f32.mrf.mxu0
      %v5409 = vadd.f32 %v5316, %v5408
      %v5410 = vpop.f32.mrf.mxu0
      %5411 = vdwg.mxu0
      %5412 = vst [vmem:[#allocation2 + $0x8] sm:$0xff] %v5391
      %5413 = vst [vmem:[#allocation2 + $0x18] sm:$0xff] %v5397
      %5414 = vst [vmem:[#allocation2 + $0x28] sm:$0xff] %v5403
      %5415 = vst [vmem:[#allocation2 + $0x38] sm:$0xff] %v5409
      %v5416 = vld [vmem:[#allocation2] sm:$0xff]
      %v5417 = vld [vmem:[#allocation2 + $0x8] sm:$0xff]
      %v5418 = vld [vmem:[#allocation2 + $0x10] sm:$0xff]
      %v5419 = vld [vmem:[#allocation2 + $0x18] sm:$0xff]
      %v5420 = vld [vmem:[#allocation2 + $0x20] sm:$0xff]
      %v5421 = vld [vmem:[#allocation2 + $0x28] sm:$0xff]
      %v5422 = vld [vmem:[#allocation2 + $0x30] sm:$0xff]
      %v5423 = vld [vmem:[#allocation2 + $0x38] sm:$0xff]
      %v5424 = vld [vmem:[%s4] sm:$0xff]
      %v5425 = vld [vmem:[%s4 + $0x8] sm:$0xff]
      %v5426 = vld [vmem:[%s4 + $0x10] sm:$0xff]
      %v5427 = vld [vmem:[%s4 + $0x18] sm:$0xff]
      %v5428 = vld [vmem:[%s4 + $0x20] sm:$0xff]
      %v5429 = vld [vmem:[%s4 + $0x28] sm:$0xff]
      %v5430 = vld [vmem:[%s4 + $0x30] sm:$0xff]
      %v5431 = vld [vmem:[%s4 + $0x38] sm:$0xff]
      %v5432 = vld [vmem:[%s4 + $0x40] sm:$0xff]
      %v5433 = vld [vmem:[%s4 + $0x48] sm:$0xff]
      %v5434 = vld [vmem:[%s4 + $0x50] sm:$0xff]
      %v5435 = vld [vmem:[%s4 + $0x58] sm:$0xff]
      %v5436 = vld [vmem:[%s4 + $0x60] sm:$0xff]
      %v5437 = vld [vmem:[%s4 + $0x68] sm:$0xff]
      %v5438 = vld [vmem:[%s4 + $0x70] sm:$0xff]
      %v5439 = vld [vmem:[%s4 + $0x78] sm:$0xff]
      %v5440 = vld [vmem:[%s4 + $0x80] sm:$0xff]
      %v5441 = vld [vmem:[%s4 + $0x88] sm:$0xff]
      %v5442 = vld [vmem:[%s4 + $0x90] sm:$0xff]
      %v5443 = vld [vmem:[%s4 + $0x98] sm:$0xff]
      %v5444 = vld [vmem:[%s4 + $0xa0] sm:$0xff]
      %v5445 = vld [vmem:[%s4 + $0xa8] sm:$0xff]
      %v5446 = vld [vmem:[%s4 + $0xb0] sm:$0xff]
      %v5447 = vld [vmem:[%s4 + $0xb8] sm:$0xff]
      %v5448 = vld [vmem:[%s4 + $0xc0] sm:$0xff]
      %v5449 = vld [vmem:[%s4 + $0xc8] sm:$0xff]
      %v5450 = vld [vmem:[%s4 + $0xd0] sm:$0xff]
      %v5451 = vld [vmem:[%s4 + $0xd8] sm:$0xff]
      %v5452 = vld [vmem:[%s4 + $0xe0] sm:$0xff]
      %v5453 = vld [vmem:[%s4 + $0xe8] sm:$0xff]
      %v5454 = vld [vmem:[%s4 + $0xf0] sm:$0xff]
      %v5455 = vld [vmem:[%s4 + $0xf8] sm:$0xff]
      %5456 = vmatprep.subr.mxu0 0.0
      %v5457 = vand.u32 %v5439, 4294901760
      %5458 = vmatpush1.msra.mxu0 %v5457
      %5459 = vmatprep.subr.mxu0 0.0
      %v5460 = vand.u32 %v5438, 4294901760
      %5461 = vmatpush1.msra.mxu0 %v5460
      %5462 = vmatprep.subr.mxu0 0.0
      %v5463 = vand.u32 %v5437, 4294901760
      %5464 = vmatpush1.msra.mxu0 %v5463
      %5465 = vmatprep.subr.mxu0 0.0
      %v5466 = vand.u32 %v5436, 4294901760
      %5467 = vmatpush1.msra.mxu0 %v5466
      %5468 = vmatprep.subr.mxu0 0.0
      %v5469 = vand.u32 %v5435, 4294901760
      %5470 = vmatpush1.msra.mxu0 %v5469
      %5471 = vmatprep.subr.mxu0 0.0
      %v5472 = vand.u32 %v5434, 4294901760
      %5473 = vmatpush1.msra.mxu0 %v5472
      %5474 = vmatprep.subr.mxu0 0.0
      %v5475 = vand.u32 %v5433, 4294901760
      %5476 = vmatpush1.msra.mxu0 %v5475
      %5477 = vmatprep.subr.mxu0 0.0
      %v5478 = vand.u32 %v5432, 4294901760
      %5479 = vmatpush1.msra.mxu0 %v5478
      %5480 = vmatprep.subr.mxu0 0.0
      %v5481 = vand.u32 %v5431, 4294901760
      %5482 = vmatpush1.msra.mxu0 %v5481
      %5483 = vmatprep.subr.mxu0 0.0
      %v5484 = vand.u32 %v5430, 4294901760
      %5485 = vmatpush1.msra.mxu0 %v5484
      %5486 = vmatprep.subr.mxu0 0.0
      %v5487 = vand.u32 %v5429, 4294901760
      %5488 = vmatpush1.msra.mxu0 %v5487
      %5489 = vmatprep.subr.mxu0 0.0
      %v5490 = vand.u32 %v5428, 4294901760
      %5491 = vmatpush1.msra.mxu0 %v5490
      %5492 = vmatprep.subr.mxu0 0.0
      %v5493 = vand.u32 %v5427, 4294901760
      %5494 = vmatpush1.msra.mxu0 %v5493
      %5495 = vmatprep.subr.mxu0 0.0
      %v5496 = vand.u32 %v5426, 4294901760
      %5497 = vmatpush1.msra.mxu0 %v5496
      %5498 = vmatprep.subr.mxu0 0.0
      %v5499 = vand.u32 %v5425, 4294901760
      %5500 = vmatpush1.msra.mxu0 %v5499
      %5501 = vmatprep.subr.mxu0 0.0
      %v5502 = vand.u32 %v5424, 4294901760
      %5503 = vmatpush1.msra.mxu0 %v5502
      %5504 = vmatprep.subr.mxu0 0.0
      %v5505 = vand.u32 %v5455, 4294901760
      %5506 = vmatpush2.msra.mxu0 %v5505
      %5507 = vmatprep.subr.mxu0 0.0
      %v5508 = vand.u32 %v5454, 4294901760
      %5509 = vmatpush2.msra.mxu0 %v5508
      %5510 = vmatprep.subr.mxu0 0.0
      %v5511 = vand.u32 %v5453, 4294901760
      %5512 = vmatpush2.msra.mxu0 %v5511
      %5513 = vmatprep.subr.mxu0 0.0
      %v5514 = vand.u32 %v5452, 4294901760
      %5515 = vmatpush2.msra.mxu0 %v5514
      %5516 = vmatprep.subr.mxu0 0.0
      %v5517 = vand.u32 %v5451, 4294901760
      %5518 = vmatpush2.msra.mxu0 %v5517
      %5519 = vmatprep.subr.mxu0 0.0
      %v5520 = vand.u32 %v5450, 4294901760
      %5521 = vmatpush2.msra.mxu0 %v5520
      %5522 = vmatprep.subr.mxu0 0.0
      %v5523 = vand.u32 %v5449, 4294901760
      %5524 = vmatpush2.msra.mxu0 %v5523
      %5525 = vmatprep.subr.mxu0 0.0
      %v5526 = vand.u32 %v5448, 4294901760
      %5527 = vmatpush2.msra.mxu0 %v5526
      %5528 = vmatprep.subr.mxu0 0.0
      %v5529 = vand.u32 %v5447, 4294901760
      %5530 = vmatpush2.msra.mxu0 %v5529
      %5531 = vmatprep.subr.mxu0 0.0
      %v5532 = vand.u32 %v5446, 4294901760
      %5533 = vmatpush2.msra.mxu0 %v5532
      %5534 = vmatprep.subr.mxu0 0.0
      %v5535 = vand.u32 %v5445, 4294901760
      %5536 = vmatpush2.msra.mxu0 %v5535
      %5537 = vmatprep.subr.mxu0 0.0
      %v5538 = vand.u32 %v5444, 4294901760
      %5539 = vmatpush2.msra.mxu0 %v5538
      %5540 = vmatprep.subr.mxu0 0.0
      %v5541 = vand.u32 %v5443, 4294901760
      %5542 = vmatpush2.msra.mxu0 %v5541
      %5543 = vmatprep.subr.mxu0 0.0
      %v5544 = vand.u32 %v5442, 4294901760
      %5545 = vmatpush2.msra.mxu0 %v5544
      %5546 = vmatprep.subr.mxu0 0.0
      %v5547 = vand.u32 %v5441, 4294901760
      %5548 = vmatpush2.msra.mxu0 %v5547
      %5549 = vmatprep.subr.mxu0 0.0
      %v5550 = vand.u32 %v5440, 4294901760
      %5551 = vmatpush2.msra.mxu0 %v5550
      %v5552 = vand.u32 %v5417, 4294901760
      %v5553 = vsub.f32 %v5417, %v5552
      %v5554 = vand.u32 %v5553, 4294901760
      %v5555 = vsub.f32 %v5553, %v5554
      %v5556 = vand.u32 %v5555, 4294901760
      %5557 = vmatprep.mubr.f32.mxu0 %v5556
      %v5558 = vand.u32 %v5416, 4294901760
      %v5559 = vsub.f32 %v5416, %v5558
      %v5560 = vand.u32 %v5559, 4294901760
      %v5561 = vsub.f32 %v5559, %v5560
      %v5562 = vand.u32 %v5561, 4294901760
      %5563 = vmatmul.mubr.f32.gmra.mxu0 %v5562
      %v5564 = vpop.f32.mrf.mxu0
      %v5565 = vadd.f32 0.0, %v5564
      %v5566 = vpop.f32.mrf.mxu0
      %v5567 = vand.u32 %v5419, 4294901760
      %v5568 = vsub.f32 %v5419, %v5567
      %v5569 = vand.u32 %v5568, 4294901760
      %v5570 = vsub.f32 %v5568, %v5569
      %v5571 = vand.u32 %v5570, 4294901760
      %5572 = vmatprep.mubr.f32.mxu0 %v5571
      %v5573 = vand.u32 %v5418, 4294901760
      %v5574 = vsub.f32 %v5418, %v5573
      %v5575 = vand.u32 %v5574, 4294901760
      %v5576 = vsub.f32 %v5574, %v5575
      %v5577 = vand.u32 %v5576, 4294901760
      %5578 = vmatmul.mubr.f32.gmra.mxu0 %v5577
      %v5579 = vpop.f32.mrf.mxu0
      %v5580 = vadd.f32 0.0, %v5579
      %v5581 = vpop.f32.mrf.mxu0
      %v5582 = vand.u32 %v5421, 4294901760
      %v5583 = vsub.f32 %v5421, %v5582
      %v5584 = vand.u32 %v5583, 4294901760
      %v5585 = vsub.f32 %v5583, %v5584
      %v5586 = vand.u32 %v5585, 4294901760
      %5587 = vmatprep.mubr.f32.mxu0 %v5586
      %v5588 = vand.u32 %v5420, 4294901760
      %v5589 = vsub.f32 %v5420, %v5588
      %v5590 = vand.u32 %v5589, 4294901760
      %v5591 = vsub.f32 %v5589, %v5590
      %v5592 = vand.u32 %v5591, 4294901760
      %5593 = vmatmul.mubr.f32.gmra.mxu0 %v5592
      %v5594 = vpop.f32.mrf.mxu0
      %v5595 = vadd.f32 0.0, %v5594
      %v5596 = vpop.f32.mrf.mxu0
      %v5597 = vand.u32 %v5423, 4294901760
      %v5598 = vsub.f32 %v5423, %v5597
      %v5599 = vand.u32 %v5598, 4294901760
      %v5600 = vsub.f32 %v5598, %v5599
      %v5601 = vand.u32 %v5600, 4294901760
      %5602 = vmatprep.mubr.f32.mxu0 %v5601
      %v5603 = vand.u32 %v5422, 4294901760
      %v5604 = vsub.f32 %v5422, %v5603
      %v5605 = vand.u32 %v5604, 4294901760
      %v5606 = vsub.f32 %v5604, %v5605
      %v5607 = vand.u32 %v5606, 4294901760
      %5608 = vmatmul.mubr.f32.gmra.mxu0 %v5607
      %v5609 = vpop.f32.mrf.mxu0
      %v5610 = vadd.f32 0.0, %v5609
      %v5611 = vpop.f32.mrf.mxu0
      %5612 = vdwg.mxu0
      %5613 = vmatprep.subr.mxu0 0.0
      %v5614 = vand.u32 %v5439, 4294901760
      %v5615 = vsub.f32 %v5439, %v5614
      %v5616 = vand.u32 %v5615, 4294901760
      %v5617 = vsub.f32 %v5615, %v5616
      %v5618 = vand.u32 %v5617, 4294901760
      %5619 = vmatpush1.msra.mxu0 %v5618
      %5620 = vmatprep.subr.mxu0 0.0
      %v5621 = vand.u32 %v5438, 4294901760
      %v5622 = vsub.f32 %v5438, %v5621
      %v5623 = vand.u32 %v5622, 4294901760
      %v5624 = vsub.f32 %v5622, %v5623
      %v5625 = vand.u32 %v5624, 4294901760
      %5626 = vmatpush1.msra.mxu0 %v5625
      %5627 = vmatprep.subr.mxu0 0.0
      %v5628 = vand.u32 %v5437, 4294901760
      %v5629 = vsub.f32 %v5437, %v5628
      %v5630 = vand.u32 %v5629, 4294901760
      %v5631 = vsub.f32 %v5629, %v5630
      %v5632 = vand.u32 %v5631, 4294901760
      %5633 = vmatpush1.msra.mxu0 %v5632
      %5634 = vmatprep.subr.mxu0 0.0
      %v5635 = vand.u32 %v5436, 4294901760
      %v5636 = vsub.f32 %v5436, %v5635
      %v5637 = vand.u32 %v5636, 4294901760
      %v5638 = vsub.f32 %v5636, %v5637
      %v5639 = vand.u32 %v5638, 4294901760
      %5640 = vmatpush1.msra.mxu0 %v5639
      %5641 = vmatprep.subr.mxu0 0.0
      %v5642 = vand.u32 %v5435, 4294901760
      %v5643 = vsub.f32 %v5435, %v5642
      %v5644 = vand.u32 %v5643, 4294901760
      %v5645 = vsub.f32 %v5643, %v5644
      %v5646 = vand.u32 %v5645, 4294901760
      %5647 = vmatpush1.msra.mxu0 %v5646
      %5648 = vmatprep.subr.mxu0 0.0
      %v5649 = vand.u32 %v5434, 4294901760
      %v5650 = vsub.f32 %v5434, %v5649
      %v5651 = vand.u32 %v5650, 4294901760
      %v5652 = vsub.f32 %v5650, %v5651
      %v5653 = vand.u32 %v5652, 4294901760
      %5654 = vmatpush1.msra.mxu0 %v5653
      %5655 = vmatprep.subr.mxu0 0.0
      %v5656 = vand.u32 %v5433, 4294901760
      %v5657 = vsub.f32 %v5433, %v5656
      %v5658 = vand.u32 %v5657, 4294901760
      %v5659 = vsub.f32 %v5657, %v5658
      %v5660 = vand.u32 %v5659, 4294901760
      %5661 = vmatpush1.msra.mxu0 %v5660
      %5662 = vmatprep.subr.mxu0 0.0
      %v5663 = vand.u32 %v5432, 4294901760
      %v5664 = vsub.f32 %v5432, %v5663
      %v5665 = vand.u32 %v5664, 4294901760
      %v5666 = vsub.f32 %v5664, %v5665
      %v5667 = vand.u32 %v5666, 4294901760
      %5668 = vmatpush1.msra.mxu0 %v5667
      %5669 = vmatprep.subr.mxu0 0.0
      %v5670 = vand.u32 %v5431, 4294901760
      %v5671 = vsub.f32 %v5431, %v5670
      %v5672 = vand.u32 %v5671, 4294901760
      %v5673 = vsub.f32 %v5671, %v5672
      %v5674 = vand.u32 %v5673, 4294901760
      %5675 = vmatpush1.msra.mxu0 %v5674
      %5676 = vmatprep.subr.mxu0 0.0
      %v5677 = vand.u32 %v5430, 4294901760
      %v5678 = vsub.f32 %v5430, %v5677
      %v5679 = vand.u32 %v5678, 4294901760
      %v5680 = vsub.f32 %v5678, %v5679
      %v5681 = vand.u32 %v5680, 4294901760
      %5682 = vmatpush1.msra.mxu0 %v5681
      %5683 = vmatprep.subr.mxu0 0.0
      %v5684 = vand.u32 %v5429, 4294901760
      %v5685 = vsub.f32 %v5429, %v5684
      %v5686 = vand.u32 %v5685, 4294901760
      %v5687 = vsub.f32 %v5685, %v5686
      %v5688 = vand.u32 %v5687, 4294901760
      %5689 = vmatpush1.msra.mxu0 %v5688
      %5690 = vmatprep.subr.mxu0 0.0
      %v5691 = vand.u32 %v5428, 4294901760
      %v5692 = vsub.f32 %v5428, %v5691
      %v5693 = vand.u32 %v5692, 4294901760
      %v5694 = vsub.f32 %v5692, %v5693
      %v5695 = vand.u32 %v5694, 4294901760
      %5696 = vmatpush1.msra.mxu0 %v5695
      %5697 = vmatprep.subr.mxu0 0.0
      %v5698 = vand.u32 %v5427, 4294901760
      %v5699 = vsub.f32 %v5427, %v5698
      %v5700 = vand.u32 %v5699, 4294901760
      %v5701 = vsub.f32 %v5699, %v5700
      %v5702 = vand.u32 %v5701, 4294901760
      %5703 = vmatpush1.msra.mxu0 %v5702
      %5704 = vmatprep.subr.mxu0 0.0
      %v5705 = vand.u32 %v5426, 4294901760
      %v5706 = vsub.f32 %v5426, %v5705
      %v5707 = vand.u32 %v5706, 4294901760
      %v5708 = vsub.f32 %v5706, %v5707
      %v5709 = vand.u32 %v5708, 4294901760
      %5710 = vmatpush1.msra.mxu0 %v5709
      %5711 = vmatprep.subr.mxu0 0.0
      %v5712 = vand.u32 %v5425, 4294901760
      %v5713 = vsub.f32 %v5425, %v5712
      %v5714 = vand.u32 %v5713, 4294901760
      %v5715 = vsub.f32 %v5713, %v5714
      %v5716 = vand.u32 %v5715, 4294901760
      %5717 = vmatpush1.msra.mxu0 %v5716
      %5718 = vmatprep.subr.mxu0 0.0
      %v5719 = vand.u32 %v5424, 4294901760
      %v5720 = vsub.f32 %v5424, %v5719
      %v5721 = vand.u32 %v5720, 4294901760
      %v5722 = vsub.f32 %v5720, %v5721
      %v5723 = vand.u32 %v5722, 4294901760
      %5724 = vmatpush1.msra.mxu0 %v5723
      %5725 = vmatprep.subr.mxu0 0.0
      %v5726 = vand.u32 %v5455, 4294901760
      %v5727 = vsub.f32 %v5455, %v5726
      %v5728 = vand.u32 %v5727, 4294901760
      %v5729 = vsub.f32 %v5727, %v5728
      %v5730 = vand.u32 %v5729, 4294901760
      %5731 = vmatpush2.msra.mxu0 %v5730
      %5732 = vmatprep.subr.mxu0 0.0
      %v5733 = vand.u32 %v5454, 4294901760
      %v5734 = vsub.f32 %v5454, %v5733
      %v5735 = vand.u32 %v5734, 4294901760
      %v5736 = vsub.f32 %v5734, %v5735
      %v5737 = vand.u32 %v5736, 4294901760
      %5738 = vmatpush2.msra.mxu0 %v5737
      %5739 = vmatprep.subr.mxu0 0.0
      %v5740 = vand.u32 %v5453, 4294901760
      %v5741 = vsub.f32 %v5453, %v5740
      %v5742 = vand.u32 %v5741, 4294901760
      %v5743 = vsub.f32 %v5741, %v5742
      %v5744 = vand.u32 %v5743, 4294901760
      %5745 = vmatpush2.msra.mxu0 %v5744
      %5746 = vmatprep.subr.mxu0 0.0
      %v5747 = vand.u32 %v5452, 4294901760
      %v5748 = vsub.f32 %v5452, %v5747
      %v5749 = vand.u32 %v5748, 4294901760
      %v5750 = vsub.f32 %v5748, %v5749
      %v5751 = vand.u32 %v5750, 4294901760
      %5752 = vmatpush2.msra.mxu0 %v5751
      %5753 = vmatprep.subr.mxu0 0.0
      %v5754 = vand.u32 %v5451, 4294901760
      %v5755 = vsub.f32 %v5451, %v5754
      %v5756 = vand.u32 %v5755, 4294901760
      %v5757 = vsub.f32 %v5755, %v5756
      %v5758 = vand.u32 %v5757, 4294901760
      %5759 = vmatpush2.msra.mxu0 %v5758
      %5760 = vmatprep.subr.mxu0 0.0
      %v5761 = vand.u32 %v5450, 4294901760
      %v5762 = vsub.f32 %v5450, %v5761
      %v5763 = vand.u32 %v5762, 4294901760
      %v5764 = vsub.f32 %v5762, %v5763
      %v5765 = vand.u32 %v5764, 4294901760
      %5766 = vmatpush2.msra.mxu0 %v5765
      %5767 = vmatprep.subr.mxu0 0.0
      %v5768 = vand.u32 %v5449, 4294901760
      %v5769 = vsub.f32 %v5449, %v5768
      %v5770 = vand.u32 %v5769, 4294901760
      %v5771 = vsub.f32 %v5769, %v5770
      %v5772 = vand.u32 %v5771, 4294901760
      %5773 = vmatpush2.msra.mxu0 %v5772
      %5774 = vmatprep.subr.mxu0 0.0
      %v5775 = vand.u32 %v5448, 4294901760
      %v5776 = vsub.f32 %v5448, %v5775
      %v5777 = vand.u32 %v5776, 4294901760
      %v5778 = vsub.f32 %v5776, %v5777
      %v5779 = vand.u32 %v5778, 4294901760
      %5780 = vmatpush2.msra.mxu0 %v5779
      %5781 = vmatprep.subr.mxu0 0.0
      %v5782 = vand.u32 %v5447, 4294901760
      %v5783 = vsub.f32 %v5447, %v5782
      %v5784 = vand.u32 %v5783, 4294901760
      %v5785 = vsub.f32 %v5783, %v5784
      %v5786 = vand.u32 %v5785, 4294901760
      %5787 = vmatpush2.msra.mxu0 %v5786
      %5788 = vmatprep.subr.mxu0 0.0
      %v5789 = vand.u32 %v5446, 4294901760
      %v5790 = vsub.f32 %v5446, %v5789
      %v5791 = vand.u32 %v5790, 4294901760
      %v5792 = vsub.f32 %v5790, %v5791
      %v5793 = vand.u32 %v5792, 4294901760
      %5794 = vmatpush2.msra.mxu0 %v5793
      %5795 = vmatprep.subr.mxu0 0.0
      %v5796 = vand.u32 %v5445, 4294901760
      %v5797 = vsub.f32 %v5445, %v5796
      %v5798 = vand.u32 %v5797, 4294901760
      %v5799 = vsub.f32 %v5797, %v5798
      %v5800 = vand.u32 %v5799, 4294901760
      %5801 = vmatpush2.msra.mxu0 %v5800
      %5802 = vmatprep.subr.mxu0 0.0
      %v5803 = vand.u32 %v5444, 4294901760
      %v5804 = vsub.f32 %v5444, %v5803
      %v5805 = vand.u32 %v5804, 4294901760
      %v5806 = vsub.f32 %v5804, %v5805
      %v5807 = vand.u32 %v5806, 4294901760
      %5808 = vmatpush2.msra.mxu0 %v5807
      %5809 = vmatprep.subr.mxu0 0.0
      %v5810 = vand.u32 %v5443, 4294901760
      %v5811 = vsub.f32 %v5443, %v5810
      %v5812 = vand.u32 %v5811, 4294901760
      %v5813 = vsub.f32 %v5811, %v5812
      %v5814 = vand.u32 %v5813, 4294901760
      %5815 = vmatpush2.msra.mxu0 %v5814
      %5816 = vmatprep.subr.mxu0 0.0
      %v5817 = vand.u32 %v5442, 4294901760
      %v5818 = vsub.f32 %v5442, %v5817
      %v5819 = vand.u32 %v5818, 4294901760
      %v5820 = vsub.f32 %v5818, %v5819
      %v5821 = vand.u32 %v5820, 4294901760
      %5822 = vmatpush2.msra.mxu0 %v5821
      %5823 = vmatprep.subr.mxu0 0.0
      %v5824 = vand.u32 %v5441, 4294901760
      %v5825 = vsub.f32 %v5441, %v5824
      %v5826 = vand.u32 %v5825, 4294901760
      %v5827 = vsub.f32 %v5825, %v5826
      %v5828 = vand.u32 %v5827, 4294901760
      %5829 = vmatpush2.msra.mxu0 %v5828
      %5830 = vmatprep.subr.mxu0 0.0
      %v5831 = vand.u32 %v5440, 4294901760
      %v5832 = vsub.f32 %v5440, %v5831
      %v5833 = vand.u32 %v5832, 4294901760
      %v5834 = vsub.f32 %v5832, %v5833
      %v5835 = vand.u32 %v5834, 4294901760
      %5836 = vmatpush2.msra.mxu0 %v5835
      %v5837 = vand.u32 %v5417, 4294901760
      %5838 = vmatprep.mubr.f32.mxu0 %v5837
      %v5839 = vand.u32 %v5416, 4294901760
      %5840 = vmatmul.mubr.f32.gmra.mxu0 %v5839
      %v5841 = vpop.f32.mrf.mxu0
      %v5842 = vadd.f32 %v5565, %v5841
      %v5843 = vpop.f32.mrf.mxu0
      %v5844 = vand.u32 %v5419, 4294901760
      %5845 = vmatprep.mubr.f32.mxu0 %v5844
      %v5846 = vand.u32 %v5418, 4294901760
      %5847 = vmatmul.mubr.f32.gmra.mxu0 %v5846
      %v5848 = vpop.f32.mrf.mxu0
      %v5849 = vadd.f32 %v5580, %v5848
      %v5850 = vpop.f32.mrf.mxu0
      %v5851 = vand.u32 %v5421, 4294901760
      %5852 = vmatprep.mubr.f32.mxu0 %v5851
      %v5853 = vand.u32 %v5420, 4294901760
      %5854 = vmatmul.mubr.f32.gmra.mxu0 %v5853
      %v5855 = vpop.f32.mrf.mxu0
      %v5856 = vadd.f32 %v5595, %v5855
      %v5857 = vpop.f32.mrf.mxu0
      %v5858 = vand.u32 %v5423, 4294901760
      %5859 = vmatprep.mubr.f32.mxu0 %v5858
      %v5860 = vand.u32 %v5422, 4294901760
      %5861 = vmatmul.mubr.f32.gmra.mxu0 %v5860
      %v5862 = vpop.f32.mrf.mxu0
      %v5863 = vadd.f32 %v5610, %v5862
      %v5864 = vpop.f32.mrf.mxu0
      %5865 = vdwg.mxu0
      %5866 = vmatprep.subr.mxu0 0.0
      %v5867 = vand.u32 %v5439, 4294901760
      %v5868 = vsub.f32 %v5439, %v5867
      %5869 = vmatpush1.msra.mxu0 %v5868
      %5870 = vmatprep.subr.mxu0 0.0
      %v5871 = vand.u32 %v5438, 4294901760
      %v5872 = vsub.f32 %v5438, %v5871
      %5873 = vmatpush1.msra.mxu0 %v5872
      %5874 = vmatprep.subr.mxu0 0.0
      %v5875 = vand.u32 %v5437, 4294901760
      %v5876 = vsub.f32 %v5437, %v5875
      %5877 = vmatpush1.msra.mxu0 %v5876
      %5878 = vmatprep.subr.mxu0 0.0
      %v5879 = vand.u32 %v5436, 4294901760
      %v5880 = vsub.f32 %v5436, %v5879
      %5881 = vmatpush1.msra.mxu0 %v5880
      %5882 = vmatprep.subr.mxu0 0.0
      %v5883 = vand.u32 %v5435, 4294901760
      %v5884 = vsub.f32 %v5435, %v5883
      %5885 = vmatpush1.msra.mxu0 %v5884
      %5886 = vmatprep.subr.mxu0 0.0
      %v5887 = vand.u32 %v5434, 4294901760
      %v5888 = vsub.f32 %v5434, %v5887
      %5889 = vmatpush1.msra.mxu0 %v5888
      %5890 = vmatprep.subr.mxu0 0.0
      %v5891 = vand.u32 %v5433, 4294901760
      %v5892 = vsub.f32 %v5433, %v5891
      %5893 = vmatpush1.msra.mxu0 %v5892
      %5894 = vmatprep.subr.mxu0 0.0
      %v5895 = vand.u32 %v5432, 4294901760
      %v5896 = vsub.f32 %v5432, %v5895
      %5897 = vmatpush1.msra.mxu0 %v5896
      %5898 = vmatprep.subr.mxu0 0.0
      %v5899 = vand.u32 %v5431, 4294901760
      %v5900 = vsub.f32 %v5431, %v5899
      %5901 = vmatpush1.msra.mxu0 %v5900
      %5902 = vmatprep.subr.mxu0 0.0
      %v5903 = vand.u32 %v5430, 4294901760
      %v5904 = vsub.f32 %v5430, %v5903
      %5905 = vmatpush1.msra.mxu0 %v5904
      %5906 = vmatprep.subr.mxu0 0.0
      %v5907 = vand.u32 %v5429, 4294901760
      %v5908 = vsub.f32 %v5429, %v5907
      %5909 = vmatpush1.msra.mxu0 %v5908
      %5910 = vmatprep.subr.mxu0 0.0
      %v5911 = vand.u32 %v5428, 4294901760
      %v5912 = vsub.f32 %v5428, %v5911
      %5913 = vmatpush1.msra.mxu0 %v5912
      %5914 = vmatprep.subr.mxu0 0.0
      %v5915 = vand.u32 %v5427, 4294901760
      %v5916 = vsub.f32 %v5427, %v5915
      %5917 = vmatpush1.msra.mxu0 %v5916
      %5918 = vmatprep.subr.mxu0 0.0
      %v5919 = vand.u32 %v5426, 4294901760
      %v5920 = vsub.f32 %v5426, %v5919
      %5921 = vmatpush1.msra.mxu0 %v5920
      %5922 = vmatprep.subr.mxu0 0.0
      %v5923 = vand.u32 %v5425, 4294901760
      %v5924 = vsub.f32 %v5425, %v5923
      %5925 = vmatpush1.msra.mxu0 %v5924
      %5926 = vmatprep.subr.mxu0 0.0
      %v5927 = vand.u32 %v5424, 4294901760
      %v5928 = vsub.f32 %v5424, %v5927
      %5929 = vmatpush1.msra.mxu0 %v5928
      %5930 = vmatprep.subr.mxu0 0.0
      %v5931 = vand.u32 %v5455, 4294901760
      %v5932 = vsub.f32 %v5455, %v5931
      %5933 = vmatpush2.msra.mxu0 %v5932
      %5934 = vmatprep.subr.mxu0 0.0
      %v5935 = vand.u32 %v5454, 4294901760
      %v5936 = vsub.f32 %v5454, %v5935
      %5937 = vmatpush2.msra.mxu0 %v5936
      %5938 = vmatprep.subr.mxu0 0.0
      %v5939 = vand.u32 %v5453, 4294901760
      %v5940 = vsub.f32 %v5453, %v5939
      %5941 = vmatpush2.msra.mxu0 %v5940
      %5942 = vmatprep.subr.mxu0 0.0
      %v5943 = vand.u32 %v5452, 4294901760
      %v5944 = vsub.f32 %v5452, %v5943
      %5945 = vmatpush2.msra.mxu0 %v5944
      %5946 = vmatprep.subr.mxu0 0.0
      %v5947 = vand.u32 %v5451, 4294901760
      %v5948 = vsub.f32 %v5451, %v5947
      %5949 = vmatpush2.msra.mxu0 %v5948
      %5950 = vmatprep.subr.mxu0 0.0
      %v5951 = vand.u32 %v5450, 4294901760
      %v5952 = vsub.f32 %v5450, %v5951
      %5953 = vmatpush2.msra.mxu0 %v5952
      %5954 = vmatprep.subr.mxu0 0.0
      %v5955 = vand.u32 %v5449, 4294901760
      %v5956 = vsub.f32 %v5449, %v5955
      %5957 = vmatpush2.msra.mxu0 %v5956
      %5958 = vmatprep.subr.mxu0 0.0
      %v5959 = vand.u32 %v5448, 4294901760
      %v5960 = vsub.f32 %v5448, %v5959
      %5961 = vmatpush2.msra.mxu0 %v5960
      %5962 = vmatprep.subr.mxu0 0.0
      %v5963 = vand.u32 %v5447, 4294901760
      %v5964 = vsub.f32 %v5447, %v5963
      %5965 = vmatpush2.msra.mxu0 %v5964
      %5966 = vmatprep.subr.mxu0 0.0
      %v5967 = vand.u32 %v5446, 4294901760
      %v5968 = vsub.f32 %v5446, %v5967
      %5969 = vmatpush2.msra.mxu0 %v5968
      %5970 = vmatprep.subr.mxu0 0.0
      %v5971 = vand.u32 %v5445, 4294901760
      %v5972 = vsub.f32 %v5445, %v5971
      %5973 = vmatpush2.msra.mxu0 %v5972
      %5974 = vmatprep.subr.mxu0 0.0
      %v5975 = vand.u32 %v5444, 4294901760
      %v5976 = vsub.f32 %v5444, %v5975
      %5977 = vmatpush2.msra.mxu0 %v5976
      %5978 = vmatprep.subr.mxu0 0.0
      %v5979 = vand.u32 %v5443, 4294901760
      %v5980 = vsub.f32 %v5443, %v5979
      %5981 = vmatpush2.msra.mxu0 %v5980
      %5982 = vmatprep.subr.mxu0 0.0
      %v5983 = vand.u32 %v5442, 4294901760
      %v5984 = vsub.f32 %v5442, %v5983
      %5985 = vmatpush2.msra.mxu0 %v5984
      %5986 = vmatprep.subr.mxu0 0.0
      %v5987 = vand.u32 %v5441, 4294901760
      %v5988 = vsub.f32 %v5441, %v5987
      %5989 = vmatpush2.msra.mxu0 %v5988
      %5990 = vmatprep.subr.mxu0 0.0
      %v5991 = vand.u32 %v5440, 4294901760
      %v5992 = vsub.f32 %v5440, %v5991
      %5993 = vmatpush2.msra.mxu0 %v5992
      %v5994 = vand.u32 %v5417, 4294901760
      %v5995 = vsub.f32 %v5417, %v5994
      %5996 = vmatprep.mubr.f32.mxu0 %v5995
      %v5997 = vand.u32 %v5416, 4294901760
      %v5998 = vsub.f32 %v5416, %v5997
      %5999 = vmatmul.mubr.f32.gmra.mxu0 %v5998
      %v6000 = vpop.f32.mrf.mxu0
      %v6001 = vadd.f32 %v5842, %v6000
      %v6002 = vpop.f32.mrf.mxu0
      %v6003 = vand.u32 %v5419, 4294901760
      %v6004 = vsub.f32 %v5419, %v6003
      %6005 = vmatprep.mubr.f32.mxu0 %v6004
      %v6006 = vand.u32 %v5418, 4294901760
      %v6007 = vsub.f32 %v5418, %v6006
      %6008 = vmatmul.mubr.f32.gmra.mxu0 %v6007
      %v6009 = vpop.f32.mrf.mxu0
      %v6010 = vadd.f32 %v5849, %v6009
      %v6011 = vpop.f32.mrf.mxu0
      %v6012 = vand.u32 %v5421, 4294901760
      %v6013 = vsub.f32 %v5421, %v6012
      %6014 = vmatprep.mubr.f32.mxu0 %v6013
      %v6015 = vand.u32 %v5420, 4294901760
      %v6016 = vsub.f32 %v5420, %v6015
      %6017 = vmatmul.mubr.f32.gmra.mxu0 %v6016
      %v6018 = vpop.f32.mrf.mxu0
      %v6019 = vadd.f32 %v5856, %v6018
      %v6020 = vpop.f32.mrf.mxu0
      %v6021 = vand.u32 %v5423, 4294901760
      %v6022 = vsub.f32 %v5423, %v6021
      %6023 = vmatprep.mubr.f32.mxu0 %v6022
      %v6024 = vand.u32 %v5422, 4294901760
      %v6025 = vsub.f32 %v5422, %v6024
      %6026 = vmatmul.mubr.f32.gmra.mxu0 %v6025
      %v6027 = vpop.f32.mrf.mxu0
      %v6028 = vadd.f32 %v5863, %v6027
      %v6029 = vpop.f32.mrf.mxu0
      %6030 = vdwg.mxu0
      %6031 = vmatprep.subr.mxu0 0.0
      %v6032 = vand.u32 %v5439, 4294901760
      %6033 = vmatpush1.msra.mxu0 %v6032
      %6034 = vmatprep.subr.mxu0 0.0
      %v6035 = vand.u32 %v5438, 4294901760
      %6036 = vmatpush1.msra.mxu0 %v6035
      %6037 = vmatprep.subr.mxu0 0.0
      %v6038 = vand.u32 %v5437, 4294901760
      %6039 = vmatpush1.msra.mxu0 %v6038
      %6040 = vmatprep.subr.mxu0 0.0
      %v6041 = vand.u32 %v5436, 4294901760
      %6042 = vmatpush1.msra.mxu0 %v6041
      %6043 = vmatprep.subr.mxu0 0.0
      %v6044 = vand.u32 %v5435, 4294901760
      %6045 = vmatpush1.msra.mxu0 %v6044
      %6046 = vmatprep.subr.mxu0 0.0
      %v6047 = vand.u32 %v5434, 4294901760
      %6048 = vmatpush1.msra.mxu0 %v6047
      %6049 = vmatprep.subr.mxu0 0.0
      %v6050 = vand.u32 %v5433, 4294901760
      %6051 = vmatpush1.msra.mxu0 %v6050
      %6052 = vmatprep.subr.mxu0 0.0
      %v6053 = vand.u32 %v5432, 4294901760
      %6054 = vmatpush1.msra.mxu0 %v6053
      %6055 = vmatprep.subr.mxu0 0.0
      %v6056 = vand.u32 %v5431, 4294901760
      %6057 = vmatpush1.msra.mxu0 %v6056
      %6058 = vmatprep.subr.mxu0 0.0
      %v6059 = vand.u32 %v5430, 4294901760
      %6060 = vmatpush1.msra.mxu0 %v6059
      %6061 = vmatprep.subr.mxu0 0.0
      %v6062 = vand.u32 %v5429, 4294901760
      %6063 = vmatpush1.msra.mxu0 %v6062
      %6064 = vmatprep.subr.mxu0 0.0
      %v6065 = vand.u32 %v5428, 4294901760
      %6066 = vmatpush1.msra.mxu0 %v6065
      %6067 = vmatprep.subr.mxu0 0.0
      %v6068 = vand.u32 %v5427, 4294901760
      %6069 = vmatpush1.msra.mxu0 %v6068
      %6070 = vmatprep.subr.mxu0 0.0
      %v6071 = vand.u32 %v5426, 4294901760
      %6072 = vmatpush1.msra.mxu0 %v6071
      %6073 = vmatprep.subr.mxu0 0.0
      %v6074 = vand.u32 %v5425, 4294901760
      %6075 = vmatpush1.msra.mxu0 %v6074
      %6076 = vmatprep.subr.mxu0 0.0
      %v6077 = vand.u32 %v5424, 4294901760
      %6078 = vmatpush1.msra.mxu0 %v6077
      %6079 = vmatprep.subr.mxu0 0.0
      %v6080 = vand.u32 %v5455, 4294901760
      %6081 = vmatpush2.msra.mxu0 %v6080
      %6082 = vmatprep.subr.mxu0 0.0
      %v6083 = vand.u32 %v5454, 4294901760
      %6084 = vmatpush2.msra.mxu0 %v6083
      %6085 = vmatprep.subr.mxu0 0.0
      %v6086 = vand.u32 %v5453, 4294901760
      %6087 = vmatpush2.msra.mxu0 %v6086
      %6088 = vmatprep.subr.mxu0 0.0
      %v6089 = vand.u32 %v5452, 4294901760
      %6090 = vmatpush2.msra.mxu0 %v6089
      %6091 = vmatprep.subr.mxu0 0.0
      %v6092 = vand.u32 %v5451, 4294901760
      %6093 = vmatpush2.msra.mxu0 %v6092
      %6094 = vmatprep.subr.mxu0 0.0
      %v6095 = vand.u32 %v5450, 4294901760
      %6096 = vmatpush2.msra.mxu0 %v6095
      %6097 = vmatprep.subr.mxu0 0.0
      %v6098 = vand.u32 %v5449, 4294901760
      %6099 = vmatpush2.msra.mxu0 %v6098
      %6100 = vmatprep.subr.mxu0 0.0
      %v6101 = vand.u32 %v5448, 4294901760
      %6102 = vmatpush2.msra.mxu0 %v6101
      %6103 = vmatprep.subr.mxu0 0.0
      %v6104 = vand.u32 %v5447, 4294901760
      %6105 = vmatpush2.msra.mxu0 %v6104
      %6106 = vmatprep.subr.mxu0 0.0
      %v6107 = vand.u32 %v5446, 4294901760
      %6108 = vmatpush2.msra.mxu0 %v6107
      %6109 = vmatprep.subr.mxu0 0.0
      %v6110 = vand.u32 %v5445, 4294901760
      %6111 = vmatpush2.msra.mxu0 %v6110
      %6112 = vmatprep.subr.mxu0 0.0
      %v6113 = vand.u32 %v5444, 4294901760
      %6114 = vmatpush2.msra.mxu0 %v6113
      %6115 = vmatprep.subr.mxu0 0.0
      %v6116 = vand.u32 %v5443, 4294901760
      %6117 = vmatpush2.msra.mxu0 %v6116
      %6118 = vmatprep.subr.mxu0 0.0
      %v6119 = vand.u32 %v5442, 4294901760
      %6120 = vmatpush2.msra.mxu0 %v6119
      %6121 = vmatprep.subr.mxu0 0.0
      %v6122 = vand.u32 %v5441, 4294901760
      %6123 = vmatpush2.msra.mxu0 %v6122
      %6124 = vmatprep.subr.mxu0 0.0
      %v6125 = vand.u32 %v5440, 4294901760
      %6126 = vmatpush2.msra.mxu0 %v6125
      %v6127 = vand.u32 %v5417, 4294901760
      %v6128 = vsub.f32 %v5417, %v6127
      %v6129 = vand.u32 %v6128, 4294901760
      %6130 = vmatprep.mubr.f32.mxu0 %v6129
      %v6131 = vand.u32 %v5416, 4294901760
      %v6132 = vsub.f32 %v5416, %v6131
      %v6133 = vand.u32 %v6132, 4294901760
      %6134 = vmatmul.mubr.f32.gmra.mxu0 %v6133
      %v6135 = vpop.f32.mrf.mxu0
      %v6136 = vadd.f32 %v6001, %v6135
      %v6137 = vpop.f32.mrf.mxu0
      %v6138 = vand.u32 %v5419, 4294901760
      %v6139 = vsub.f32 %v5419, %v6138
      %v6140 = vand.u32 %v6139, 4294901760
      %6141 = vmatprep.mubr.f32.mxu0 %v6140
      %v6142 = vand.u32 %v5418, 4294901760
      %v6143 = vsub.f32 %v5418, %v6142
      %v6144 = vand.u32 %v6143, 4294901760
      %6145 = vmatmul.mubr.f32.gmra.mxu0 %v6144
      %v6146 = vpop.f32.mrf.mxu0
      %v6147 = vadd.f32 %v6010, %v6146
      %v6148 = vpop.f32.mrf.mxu0
      %v6149 = vand.u32 %v5421, 4294901760
      %v6150 = vsub.f32 %v5421, %v6149
      %v6151 = vand.u32 %v6150, 4294901760
      %6152 = vmatprep.mubr.f32.mxu0 %v6151
      %v6153 = vand.u32 %v5420, 4294901760
      %v6154 = vsub.f32 %v5420, %v6153
      %v6155 = vand.u32 %v6154, 4294901760
      %6156 = vmatmul.mubr.f32.gmra.mxu0 %v6155
      %v6157 = vpop.f32.mrf.mxu0
      %v6158 = vadd.f32 %v6019, %v6157
      %v6159 = vpop.f32.mrf.mxu0
      %v6160 = vand.u32 %v5423, 4294901760
      %v6161 = vsub.f32 %v5423, %v6160
      %v6162 = vand.u32 %v6161, 4294901760
      %6163 = vmatprep.mubr.f32.mxu0 %v6162
      %v6164 = vand.u32 %v5422, 4294901760
      %v6165 = vsub.f32 %v5422, %v6164
      %v6166 = vand.u32 %v6165, 4294901760
      %6167 = vmatmul.mubr.f32.gmra.mxu0 %v6166
      %v6168 = vpop.f32.mrf.mxu0
      %v6169 = vadd.f32 %v6028, %v6168
      %v6170 = vpop.f32.mrf.mxu0
      %6171 = vdwg.mxu0
      %6172 = vmatprep.subr.mxu0 0.0
      %v6173 = vand.u32 %v5439, 4294901760
      %v6174 = vsub.f32 %v5439, %v6173
      %v6175 = vand.u32 %v6174, 4294901760
      %6176 = vmatpush1.msra.mxu0 %v6175
      %6177 = vmatprep.subr.mxu0 0.0
      %v6178 = vand.u32 %v5438, 4294901760
      %v6179 = vsub.f32 %v5438, %v6178
      %v6180 = vand.u32 %v6179, 4294901760
      %6181 = vmatpush1.msra.mxu0 %v6180
      %6182 = vmatprep.subr.mxu0 0.0
      %v6183 = vand.u32 %v5437, 4294901760
      %v6184 = vsub.f32 %v5437, %v6183
      %v6185 = vand.u32 %v6184, 4294901760
      %6186 = vmatpush1.msra.mxu0 %v6185
      %6187 = vmatprep.subr.mxu0 0.0
      %v6188 = vand.u32 %v5436, 4294901760
      %v6189 = vsub.f32 %v5436, %v6188
      %v6190 = vand.u32 %v6189, 4294901760
      %6191 = vmatpush1.msra.mxu0 %v6190
      %6192 = vmatprep.subr.mxu0 0.0
      %v6193 = vand.u32 %v5435, 4294901760
      %v6194 = vsub.f32 %v5435, %v6193
      %v6195 = vand.u32 %v6194, 4294901760
      %6196 = vmatpush1.msra.mxu0 %v6195
      %6197 = vmatprep.subr.mxu0 0.0
      %v6198 = vand.u32 %v5434, 4294901760
      %v6199 = vsub.f32 %v5434, %v6198
      %v6200 = vand.u32 %v6199, 4294901760
      %6201 = vmatpush1.msra.mxu0 %v6200
      %6202 = vmatprep.subr.mxu0 0.0
      %v6203 = vand.u32 %v5433, 4294901760
      %v6204 = vsub.f32 %v5433, %v6203
      %v6205 = vand.u32 %v6204, 4294901760
      %6206 = vmatpush1.msra.mxu0 %v6205
      %6207 = vmatprep.subr.mxu0 0.0
      %v6208 = vand.u32 %v5432, 4294901760
      %v6209 = vsub.f32 %v5432, %v6208
      %v6210 = vand.u32 %v6209, 4294901760
      %6211 = vmatpush1.msra.mxu0 %v6210
      %6212 = vmatprep.subr.mxu0 0.0
      %v6213 = vand.u32 %v5431, 4294901760
      %v6214 = vsub.f32 %v5431, %v6213
      %v6215 = vand.u32 %v6214, 4294901760
      %6216 = vmatpush1.msra.mxu0 %v6215
      %6217 = vmatprep.subr.mxu0 0.0
      %v6218 = vand.u32 %v5430, 4294901760
      %v6219 = vsub.f32 %v5430, %v6218
      %v6220 = vand.u32 %v6219, 4294901760
      %6221 = vmatpush1.msra.mxu0 %v6220
      %6222 = vmatprep.subr.mxu0 0.0
      %v6223 = vand.u32 %v5429, 4294901760
      %v6224 = vsub.f32 %v5429, %v6223
      %v6225 = vand.u32 %v6224, 4294901760
      %6226 = vmatpush1.msra.mxu0 %v6225
      %6227 = vmatprep.subr.mxu0 0.0
      %v6228 = vand.u32 %v5428, 4294901760
      %v6229 = vsub.f32 %v5428, %v6228
      %v6230 = vand.u32 %v6229, 4294901760
      %6231 = vmatpush1.msra.mxu0 %v6230
      %6232 = vmatprep.subr.mxu0 0.0
      %v6233 = vand.u32 %v5427, 4294901760
      %v6234 = vsub.f32 %v5427, %v6233
      %v6235 = vand.u32 %v6234, 4294901760
      %6236 = vmatpush1.msra.mxu0 %v6235
      %6237 = vmatprep.subr.mxu0 0.0
      %v6238 = vand.u32 %v5426, 4294901760
      %v6239 = vsub.f32 %v5426, %v6238
      %v6240 = vand.u32 %v6239, 4294901760
      %6241 = vmatpush1.msra.mxu0 %v6240
      %6242 = vmatprep.subr.mxu0 0.0
      %v6243 = vand.u32 %v5425, 4294901760
      %v6244 = vsub.f32 %v5425, %v6243
      %v6245 = vand.u32 %v6244, 4294901760
      %6246 = vmatpush1.msra.mxu0 %v6245
      %6247 = vmatprep.subr.mxu0 0.0
      %v6248 = vand.u32 %v5424, 4294901760
      %v6249 = vsub.f32 %v5424, %v6248
      %v6250 = vand.u32 %v6249, 4294901760
      %6251 = vmatpush1.msra.mxu0 %v6250
      %6252 = vmatprep.subr.mxu0 0.0
      %v6253 = vand.u32 %v5455, 4294901760
      %v6254 = vsub.f32 %v5455, %v6253
      %v6255 = vand.u32 %v6254, 4294901760
      %6256 = vmatpush2.msra.mxu0 %v6255
      %6257 = vmatprep.subr.mxu0 0.0
      %v6258 = vand.u32 %v5454, 4294901760
      %v6259 = vsub.f32 %v5454, %v6258
      %v6260 = vand.u32 %v6259, 4294901760
      %6261 = vmatpush2.msra.mxu0 %v6260
      %6262 = vmatprep.subr.mxu0 0.0
      %v6263 = vand.u32 %v5453, 4294901760
      %v6264 = vsub.f32 %v5453, %v6263
      %v6265 = vand.u32 %v6264, 4294901760
      %6266 = vmatpush2.msra.mxu0 %v6265
      %6267 = vmatprep.subr.mxu0 0.0
      %v6268 = vand.u32 %v5452, 4294901760
      %v6269 = vsub.f32 %v5452, %v6268
      %v6270 = vand.u32 %v6269, 4294901760
      %6271 = vmatpush2.msra.mxu0 %v6270
      %6272 = vmatprep.subr.mxu0 0.0
      %v6273 = vand.u32 %v5451, 4294901760
      %v6274 = vsub.f32 %v5451, %v6273
      %v6275 = vand.u32 %v6274, 4294901760
      %6276 = vmatpush2.msra.mxu0 %v6275
      %6277 = vmatprep.subr.mxu0 0.0
      %v6278 = vand.u32 %v5450, 4294901760
      %v6279 = vsub.f32 %v5450, %v6278
      %v6280 = vand.u32 %v6279, 4294901760
      %6281 = vmatpush2.msra.mxu0 %v6280
      %6282 = vmatprep.subr.mxu0 0.0
      %v6283 = vand.u32 %v5449, 4294901760
      %v6284 = vsub.f32 %v5449, %v6283
      %v6285 = vand.u32 %v6284, 4294901760
      %6286 = vmatpush2.msra.mxu0 %v6285
      %6287 = vmatprep.subr.mxu0 0.0
      %v6288 = vand.u32 %v5448, 4294901760
      %v6289 = vsub.f32 %v5448, %v6288
      %v6290 = vand.u32 %v6289, 4294901760
      %6291 = vmatpush2.msra.mxu0 %v6290
      %6292 = vmatprep.subr.mxu0 0.0
      %v6293 = vand.u32 %v5447, 4294901760
      %v6294 = vsub.f32 %v5447, %v6293
      %v6295 = vand.u32 %v6294, 4294901760
      %6296 = vmatpush2.msra.mxu0 %v6295
      %6297 = vmatprep.subr.mxu0 0.0
      %v6298 = vand.u32 %v5446, 4294901760
      %v6299 = vsub.f32 %v5446, %v6298
      %v6300 = vand.u32 %v6299, 4294901760
      %6301 = vmatpush2.msra.mxu0 %v6300
      %6302 = vmatprep.subr.mxu0 0.0
      %v6303 = vand.u32 %v5445, 4294901760
      %v6304 = vsub.f32 %v5445, %v6303
      %v6305 = vand.u32 %v6304, 4294901760
      %6306 = vmatpush2.msra.mxu0 %v6305
      %6307 = vmatprep.subr.mxu0 0.0
      %v6308 = vand.u32 %v5444, 4294901760
      %v6309 = vsub.f32 %v5444, %v6308
      %v6310 = vand.u32 %v6309, 4294901760
      %6311 = vmatpush2.msra.mxu0 %v6310
      %6312 = vmatprep.subr.mxu0 0.0
      %v6313 = vand.u32 %v5443, 4294901760
      %v6314 = vsub.f32 %v5443, %v6313
      %v6315 = vand.u32 %v6314, 4294901760
      %6316 = vmatpush2.msra.mxu0 %v6315
      %6317 = vmatprep.subr.mxu0 0.0
      %v6318 = vand.u32 %v5442, 4294901760
      %v6319 = vsub.f32 %v5442, %v6318
      %v6320 = vand.u32 %v6319, 4294901760
      %6321 = vmatpush2.msra.mxu0 %v6320
      %6322 = vmatprep.subr.mxu0 0.0
      %v6323 = vand.u32 %v5441, 4294901760
      %v6324 = vsub.f32 %v5441, %v6323
      %v6325 = vand.u32 %v6324, 4294901760
      %6326 = vmatpush2.msra.mxu0 %v6325
      %6327 = vmatprep.subr.mxu0 0.0
      %v6328 = vand.u32 %v5440, 4294901760
      %v6329 = vsub.f32 %v5440, %v6328
      %v6330 = vand.u32 %v6329, 4294901760
      %6331 = vmatpush2.msra.mxu0 %v6330
      %v6332 = vand.u32 %v5417, 4294901760
      %6333 = vmatprep.mubr.f32.mxu0 %v6332
      %v6334 = vand.u32 %v5416, 4294901760
      %6335 = vmatmul.mubr.f32.gmra.mxu0 %v6334
      %v6336 = vpop.f32.mrf.mxu0
      %v6337 = vadd.f32 %v6136, %v6336
      %v6338 = vpop.f32.mrf.mxu0
      %v6339 = vand.u32 %v5419, 4294901760
      %6340 = vmatprep.mubr.f32.mxu0 %v6339
      %v6341 = vand.u32 %v5418, 4294901760
      %6342 = vmatmul.mubr.f32.gmra.mxu0 %v6341
      %v6343 = vpop.f32.mrf.mxu0
      %v6344 = vadd.f32 %v6147, %v6343
      %v6345 = vpop.f32.mrf.mxu0
      %v6346 = vand.u32 %v5421, 4294901760
      %6347 = vmatprep.mubr.f32.mxu0 %v6346
      %v6348 = vand.u32 %v5420, 4294901760
      %6349 = vmatmul.mubr.f32.gmra.mxu0 %v6348
      %v6350 = vpop.f32.mrf.mxu0
      %v6351 = vadd.f32 %v6158, %v6350
      %v6352 = vpop.f32.mrf.mxu0
      %v6353 = vand.u32 %v5423, 4294901760
      %6354 = vmatprep.mubr.f32.mxu0 %v6353
      %v6355 = vand.u32 %v5422, 4294901760
      %6356 = vmatmul.mubr.f32.gmra.mxu0 %v6355
      %v6357 = vpop.f32.mrf.mxu0
      %v6358 = vadd.f32 %v6169, %v6357
      %v6359 = vpop.f32.mrf.mxu0
      %6360 = vdwg.mxu0
      %6361 = vmatprep.subr.mxu0 0.0
      %v6362 = vand.u32 %v5439, 4294901760
      %6363 = vmatpush1.msra.mxu0 %v6362
      %6364 = vmatprep.subr.mxu0 0.0
      %v6365 = vand.u32 %v5438, 4294901760
      %6366 = vmatpush1.msra.mxu0 %v6365
      %6367 = vmatprep.subr.mxu0 0.0
      %v6368 = vand.u32 %v5437, 4294901760
      %6369 = vmatpush1.msra.mxu0 %v6368
      %6370 = vmatprep.subr.mxu0 0.0
      %v6371 = vand.u32 %v5436, 4294901760
      %6372 = vmatpush1.msra.mxu0 %v6371
      %6373 = vmatprep.subr.mxu0 0.0
      %v6374 = vand.u32 %v5435, 4294901760
      %6375 = vmatpush1.msra.mxu0 %v6374
      %6376 = vmatprep.subr.mxu0 0.0
      %v6377 = vand.u32 %v5434, 4294901760
      %6378 = vmatpush1.msra.mxu0 %v6377
      %6379 = vmatprep.subr.mxu0 0.0
      %v6380 = vand.u32 %v5433, 4294901760
      %6381 = vmatpush1.msra.mxu0 %v6380
      %6382 = vmatprep.subr.mxu0 0.0
      %v6383 = vand.u32 %v5432, 4294901760
      %6384 = vmatpush1.msra.mxu0 %v6383
      %6385 = vmatprep.subr.mxu0 0.0
      %v6386 = vand.u32 %v5431, 4294901760
      %6387 = vmatpush1.msra.mxu0 %v6386
      %6388 = vmatprep.subr.mxu0 0.0
      %v6389 = vand.u32 %v5430, 4294901760
      %6390 = vmatpush1.msra.mxu0 %v6389
      %6391 = vmatprep.subr.mxu0 0.0
      %v6392 = vand.u32 %v5429, 4294901760
      %6393 = vmatpush1.msra.mxu0 %v6392
      %6394 = vmatprep.subr.mxu0 0.0
      %v6395 = vand.u32 %v5428, 4294901760
      %6396 = vmatpush1.msra.mxu0 %v6395
      %6397 = vmatprep.subr.mxu0 0.0
      %v6398 = vand.u32 %v5427, 4294901760
      %6399 = vmatpush1.msra.mxu0 %v6398
      %6400 = vmatprep.subr.mxu0 0.0
      %v6401 = vand.u32 %v5426, 4294901760
      %6402 = vmatpush1.msra.mxu0 %v6401
      %6403 = vmatprep.subr.mxu0 0.0
      %v6404 = vand.u32 %v5425, 4294901760
      %6405 = vmatpush1.msra.mxu0 %v6404
      %6406 = vmatprep.subr.mxu0 0.0
      %v6407 = vand.u32 %v5424, 4294901760
      %6408 = vmatpush1.msra.mxu0 %v6407
      %6409 = vmatprep.subr.mxu0 0.0
      %v6410 = vand.u32 %v5455, 4294901760
      %6411 = vmatpush2.msra.mxu0 %v6410
      %6412 = vmatprep.subr.mxu0 0.0
      %v6413 = vand.u32 %v5454, 4294901760
      %6414 = vmatpush2.msra.mxu0 %v6413
      %6415 = vmatprep.subr.mxu0 0.0
      %v6416 = vand.u32 %v5453, 4294901760
      %6417 = vmatpush2.msra.mxu0 %v6416
      %6418 = vmatprep.subr.mxu0 0.0
      %v6419 = vand.u32 %v5452, 4294901760
      %6420 = vmatpush2.msra.mxu0 %v6419
      %6421 = vmatprep.subr.mxu0 0.0
      %v6422 = vand.u32 %v5451, 4294901760
      %6423 = vmatpush2.msra.mxu0 %v6422
      %6424 = vmatprep.subr.mxu0 0.0
      %v6425 = vand.u32 %v5450, 4294901760
      %6426 = vmatpush2.msra.mxu0 %v6425
      %6427 = vmatprep.subr.mxu0 0.0
      %v6428 = vand.u32 %v5449, 4294901760
      %6429 = vmatpush2.msra.mxu0 %v6428
      %6430 = vmatprep.subr.mxu0 0.0
      %v6431 = vand.u32 %v5448, 4294901760
      %6432 = vmatpush2.msra.mxu0 %v6431
      %6433 = vmatprep.subr.mxu0 0.0
      %v6434 = vand.u32 %v5447, 4294901760
      %6435 = vmatpush2.msra.mxu0 %v6434
      %6436 = vmatprep.subr.mxu0 0.0
      %v6437 = vand.u32 %v5446, 4294901760
      %6438 = vmatpush2.msra.mxu0 %v6437
      %6439 = vmatprep.subr.mxu0 0.0
      %v6440 = vand.u32 %v5445, 4294901760
      %6441 = vmatpush2.msra.mxu0 %v6440
      %6442 = vmatprep.subr.mxu0 0.0
      %v6443 = vand.u32 %v5444, 4294901760
      %6444 = vmatpush2.msra.mxu0 %v6443
      %6445 = vmatprep.subr.mxu0 0.0
      %v6446 = vand.u32 %v5443, 4294901760
      %6447 = vmatpush2.msra.mxu0 %v6446
      %6448 = vmatprep.subr.mxu0 0.0
      %v6449 = vand.u32 %v5442, 4294901760
      %6450 = vmatpush2.msra.mxu0 %v6449
      %6451 = vmatprep.subr.mxu0 0.0
      %v6452 = vand.u32 %v5441, 4294901760
      %6453 = vmatpush2.msra.mxu0 %v6452
      %6454 = vmatprep.subr.mxu0 0.0
      %v6455 = vand.u32 %v5440, 4294901760
      %6456 = vmatpush2.msra.mxu0 %v6455
      %v6457 = vand.u32 %v5417, 4294901760
      %6458 = vmatprep.mubr.f32.mxu0 %v6457
      %v6459 = vand.u32 %v5416, 4294901760
      %6460 = vmatmul.mubr.f32.gmra.mxu0 %v6459
      %v6461 = vpop.f32.mrf.mxu0
      %v6462 = vadd.f32 %v6337, %v6461
      %v6463 = vpop.f32.mrf.mxu0
      %v6464 = vand.u32 %v5419, 4294901760
      %6465 = vmatprep.mubr.f32.mxu0 %v6464
      %v6466 = vand.u32 %v5418, 4294901760
      %6467 = vmatmul.mubr.f32.gmra.mxu0 %v6466
      %v6468 = vpop.f32.mrf.mxu0
      %v6469 = vadd.f32 %v6344, %v6468
      %v6470 = vpop.f32.mrf.mxu0
      %v6471 = vand.u32 %v5421, 4294901760
      %6472 = vmatprep.mubr.f32.mxu0 %v6471
      %v6473 = vand.u32 %v5420, 4294901760
      %6474 = vmatmul.mubr.f32.gmra.mxu0 %v6473
      %v6475 = vpop.f32.mrf.mxu0
      %v6476 = vadd.f32 %v6351, %v6475
      %v6477 = vpop.f32.mrf.mxu0
      %v6478 = vand.u32 %v5423, 4294901760
      %6479 = vmatprep.mubr.f32.mxu0 %v6478
      %v6480 = vand.u32 %v5422, 4294901760
      %6481 = vmatmul.mubr.f32.gmra.mxu0 %v6480
      %v6482 = vpop.f32.mrf.mxu0
      %v6483 = vadd.f32 %v6358, %v6482
      %v6484 = vpop.f32.mrf.mxu0
      %6485 = vdwg.mxu0
      %6486 = vst.msk [vmem:[%s226] sm:$0xff] %vm236, %v6462
      %6487 = vst.msk [vmem:[%s226 + $0x8] sm:$0xff] %vm236, %v6469
      %6488 = vst.msk [vmem:[%s226 + $0x10] sm:$0xff] %vm236, %v6476
      %6489 = vst.msk [vmem:[%s226 + $0x18] sm:$0xff] %vm236, %v6483
      %s6490 = smul.u32 4, %s16
      %p6491 = scmp.lt.s32.totalorder %s6490, 7
      %s6492 = scalar_select %p6491, %s6490, 7
      %s6493 = smul.addr %s6492, 8
      %s6494 = scalar_lea.vmem %s5, %s6493
      // Predicated region
      $region41: #{tpu_custom_call.1} parent=39 // pred_check
        %p6495 = pneg %p144
      $region42: #{tpu_custom_call.1} parent=39 // pred_check_branch
        %6497 = sbr.rel (%p6495) target = $region44
      $region43: #{tpu_custom_call.1} parent=39 // pred_region
        %s6498 = smul.u32 4, %s16
      $region44: #{tpu_custom_call.1} parent=39 // pred_fallthru
        _
    $region40: #{tpu_custom_call.1} parent=5 // pred_fallthru
      _
    %p6499 = scmp.le.s32.totalorder 2, %s11
    // Predicated region
    $region45: #{tpu_custom_call.1} parent=5 // pred_check
      %p6500 = pneg %p6499
    $region46: #{tpu_custom_call.1} parent=5 // pred_check_branch
      %6502 = sbr.rel (%p6500) target = $region48
    $region47: #{tpu_custom_call.1} parent=5 // pred_region
      %s6503 = ssub.s32 %s11, 2
      // Predicated region
      $region49: #{tpu_custom_call.1} parent=47 // pred_check
        %p6504 = pneg %p150
      $region50: #{tpu_custom_call.1} parent=47 // pred_check_branch
        %6506 = sbr.rel (%p6504) target = $region52
      $region51: #{tpu_custom_call.1} parent=47 // pred_region
        %s6507 = smul.u32 4, %s17
        %p6508 = scmp.lt.s32.totalorder %s6507, 7
        %s6509 = scalar_select %p6508, %s6507, 7
        %s6510 = smul.addr %s6509, 8
        %s6511 = scalar_lea.vmem %s5, %s6510
      $region52: #{tpu_custom_call.1} parent=47 // pred_fallthru
        _
    $region48: #{tpu_custom_call.1} parent=5 // pred_fallthru
      _
  $region6: #{tpu_custom_call.1} parent=0 // loop_footer
    %s15 = sadd.s32 1, %s11
  $region7: #{tpu_custom_call.1} parent=0 // loop_footer_branch
    %10 = sbr.rel target = $region3
  $region8: #{tpu_custom_call.1} parent=0 // loop_exit
    _

</llo_original>
